<compile_context>
chip_gen: v7x
topology: tpu7x:2x2x1
jax: 0.10.0
libtpu: 0.0.40
codegen_flags: <defaults>
</compile_context>

<pallas_src>
import jax
import jax.numpy as jnp
from jax import lax
from jax.experimental import pallas as pl
from jax.experimental.pallas import tpu as pltpu

SQRT2 = 1.4142135623730951


def _erf_approx(x):
    # Abramowitz & Stegun 7.1.26, |err| <= 1.5e-7.  Uses only exp / divide /
    # where / abs, all of which lower on Mosaic and run in interpret mode.
    a1, a2, a3, a4, a5 = (0.254829592, -0.284496736, 1.421413741,
                          -1.453152027, 1.061405429)
    p = 0.3275911
    s = jnp.where(x >= 0.0, 1.0, -1.0)
    ax = jnp.abs(x)
    t = 1.0 / (1.0 + p * ax)
    poly = ((((a5 * t + a4) * t + a3) * t + a2) * t + a1) * t
    return s * (1.0 - poly * jnp.exp(-ax * ax))


def _gelu_exact(x):
    return 0.5 * x * (1.0 + _erf_approx(x / SQRT2))


# --------------------------------- wrapper -----------------------------------

def convmixer_forward(x_nchw, params, patch=4, eps=1e-5):
    # NCHW (PyTorch) -> NHWC once, in the wrapper (channels on lanes).
    x = jnp.transpose(x_nchw, (0, 2, 3, 1)).astype(jnp.float32)
    N, H, W, Cin = x.shape
    p = patch
    assert H % p == 0 and W % p == 0, "H, W must be divisible by patch"
    Ho, Wo = H // p, W // p
    Q = Ho * Wo
    c4 = params['w1'].shape[-1]
    c2 = params['w2'].shape[-1]
    fd = params['w3'].shape[-1]
    ncls = params['wh'].shape[-1]

    # Flat-grid geometry: the working grid is the 2-pixel-padded image, row
    # pitch Wp, flattened row-major.  conv1 output for image pixel (h, w) lives
    # at flat index (h+1)*Wp + (w+1); conv2 output for (h2, w2) at h2*Wp + w2.
    Wp = W + 4
    F1 = (H + 3) * Wp          # rows on which conv1 is evaluated
    F2 = H * Wp                # rows on which conv2 is evaluated
    Fin = (H + 6) * Wp         # zero-padded flat input rows (covers all taps)

    # ---------------- host-side (tiny, one-time) packing ---------------------
    xp = jnp.pad(x, ((0, 0), (2, (Fin // Wp) - 2 - H), (2, 2), (0, 0)))
    x_flat = xp.reshape(N, Fin, Cin)

    # im2col weight layouts: rows ordered (kh, kw, cin) to match the in-kernel
    # tap concatenation order.
    w1m = params['w1'].reshape(9 * Cin, c4).astype(jnp.bfloat16)
    w2m = params['w2'].reshape(9 * c4, c2).astype(jnp.bfloat16)
    w3m = params['w3'].reshape(p * p * c2, fd).astype(jnp.bfloat16)

    scale = params['bn_gamma'] / jnp.sqrt(params['bn_var'] + eps)   # eval-mode BN
    shift = params['bn_beta'] - params['bn_mean'] * scale
    row = lambda v: v.reshape(1, -1).astype(jnp.float32)
    b1r, b2r, b3r = row(params['b1']), row(params['b2']), row(params['b3'])
    bns, bnb, bhr = row(scale), row(shift), row(params['bh'])
    whf = params['wh'].astype(jnp.float32)

    # mask1: conv1 is only valid at padded positions i in [1..H], j in [1..W];
    # zeroing everything else also supplies conv2's zero "SAME" padding ring.
    r1 = jnp.arange(F1)
    i1, j1 = r1 // Wp, r1 % Wp
    mask1 = (((i1 >= 1) & (i1 <= H) & (j1 >= 1) & (j1 <= W))
             .astype(jnp.float32).reshape(F1, 1))

    # maskE: scatter each valid conv2 row into its (ph, pw) lane block so the
    # patch-embed conv becomes one (F2, p*p*c2) x (p*p*c2, fd) matmul.
    r2 = jnp.arange(F2)
    h2, w2 = r2 // Wp, r2 % Wp
    valid2 = w2 < W
    kidx = (h2 % p) * p + (w2 % p)
    cols = jnp.arange(p * p * c2)
    maskE = (valid2[:, None] & (cols[None, :] // c2 == kidx[:, None])
             ).astype(jnp.float32)                                   # (F2, p*p*c2)

    # tpool: 0/1 matrix summing the p*p pixels that belong to each patch.
    qidx = (h2 // p) * Wo + (w2 // p)
    tpool = (valid2[None, :] & (jnp.arange(Q)[:, None] == qidx[None, :])
             ).astype(jnp.float32)                                   # (Q, F2)

    tap_offsets = [kh * Wp + kw for kh in range(3) for kw in range(3)]

    # ------------------------------ fused kernel -----------------------------
    def kernel(x_ref, w1_ref, b1_ref, mask1_ref, w2_ref, b2_ref,
               maskE_ref, w3_ref, b3_ref, tpool_ref, bns_ref, bnb_ref,
               wh_ref, bh_ref, out_ref):
        xf = x_ref[...][0]                                       # (Fin, Cin) f32

        # conv1 (3x3, s1, p1): one im2col matmul on the flat grid.
        cols1 = jnp.concatenate([xf[o:o + F1, :] for o in tap_offsets],
                                axis=1)                          # (F1, 9*Cin)
        y1 = jnp.dot(cols1.astype(jnp.bfloat16), w1_ref[...],
                     preferred_element_type=jnp.float32) + b1_ref[...]
        y1 = y1 * mask1_ref[...]          # zero ring == conv2's zero padding

        # conv2 (3x3, s1, p1): one im2col matmul (K = 9*c4).
        cols2 = jnp.concatenate([y1[o:o + F2, :] for o in tap_offsets],
                                axis=1)                          # (F2, 9*c4)
        y2 = jnp.dot(cols2.astype(jnp.bfloat16), w2_ref[...],
                     preferred_element_type=jnp.float32) + b2_ref[...]

        # patch-embed conv (p x p, stride p), all on the MXU:
        #   scatter-into-lane-blocks (maskE) -> one matmul with the flattened
        #   patch weight -> 0/1 pooling matmul over the p*p pixels per patch.
        y2e = jnp.concatenate([y2] * (p * p), axis=1) * maskE_ref[...]
        z = jnp.dot(y2e.astype(jnp.bfloat16), w3_ref[...],
                    preferred_element_type=jnp.float32)          # (F2, fd)
        feats = jnp.dot(tpool_ref[...], z,
                        preferred_element_type=jnp.float32) + b3_ref[...]  # (Q, fd)

        feats = _gelu_exact(feats)
        feats = feats * bns_ref[...] + bnb_ref[...]              # eval-mode BN

        # TODO(synk): Level{1,2,3,4}Waveblock residual layers are not defined in
        # the provided source, so the `x = attn(x) + x` loop is omitted (depth=0).

        # global average pool + classifier head (fused epilogue).
        pooled = jnp.mean(feats, axis=0, keepdims=True)          # (1, fd)
        logits = jnp.dot(pooled, wh_ref[...],
                         preferred_element_type=jnp.float32) + bh_ref[...]
        out_ref[...] = logits.reshape(1, 1, ncls)

    # ------------------------------- specs ------------------------------------
    def resident(a):              # weights/masks: fetched once, constant index
        zeros = (0,) * a.ndim
        return pl.BlockSpec(a.shape, lambda i, z=zeros: z)

    in_specs = [
        pl.BlockSpec((1, Fin, Cin), lambda i: (i, 0, 0)),
        resident(w1m), resident(b1r), resident(mask1),
        resident(w2m), resident(b2r),
        resident(maskE), resident(w3m), resident(b3r), resident(tpool),
        resident(bns), resident(bnb), resident(whf), resident(bhr),
    ]

    flops = int(2 * N * (F1 * 9 * Cin * c4 + F2 * 9 * c4 * c2
                         + F2 * p * p * c2 * fd + Q * F2 * fd + fd * ncls))
    transc = int(N * Q * fd)
    bytes_acc = int(x_flat.size * 4
                    + (w1m.size + w2m.size + w3m.size) * 2
                    + (mask1.size + maskE.size + tpool.size) * 4
                    + (b1r.size + b2r.size + b3r.size + bns.size + bnb.size
                       + whf.size + bhr.size) * 4
                    + N * ncls * 4)

    out = pl.pallas_call(
        kernel,
        out_shape=jax.ShapeDtypeStruct((N, 1, ncls), jnp.float32),
        grid_spec=pltpu.PrefetchScalarGridSpec(
            num_scalar_prefetch=0,
            grid=(N,),
            in_specs=in_specs,
            out_specs=pl.BlockSpec((1, 1, ncls), lambda i: (i, 0, 0)),
        ),
        compiler_params=pltpu.CompilerParams(
            dimension_semantics=("parallel",),          # batch across cores
            vmem_limit_bytes=32 * 1024 * 1024),
        cost_estimate=pl.CostEstimate(flops=flops, transcendentals=transc,
                                      bytes_accessed=bytes_acc),
    )(x_flat, w1m, b1r, mask1, w2m, b2r, maskE, w3m, b3r, tpool,
      bns, bnb, whf, bhr)
    return out.reshape(N, ncls)


# --------------------------- params / reference ------------------------------

def init_params(key, final_dim=16, patch=4, in_chans=3, num_classes=10):
    keys = jax.random.split(key, 12)
    c4, c2 = final_dim // 4, final_dim // 2

    def u(k, shape, fan_in):                     # PyTorch-style uniform init
        bound = 1.0 / float(fan_in) ** 0.5
        return jax.random.uniform(k, shape, jnp.float32, -bound, bound)

    return dict(
        w1=u(keys[0], (3, 3, in_chans, c4), 9 * in_chans),
        b1=u(keys[1], (c4,), 9 * in_chans),
        w2=u(keys[2], (3, 3, c4, c2), 9 * c4),
        b2=u(keys[3], (c2,), 9 * c4),
        w3=u(keys[4], (patch, patch, c2, final_dim), patch * patch * c2),
        b3=u(keys[5], (final_dim,), patch * patch * c2),
        bn_gamma=1.0 + 0.1 * jax.random.normal(keys[6], (final_dim,), jnp.float32),
        bn_beta=0.1 * jax.random.normal(keys[7], (final_dim,), jnp.float32),
        bn_mean=0.1 * jax.random.normal(keys[8], (final_dim,), jnp.float32),
        bn_var=1.0 + 0.1 * jnp.abs(
            jax.random.normal(keys[9], (final_dim,), jnp.float32)),
        wh=u(keys[10], (final_dim, num_classes), final_dim),
        bh=u(keys[11], (num_classes,), final_dim),
    )


def ref_forward(x_nchw, params, patch=4, eps=1e-5):
    dn = ('NHWC', 'HWIO', 'NHWC')
    hp = lax.Precision.HIGHEST
    x = jnp.transpose(x_nchw, (0, 2, 3, 1)).astype(jnp.float32)
    x = lax.conv_general_dilated(x, params['w1'], (1, 1), 'SAME',
                                 dimension_numbers=dn, precision=hp) + params['b1']
    x = lax.conv_general_dilated(x, params['w2'], (1, 1), 'SAME',
                                 dimension_numbers=dn, precision=hp) + params['b2']
    x = lax.conv_general_dilated(x, params['w3'], (patch, patch), 'VALID',
                                 dimension_numbers=dn, precision=hp) + params['b3']
    x = 0.5 * x * (1.0 + lax.erf(x / SQRT2))          # exact GELU
    scale = params['bn_gamma'] / jnp.sqrt(params['bn_var'] + eps)
    shift = params['bn_beta'] - params['bn_mean'] * scale
    x = x * scale + shift
    pooled = x.mean(axis=(1, 2))
    return jnp.dot(pooled, params['wh'], precision=hp) + params['bh']


if __name__ == "__main__":
    key = jax.random.PRNGKey(0)
    kx, kp = jax.random.split(key)
    # Module-consistent small shapes: batch=2, in_chans=3, 16x16 image,
    # final_dim=16, patch_size=4, num_classes=10.
    x = jax.random.normal(kx, (2, 3, 16, 16), jnp.float32)        # NCHW
    params = init_params(kp, final_dim=16, patch=4, in_chans=3, num_classes=10)

    out = convmixer_forward(x, params, patch=4)
    out = jax.block_until_ready(out)

    ref = ref_forward(x, params, patch=4)
    assert out.shape == (2, 10), out.shape
    max_err = float(jnp.max(jnp.abs(out - ref)))
    assert jnp.allclose(out, ref, atol=2e-2, rtol=2e-2), f"max abs err {max_err}"
    print("KERNEL_OK")
</pallas_src>

<mosaic_0001>
module attributes {stable_mosaic.version = 11 : i64} {
  func.func @kernel(%arg0: i32, %arg1: memref<1x440x3xf32, #tpu.memory_space<vmem>>, %arg2: memref<27x4xbf16, #tpu.memory_space<vmem>>, %arg3: memref<1x4xf32, #tpu.memory_space<vmem>>, %arg4: memref<380x1xf32, #tpu.memory_space<vmem>>, %arg5: memref<36x8xbf16, #tpu.memory_space<vmem>>, %arg6: memref<1x8xf32, #tpu.memory_space<vmem>>, %arg7: memref<320x128xf32, #tpu.memory_space<vmem>>, %arg8: memref<128x16xbf16, #tpu.memory_space<vmem>>, %arg9: memref<1x16xf32, #tpu.memory_space<vmem>>, %arg10: memref<16x320xf32, #tpu.memory_space<vmem>>, %arg11: memref<1x16xf32, #tpu.memory_space<vmem>>, %arg12: memref<1x16xf32, #tpu.memory_space<vmem>>, %arg13: memref<16x10xf32, #tpu.memory_space<vmem>>, %arg14: memref<1x10xf32, #tpu.memory_space<vmem>>, %arg15: memref<1x1x10xf32, #tpu.memory_space<vmem>>) attributes {dimension_semantics = [#tpu.dimension_semantics<parallel>], iteration_bounds = array<i64: 2>, scalar_prefetch = 0 : i64, scratch_operands = 0 : i64, tpu.core_type = #tpu.core_type<tc>, window_params = [{transform_indices = @transform_0, window_bounds = array<i64: 1, 440, 3>}, {pipeline_mode = #tpu.pipeline_mode<synchronous>, transform_indices = @transform_1, window_bounds = array<i64: 27, 4>}, {pipeline_mode = #tpu.pipeline_mode<synchronous>, transform_indices = @transform_2, window_bounds = array<i64: 1, 4>}, {pipeline_mode = #tpu.pipeline_mode<synchronous>, transform_indices = @transform_3, window_bounds = array<i64: 380, 1>}, {pipeline_mode = #tpu.pipeline_mode<synchronous>, transform_indices = @transform_4, window_bounds = array<i64: 36, 8>}, {pipeline_mode = #tpu.pipeline_mode<synchronous>, transform_indices = @transform_5, window_bounds = array<i64: 1, 8>}, {pipeline_mode = #tpu.pipeline_mode<synchronous>, transform_indices = @transform_6, window_bounds = array<i64: 320, 128>}, {pipeline_mode = #tpu.pipeline_mode<synchronous>, transform_indices = @transform_7, window_bounds = array<i64: 128, 16>}, {pipeline_mode = #tpu.pipeline_mode<synchronous>, transform_indices = @transform_8, window_bounds = array<i64: 1, 16>}, {pipeline_mode = #tpu.pipeline_mode<synchronous>, transform_indices = @transform_9, window_bounds = array<i64: 16, 320>}, {pipeline_mode = #tpu.pipeline_mode<synchronous>, transform_indices = @transform_10, window_bounds = array<i64: 1, 16>}, {pipeline_mode = #tpu.pipeline_mode<synchronous>, transform_indices = @transform_11, window_bounds = array<i64: 1, 16>}, {pipeline_mode = #tpu.pipeline_mode<synchronous>, transform_indices = @transform_12, window_bounds = array<i64: 16, 10>}, {pipeline_mode = #tpu.pipeline_mode<synchronous>, transform_indices = @transform_13, window_bounds = array<i64: 1, 10>}, {transform_indices = @transform_14, window_bounds = array<i64: 1, 1, 10>}]} {
    %c0 = arith.constant 0 : index
    %c0_0 = arith.constant 0 : index
    %c0_1 = arith.constant 0 : index
    %0 = vector.load %arg1[%c0, %c0_0, %c0_1] : memref<1x440x3xf32, #tpu.memory_space<vmem>>, vector<1x440x3xf32>
    %1 = vector.shape_cast %0 : vector<1x440x3xf32> to vector<440x3xf32>
    %2 = vector.extract_strided_slice %1 {offsets = [0, 0], sizes = [380, 3], strides = [1, 1]} : vector<440x3xf32> to vector<380x3xf32>
    %3 = vector.extract_strided_slice %1 {offsets = [1, 0], sizes = [380, 3], strides = [1, 1]} : vector<440x3xf32> to vector<380x3xf32>
    %4 = vector.extract_strided_slice %1 {offsets = [2, 0], sizes = [380, 3], strides = [1, 1]} : vector<440x3xf32> to vector<380x3xf32>
    %5 = vector.extract_strided_slice %1 {offsets = [20, 0], sizes = [380, 3], strides = [1, 1]} : vector<440x3xf32> to vector<380x3xf32>
    %6 = vector.extract_strided_slice %1 {offsets = [21, 0], sizes = [380, 3], strides = [1, 1]} : vector<440x3xf32> to vector<380x3xf32>
    %7 = vector.extract_strided_slice %1 {offsets = [22, 0], sizes = [380, 3], strides = [1, 1]} : vector<440x3xf32> to vector<380x3xf32>
    %8 = vector.extract_strided_slice %1 {offsets = [40, 0], sizes = [380, 3], strides = [1, 1]} : vector<440x3xf32> to vector<380x3xf32>
    %9 = vector.extract_strided_slice %1 {offsets = [41, 0], sizes = [380, 3], strides = [1, 1]} : vector<440x3xf32> to vector<380x3xf32>
    %10 = vector.extract_strided_slice %1 {offsets = [42, 0], sizes = [380, 3], strides = [1, 1]} : vector<440x3xf32> to vector<380x3xf32>
    %11 = tpu.concatenate %2, %3, %4, %5, %6, %7, %8, %9, %10 in 1 : vector<380x3xf32>, vector<380x3xf32>, vector<380x3xf32>, vector<380x3xf32>, vector<380x3xf32>, vector<380x3xf32>, vector<380x3xf32>, vector<380x3xf32>, vector<380x3xf32> -> vector<380x27xf32>
    %12 = arith.truncf %11 : vector<380x27xf32> to vector<380x27xbf16>
    %c0_2 = arith.constant 0 : index
    %c0_3 = arith.constant 0 : index
    %13 = vector.load %arg2[%c0_2, %c0_3] : memref<27x4xbf16, #tpu.memory_space<vmem>>, vector<27x4xbf16>
    %cst = arith.constant dense<0.000000e+00> : vector<380x4xf32>
    %14 = tpu.matmul %12, %13, %cst {dimension_numbers = #tpu.dot_dimension_numbers<[1], [0], [0], [1], [0, 0, 1, 1], [], []>} : vector<380x27xbf16>, vector<27x4xbf16>, vector<380x4xf32> -> vector<380x4xf32>
    %c0_4 = arith.constant 0 : index
    %c0_5 = arith.constant 0 : index
    %15 = vector.load %arg3[%c0_4, %c0_5] : memref<1x4xf32, #tpu.memory_space<vmem>>, vector<1x4xf32>
    %16 = vector.broadcast %15 : vector<1x4xf32> to vector<380x4xf32>
    %17 = arith.addf %14, %16 : vector<380x4xf32>
    %c0_6 = arith.constant 0 : index
    %c0_7 = arith.constant 0 : index
    %18 = vector.load %arg4[%c0_6, %c0_7] : memref<380x1xf32, #tpu.memory_space<vmem>>, vector<380x1xf32>
    %19 = vector.broadcast %18 : vector<380x1xf32> to vector<380x4xf32>
    %20 = arith.mulf %17, %19 : vector<380x4xf32>
    %21 = vector.extract_strided_slice %20 {offsets = [0, 0], sizes = [320, 4], strides = [1, 1]} : vector<380x4xf32> to vector<320x4xf32>
    %22 = vector.extract_strided_slice %20 {offsets = [1, 0], sizes = [320, 4], strides = [1, 1]} : vector<380x4xf32> to vector<320x4xf32>
    %23 = vector.extract_strided_slice %20 {offsets = [2, 0], sizes = [320, 4], strides = [1, 1]} : vector<380x4xf32> to vector<320x4xf32>
    %24 = vector.extract_strided_slice %20 {offsets = [20, 0], sizes = [320, 4], strides = [1, 1]} : vector<380x4xf32> to vector<320x4xf32>
    %25 = vector.extract_strided_slice %20 {offsets = [21, 0], sizes = [320, 4], strides = [1, 1]} : vector<380x4xf32> to vector<320x4xf32>
    %26 = vector.extract_strided_slice %20 {offsets = [22, 0], sizes = [320, 4], strides = [1, 1]} : vector<380x4xf32> to vector<320x4xf32>
    %27 = vector.extract_strided_slice %20 {offsets = [40, 0], sizes = [320, 4], strides = [1, 1]} : vector<380x4xf32> to vector<320x4xf32>
    %28 = vector.extract_strided_slice %20 {offsets = [41, 0], sizes = [320, 4], strides = [1, 1]} : vector<380x4xf32> to vector<320x4xf32>
    %29 = vector.extract_strided_slice %20 {offsets = [42, 0], sizes = [320, 4], strides = [1, 1]} : vector<380x4xf32> to vector<320x4xf32>
    %30 = tpu.concatenate %21, %22, %23, %24, %25, %26, %27, %28, %29 in 1 : vector<320x4xf32>, vector<320x4xf32>, vector<320x4xf32>, vector<320x4xf32>, vector<320x4xf32>, vector<320x4xf32>, vector<320x4xf32>, vector<320x4xf32>, vector<320x4xf32> -> vector<320x36xf32>
    %31 = arith.truncf %30 : vector<320x36xf32> to vector<320x36xbf16>
    %c0_8 = arith.constant 0 : index
    %c0_9 = arith.constant 0 : index
    %32 = vector.load %arg5[%c0_8, %c0_9] : memref<36x8xbf16, #tpu.memory_space<vmem>>, vector<36x8xbf16>
    %cst_10 = arith.constant dense<0.000000e+00> : vector<320x8xf32>
    %33 = tpu.matmul %31, %32, %cst_10 {dimension_numbers = #tpu.dot_dimension_numbers<[1], [0], [0], [1], [0, 0, 1, 1], [], []>} : vector<320x36xbf16>, vector<36x8xbf16>, vector<320x8xf32> -> vector<320x8xf32>
    %c0_11 = arith.constant 0 : index
    %c0_12 = arith.constant 0 : index
    %34 = vector.load %arg6[%c0_11, %c0_12] : memref<1x8xf32, #tpu.memory_space<vmem>>, vector<1x8xf32>
    %35 = vector.broadcast %34 : vector<1x8xf32> to vector<320x8xf32>
    %36 = arith.addf %33, %35 : vector<320x8xf32>
    %37 = tpu.concatenate %36, %36, %36, %36, %36, %36, %36, %36, %36, %36, %36, %36, %36, %36, %36, %36 in 1 : vector<320x8xf32>, vector<320x8xf32>, vector<320x8xf32>, vector<320x8xf32>, vector<320x8xf32>, vector<320x8xf32>, vector<320x8xf32>, vector<320x8xf32>, vector<320x8xf32>, vector<320x8xf32>, vector<320x8xf32>, vector<320x8xf32>, vector<320x8xf32>, vector<320x8xf32>, vector<320x8xf32>, vector<320x8xf32> -> vector<320x128xf32>
    %c0_13 = arith.constant 0 : index
    %c0_14 = arith.constant 0 : index
    %38 = vector.load %arg7[%c0_13, %c0_14] : memref<320x128xf32, #tpu.memory_space<vmem>>, vector<320x128xf32>
    %39 = arith.mulf %37, %38 : vector<320x128xf32>
    %40 = arith.truncf %39 : vector<320x128xf32> to vector<320x128xbf16>
    %c0_15 = arith.constant 0 : index
    %c0_16 = arith.constant 0 : index
    %41 = vector.load %arg8[%c0_15, %c0_16] : memref<128x16xbf16, #tpu.memory_space<vmem>>, vector<128x16xbf16>
    %cst_17 = arith.constant dense<0.000000e+00> : vector<320x16xf32>
    %42 = tpu.matmul %40, %41, %cst_17 {dimension_numbers = #tpu.dot_dimension_numbers<[1], [0], [0], [1], [0, 0, 1, 1], [], []>} : vector<320x128xbf16>, vector<128x16xbf16>, vector<320x16xf32> -> vector<320x16xf32>
    %c0_18 = arith.constant 0 : index
    %c0_19 = arith.constant 0 : index
    %43 = vector.load %arg10[%c0_18, %c0_19] : memref<16x320xf32, #tpu.memory_space<vmem>>, vector<16x320xf32>
    %cst_20 = arith.constant dense<0.000000e+00> : vector<16x16xf32>
    %44 = tpu.matmul %43, %42, %cst_20 {dimension_numbers = #tpu.dot_dimension_numbers<[1], [0], [0], [1], [0, 0, 1, 1], [], []>} : vector<16x320xf32>, vector<320x16xf32>, vector<16x16xf32> -> vector<16x16xf32>
    %c0_21 = arith.constant 0 : index
    %c0_22 = arith.constant 0 : index
    %45 = vector.load %arg9[%c0_21, %c0_22] : memref<1x16xf32, #tpu.memory_space<vmem>>, vector<1x16xf32>
    %46 = vector.broadcast %45 : vector<1x16xf32> to vector<16x16xf32>
    %47 = arith.addf %44, %46 : vector<16x16xf32>
    %cst_23 = arith.constant 5.000000e-01 : f32
    %48 = vector.broadcast %cst_23 : f32 to vector<16x16xf32>
    %49 = arith.mulf %48, %47 : vector<16x16xf32>
    %cst_24 = arith.constant 1.41421354 : f32
    %50 = vector.broadcast %cst_24 : f32 to vector<16x16xf32>
    %51 = arith.divf %47, %50 : vector<16x16xf32>
    %cst_25 = arith.constant 0.000000e+00 : f32
    %52 = vector.broadcast %cst_25 : f32 to vector<16x16xf32>
    %53 = arith.cmpf oge, %51, %52 : vector<16x16xf32>
    %cst_26 = arith.constant 1.000000e+00 : f32
    %cst_27 = arith.constant -1.000000e+00 : f32
    %54 = vector.broadcast %cst_26 : f32 to vector<16x16xf32>
    %55 = vector.broadcast %cst_27 : f32 to vector<16x16xf32>
    %56 = arith.select %53, %54, %55 : vector<16x16xi1>, vector<16x16xf32>
    %57 = math.absf %51 : vector<16x16xf32>
    %cst_28 = arith.constant 0.327591091 : f32
    %58 = vector.broadcast %cst_28 : f32 to vector<16x16xf32>
    %59 = arith.mulf %58, %57 : vector<16x16xf32>
    %cst_29 = arith.constant 1.000000e+00 : f32
    %60 = vector.broadcast %cst_29 : f32 to vector<16x16xf32>
    %61 = arith.addf %60, %59 : vector<16x16xf32>
    %cst_30 = arith.constant 1.000000e+00 : f32
    %62 = vector.broadcast %cst_30 : f32 to vector<16x16xf32>
    %63 = arith.divf %62, %61 : vector<16x16xf32>
    %cst_31 = arith.constant 1.06140542 : f32
    %64 = vector.broadcast %cst_31 : f32 to vector<16x16xf32>
    %65 = arith.mulf %64, %63 : vector<16x16xf32>
    %cst_32 = arith.constant -1.45315206 : f32
    %66 = vector.broadcast %cst_32 : f32 to vector<16x16xf32>
    %67 = arith.addf %65, %66 : vector<16x16xf32>
    %68 = arith.mulf %67, %63 : vector<16x16xf32>
    %cst_33 = arith.constant 1.42141378 : f32
    %69 = vector.broadcast %cst_33 : f32 to vector<16x16xf32>
    %70 = arith.addf %68, %69 : vector<16x16xf32>
    %71 = arith.mulf %70, %63 : vector<16x16xf32>
    %cst_34 = arith.constant -0.284496725 : f32
    %72 = vector.broadcast %cst_34 : f32 to vector<16x16xf32>
    %73 = arith.addf %71, %72 : vector<16x16xf32>
    %74 = arith.mulf %73, %63 : vector<16x16xf32>
    %cst_35 = arith.constant 0.254829586 : f32
    %75 = vector.broadcast %cst_35 : f32 to vector<16x16xf32>
    %76 = arith.addf %74, %75 : vector<16x16xf32>
    %77 = arith.mulf %76, %63 : vector<16x16xf32>
    %cst_36 = arith.constant 0.000000e+00 : f32
    %78 = vector.broadcast %cst_36 : f32 to vector<16x16xf32>
    %79 = arith.subf %78, %57 : vector<16x16xf32>
    %80 = arith.mulf %79, %57 : vector<16x16xf32>
    %81 = math.exp %80 : vector<16x16xf32>
    %82 = arith.mulf %77, %81 : vector<16x16xf32>
    %cst_37 = arith.constant 1.000000e+00 : f32
    %83 = vector.broadcast %cst_37 : f32 to vector<16x16xf32>
    %84 = arith.subf %83, %82 : vector<16x16xf32>
    %85 = arith.mulf %56, %84 : vector<16x16xf32>
    %cst_38 = arith.constant 1.000000e+00 : f32
    %86 = vector.broadcast %cst_38 : f32 to vector<16x16xf32>
    %87 = arith.addf %86, %85 : vector<16x16xf32>
    %88 = arith.mulf %49, %87 : vector<16x16xf32>
    %c0_39 = arith.constant 0 : index
    %c0_40 = arith.constant 0 : index
    %89 = vector.load %arg11[%c0_39, %c0_40] : memref<1x16xf32, #tpu.memory_space<vmem>>, vector<1x16xf32>
    %90 = vector.broadcast %89 : vector<1x16xf32> to vector<16x16xf32>
    %91 = arith.mulf %88, %90 : vector<16x16xf32>
    %c0_41 = arith.constant 0 : index
    %c0_42 = arith.constant 0 : index
    %92 = vector.load %arg12[%c0_41, %c0_42] : memref<1x16xf32, #tpu.memory_space<vmem>>, vector<1x16xf32>
    %93 = vector.broadcast %92 : vector<1x16xf32> to vector<16x16xf32>
    %94 = arith.addf %91, %93 : vector<16x16xf32>
    %cst_43 = arith.constant dense<0.000000e+00> : vector<16xf32>
    %95 = vector.multi_reduction <add>, %94, %cst_43 [0] : vector<16x16xf32> to vector<16xf32>
    %96 = vector.shape_cast %95 : vector<16xf32> to vector<1x16xf32>
    %cst_44 = arith.constant 1.600000e+01 : f32
    %97 = vector.broadcast %cst_44 : f32 to vector<1x16xf32>
    %98 = arith.divf %96, %97 : vector<1x16xf32>
    %c0_45 = arith.constant 0 : index
    %c0_46 = arith.constant 0 : index
    %99 = vector.load %arg13[%c0_45, %c0_46] : memref<16x10xf32, #tpu.memory_space<vmem>>, vector<16x10xf32>
    %cst_47 = arith.constant dense<0.000000e+00> : vector<1x10xf32>
    %100 = tpu.matmul %98, %99, %cst_47 {dimension_numbers = #tpu.dot_dimension_numbers<[1], [0], [0], [1], [0, 0, 1, 1], [], []>} : vector<1x16xf32>, vector<16x10xf32>, vector<1x10xf32> -> vector<1x10xf32>
    %c0_48 = arith.constant 0 : index
    %c0_49 = arith.constant 0 : index
    %101 = vector.load %arg14[%c0_48, %c0_49] : memref<1x10xf32, #tpu.memory_space<vmem>>, vector<1x10xf32>
    %102 = arith.addf %100, %101 : vector<1x10xf32>
    %103 = vector.shape_cast %102 : vector<1x10xf32> to vector<1x1x10xf32>
    %c0_50 = arith.constant 0 : index
    %c0_51 = arith.constant 0 : index
    %c0_52 = arith.constant 0 : index
    %104 = vector.load %arg15[%c0_50, %c0_51, %c0_52] : memref<1x1x10xf32, #tpu.memory_space<vmem>>, vector<1x1x10xf32>
    tpu.vector_store %arg15[%c0_50, %c0_51, %c0_52], %103 {strides = array<i32>} : memref<1x1x10xf32, #tpu.memory_space<vmem>>, vector<1x1x10xf32>,
    return
  }
  func.func @transform_0(%arg0: i32) -> (i32, i32, i32) {
    %c0_i32 = arith.constant 0 : i32
    %c0_i32_0 = arith.constant 0 : i32
    %c0_i32_1 = arith.constant 0 : i32
    return %arg0, %c0_i32, %c0_i32_0 : i32, i32, i32
  }
  func.func @transform_1(%arg0: i32) -> (i32, i32) {
    %c0_i32 = arith.constant 0 : i32
    %c0_i32_0 = arith.constant 0 : i32
    %c0_i32_1 = arith.constant 0 : i32
    return %c0_i32, %c0_i32_0 : i32, i32
  }
  func.func @transform_2(%arg0: i32) -> (i32, i32) {
    %c0_i32 = arith.constant 0 : i32
    %c0_i32_0 = arith.constant 0 : i32
    %c0_i32_1 = arith.constant 0 : i32
    return %c0_i32, %c0_i32_0 : i32, i32
  }
  func.func @transform_3(%arg0: i32) -> (i32, i32) {
    %c0_i32 = arith.constant 0 : i32
    %c0_i32_0 = arith.constant 0 : i32
    %c0_i32_1 = arith.constant 0 : i32
    return %c0_i32, %c0_i32_0 : i32, i32
  }
  func.func @transform_4(%arg0: i32) -> (i32, i32) {
    %c0_i32 = arith.constant 0 : i32
    %c0_i32_0 = arith.constant 0 : i32
    %c0_i32_1 = arith.constant 0 : i32
    return %c0_i32, %c0_i32_0 : i32, i32
  }
  func.func @transform_5(%arg0: i32) -> (i32, i32) {
    %c0_i32 = arith.constant 0 : i32
    %c0_i32_0 = arith.constant 0 : i32
    %c0_i32_1 = arith.constant 0 : i32
    return %c0_i32, %c0_i32_0 : i32, i32
  }
  func.func @transform_6(%arg0: i32) -> (i32, i32) {
    %c0_i32 = arith.constant 0 : i32
    %c0_i32_0 = arith.constant 0 : i32
    %c0_i32_1 = arith.constant 0 : i32
    return %c0_i32, %c0_i32_0 : i32, i32
  }
  func.func @transform_7(%arg0: i32) -> (i32, i32) {
    %c0_i32 = arith.constant 0 : i32
    %c0_i32_0 = arith.constant 0 : i32
    %c0_i32_1 = arith.constant 0 : i32
    return %c0_i32, %c0_i32_0 : i32, i32
  }
  func.func @transform_8(%arg0: i32) -> (i32, i32) {
    %c0_i32 = arith.constant 0 : i32
    %c0_i32_0 = arith.constant 0 : i32
    %c0_i32_1 = arith.constant 0 : i32
    return %c0_i32, %c0_i32_0 : i32, i32
  }
  func.func @transform_9(%arg0: i32) -> (i32, i32) {
    %c0_i32 = arith.constant 0 : i32
    %c0_i32_0 = arith.constant 0 : i32
    %c0_i32_1 = arith.constant 0 : i32
    return %c0_i32, %c0_i32_0 : i32, i32
  }
  func.func @transform_10(%arg0: i32) -> (i32, i32) {
    %c0_i32 = arith.constant 0 : i32
    %c0_i32_0 = arith.constant 0 : i32
    %c0_i32_1 = arith.constant 0 : i32
    return %c0_i32, %c0_i32_0 : i32, i32
  }
  func.func @transform_11(%arg0: i32) -> (i32, i32) {
    %c0_i32 = arith.constant 0 : i32
    %c0_i32_0 = arith.constant 0 : i32
    %c0_i32_1 = arith.constant 0 : i32
    return %c0_i32, %c0_i32_0 : i32, i32
  }
  func.func @transform_12(%arg0: i32) -> (i32, i32) {
    %c0_i32 = arith.constant 0 : i32
    %c0_i32_0 = arith.constant 0 : i32
    %c0_i32_1 = arith.constant 0 : i32
    return %c0_i32, %c0_i32_0 : i32, i32
  }
  func.func @transform_13(%arg0: i32) -> (i32, i32) {
    %c0_i32 = arith.constant 0 : i32
    %c0_i32_0 = arith.constant 0 : i32
    %c0_i32_1 = arith.constant 0 : i32
    return %c0_i32, %c0_i32_0 : i32, i32
  }
  func.func @transform_14(%arg0: i32) -> (i32, i32, i32) {
    %c0_i32 = arith.constant 0 : i32
    %c0_i32_0 = arith.constant 0 : i32
    %c0_i32_1 = arith.constant 0 : i32
    return %arg0, %c0_i32, %c0_i32_0 : i32, i32, i32
  }
}

</mosaic_0001>

<llo_original>
// kernel: tpu_custom_call.1
$region0: #{tpu_custom_call.1}
  #allocation0 [shape = 'u32[]', space=smem, size = 0x4, offset = 0x4, fixed_abs, tag = 'smem constant byte address 0x4 - core index']
  #allocation1 [shape = 'u32[144,128]{1,0:T(1,128)}', space=vmem, size = 0x12000, scoped, tag = 'internal scratch']
  %s0 = inlined_call_operand.vmem [shape: f32[2,440,3], index: 0, kind: input, shape index: {}]
  %s1 = inlined_call_operand.vmem [shape: bf16[27,4], index: 1, kind: input, shape index: {}]
  %s2 = inlined_call_operand.vmem [shape: f32[1,4], index: 2, kind: input, shape index: {}]
  %s3 = inlined_call_operand.vmem [shape: f32[380,1], index: 3, kind: input, shape index: {}]
  %s4 = inlined_call_operand.vmem [shape: bf16[36,8], index: 4, kind: input, shape index: {}]
  %s5 = inlined_call_operand.vmem [shape: f32[1,8], index: 5, kind: input, shape index: {}]
  %s6 = inlined_call_operand.vmem [shape: f32[320,128], index: 6, kind: input, shape index: {}]
  %s7 = inlined_call_operand.vmem [shape: bf16[128,16], index: 7, kind: input, shape index: {}]
  %s8 = inlined_call_operand.vmem [shape: f32[1,16], index: 8, kind: input, shape index: {}]
  %s9 = inlined_call_operand.vmem [shape: f32[16,320], index: 9, kind: input, shape index: {}]
  %s10 = inlined_call_operand.vmem [shape: f32[1,16], index: 10, kind: input, shape index: {}]
  %s11 = inlined_call_operand.vmem [shape: f32[1,16], index: 11, kind: input, shape index: {}]
  %s12 = inlined_call_operand.vmem [shape: f32[16,10], index: 12, kind: input, shape index: {}]
  %s13 = inlined_call_operand.vmem [shape: f32[1,10], index: 13, kind: input, shape index: {}]
  %s14 = inlined_call_operand.hbm [shape: f32[2,1,10], index: 14, kind: output, shape index: {}]
  %s15 = sld [smem:[#allocation0]]
  $region89: #{tpu_custom_call.1} parent=0
    _
  %s17 = ssub.s32 1, %s15
  %s18 = scalar_select 0, %s17, %s15
  $region1: #{tpu_custom_call.1} parent=0
    #allocation2 [shape = 'u8[1024]{0}', space=vmem, size = 0x400, scoped, tag = 'output window, operand 0']
    #allocation3 [shape = 's32[2]{0}', space=sflag, size = 0x8, scoped, tag = 'scoped memory for tpu_custom_call.1']
    %19 = vsyncpa [#allocation3], 0
    %s20 = scalar_lea.sflag [#allocation3], 1
    %21 = vsyncpa %s20, 0
    loop: start=0, step=1, limit=4
    $region2: #{tpu_custom_call.1} parent=1 // loop_pre_header
      _
    $region3: #{tpu_custom_call.1} parent=1 // loop_header
      %s23 = sphi 0, %s27
      %p24 = scmp.ge.s32.totalorder %s23, 4
      %s33 = sphi 0, %s35
      %s36 = sphi 0, %s33
      %s37 = sphi 0, %s36
      %s53 = sphi 0, %s37
      %s57 = sphi 0, %s57
      %s59 = sphi 0, %s57
      %s60 = sphi 0, %s59
      %s74 = sphi 0, %s60
      %s78 = sphi 0, %s78
      %s80 = sphi 0, %s78
      %s81 = sphi 0, %s80
      %s95 = sphi 0, %s81
      %s99 = sphi 0, %s99
      %s101 = sphi 0, %s99
      %s102 = sphi 0, %s101
      %s116 = sphi 0, %s102
      %s120 = sphi 0, %s120
      %s122 = sphi 0, %s120
      %s123 = sphi 0, %s122
      %s137 = sphi 0, %s123
      %s141 = sphi 0, %s141
      %s143 = sphi 0, %s141
      %s144 = sphi 0, %s143
      %s158 = sphi 0, %s144
      %s162 = sphi 0, %s162
      %s164 = sphi 0, %s162
      %s165 = sphi 0, %s164
      %s179 = sphi 0, %s165
      %s183 = sphi 0, %s183
      %s185 = sphi 0, %s183
      %s186 = sphi 0, %s185
      %s200 = sphi 0, %s186
      %s204 = sphi 0, %s204
      %s206 = sphi 0, %s204
      %s207 = sphi 0, %s206
      %s221 = sphi 0, %s207
      %s225 = sphi 0, %s225
      %s227 = sphi 0, %s225
      %s228 = sphi 0, %s227
      %s242 = sphi 0, %s228
      %s246 = sphi 0, %s246
      %s248 = sphi 0, %s246
      %s249 = sphi 0, %s248
      %s263 = sphi 0, %s249
      %s267 = sphi 0, %s267
      %s269 = sphi 0, %s267
      %s270 = sphi 0, %s269
      %s284 = sphi 0, %s270
      %s288 = sphi 0, %s288
      %s290 = sphi 0, %s288
      %s291 = sphi 0, %s290
      %s305 = sphi 0, %s291
      %s309 = sphi 0, %s309
      %s311 = sphi 0, %s309
      %s312 = sphi 0, %s311
      %s326 = sphi 0, %s312
      %s332 = sphi 0, %s334
      %s335 = sphi 0, %s332
      %s336 = sphi 0, %s335
      %s352 = sphi 0, %s336
    $region4: #{tpu_custom_call.1} parent=1 // loop_header_branch
      %26 = sbr.rel (%p24) target = $region8
    $region5: #{tpu_custom_call.1} parent=1 // loop_body
      %s28 = ssub.s32 %s23, 1
      %s29 = ssub.s32 %s23, 2
      %s30 = sadd.s32 %s23, 1
      %s31 = ssub.s32 %s23, %s30
      %p32 = scmp.eq.s32.totalorder %s31, 0
      %s34 = sadd.s32 %s33, 1
      %s35 = scalar_select %p32, %s33, %s34
      %p38 = pneg %p32
      %p39 = scmp.eq.s32.totalorder %s23, 1
      %p40 = por %p38, %p39
      %p41 = scmp.ne.s32.totalorder %s33, %s36
      %p42 = scmp.eq.s32.totalorder %s23, 0
      %p43 = por %p41, %p42
      %p44 = scmp.ne.s32.totalorder %s33, %s36
      %p45 = scmp.eq.s32.totalorder %s28, 1
      %p46 = por %p44, %p45
      %p47 = scmp.ne.s32.totalorder %s36, %s37
      %p48 = scmp.eq.s32.totalorder %s28, 0
      %p49 = por %p47, %p48
      %p50 = scmp.ne.s32.totalorder %s36, %s37
      %p51 = scmp.eq.s32.totalorder %s29, 1
      %p52 = por %p50, %p51
      %p54 = scmp.ne.s32.totalorder %s37, %s53
      %p55 = scmp.eq.s32.totalorder %s29, 0
      %p56 = por %p54, %p55
      %s58 = sadd.s32 %s57, 1
      %p61 = scmp.eq.s32.totalorder %s23, 1
      %p62 = scmp.ne.s32.totalorder %s57, %s59
      %p63 = scmp.eq.s32.totalorder %s23, 0
      %p64 = por %p62, %p63
      %p65 = scmp.ne.s32.totalorder %s57, %s59
      %p66 = scmp.eq.s32.totalorder %s28, 1
      %p67 = por %p65, %p66
      %p68 = scmp.ne.s32.totalorder %s59, %s60
      %p69 = scmp.eq.s32.totalorder %s28, 0
      %p70 = por %p68, %p69
      %p71 = scmp.ne.s32.totalorder %s59, %s60
      %p72 = scmp.eq.s32.totalorder %s29, 1
      %p73 = por %p71, %p72
      %p75 = scmp.ne.s32.totalorder %s60, %s74
      %p76 = scmp.eq.s32.totalorder %s29, 0
      %p77 = por %p75, %p76
      %s79 = sadd.s32 %s78, 1
      %p82 = scmp.eq.s32.totalorder %s23, 1
      %p83 = scmp.ne.s32.totalorder %s78, %s80
      %p84 = scmp.eq.s32.totalorder %s23, 0
      %p85 = por %p83, %p84
      %p86 = scmp.ne.s32.totalorder %s78, %s80
      %p87 = scmp.eq.s32.totalorder %s28, 1
      %p88 = por %p86, %p87
      %p89 = scmp.ne.s32.totalorder %s80, %s81
      %p90 = scmp.eq.s32.totalorder %s28, 0
      %p91 = por %p89, %p90
      %p92 = scmp.ne.s32.totalorder %s80, %s81
      %p93 = scmp.eq.s32.totalorder %s29, 1
      %p94 = por %p92, %p93
      %p96 = scmp.ne.s32.totalorder %s81, %s95
      %p97 = scmp.eq.s32.totalorder %s29, 0
      %p98 = por %p96, %p97
      %s100 = sadd.s32 %s99, 1
      %p103 = scmp.eq.s32.totalorder %s23, 1
      %p104 = scmp.ne.s32.totalorder %s99, %s101
      %p105 = scmp.eq.s32.totalorder %s23, 0
      %p106 = por %p104, %p105
      %p107 = scmp.ne.s32.totalorder %s99, %s101
      %p108 = scmp.eq.s32.totalorder %s28, 1
      %p109 = por %p107, %p108
      %p110 = scmp.ne.s32.totalorder %s101, %s102
      %p111 = scmp.eq.s32.totalorder %s28, 0
      %p112 = por %p110, %p111
      %p113 = scmp.ne.s32.totalorder %s101, %s102
      %p114 = scmp.eq.s32.totalorder %s29, 1
      %p115 = por %p113, %p114
      %p117 = scmp.ne.s32.totalorder %s102, %s116
      %p118 = scmp.eq.s32.totalorder %s29, 0
      %p119 = por %p117, %p118
      %s121 = sadd.s32 %s120, 1
      %p124 = scmp.eq.s32.totalorder %s23, 1
      %p125 = scmp.ne.s32.totalorder %s120, %s122
      %p126 = scmp.eq.s32.totalorder %s23, 0
      %p127 = por %p125, %p126
      %p128 = scmp.ne.s32.totalorder %s120, %s122
      %p129 = scmp.eq.s32.totalorder %s28, 1
      %p130 = por %p128, %p129
      %p131 = scmp.ne.s32.totalorder %s122, %s123
      %p132 = scmp.eq.s32.totalorder %s28, 0
      %p133 = por %p131, %p132
      %p134 = scmp.ne.s32.totalorder %s122, %s123
      %p135 = scmp.eq.s32.totalorder %s29, 1
      %p136 = por %p134, %p135
      %p138 = scmp.ne.s32.totalorder %s123, %s137
      %p139 = scmp.eq.s32.totalorder %s29, 0
      %p140 = por %p138, %p139
      %s142 = sadd.s32 %s141, 1
      %p145 = scmp.eq.s32.totalorder %s23, 1
      %p146 = scmp.ne.s32.totalorder %s141, %s143
      %p147 = scmp.eq.s32.totalorder %s23, 0
      %p148 = por %p146, %p147
      %p149 = scmp.ne.s32.totalorder %s141, %s143
      %p150 = scmp.eq.s32.totalorder %s28, 1
      %p151 = por %p149, %p150
      %p152 = scmp.ne.s32.totalorder %s143, %s144
      %p153 = scmp.eq.s32.totalorder %s28, 0
      %p154 = por %p152, %p153
      %p155 = scmp.ne.s32.totalorder %s143, %s144
      %p156 = scmp.eq.s32.totalorder %s29, 1
      %p157 = por %p155, %p156
      %p159 = scmp.ne.s32.totalorder %s144, %s158
      %p160 = scmp.eq.s32.totalorder %s29, 0
      %p161 = por %p159, %p160
      %s163 = sadd.s32 %s162, 1
      %p166 = scmp.eq.s32.totalorder %s23, 1
      %p167 = scmp.ne.s32.totalorder %s162, %s164
      %p168 = scmp.eq.s32.totalorder %s23, 0
      %p169 = por %p167, %p168
      %p170 = scmp.ne.s32.totalorder %s162, %s164
      %p171 = scmp.eq.s32.totalorder %s28, 1
      %p172 = por %p170, %p171
      %p173 = scmp.ne.s32.totalorder %s164, %s165
      %p174 = scmp.eq.s32.totalorder %s28, 0
      %p175 = por %p173, %p174
      %p176 = scmp.ne.s32.totalorder %s164, %s165
      %p177 = scmp.eq.s32.totalorder %s29, 1
      %p178 = por %p176, %p177
      %p180 = scmp.ne.s32.totalorder %s165, %s179
      %p181 = scmp.eq.s32.totalorder %s29, 0
      %p182 = por %p180, %p181
      %s184 = sadd.s32 %s183, 1
      %p187 = scmp.eq.s32.totalorder %s23, 1
      %p188 = scmp.ne.s32.totalorder %s183, %s185
      %p189 = scmp.eq.s32.totalorder %s23, 0
      %p190 = por %p188, %p189
      %p191 = scmp.ne.s32.totalorder %s183, %s185
      %p192 = scmp.eq.s32.totalorder %s28, 1
      %p193 = por %p191, %p192
      %p194 = scmp.ne.s32.totalorder %s185, %s186
      %p195 = scmp.eq.s32.totalorder %s28, 0
      %p196 = por %p194, %p195
      %p197 = scmp.ne.s32.totalorder %s185, %s186
      %p198 = scmp.eq.s32.totalorder %s29, 1
      %p199 = por %p197, %p198
      %p201 = scmp.ne.s32.totalorder %s186, %s200
      %p202 = scmp.eq.s32.totalorder %s29, 0
      %p203 = por %p201, %p202
      %s205 = sadd.s32 %s204, 1
      %p208 = scmp.eq.s32.totalorder %s23, 1
      %p209 = scmp.ne.s32.totalorder %s204, %s206
      %p210 = scmp.eq.s32.totalorder %s23, 0
      %p211 = por %p209, %p210
      %p212 = scmp.ne.s32.totalorder %s204, %s206
      %p213 = scmp.eq.s32.totalorder %s28, 1
      %p214 = por %p212, %p213
      %p215 = scmp.ne.s32.totalorder %s206, %s207
      %p216 = scmp.eq.s32.totalorder %s28, 0
      %p217 = por %p215, %p216
      %p218 = scmp.ne.s32.totalorder %s206, %s207
      %p219 = scmp.eq.s32.totalorder %s29, 1
      %p220 = por %p218, %p219
      %p222 = scmp.ne.s32.totalorder %s207, %s221
      %p223 = scmp.eq.s32.totalorder %s29, 0
      %p224 = por %p222, %p223
      %s226 = sadd.s32 %s225, 1
      %p229 = scmp.eq.s32.totalorder %s23, 1
      %p230 = scmp.ne.s32.totalorder %s225, %s227
      %p231 = scmp.eq.s32.totalorder %s23, 0
      %p232 = por %p230, %p231
      %p233 = scmp.ne.s32.totalorder %s225, %s227
      %p234 = scmp.eq.s32.totalorder %s28, 1
      %p235 = por %p233, %p234
      %p236 = scmp.ne.s32.totalorder %s227, %s228
      %p237 = scmp.eq.s32.totalorder %s28, 0
      %p238 = por %p236, %p237
      %p239 = scmp.ne.s32.totalorder %s227, %s228
      %p240 = scmp.eq.s32.totalorder %s29, 1
      %p241 = por %p239, %p240
      %p243 = scmp.ne.s32.totalorder %s228, %s242
      %p244 = scmp.eq.s32.totalorder %s29, 0
      %p245 = por %p243, %p244
      %s247 = sadd.s32 %s246, 1
      %p250 = scmp.eq.s32.totalorder %s23, 1
      %p251 = scmp.ne.s32.totalorder %s246, %s248
      %p252 = scmp.eq.s32.totalorder %s23, 0
      %p253 = por %p251, %p252
      %p254 = scmp.ne.s32.totalorder %s246, %s248
      %p255 = scmp.eq.s32.totalorder %s28, 1
      %p256 = por %p254, %p255
      %p257 = scmp.ne.s32.totalorder %s248, %s249
      %p258 = scmp.eq.s32.totalorder %s28, 0
      %p259 = por %p257, %p258
      %p260 = scmp.ne.s32.totalorder %s248, %s249
      %p261 = scmp.eq.s32.totalorder %s29, 1
      %p262 = por %p260, %p261
      %p264 = scmp.ne.s32.totalorder %s249, %s263
      %p265 = scmp.eq.s32.totalorder %s29, 0
      %p266 = por %p264, %p265
      %s268 = sadd.s32 %s267, 1
      %p271 = scmp.eq.s32.totalorder %s23, 1
      %p272 = scmp.ne.s32.totalorder %s267, %s269
      %p273 = scmp.eq.s32.totalorder %s23, 0
      %p274 = por %p272, %p273
      %p275 = scmp.ne.s32.totalorder %s267, %s269
      %p276 = scmp.eq.s32.totalorder %s28, 1
      %p277 = por %p275, %p276
      %p278 = scmp.ne.s32.totalorder %s269, %s270
      %p279 = scmp.eq.s32.totalorder %s28, 0
      %p280 = por %p278, %p279
      %p281 = scmp.ne.s32.totalorder %s269, %s270
      %p282 = scmp.eq.s32.totalorder %s29, 1
      %p283 = por %p281, %p282
      %p285 = scmp.ne.s32.totalorder %s270, %s284
      %p286 = scmp.eq.s32.totalorder %s29, 0
      %p287 = por %p285, %p286
      %s289 = sadd.s32 %s288, 1
      %p292 = scmp.eq.s32.totalorder %s23, 1
      %p293 = scmp.ne.s32.totalorder %s288, %s290
      %p294 = scmp.eq.s32.totalorder %s23, 0
      %p295 = por %p293, %p294
      %p296 = scmp.ne.s32.totalorder %s288, %s290
      %p297 = scmp.eq.s32.totalorder %s28, 1
      %p298 = por %p296, %p297
      %p299 = scmp.ne.s32.totalorder %s290, %s291
      %p300 = scmp.eq.s32.totalorder %s28, 0
      %p301 = por %p299, %p300
      %p302 = scmp.ne.s32.totalorder %s290, %s291
      %p303 = scmp.eq.s32.totalorder %s29, 1
      %p304 = por %p302, %p303
      %p306 = scmp.ne.s32.totalorder %s291, %s305
      %p307 = scmp.eq.s32.totalorder %s29, 0
      %p308 = por %p306, %p307
      %s310 = sadd.s32 %s309, 1
      %p313 = scmp.eq.s32.totalorder %s23, 1
      %p314 = scmp.ne.s32.totalorder %s309, %s311
      %p315 = scmp.eq.s32.totalorder %s23, 0
      %p316 = por %p314, %p315
      %p317 = scmp.ne.s32.totalorder %s309, %s311
      %p318 = scmp.eq.s32.totalorder %s28, 1
      %p319 = por %p317, %p318
      %p320 = scmp.ne.s32.totalorder %s311, %s312
      %p321 = scmp.eq.s32.totalorder %s28, 0
      %p322 = por %p320, %p321
      %p323 = scmp.ne.s32.totalorder %s311, %s312
      %p324 = scmp.eq.s32.totalorder %s29, 1
      %p325 = por %p323, %p324
      %p327 = scmp.ne.s32.totalorder %s312, %s326
      %p328 = scmp.eq.s32.totalorder %s29, 0
      %p329 = por %p327, %p328
      %s330 = ssub.s32 %s23, %s30
      %p331 = scmp.eq.s32.totalorder %s330, 0
      %s333 = sadd.s32 %s332, 1
      %s334 = scalar_select %p331, %s332, %s333
      %p337 = pneg %p331
      %p338 = scmp.eq.s32.totalorder %s23, 1
      %p339 = por %p337, %p338
      %p340 = scmp.ne.s32.totalorder %s332, %s335
      %p341 = scmp.eq.s32.totalorder %s23, 0
      %p342 = por %p340, %p341
      %p343 = scmp.ne.s32.totalorder %s332, %s335
      %p344 = scmp.eq.s32.totalorder %s28, 1
      %p345 = por %p343, %p344
      %p346 = scmp.ne.s32.totalorder %s335, %s336
      %p347 = scmp.eq.s32.totalorder %s28, 0
      %p348 = por %p346, %p347
      %p349 = scmp.ne.s32.totalorder %s335, %s336
      %p350 = scmp.eq.s32.totalorder %s29, 1
      %p351 = por %p349, %p350
      %p353 = scmp.ne.s32.totalorder %s336, %s352
      %p354 = scmp.eq.s32.totalorder %s29, 0
      %p355 = por %p353, %p354
      %p356 = scmp.le.s32.totalorder 1, %s23
      %p357 = scmp.lt.s32.totalorder %s23, 3
      %p358 = pnand %p356, %p357
      %p359 = pneg %p358
      // Predicated region
      $region9: #{tpu_custom_call.1} parent=5 // pred_check
        _
      $region10: #{tpu_custom_call.1} parent=5 // pred_check_branch
        %361 = sbr.rel (%p358) target = $region12
      $region11: #{tpu_custom_call.1} parent=5 // pred_region
        %s362 = ssub.s32 %s23, 1
        // Predicated region
        $region13: #{tpu_custom_call.1} parent=11 // pred_check
          %p363 = pneg %p70
        $region14: #{tpu_custom_call.1} parent=11 // pred_check_branch
          %365 = sbr.rel (%p363) target = $region16
        $region15: #{tpu_custom_call.1} parent=11 // pred_region
          _
        $region16: #{tpu_custom_call.1} parent=11 // pred_fallthru
          _
        // Predicated region
        $region17: #{tpu_custom_call.1} parent=11 // pred_check
          %p366 = pneg %p91
        $region18: #{tpu_custom_call.1} parent=11 // pred_check_branch
          %368 = sbr.rel (%p366) target = $region20
        $region19: #{tpu_custom_call.1} parent=11 // pred_region
          _
        $region20: #{tpu_custom_call.1} parent=11 // pred_fallthru
          _
        // Predicated region
        $region21: #{tpu_custom_call.1} parent=11 // pred_check
          %p369 = pneg %p112
        $region22: #{tpu_custom_call.1} parent=11 // pred_check_branch
          %371 = sbr.rel (%p369) target = $region24
        $region23: #{tpu_custom_call.1} parent=11 // pred_region
          _
        $region24: #{tpu_custom_call.1} parent=11 // pred_fallthru
          _
        // Predicated region
        $region25: #{tpu_custom_call.1} parent=11 // pred_check
          %p372 = pneg %p133
        $region26: #{tpu_custom_call.1} parent=11 // pred_check_branch
          %374 = sbr.rel (%p372) target = $region28
        $region27: #{tpu_custom_call.1} parent=11 // pred_region
          _
        $region28: #{tpu_custom_call.1} parent=11 // pred_fallthru
          _
        // Predicated region
        $region29: #{tpu_custom_call.1} parent=11 // pred_check
          %p375 = pneg %p154
        $region30: #{tpu_custom_call.1} parent=11 // pred_check_branch
          %377 = sbr.rel (%p375) target = $region32
        $region31: #{tpu_custom_call.1} parent=11 // pred_region
          _
        $region32: #{tpu_custom_call.1} parent=11 // pred_fallthru
          _
        // Predicated region
        $region33: #{tpu_custom_call.1} parent=11 // pred_check
          %p378 = pneg %p175
        $region34: #{tpu_custom_call.1} parent=11 // pred_check_branch
          %380 = sbr.rel (%p378) target = $region36
        $region35: #{tpu_custom_call.1} parent=11 // pred_region
          _
        $region36: #{tpu_custom_call.1} parent=11 // pred_fallthru
          _
        // Predicated region
        $region37: #{tpu_custom_call.1} parent=11 // pred_check
          %p381 = pneg %p196
        $region38: #{tpu_custom_call.1} parent=11 // pred_check_branch
          %383 = sbr.rel (%p381) target = $region40
        $region39: #{tpu_custom_call.1} parent=11 // pred_region
          _
        $region40: #{tpu_custom_call.1} parent=11 // pred_fallthru
          _
        // Predicated region
        $region41: #{tpu_custom_call.1} parent=11 // pred_check
          %p384 = pneg %p217
        $region42: #{tpu_custom_call.1} parent=11 // pred_check_branch
          %386 = sbr.rel (%p384) target = $region44
        $region43: #{tpu_custom_call.1} parent=11 // pred_region
          _
        $region44: #{tpu_custom_call.1} parent=11 // pred_fallthru
          _
        // Predicated region
        $region45: #{tpu_custom_call.1} parent=11 // pred_check
          %p387 = pneg %p238
        $region46: #{tpu_custom_call.1} parent=11 // pred_check_branch
          %389 = sbr.rel (%p387) target = $region48
        $region47: #{tpu_custom_call.1} parent=11 // pred_region
          _
        $region48: #{tpu_custom_call.1} parent=11 // pred_fallthru
          _
        // Predicated region
        $region49: #{tpu_custom_call.1} parent=11 // pred_check
          %p390 = pneg %p259
        $region50: #{tpu_custom_call.1} parent=11 // pred_check_branch
          %392 = sbr.rel (%p390) target = $region52
        $region51: #{tpu_custom_call.1} parent=11 // pred_region
          _
        $region52: #{tpu_custom_call.1} parent=11 // pred_fallthru
          _
        // Predicated region
        $region53: #{tpu_custom_call.1} parent=11 // pred_check
          %p393 = pneg %p280
        $region54: #{tpu_custom_call.1} parent=11 // pred_check_branch
          %395 = sbr.rel (%p393) target = $region56
        $region55: #{tpu_custom_call.1} parent=11 // pred_region
          _
        $region56: #{tpu_custom_call.1} parent=11 // pred_fallthru
          _
        // Predicated region
        $region57: #{tpu_custom_call.1} parent=11 // pred_check
          %p396 = pneg %p301
        $region58: #{tpu_custom_call.1} parent=11 // pred_check_branch
          %398 = sbr.rel (%p396) target = $region60
        $region59: #{tpu_custom_call.1} parent=11 // pred_region
          _
        $region60: #{tpu_custom_call.1} parent=11 // pred_fallthru
          _
        // Predicated region
        $region61: #{tpu_custom_call.1} parent=11 // pred_check
          %p399 = pneg %p322
        $region62: #{tpu_custom_call.1} parent=11 // pred_check_branch
          %401 = sbr.rel (%p399) target = $region64
        $region63: #{tpu_custom_call.1} parent=11 // pred_region
          _
        $region64: #{tpu_custom_call.1} parent=11 // pred_fallthru
          _
      $region12: #{tpu_custom_call.1} parent=5 // pred_fallthru
        _
      %p402 = scmp.lt.s32.totalorder %s23, 2
      // Predicated region
      $region65: #{tpu_custom_call.1} parent=5 // pred_check
        %p403 = pneg %p402
      $region66: #{tpu_custom_call.1} parent=5 // pred_check_branch
        %405 = sbr.rel (%p403) target = $region68
      $region67: #{tpu_custom_call.1} parent=5 // pred_region
        // Predicated region
        $region69: #{tpu_custom_call.1} parent=67 // pred_check
          %p406 = pneg %p43
        $region70: #{tpu_custom_call.1} parent=67 // pred_check_branch
          %408 = sbr.rel (%p406) target = $region72
        $region71: #{tpu_custom_call.1} parent=67 // pred_region
          %p409 = scmp.lt.s32.totalorder %s23, 1
          %s410 = scalar_select %p409, %s23, 1
          %s411 = smul.addr %s410, 55
          %s412 = smul.addr %s411, 8
          %s413 = scalar_lea.vmem %s0, %s412
        $region72: #{tpu_custom_call.1} parent=67 // pred_fallthru
          _
      $region68: #{tpu_custom_call.1} parent=5 // pred_fallthru
        _
      %p414 = scmp.le.s32.totalorder 1, %s23
      %p415 = scmp.lt.s32.totalorder %s23, 3
      %p416 = pnand %p414, %p415
      %p417 = pneg %p416
      // Predicated region
      $region73: #{tpu_custom_call.1} parent=5 // pred_check
        _
      $region74: #{tpu_custom_call.1} parent=5 // pred_check_branch
        %419 = sbr.rel (%p416) target = $region76
      $region75: #{tpu_custom_call.1} parent=5 // pred_region
        %s420 = ssub.s32 %s23, 1
        %p421 = scmp.lt.s32.totalorder %s28, 1
        %s422 = scalar_select %p421, %s28, 1
        %s423 = smul.addr %s422, 55
        %s424 = smul.addr %s423, 8
        %s425 = scalar_lea.vmem %s0, %s424
        %p426 = pneg %p49
        %p427 = pneg %p46
        %p428 = pneg %p70
        %p429 = pneg %p67
        %p430 = pneg %p91
        %p431 = pneg %p88
        %p432 = pneg %p112
        %p433 = pneg %p109
        %p434 = pneg %p133
        %p435 = pneg %p130
        %p436 = pneg %p154
        %p437 = pneg %p151
        %p438 = pneg %p175
        %p439 = pneg %p172
        %p440 = pneg %p196
        %p441 = pneg %p193
        %p442 = pneg %p217
        %p443 = pneg %p214
        %p444 = pneg %p238
        %p445 = pneg %p235
        %p446 = pneg %p259
        %p447 = pneg %p256
        %p448 = pneg %p280
        %p449 = pneg %p277
        %p450 = pneg %p301
        %p451 = pneg %p298
        %p452 = pneg %p322
        %p453 = pneg %p319
        %p454 = pneg %p348
        %p455 = pneg %p345
        %s456 = sand.u32 %s335, 1
        %s457 = scalar_lea.sflag [#allocation3], %s456
        %s458 = sand.u32 %s335, 1
        %s459 = scalar_lea.vmem [#allocation2], %s458
        %p460 = scmp.lt.s32.totalorder %s28, 1
        %s461 = scalar_select %p460, %s28, 1
        %s462 = smul.addr %s461, 55
        %s463 = smul.addr %s462, 8
        %s464 = scalar_lea.vmem %s0, %s463
        %v466 = vld [vmem:[%s464] sm:$0xff]
        %v467 = vld [vmem:[%s464 + $0x8] sm:$0xff]
        %v468 = vld [vmem:[%s464 + $0x10] sm:$0xff]
        %v469 = vld [vmem:[%s464 + $0x18] sm:$0xff]
        %v470 = vld [vmem:[%s464 + $0x20] sm:$0xff]
        %v471 = vld [vmem:[%s464 + $0x28] sm:$0xff]
        %v472 = vld [vmem:[%s464 + $0x30] sm:$0xff]
        %v473 = vld [vmem:[%s464 + $0x38] sm:$0xff]
        %v474 = vld [vmem:[%s464 + $0x40] sm:$0xff]
        %v475 = vld [vmem:[%s464 + $0x48] sm:$0xff]
        %v476 = vld [vmem:[%s464 + $0x50] sm:$0xff]
        %v477 = vld [vmem:[%s464 + $0x58] sm:$0xff]
        %v478 = vld [vmem:[%s464 + $0x60] sm:$0xff]
        %v479 = vld [vmem:[%s464 + $0x68] sm:$0xff]
        %v480 = vld [vmem:[%s464 + $0x70] sm:$0xff]
        %v481 = vld [vmem:[%s464 + $0x78] sm:$0xff]
        %v482 = vld [vmem:[%s464 + $0x80] sm:$0xff]
        %v483 = vld [vmem:[%s464 + $0x88] sm:$0xff]
        %v484 = vld [vmem:[%s464 + $0x90] sm:$0xff]
        %v485 = vld [vmem:[%s464 + $0x98] sm:$0xff]
        %v486 = vld [vmem:[%s464 + $0xa0] sm:$0xff]
        %v487 = vld [vmem:[%s464 + $0xa8] sm:$0xff]
        %v488 = vld [vmem:[%s464 + $0xb0] sm:$0xff]
        %v489 = vld [vmem:[%s464 + $0xb8] sm:$0xff]
        %v490 = vld [vmem:[%s464 + $0xc0] sm:$0xff]
        %v491 = vld [vmem:[%s464 + $0xc8] sm:$0xff]
        %v492 = vld [vmem:[%s464 + $0xd0] sm:$0xff]
        %v493 = vld [vmem:[%s464 + $0xd8] sm:$0xff]
        %v494 = vld [vmem:[%s464 + $0xe0] sm:$0xff]
        %v495 = vld [vmem:[%s464 + $0xe8] sm:$0xff]
        %v496 = vld [vmem:[%s464 + $0xf0] sm:$0xff]
        %v497 = vld [vmem:[%s464 + $0xf8] sm:$0xff]
        %v498 = vld [vmem:[%s464 + $0x100] sm:$0xff]
        %v499 = vld [vmem:[%s464 + $0x108] sm:$0xff]
        %v500 = vld [vmem:[%s464 + $0x110] sm:$0xff]
        %v501 = vld [vmem:[%s464 + $0x118] sm:$0xff]
        %v502 = vld [vmem:[%s464 + $0x120] sm:$0xff]
        %v503 = vld [vmem:[%s464 + $0x128] sm:$0xff]
        %v504 = vld [vmem:[%s464 + $0x130] sm:$0xff]
        %v505 = vld [vmem:[%s464 + $0x138] sm:$0xff]
        %v506 = vld [vmem:[%s464 + $0x140] sm:$0xff]
        %v507 = vld [vmem:[%s464 + $0x148] sm:$0xff]
        %v508 = vld [vmem:[%s464 + $0x150] sm:$0xff]
        %v509 = vld [vmem:[%s464 + $0x158] sm:$0xff]
        %v510 = vld [vmem:[%s464 + $0x160] sm:$0xff]
        %v511 = vld [vmem:[%s464 + $0x168] sm:$0xff]
        %v512 = vld [vmem:[%s464 + $0x170] sm:$0xff]
        %v513 = vld [vmem:[%s464 + $0x178] sm:$0xff]
        %v514 = vld [vmem:[%s464 + $0x180] sm:$0xff]
        %v515 = vld [vmem:[%s464 + $0x188] sm:$0xff]
        %v516 = vld [vmem:[%s464 + $0x190] sm:$0xff]
        %v517 = vld [vmem:[%s464 + $0x198] sm:$0xff]
        %v518 = vld [vmem:[%s464 + $0x1a0] sm:$0xff]
        %vm567 = vcmask 1046528
        %v568 = vrot.slane %v466, 1
        %v569 = vrot.slane %v467, 1
        %v570 = vsel %vm567, %v568, %v569
        %v571 = vrot.slane %v468, 1
        %v572 = vsel %vm567, %v569, %v571
        %v573 = vrot.slane %v469, 1
        %v574 = vsel %vm567, %v571, %v573
        %v575 = vrot.slane %v470, 1
        %v576 = vsel %vm567, %v573, %v575
        %v577 = vrot.slane %v471, 1
        %v578 = vsel %vm567, %v575, %v577
        %v579 = vrot.slane %v472, 1
        %v580 = vsel %vm567, %v577, %v579
        %v581 = vrot.slane %v473, 1
        %v582 = vsel %vm567, %v579, %v581
        %v583 = vrot.slane %v474, 1
        %v584 = vsel %vm567, %v581, %v583
        %v585 = vrot.slane %v475, 1
        %v586 = vsel %vm567, %v583, %v585
        %v587 = vrot.slane %v476, 1
        %v588 = vsel %vm567, %v585, %v587
        %v589 = vrot.slane %v477, 1
        %v590 = vsel %vm567, %v587, %v589
        %v591 = vrot.slane %v478, 1
        %v592 = vsel %vm567, %v589, %v591
        %v593 = vrot.slane %v479, 1
        %v594 = vsel %vm567, %v591, %v593
        %v595 = vrot.slane %v480, 1
        %v596 = vsel %vm567, %v593, %v595
        %v597 = vrot.slane %v481, 1
        %v598 = vsel %vm567, %v595, %v597
        %v599 = vrot.slane %v482, 1
        %v600 = vsel %vm567, %v597, %v599
        %v601 = vrot.slane %v483, 1
        %v602 = vsel %vm567, %v599, %v601
        %v603 = vrot.slane %v484, 1
        %v604 = vsel %vm567, %v601, %v603
        %v605 = vrot.slane %v485, 1
        %v606 = vsel %vm567, %v603, %v605
        %v607 = vrot.slane %v486, 1
        %v608 = vsel %vm567, %v605, %v607
        %v609 = vrot.slane %v487, 1
        %v610 = vsel %vm567, %v607, %v609
        %v611 = vrot.slane %v488, 1
        %v612 = vsel %vm567, %v609, %v611
        %v613 = vrot.slane %v489, 1
        %v614 = vsel %vm567, %v611, %v613
        %v615 = vrot.slane %v490, 1
        %v616 = vsel %vm567, %v613, %v615
        %v617 = vrot.slane %v491, 1
        %v618 = vsel %vm567, %v615, %v617
        %v619 = vrot.slane %v492, 1
        %v620 = vsel %vm567, %v617, %v619
        %v621 = vrot.slane %v493, 1
        %v622 = vsel %vm567, %v619, %v621
        %v623 = vrot.slane %v494, 1
        %v624 = vsel %vm567, %v621, %v623
        %v625 = vrot.slane %v495, 1
        %v626 = vsel %vm567, %v623, %v625
        %v627 = vrot.slane %v496, 1
        %v628 = vsel %vm567, %v625, %v627
        %v629 = vrot.slane %v497, 1
        %v630 = vsel %vm567, %v627, %v629
        %v631 = vrot.slane %v498, 1
        %v632 = vsel %vm567, %v629, %v631
        %v633 = vrot.slane %v499, 1
        %v634 = vsel %vm567, %v631, %v633
        %v635 = vrot.slane %v500, 1
        %v636 = vsel %vm567, %v633, %v635
        %v637 = vrot.slane %v501, 1
        %v638 = vsel %vm567, %v635, %v637
        %v639 = vrot.slane %v502, 1
        %v640 = vsel %vm567, %v637, %v639
        %v641 = vrot.slane %v503, 1
        %v642 = vsel %vm567, %v639, %v641
        %v643 = vrot.slane %v504, 1
        %v644 = vsel %vm567, %v641, %v643
        %v645 = vrot.slane %v505, 1
        %v646 = vsel %vm567, %v643, %v645
        %v647 = vrot.slane %v506, 1
        %v648 = vsel %vm567, %v645, %v647
        %v649 = vrot.slane %v507, 1
        %v650 = vsel %vm567, %v647, %v649
        %v651 = vrot.slane %v508, 1
        %v652 = vsel %vm567, %v649, %v651
        %v653 = vrot.slane %v509, 1
        %v654 = vsel %vm567, %v651, %v653
        %v655 = vrot.slane %v510, 1
        %v656 = vsel %vm567, %v653, %v655
        %v657 = vrot.slane %v511, 1
        %v658 = vsel %vm567, %v655, %v657
        %v659 = vrot.slane %v512, 1
        %v660 = vsel %vm567, %v657, %v659
        %v661 = vrot.slane %v513, 1
        %v662 = vsel %vm567, %v659, %v661
        %663 = vrot.lane.b32.xlu0 %v570, 3
        %v664 = vpop.permute.xlu0 %663
        %665 = vrot.lane.b32.xlu0 %v572, 3
        %v666 = vpop.permute.xlu0 %665
        %667 = vrot.lane.b32.xlu0 %v574, 3
        %v668 = vpop.permute.xlu0 %667
        %669 = vrot.lane.b32.xlu0 %v576, 3
        %v670 = vpop.permute.xlu0 %669
        %671 = vrot.lane.b32.xlu0 %v578, 3
        %v672 = vpop.permute.xlu0 %671
        %673 = vrot.lane.b32.xlu0 %v580, 3
        %v674 = vpop.permute.xlu0 %673
        %675 = vrot.lane.b32.xlu0 %v582, 3
        %v676 = vpop.permute.xlu0 %675
        %677 = vrot.lane.b32.xlu0 %v584, 3
        %v678 = vpop.permute.xlu0 %677
        %679 = vrot.lane.b32.xlu0 %v586, 3
        %v680 = vpop.permute.xlu0 %679
        %681 = vrot.lane.b32.xlu0 %v588, 3
        %v682 = vpop.permute.xlu0 %681
        %683 = vrot.lane.b32.xlu0 %v590, 3
        %v684 = vpop.permute.xlu0 %683
        %685 = vrot.lane.b32.xlu0 %v592, 3
        %v686 = vpop.permute.xlu0 %685
        %687 = vrot.lane.b32.xlu0 %v594, 3
        %v688 = vpop.permute.xlu0 %687
        %689 = vrot.lane.b32.xlu0 %v596, 3
        %v690 = vpop.permute.xlu0 %689
        %691 = vrot.lane.b32.xlu0 %v598, 3
        %v692 = vpop.permute.xlu0 %691
        %693 = vrot.lane.b32.xlu0 %v600, 3
        %v694 = vpop.permute.xlu0 %693
        %695 = vrot.lane.b32.xlu0 %v602, 3
        %v696 = vpop.permute.xlu0 %695
        %697 = vrot.lane.b32.xlu0 %v604, 3
        %v698 = vpop.permute.xlu0 %697
        %699 = vrot.lane.b32.xlu0 %v606, 3
        %v700 = vpop.permute.xlu0 %699
        %701 = vrot.lane.b32.xlu0 %v608, 3
        %v702 = vpop.permute.xlu0 %701
        %703 = vrot.lane.b32.xlu0 %v610, 3
        %v704 = vpop.permute.xlu0 %703
        %705 = vrot.lane.b32.xlu0 %v612, 3
        %v706 = vpop.permute.xlu0 %705
        %707 = vrot.lane.b32.xlu0 %v614, 3
        %v708 = vpop.permute.xlu0 %707
        %709 = vrot.lane.b32.xlu0 %v616, 3
        %v710 = vpop.permute.xlu0 %709
        %711 = vrot.lane.b32.xlu0 %v618, 3
        %v712 = vpop.permute.xlu0 %711
        %713 = vrot.lane.b32.xlu0 %v620, 3
        %v714 = vpop.permute.xlu0 %713
        %715 = vrot.lane.b32.xlu0 %v622, 3
        %v716 = vpop.permute.xlu0 %715
        %717 = vrot.lane.b32.xlu0 %v624, 3
        %v718 = vpop.permute.xlu0 %717
        %719 = vrot.lane.b32.xlu0 %v626, 3
        %v720 = vpop.permute.xlu0 %719
        %721 = vrot.lane.b32.xlu0 %v628, 3
        %v722 = vpop.permute.xlu0 %721
        %723 = vrot.lane.b32.xlu0 %v630, 3
        %v724 = vpop.permute.xlu0 %723
        %725 = vrot.lane.b32.xlu0 %v632, 3
        %v726 = vpop.permute.xlu0 %725
        %727 = vrot.lane.b32.xlu0 %v634, 3
        %v728 = vpop.permute.xlu0 %727
        %729 = vrot.lane.b32.xlu0 %v636, 3
        %v730 = vpop.permute.xlu0 %729
        %731 = vrot.lane.b32.xlu0 %v638, 3
        %v732 = vpop.permute.xlu0 %731
        %733 = vrot.lane.b32.xlu0 %v640, 3
        %v734 = vpop.permute.xlu0 %733
        %735 = vrot.lane.b32.xlu0 %v642, 3
        %v736 = vpop.permute.xlu0 %735
        %737 = vrot.lane.b32.xlu0 %v644, 3
        %v738 = vpop.permute.xlu0 %737
        %739 = vrot.lane.b32.xlu0 %v646, 3
        %v740 = vpop.permute.xlu0 %739
        %741 = vrot.lane.b32.xlu0 %v648, 3
        %v742 = vpop.permute.xlu0 %741
        %743 = vrot.lane.b32.xlu0 %v650, 3
        %v744 = vpop.permute.xlu0 %743
        %745 = vrot.lane.b32.xlu0 %v652, 3
        %v746 = vpop.permute.xlu0 %745
        %747 = vrot.lane.b32.xlu0 %v654, 3
        %v748 = vpop.permute.xlu0 %747
        %749 = vrot.lane.b32.xlu0 %v656, 3
        %v750 = vpop.permute.xlu0 %749
        %751 = vrot.lane.b32.xlu0 %v658, 3
        %v752 = vpop.permute.xlu0 %751
        %753 = vrot.lane.b32.xlu0 %v660, 3
        %v754 = vpop.permute.xlu0 %753
        %755 = vrot.lane.b32.xlu0 %v662, 3
        %v756 = vpop.permute.xlu0 %755
        %757 = vrot.lane.b32.xlu0 %v661, 3
        %v758 = vpop.permute.xlu0 %757
        %vm807 = vcmask 1045504
        %v808 = vrot.slane %v466, 2
        %v809 = vrot.slane %v467, 2
        %v810 = vsel %vm807, %v808, %v809
        %v811 = vrot.slane %v468, 2
        %v812 = vsel %vm807, %v809, %v811
        %v813 = vrot.slane %v469, 2
        %v814 = vsel %vm807, %v811, %v813
        %v815 = vrot.slane %v470, 2
        %v816 = vsel %vm807, %v813, %v815
        %v817 = vrot.slane %v471, 2
        %v818 = vsel %vm807, %v815, %v817
        %v819 = vrot.slane %v472, 2
        %v820 = vsel %vm807, %v817, %v819
        %v821 = vrot.slane %v473, 2
        %v822 = vsel %vm807, %v819, %v821
        %v823 = vrot.slane %v474, 2
        %v824 = vsel %vm807, %v821, %v823
        %v825 = vrot.slane %v475, 2
        %v826 = vsel %vm807, %v823, %v825
        %v827 = vrot.slane %v476, 2
        %v828 = vsel %vm807, %v825, %v827
        %v829 = vrot.slane %v477, 2
        %v830 = vsel %vm807, %v827, %v829
        %v831 = vrot.slane %v478, 2
        %v832 = vsel %vm807, %v829, %v831
        %v833 = vrot.slane %v479, 2
        %v834 = vsel %vm807, %v831, %v833
        %v835 = vrot.slane %v480, 2
        %v836 = vsel %vm807, %v833, %v835
        %v837 = vrot.slane %v481, 2
        %v838 = vsel %vm807, %v835, %v837
        %v839 = vrot.slane %v482, 2
        %v840 = vsel %vm807, %v837, %v839
        %v841 = vrot.slane %v483, 2
        %v842 = vsel %vm807, %v839, %v841
        %v843 = vrot.slane %v484, 2
        %v844 = vsel %vm807, %v841, %v843
        %v845 = vrot.slane %v485, 2
        %v846 = vsel %vm807, %v843, %v845
        %v847 = vrot.slane %v486, 2
        %v848 = vsel %vm807, %v845, %v847
        %v849 = vrot.slane %v487, 2
        %v850 = vsel %vm807, %v847, %v849
        %v851 = vrot.slane %v488, 2
        %v852 = vsel %vm807, %v849, %v851
        %v853 = vrot.slane %v489, 2
        %v854 = vsel %vm807, %v851, %v853
        %v855 = vrot.slane %v490, 2
        %v856 = vsel %vm807, %v853, %v855
        %v857 = vrot.slane %v491, 2
        %v858 = vsel %vm807, %v855, %v857
        %v859 = vrot.slane %v492, 2
        %v860 = vsel %vm807, %v857, %v859
        %v861 = vrot.slane %v493, 2
        %v862 = vsel %vm807, %v859, %v861
        %v863 = vrot.slane %v494, 2
        %v864 = vsel %vm807, %v861, %v863
        %v865 = vrot.slane %v495, 2
        %v866 = vsel %vm807, %v863, %v865
        %v867 = vrot.slane %v496, 2
        %v868 = vsel %vm807, %v865, %v867
        %v869 = vrot.slane %v497, 2
        %v870 = vsel %vm807, %v867, %v869
        %v871 = vrot.slane %v498, 2
        %v872 = vsel %vm807, %v869, %v871
        %v873 = vrot.slane %v499, 2
        %v874 = vsel %vm807, %v871, %v873
        %v875 = vrot.slane %v500, 2
        %v876 = vsel %vm807, %v873, %v875
        %v877 = vrot.slane %v501, 2
        %v878 = vsel %vm807, %v875, %v877
        %v879 = vrot.slane %v502, 2
        %v880 = vsel %vm807, %v877, %v879
        %v881 = vrot.slane %v503, 2
        %v882 = vsel %vm807, %v879, %v881
        %v883 = vrot.slane %v504, 2
        %v884 = vsel %vm807, %v881, %v883
        %v885 = vrot.slane %v505, 2
        %v886 = vsel %vm807, %v883, %v885
        %v887 = vrot.slane %v506, 2
        %v888 = vsel %vm807, %v885, %v887
        %v889 = vrot.slane %v507, 2
        %v890 = vsel %vm807, %v887, %v889
        %v891 = vrot.slane %v508, 2
        %v892 = vsel %vm807, %v889, %v891
        %v893 = vrot.slane %v509, 2
        %v894 = vsel %vm807, %v891, %v893
        %v895 = vrot.slane %v510, 2
        %v896 = vsel %vm807, %v893, %v895
        %v897 = vrot.slane %v511, 2
        %v898 = vsel %vm807, %v895, %v897
        %v899 = vrot.slane %v512, 2
        %v900 = vsel %vm807, %v897, %v899
        %v901 = vrot.slane %v513, 2
        %v902 = vsel %vm807, %v899, %v901
        %903 = vrot.lane.b32.xlu0 %v810, 6
        %v904 = vpop.permute.xlu0 %903
        %905 = vrot.lane.b32.xlu0 %v812, 6
        %v906 = vpop.permute.xlu0 %905
        %907 = vrot.lane.b32.xlu0 %v814, 6
        %v908 = vpop.permute.xlu0 %907
        %909 = vrot.lane.b32.xlu0 %v816, 6
        %v910 = vpop.permute.xlu0 %909
        %911 = vrot.lane.b32.xlu0 %v818, 6
        %v912 = vpop.permute.xlu0 %911
        %913 = vrot.lane.b32.xlu0 %v820, 6
        %v914 = vpop.permute.xlu0 %913
        %915 = vrot.lane.b32.xlu0 %v822, 6
        %v916 = vpop.permute.xlu0 %915
        %917 = vrot.lane.b32.xlu0 %v824, 6
        %v918 = vpop.permute.xlu0 %917
        %919 = vrot.lane.b32.xlu0 %v826, 6
        %v920 = vpop.permute.xlu0 %919
        %921 = vrot.lane.b32.xlu0 %v828, 6
        %v922 = vpop.permute.xlu0 %921
        %923 = vrot.lane.b32.xlu0 %v830, 6
        %v924 = vpop.permute.xlu0 %923
        %925 = vrot.lane.b32.xlu0 %v832, 6
        %v926 = vpop.permute.xlu0 %925
        %927 = vrot.lane.b32.xlu0 %v834, 6
        %v928 = vpop.permute.xlu0 %927
        %929 = vrot.lane.b32.xlu0 %v836, 6
        %v930 = vpop.permute.xlu0 %929
        %931 = vrot.lane.b32.xlu0 %v838, 6
        %v932 = vpop.permute.xlu0 %931
        %933 = vrot.lane.b32.xlu0 %v840, 6
        %v934 = vpop.permute.xlu0 %933
        %935 = vrot.lane.b32.xlu0 %v842, 6
        %v936 = vpop.permute.xlu0 %935
        %937 = vrot.lane.b32.xlu0 %v844, 6
        %v938 = vpop.permute.xlu0 %937
        %939 = vrot.lane.b32.xlu0 %v846, 6
        %v940 = vpop.permute.xlu0 %939
        %941 = vrot.lane.b32.xlu0 %v848, 6
        %v942 = vpop.permute.xlu0 %941
        %943 = vrot.lane.b32.xlu0 %v850, 6
        %v944 = vpop.permute.xlu0 %943
        %945 = vrot.lane.b32.xlu0 %v852, 6
        %v946 = vpop.permute.xlu0 %945
        %947 = vrot.lane.b32.xlu0 %v854, 6
        %v948 = vpop.permute.xlu0 %947
        %949 = vrot.lane.b32.xlu0 %v856, 6
        %v950 = vpop.permute.xlu0 %949
        %951 = vrot.lane.b32.xlu0 %v858, 6
        %v952 = vpop.permute.xlu0 %951
        %953 = vrot.lane.b32.xlu0 %v860, 6
        %v954 = vpop.permute.xlu0 %953
        %955 = vrot.lane.b32.xlu0 %v862, 6
        %v956 = vpop.permute.xlu0 %955
        %957 = vrot.lane.b32.xlu0 %v864, 6
        %v958 = vpop.permute.xlu0 %957
        %959 = vrot.lane.b32.xlu0 %v866, 6
        %v960 = vpop.permute.xlu0 %959
        %961 = vrot.lane.b32.xlu0 %v868, 6
        %v962 = vpop.permute.xlu0 %961
        %963 = vrot.lane.b32.xlu0 %v870, 6
        %v964 = vpop.permute.xlu0 %963
        %965 = vrot.lane.b32.xlu0 %v872, 6
        %v966 = vpop.permute.xlu0 %965
        %967 = vrot.lane.b32.xlu0 %v874, 6
        %v968 = vpop.permute.xlu0 %967
        %969 = vrot.lane.b32.xlu0 %v876, 6
        %v970 = vpop.permute.xlu0 %969
        %971 = vrot.lane.b32.xlu0 %v878, 6
        %v972 = vpop.permute.xlu0 %971
        %973 = vrot.lane.b32.xlu0 %v880, 6
        %v974 = vpop.permute.xlu0 %973
        %975 = vrot.lane.b32.xlu0 %v882, 6
        %v976 = vpop.permute.xlu0 %975
        %977 = vrot.lane.b32.xlu0 %v884, 6
        %v978 = vpop.permute.xlu0 %977
        %979 = vrot.lane.b32.xlu0 %v886, 6
        %v980 = vpop.permute.xlu0 %979
        %981 = vrot.lane.b32.xlu0 %v888, 6
        %v982 = vpop.permute.xlu0 %981
        %983 = vrot.lane.b32.xlu0 %v890, 6
        %v984 = vpop.permute.xlu0 %983
        %985 = vrot.lane.b32.xlu0 %v892, 6
        %v986 = vpop.permute.xlu0 %985
        %987 = vrot.lane.b32.xlu0 %v894, 6
        %v988 = vpop.permute.xlu0 %987
        %989 = vrot.lane.b32.xlu0 %v896, 6
        %v990 = vpop.permute.xlu0 %989
        %991 = vrot.lane.b32.xlu0 %v898, 6
        %v992 = vpop.permute.xlu0 %991
        %993 = vrot.lane.b32.xlu0 %v900, 6
        %v994 = vpop.permute.xlu0 %993
        %995 = vrot.lane.b32.xlu0 %v902, 6
        %v996 = vpop.permute.xlu0 %995
        %997 = vrot.lane.b32.xlu0 %v901, 6
        %v998 = vpop.permute.xlu0 %997
        %vm1049 = vcmask 1043456
        %v1050 = vrot.slane %v468, 4
        %v1051 = vrot.slane %v469, 4
        %v1052 = vsel %vm1049, %v1050, %v1051
        %v1053 = vrot.slane %v470, 4
        %v1054 = vsel %vm1049, %v1051, %v1053
        %v1055 = vrot.slane %v471, 4
        %v1056 = vsel %vm1049, %v1053, %v1055
        %v1057 = vrot.slane %v472, 4
        %v1058 = vsel %vm1049, %v1055, %v1057
        %v1059 = vrot.slane %v473, 4
        %v1060 = vsel %vm1049, %v1057, %v1059
        %v1061 = vrot.slane %v474, 4
        %v1062 = vsel %vm1049, %v1059, %v1061
        %v1063 = vrot.slane %v475, 4
        %v1064 = vsel %vm1049, %v1061, %v1063
        %v1065 = vrot.slane %v476, 4
        %v1066 = vsel %vm1049, %v1063, %v1065
        %v1067 = vrot.slane %v477, 4
        %v1068 = vsel %vm1049, %v1065, %v1067
        %v1069 = vrot.slane %v478, 4
        %v1070 = vsel %vm1049, %v1067, %v1069
        %v1071 = vrot.slane %v479, 4
        %v1072 = vsel %vm1049, %v1069, %v1071
        %v1073 = vrot.slane %v480, 4
        %v1074 = vsel %vm1049, %v1071, %v1073
        %v1075 = vrot.slane %v481, 4
        %v1076 = vsel %vm1049, %v1073, %v1075
        %v1077 = vrot.slane %v482, 4
        %v1078 = vsel %vm1049, %v1075, %v1077
        %v1079 = vrot.slane %v483, 4
        %v1080 = vsel %vm1049, %v1077, %v1079
        %v1081 = vrot.slane %v484, 4
        %v1082 = vsel %vm1049, %v1079, %v1081
        %v1083 = vrot.slane %v485, 4
        %v1084 = vsel %vm1049, %v1081, %v1083
        %v1085 = vrot.slane %v486, 4
        %v1086 = vsel %vm1049, %v1083, %v1085
        %v1087 = vrot.slane %v487, 4
        %v1088 = vsel %vm1049, %v1085, %v1087
        %v1089 = vrot.slane %v488, 4
        %v1090 = vsel %vm1049, %v1087, %v1089
        %v1091 = vrot.slane %v489, 4
        %v1092 = vsel %vm1049, %v1089, %v1091
        %v1093 = vrot.slane %v490, 4
        %v1094 = vsel %vm1049, %v1091, %v1093
        %v1095 = vrot.slane %v491, 4
        %v1096 = vsel %vm1049, %v1093, %v1095
        %v1097 = vrot.slane %v492, 4
        %v1098 = vsel %vm1049, %v1095, %v1097
        %v1099 = vrot.slane %v493, 4
        %v1100 = vsel %vm1049, %v1097, %v1099
        %v1101 = vrot.slane %v494, 4
        %v1102 = vsel %vm1049, %v1099, %v1101
        %v1103 = vrot.slane %v495, 4
        %v1104 = vsel %vm1049, %v1101, %v1103
        %v1105 = vrot.slane %v496, 4
        %v1106 = vsel %vm1049, %v1103, %v1105
        %v1107 = vrot.slane %v497, 4
        %v1108 = vsel %vm1049, %v1105, %v1107
        %v1109 = vrot.slane %v498, 4
        %v1110 = vsel %vm1049, %v1107, %v1109
        %v1111 = vrot.slane %v499, 4
        %v1112 = vsel %vm1049, %v1109, %v1111
        %v1113 = vrot.slane %v500, 4
        %v1114 = vsel %vm1049, %v1111, %v1113
        %v1115 = vrot.slane %v501, 4
        %v1116 = vsel %vm1049, %v1113, %v1115
        %v1117 = vrot.slane %v502, 4
        %v1118 = vsel %vm1049, %v1115, %v1117
        %v1119 = vrot.slane %v503, 4
        %v1120 = vsel %vm1049, %v1117, %v1119
        %v1121 = vrot.slane %v504, 4
        %v1122 = vsel %vm1049, %v1119, %v1121
        %v1123 = vrot.slane %v505, 4
        %v1124 = vsel %vm1049, %v1121, %v1123
        %v1125 = vrot.slane %v506, 4
        %v1126 = vsel %vm1049, %v1123, %v1125
        %v1127 = vrot.slane %v507, 4
        %v1128 = vsel %vm1049, %v1125, %v1127
        %v1129 = vrot.slane %v508, 4
        %v1130 = vsel %vm1049, %v1127, %v1129
        %v1131 = vrot.slane %v509, 4
        %v1132 = vsel %vm1049, %v1129, %v1131
        %v1133 = vrot.slane %v510, 4
        %v1134 = vsel %vm1049, %v1131, %v1133
        %v1135 = vrot.slane %v511, 4
        %v1136 = vsel %vm1049, %v1133, %v1135
        %v1137 = vrot.slane %v512, 4
        %v1138 = vsel %vm1049, %v1135, %v1137
        %v1139 = vrot.slane %v513, 4
        %v1140 = vsel %vm1049, %v1137, %v1139
        %v1141 = vrot.slane %v514, 4
        %v1142 = vsel %vm1049, %v1139, %v1141
        %v1143 = vrot.slane %v515, 4
        %v1144 = vsel %vm1049, %v1141, %v1143
        %1145 = vrot.lane.b32.xlu0 %v1052, 9
        %v1146 = vpop.permute.xlu0 %1145
        %1147 = vrot.lane.b32.xlu0 %v1054, 9
        %v1148 = vpop.permute.xlu0 %1147
        %1149 = vrot.lane.b32.xlu0 %v1056, 9
        %v1150 = vpop.permute.xlu0 %1149
        %1151 = vrot.lane.b32.xlu0 %v1058, 9
        %v1152 = vpop.permute.xlu0 %1151
        %1153 = vrot.lane.b32.xlu0 %v1060, 9
        %v1154 = vpop.permute.xlu0 %1153
        %1155 = vrot.lane.b32.xlu0 %v1062, 9
        %v1156 = vpop.permute.xlu0 %1155
        %1157 = vrot.lane.b32.xlu0 %v1064, 9
        %v1158 = vpop.permute.xlu0 %1157
        %1159 = vrot.lane.b32.xlu0 %v1066, 9
        %v1160 = vpop.permute.xlu0 %1159
        %1161 = vrot.lane.b32.xlu0 %v1068, 9
        %v1162 = vpop.permute.xlu0 %1161
        %1163 = vrot.lane.b32.xlu0 %v1070, 9
        %v1164 = vpop.permute.xlu0 %1163
        %1165 = vrot.lane.b32.xlu0 %v1072, 9
        %v1166 = vpop.permute.xlu0 %1165
        %1167 = vrot.lane.b32.xlu0 %v1074, 9
        %v1168 = vpop.permute.xlu0 %1167
        %1169 = vrot.lane.b32.xlu0 %v1076, 9
        %v1170 = vpop.permute.xlu0 %1169
        %1171 = vrot.lane.b32.xlu0 %v1078, 9
        %v1172 = vpop.permute.xlu0 %1171
        %1173 = vrot.lane.b32.xlu0 %v1080, 9
        %v1174 = vpop.permute.xlu0 %1173
        %1175 = vrot.lane.b32.xlu0 %v1082, 9
        %v1176 = vpop.permute.xlu0 %1175
        %1177 = vrot.lane.b32.xlu0 %v1084, 9
        %v1178 = vpop.permute.xlu0 %1177
        %1179 = vrot.lane.b32.xlu0 %v1086, 9
        %v1180 = vpop.permute.xlu0 %1179
        %1181 = vrot.lane.b32.xlu0 %v1088, 9
        %v1182 = vpop.permute.xlu0 %1181
        %1183 = vrot.lane.b32.xlu0 %v1090, 9
        %v1184 = vpop.permute.xlu0 %1183
        %1185 = vrot.lane.b32.xlu0 %v1092, 9
        %v1186 = vpop.permute.xlu0 %1185
        %1187 = vrot.lane.b32.xlu0 %v1094, 9
        %v1188 = vpop.permute.xlu0 %1187
        %1189 = vrot.lane.b32.xlu0 %v1096, 9
        %v1190 = vpop.permute.xlu0 %1189
        %1191 = vrot.lane.b32.xlu0 %v1098, 9
        %v1192 = vpop.permute.xlu0 %1191
        %1193 = vrot.lane.b32.xlu0 %v1100, 9
        %v1194 = vpop.permute.xlu0 %1193
        %1195 = vrot.lane.b32.xlu0 %v1102, 9
        %v1196 = vpop.permute.xlu0 %1195
        %1197 = vrot.lane.b32.xlu0 %v1104, 9
        %v1198 = vpop.permute.xlu0 %1197
        %1199 = vrot.lane.b32.xlu0 %v1106, 9
        %v1200 = vpop.permute.xlu0 %1199
        %1201 = vrot.lane.b32.xlu0 %v1108, 9
        %v1202 = vpop.permute.xlu0 %1201
        %1203 = vrot.lane.b32.xlu0 %v1110, 9
        %v1204 = vpop.permute.xlu0 %1203
        %1205 = vrot.lane.b32.xlu0 %v1112, 9
        %v1206 = vpop.permute.xlu0 %1205
        %1207 = vrot.lane.b32.xlu0 %v1114, 9
        %v1208 = vpop.permute.xlu0 %1207
        %1209 = vrot.lane.b32.xlu0 %v1116, 9
        %v1210 = vpop.permute.xlu0 %1209
        %1211 = vrot.lane.b32.xlu0 %v1118, 9
        %v1212 = vpop.permute.xlu0 %1211
        %1213 = vrot.lane.b32.xlu0 %v1120, 9
        %v1214 = vpop.permute.xlu0 %1213
        %1215 = vrot.lane.b32.xlu0 %v1122, 9
        %v1216 = vpop.permute.xlu0 %1215
        %1217 = vrot.lane.b32.xlu0 %v1124, 9
        %v1218 = vpop.permute.xlu0 %1217
        %1219 = vrot.lane.b32.xlu0 %v1126, 9
        %v1220 = vpop.permute.xlu0 %1219
        %1221 = vrot.lane.b32.xlu0 %v1128, 9
        %v1222 = vpop.permute.xlu0 %1221
        %1223 = vrot.lane.b32.xlu0 %v1130, 9
        %v1224 = vpop.permute.xlu0 %1223
        %1225 = vrot.lane.b32.xlu0 %v1132, 9
        %v1226 = vpop.permute.xlu0 %1225
        %1227 = vrot.lane.b32.xlu0 %v1134, 9
        %v1228 = vpop.permute.xlu0 %1227
        %1229 = vrot.lane.b32.xlu0 %v1136, 9
        %v1230 = vpop.permute.xlu0 %1229
        %1231 = vrot.lane.b32.xlu0 %v1138, 9
        %v1232 = vpop.permute.xlu0 %1231
        %1233 = vrot.lane.b32.xlu0 %v1140, 9
        %v1234 = vpop.permute.xlu0 %1233
        %1235 = vrot.lane.b32.xlu0 %v1142, 9
        %v1236 = vpop.permute.xlu0 %1235
        %1237 = vrot.lane.b32.xlu0 %v1144, 9
        %v1238 = vpop.permute.xlu0 %1237
        %1239 = vrot.lane.b32.xlu0 %v1143, 9
        %v1240 = vpop.permute.xlu0 %1239
        %vm1290 = vcmask 1042432
        %v1291 = vrot.slane %v468, 5
        %v1292 = vrot.slane %v469, 5
        %v1293 = vsel %vm1290, %v1291, %v1292
        %v1294 = vrot.slane %v470, 5
        %v1295 = vsel %vm1290, %v1292, %v1294
        %v1296 = vrot.slane %v471, 5
        %v1297 = vsel %vm1290, %v1294, %v1296
        %v1298 = vrot.slane %v472, 5
        %v1299 = vsel %vm1290, %v1296, %v1298
        %v1300 = vrot.slane %v473, 5
        %v1301 = vsel %vm1290, %v1298, %v1300
        %v1302 = vrot.slane %v474, 5
        %v1303 = vsel %vm1290, %v1300, %v1302
        %v1304 = vrot.slane %v475, 5
        %v1305 = vsel %vm1290, %v1302, %v1304
        %v1306 = vrot.slane %v476, 5
        %v1307 = vsel %vm1290, %v1304, %v1306
        %v1308 = vrot.slane %v477, 5
        %v1309 = vsel %vm1290, %v1306, %v1308
        %v1310 = vrot.slane %v478, 5
        %v1311 = vsel %vm1290, %v1308, %v1310
        %v1312 = vrot.slane %v479, 5
        %v1313 = vsel %vm1290, %v1310, %v1312
        %v1314 = vrot.slane %v480, 5
        %v1315 = vsel %vm1290, %v1312, %v1314
        %v1316 = vrot.slane %v481, 5
        %v1317 = vsel %vm1290, %v1314, %v1316
        %v1318 = vrot.slane %v482, 5
        %v1319 = vsel %vm1290, %v1316, %v1318
        %v1320 = vrot.slane %v483, 5
        %v1321 = vsel %vm1290, %v1318, %v1320
        %v1322 = vrot.slane %v484, 5
        %v1323 = vsel %vm1290, %v1320, %v1322
        %v1324 = vrot.slane %v485, 5
        %v1325 = vsel %vm1290, %v1322, %v1324
        %v1326 = vrot.slane %v486, 5
        %v1327 = vsel %vm1290, %v1324, %v1326
        %v1328 = vrot.slane %v487, 5
        %v1329 = vsel %vm1290, %v1326, %v1328
        %v1330 = vrot.slane %v488, 5
        %v1331 = vsel %vm1290, %v1328, %v1330
        %v1332 = vrot.slane %v489, 5
        %v1333 = vsel %vm1290, %v1330, %v1332
        %v1334 = vrot.slane %v490, 5
        %v1335 = vsel %vm1290, %v1332, %v1334
        %v1336 = vrot.slane %v491, 5
        %v1337 = vsel %vm1290, %v1334, %v1336
        %v1338 = vrot.slane %v492, 5
        %v1339 = vsel %vm1290, %v1336, %v1338
        %v1340 = vrot.slane %v493, 5
        %v1341 = vsel %vm1290, %v1338, %v1340
        %v1342 = vrot.slane %v494, 5
        %v1343 = vsel %vm1290, %v1340, %v1342
        %v1344 = vrot.slane %v495, 5
        %v1345 = vsel %vm1290, %v1342, %v1344
        %v1346 = vrot.slane %v496, 5
        %v1347 = vsel %vm1290, %v1344, %v1346
        %v1348 = vrot.slane %v497, 5
        %v1349 = vsel %vm1290, %v1346, %v1348
        %v1350 = vrot.slane %v498, 5
        %v1351 = vsel %vm1290, %v1348, %v1350
        %v1352 = vrot.slane %v499, 5
        %v1353 = vsel %vm1290, %v1350, %v1352
        %v1354 = vrot.slane %v500, 5
        %v1355 = vsel %vm1290, %v1352, %v1354
        %v1356 = vrot.slane %v501, 5
        %v1357 = vsel %vm1290, %v1354, %v1356
        %v1358 = vrot.slane %v502, 5
        %v1359 = vsel %vm1290, %v1356, %v1358
        %v1360 = vrot.slane %v503, 5
        %v1361 = vsel %vm1290, %v1358, %v1360
        %v1362 = vrot.slane %v504, 5
        %v1363 = vsel %vm1290, %v1360, %v1362
        %v1364 = vrot.slane %v505, 5
        %v1365 = vsel %vm1290, %v1362, %v1364
        %v1366 = vrot.slane %v506, 5
        %v1367 = vsel %vm1290, %v1364, %v1366
        %v1368 = vrot.slane %v507, 5
        %v1369 = vsel %vm1290, %v1366, %v1368
        %v1370 = vrot.slane %v508, 5
        %v1371 = vsel %vm1290, %v1368, %v1370
        %v1372 = vrot.slane %v509, 5
        %v1373 = vsel %vm1290, %v1370, %v1372
        %v1374 = vrot.slane %v510, 5
        %v1375 = vsel %vm1290, %v1372, %v1374
        %v1376 = vrot.slane %v511, 5
        %v1377 = vsel %vm1290, %v1374, %v1376
        %v1378 = vrot.slane %v512, 5
        %v1379 = vsel %vm1290, %v1376, %v1378
        %v1380 = vrot.slane %v513, 5
        %v1381 = vsel %vm1290, %v1378, %v1380
        %v1382 = vrot.slane %v514, 5
        %v1383 = vsel %vm1290, %v1380, %v1382
        %v1384 = vrot.slane %v515, 5
        %v1385 = vsel %vm1290, %v1382, %v1384
        %v1386 = vrot.slane %v516, 5
        %v1387 = vsel %vm1290, %v1384, %v1386
        %1388 = vrot.lane.b32.xlu0 %v1293, 12
        %v1389 = vpop.permute.xlu0 %1388
        %1390 = vrot.lane.b32.xlu0 %v1295, 12
        %v1391 = vpop.permute.xlu0 %1390
        %1392 = vrot.lane.b32.xlu0 %v1297, 12
        %v1393 = vpop.permute.xlu0 %1392
        %1394 = vrot.lane.b32.xlu0 %v1299, 12
        %v1395 = vpop.permute.xlu0 %1394
        %1396 = vrot.lane.b32.xlu0 %v1301, 12
        %v1397 = vpop.permute.xlu0 %1396
        %1398 = vrot.lane.b32.xlu0 %v1303, 12
        %v1399 = vpop.permute.xlu0 %1398
        %1400 = vrot.lane.b32.xlu0 %v1305, 12
        %v1401 = vpop.permute.xlu0 %1400
        %1402 = vrot.lane.b32.xlu0 %v1307, 12
        %v1403 = vpop.permute.xlu0 %1402
        %1404 = vrot.lane.b32.xlu0 %v1309, 12
        %v1405 = vpop.permute.xlu0 %1404
        %1406 = vrot.lane.b32.xlu0 %v1311, 12
        %v1407 = vpop.permute.xlu0 %1406
        %1408 = vrot.lane.b32.xlu0 %v1313, 12
        %v1409 = vpop.permute.xlu0 %1408
        %1410 = vrot.lane.b32.xlu0 %v1315, 12
        %v1411 = vpop.permute.xlu0 %1410
        %1412 = vrot.lane.b32.xlu0 %v1317, 12
        %v1413 = vpop.permute.xlu0 %1412
        %1414 = vrot.lane.b32.xlu0 %v1319, 12
        %v1415 = vpop.permute.xlu0 %1414
        %1416 = vrot.lane.b32.xlu0 %v1321, 12
        %v1417 = vpop.permute.xlu0 %1416
        %1418 = vrot.lane.b32.xlu0 %v1323, 12
        %v1419 = vpop.permute.xlu0 %1418
        %1420 = vrot.lane.b32.xlu0 %v1325, 12
        %v1421 = vpop.permute.xlu0 %1420
        %1422 = vrot.lane.b32.xlu0 %v1327, 12
        %v1423 = vpop.permute.xlu0 %1422
        %1424 = vrot.lane.b32.xlu0 %v1329, 12
        %v1425 = vpop.permute.xlu0 %1424
        %1426 = vrot.lane.b32.xlu0 %v1331, 12
        %v1427 = vpop.permute.xlu0 %1426
        %1428 = vrot.lane.b32.xlu0 %v1333, 12
        %v1429 = vpop.permute.xlu0 %1428
        %1430 = vrot.lane.b32.xlu0 %v1335, 12
        %v1431 = vpop.permute.xlu0 %1430
        %1432 = vrot.lane.b32.xlu0 %v1337, 12
        %v1433 = vpop.permute.xlu0 %1432
        %1434 = vrot.lane.b32.xlu0 %v1339, 12
        %v1435 = vpop.permute.xlu0 %1434
        %1436 = vrot.lane.b32.xlu0 %v1341, 12
        %v1437 = vpop.permute.xlu0 %1436
        %1438 = vrot.lane.b32.xlu0 %v1343, 12
        %v1439 = vpop.permute.xlu0 %1438
        %1440 = vrot.lane.b32.xlu0 %v1345, 12
        %v1441 = vpop.permute.xlu0 %1440
        %1442 = vrot.lane.b32.xlu0 %v1347, 12
        %v1443 = vpop.permute.xlu0 %1442
        %1444 = vrot.lane.b32.xlu0 %v1349, 12
        %v1445 = vpop.permute.xlu0 %1444
        %1446 = vrot.lane.b32.xlu0 %v1351, 12
        %v1447 = vpop.permute.xlu0 %1446
        %1448 = vrot.lane.b32.xlu0 %v1353, 12
        %v1449 = vpop.permute.xlu0 %1448
        %1450 = vrot.lane.b32.xlu0 %v1355, 12
        %v1451 = vpop.permute.xlu0 %1450
        %1452 = vrot.lane.b32.xlu0 %v1357, 12
        %v1453 = vpop.permute.xlu0 %1452
        %1454 = vrot.lane.b32.xlu0 %v1359, 12
        %v1455 = vpop.permute.xlu0 %1454
        %1456 = vrot.lane.b32.xlu0 %v1361, 12
        %v1457 = vpop.permute.xlu0 %1456
        %1458 = vrot.lane.b32.xlu0 %v1363, 12
        %v1459 = vpop.permute.xlu0 %1458
        %1460 = vrot.lane.b32.xlu0 %v1365, 12
        %v1461 = vpop.permute.xlu0 %1460
        %1462 = vrot.lane.b32.xlu0 %v1367, 12
        %v1463 = vpop.permute.xlu0 %1462
        %1464 = vrot.lane.b32.xlu0 %v1369, 12
        %v1465 = vpop.permute.xlu0 %1464
        %1466 = vrot.lane.b32.xlu0 %v1371, 12
        %v1467 = vpop.permute.xlu0 %1466
        %1468 = vrot.lane.b32.xlu0 %v1373, 12
        %v1469 = vpop.permute.xlu0 %1468
        %1470 = vrot.lane.b32.xlu0 %v1375, 12
        %v1471 = vpop.permute.xlu0 %1470
        %1472 = vrot.lane.b32.xlu0 %v1377, 12
        %v1473 = vpop.permute.xlu0 %1472
        %1474 = vrot.lane.b32.xlu0 %v1379, 12
        %v1475 = vpop.permute.xlu0 %1474
        %1476 = vrot.lane.b32.xlu0 %v1381, 12
        %v1477 = vpop.permute.xlu0 %1476
        %1478 = vrot.lane.b32.xlu0 %v1383, 12
        %v1479 = vpop.permute.xlu0 %1478
        %1480 = vrot.lane.b32.xlu0 %v1385, 12
        %v1481 = vpop.permute.xlu0 %1480
        %1482 = vrot.lane.b32.xlu0 %v1387, 12
        %v1483 = vpop.permute.xlu0 %1482
        %vm1532 = vcmask 1041408
        %v1533 = vrot.slane %v468, 6
        %v1534 = vrot.slane %v469, 6
        %v1535 = vsel %vm1532, %v1533, %v1534
        %v1536 = vrot.slane %v470, 6
        %v1537 = vsel %vm1532, %v1534, %v1536
        %v1538 = vrot.slane %v471, 6
        %v1539 = vsel %vm1532, %v1536, %v1538
        %v1540 = vrot.slane %v472, 6
        %v1541 = vsel %vm1532, %v1538, %v1540
        %v1542 = vrot.slane %v473, 6
        %v1543 = vsel %vm1532, %v1540, %v1542
        %v1544 = vrot.slane %v474, 6
        %v1545 = vsel %vm1532, %v1542, %v1544
        %v1546 = vrot.slane %v475, 6
        %v1547 = vsel %vm1532, %v1544, %v1546
        %v1548 = vrot.slane %v476, 6
        %v1549 = vsel %vm1532, %v1546, %v1548
        %v1550 = vrot.slane %v477, 6
        %v1551 = vsel %vm1532, %v1548, %v1550
        %v1552 = vrot.slane %v478, 6
        %v1553 = vsel %vm1532, %v1550, %v1552
        %v1554 = vrot.slane %v479, 6
        %v1555 = vsel %vm1532, %v1552, %v1554
        %v1556 = vrot.slane %v480, 6
        %v1557 = vsel %vm1532, %v1554, %v1556
        %v1558 = vrot.slane %v481, 6
        %v1559 = vsel %vm1532, %v1556, %v1558
        %v1560 = vrot.slane %v482, 6
        %v1561 = vsel %vm1532, %v1558, %v1560
        %v1562 = vrot.slane %v483, 6
        %v1563 = vsel %vm1532, %v1560, %v1562
        %v1564 = vrot.slane %v484, 6
        %v1565 = vsel %vm1532, %v1562, %v1564
        %v1566 = vrot.slane %v485, 6
        %v1567 = vsel %vm1532, %v1564, %v1566
        %v1568 = vrot.slane %v486, 6
        %v1569 = vsel %vm1532, %v1566, %v1568
        %v1570 = vrot.slane %v487, 6
        %v1571 = vsel %vm1532, %v1568, %v1570
        %v1572 = vrot.slane %v488, 6
        %v1573 = vsel %vm1532, %v1570, %v1572
        %v1574 = vrot.slane %v489, 6
        %v1575 = vsel %vm1532, %v1572, %v1574
        %v1576 = vrot.slane %v490, 6
        %v1577 = vsel %vm1532, %v1574, %v1576
        %v1578 = vrot.slane %v491, 6
        %v1579 = vsel %vm1532, %v1576, %v1578
        %v1580 = vrot.slane %v492, 6
        %v1581 = vsel %vm1532, %v1578, %v1580
        %v1582 = vrot.slane %v493, 6
        %v1583 = vsel %vm1532, %v1580, %v1582
        %v1584 = vrot.slane %v494, 6
        %v1585 = vsel %vm1532, %v1582, %v1584
        %v1586 = vrot.slane %v495, 6
        %v1587 = vsel %vm1532, %v1584, %v1586
        %v1588 = vrot.slane %v496, 6
        %v1589 = vsel %vm1532, %v1586, %v1588
        %v1590 = vrot.slane %v497, 6
        %v1591 = vsel %vm1532, %v1588, %v1590
        %v1592 = vrot.slane %v498, 6
        %v1593 = vsel %vm1532, %v1590, %v1592
        %v1594 = vrot.slane %v499, 6
        %v1595 = vsel %vm1532, %v1592, %v1594
        %v1596 = vrot.slane %v500, 6
        %v1597 = vsel %vm1532, %v1594, %v1596
        %v1598 = vrot.slane %v501, 6
        %v1599 = vsel %vm1532, %v1596, %v1598
        %v1600 = vrot.slane %v502, 6
        %v1601 = vsel %vm1532, %v1598, %v1600
        %v1602 = vrot.slane %v503, 6
        %v1603 = vsel %vm1532, %v1600, %v1602
        %v1604 = vrot.slane %v504, 6
        %v1605 = vsel %vm1532, %v1602, %v1604
        %v1606 = vrot.slane %v505, 6
        %v1607 = vsel %vm1532, %v1604, %v1606
        %v1608 = vrot.slane %v506, 6
        %v1609 = vsel %vm1532, %v1606, %v1608
        %v1610 = vrot.slane %v507, 6
        %v1611 = vsel %vm1532, %v1608, %v1610
        %v1612 = vrot.slane %v508, 6
        %v1613 = vsel %vm1532, %v1610, %v1612
        %v1614 = vrot.slane %v509, 6
        %v1615 = vsel %vm1532, %v1612, %v1614
        %v1616 = vrot.slane %v510, 6
        %v1617 = vsel %vm1532, %v1614, %v1616
        %v1618 = vrot.slane %v511, 6
        %v1619 = vsel %vm1532, %v1616, %v1618
        %v1620 = vrot.slane %v512, 6
        %v1621 = vsel %vm1532, %v1618, %v1620
        %v1622 = vrot.slane %v513, 6
        %v1623 = vsel %vm1532, %v1620, %v1622
        %v1624 = vrot.slane %v514, 6
        %v1625 = vsel %vm1532, %v1622, %v1624
        %v1626 = vrot.slane %v515, 6
        %v1627 = vsel %vm1532, %v1624, %v1626
        %v1628 = vrot.slane %v516, 6
        %v1629 = vsel %vm1532, %v1626, %v1628
        %1630 = vrot.lane.b32.xlu0 %v1535, 15
        %v1631 = vpop.permute.xlu0 %1630
        %1632 = vrot.lane.b32.xlu0 %v1537, 15
        %v1633 = vpop.permute.xlu0 %1632
        %1634 = vrot.lane.b32.xlu0 %v1539, 15
        %v1635 = vpop.permute.xlu0 %1634
        %1636 = vrot.lane.b32.xlu0 %v1541, 15
        %v1637 = vpop.permute.xlu0 %1636
        %1638 = vrot.lane.b32.xlu0 %v1543, 15
        %v1639 = vpop.permute.xlu0 %1638
        %1640 = vrot.lane.b32.xlu0 %v1545, 15
        %v1641 = vpop.permute.xlu0 %1640
        %1642 = vrot.lane.b32.xlu0 %v1547, 15
        %v1643 = vpop.permute.xlu0 %1642
        %1644 = vrot.lane.b32.xlu0 %v1549, 15
        %v1645 = vpop.permute.xlu0 %1644
        %1646 = vrot.lane.b32.xlu0 %v1551, 15
        %v1647 = vpop.permute.xlu0 %1646
        %1648 = vrot.lane.b32.xlu0 %v1553, 15
        %v1649 = vpop.permute.xlu0 %1648
        %1650 = vrot.lane.b32.xlu0 %v1555, 15
        %v1651 = vpop.permute.xlu0 %1650
        %1652 = vrot.lane.b32.xlu0 %v1557, 15
        %v1653 = vpop.permute.xlu0 %1652
        %1654 = vrot.lane.b32.xlu0 %v1559, 15
        %v1655 = vpop.permute.xlu0 %1654
        %1656 = vrot.lane.b32.xlu0 %v1561, 15
        %v1657 = vpop.permute.xlu0 %1656
        %1658 = vrot.lane.b32.xlu0 %v1563, 15
        %v1659 = vpop.permute.xlu0 %1658
        %1660 = vrot.lane.b32.xlu0 %v1565, 15
        %v1661 = vpop.permute.xlu0 %1660
        %1662 = vrot.lane.b32.xlu0 %v1567, 15
        %v1663 = vpop.permute.xlu0 %1662
        %1664 = vrot.lane.b32.xlu0 %v1569, 15
        %v1665 = vpop.permute.xlu0 %1664
        %1666 = vrot.lane.b32.xlu0 %v1571, 15
        %v1667 = vpop.permute.xlu0 %1666
        %1668 = vrot.lane.b32.xlu0 %v1573, 15
        %v1669 = vpop.permute.xlu0 %1668
        %1670 = vrot.lane.b32.xlu0 %v1575, 15
        %v1671 = vpop.permute.xlu0 %1670
        %1672 = vrot.lane.b32.xlu0 %v1577, 15
        %v1673 = vpop.permute.xlu0 %1672
        %1674 = vrot.lane.b32.xlu0 %v1579, 15
        %v1675 = vpop.permute.xlu0 %1674
        %1676 = vrot.lane.b32.xlu0 %v1581, 15
        %v1677 = vpop.permute.xlu0 %1676
        %1678 = vrot.lane.b32.xlu0 %v1583, 15
        %v1679 = vpop.permute.xlu0 %1678
        %1680 = vrot.lane.b32.xlu0 %v1585, 15
        %v1681 = vpop.permute.xlu0 %1680
        %1682 = vrot.lane.b32.xlu0 %v1587, 15
        %v1683 = vpop.permute.xlu0 %1682
        %1684 = vrot.lane.b32.xlu0 %v1589, 15
        %v1685 = vpop.permute.xlu0 %1684
        %1686 = vrot.lane.b32.xlu0 %v1591, 15
        %v1687 = vpop.permute.xlu0 %1686
        %1688 = vrot.lane.b32.xlu0 %v1593, 15
        %v1689 = vpop.permute.xlu0 %1688
        %1690 = vrot.lane.b32.xlu0 %v1595, 15
        %v1691 = vpop.permute.xlu0 %1690
        %1692 = vrot.lane.b32.xlu0 %v1597, 15
        %v1693 = vpop.permute.xlu0 %1692
        %1694 = vrot.lane.b32.xlu0 %v1599, 15
        %v1695 = vpop.permute.xlu0 %1694
        %1696 = vrot.lane.b32.xlu0 %v1601, 15
        %v1697 = vpop.permute.xlu0 %1696
        %1698 = vrot.lane.b32.xlu0 %v1603, 15
        %v1699 = vpop.permute.xlu0 %1698
        %1700 = vrot.lane.b32.xlu0 %v1605, 15
        %v1701 = vpop.permute.xlu0 %1700
        %1702 = vrot.lane.b32.xlu0 %v1607, 15
        %v1703 = vpop.permute.xlu0 %1702
        %1704 = vrot.lane.b32.xlu0 %v1609, 15
        %v1705 = vpop.permute.xlu0 %1704
        %1706 = vrot.lane.b32.xlu0 %v1611, 15
        %v1707 = vpop.permute.xlu0 %1706
        %1708 = vrot.lane.b32.xlu0 %v1613, 15
        %v1709 = vpop.permute.xlu0 %1708
        %1710 = vrot.lane.b32.xlu0 %v1615, 15
        %v1711 = vpop.permute.xlu0 %1710
        %1712 = vrot.lane.b32.xlu0 %v1617, 15
        %v1713 = vpop.permute.xlu0 %1712
        %1714 = vrot.lane.b32.xlu0 %v1619, 15
        %v1715 = vpop.permute.xlu0 %1714
        %1716 = vrot.lane.b32.xlu0 %v1621, 15
        %v1717 = vpop.permute.xlu0 %1716
        %1718 = vrot.lane.b32.xlu0 %v1623, 15
        %v1719 = vpop.permute.xlu0 %1718
        %1720 = vrot.lane.b32.xlu0 %v1625, 15
        %v1721 = vpop.permute.xlu0 %1720
        %1722 = vrot.lane.b32.xlu0 %v1627, 15
        %v1723 = vpop.permute.xlu0 %1722
        %1724 = vrot.lane.b32.xlu0 %v1629, 15
        %v1725 = vpop.permute.xlu0 %1724
        %1776 = vrot.lane.b32.xlu0 %v471, 18
        %v1777 = vpop.permute.xlu0 %1776
        %1778 = vrot.lane.b32.xlu0 %v472, 18
        %v1779 = vpop.permute.xlu0 %1778
        %1780 = vrot.lane.b32.xlu0 %v473, 18
        %v1781 = vpop.permute.xlu0 %1780
        %1782 = vrot.lane.b32.xlu0 %v474, 18
        %v1783 = vpop.permute.xlu0 %1782
        %1784 = vrot.lane.b32.xlu0 %v475, 18
        %v1785 = vpop.permute.xlu0 %1784
        %1786 = vrot.lane.b32.xlu0 %v476, 18
        %v1787 = vpop.permute.xlu0 %1786
        %1788 = vrot.lane.b32.xlu0 %v477, 18
        %v1789 = vpop.permute.xlu0 %1788
        %1790 = vrot.lane.b32.xlu0 %v478, 18
        %v1791 = vpop.permute.xlu0 %1790
        %1792 = vrot.lane.b32.xlu0 %v479, 18
        %v1793 = vpop.permute.xlu0 %1792
        %1794 = vrot.lane.b32.xlu0 %v480, 18
        %v1795 = vpop.permute.xlu0 %1794
        %1796 = vrot.lane.b32.xlu0 %v481, 18
        %v1797 = vpop.permute.xlu0 %1796
        %1798 = vrot.lane.b32.xlu0 %v482, 18
        %v1799 = vpop.permute.xlu0 %1798
        %1800 = vrot.lane.b32.xlu0 %v483, 18
        %v1801 = vpop.permute.xlu0 %1800
        %1802 = vrot.lane.b32.xlu0 %v484, 18
        %v1803 = vpop.permute.xlu0 %1802
        %1804 = vrot.lane.b32.xlu0 %v485, 18
        %v1805 = vpop.permute.xlu0 %1804
        %1806 = vrot.lane.b32.xlu0 %v486, 18
        %v1807 = vpop.permute.xlu0 %1806
        %1808 = vrot.lane.b32.xlu0 %v487, 18
        %v1809 = vpop.permute.xlu0 %1808
        %1810 = vrot.lane.b32.xlu0 %v488, 18
        %v1811 = vpop.permute.xlu0 %1810
        %1812 = vrot.lane.b32.xlu0 %v489, 18
        %v1813 = vpop.permute.xlu0 %1812
        %1814 = vrot.lane.b32.xlu0 %v490, 18
        %v1815 = vpop.permute.xlu0 %1814
        %1816 = vrot.lane.b32.xlu0 %v491, 18
        %v1817 = vpop.permute.xlu0 %1816
        %1818 = vrot.lane.b32.xlu0 %v492, 18
        %v1819 = vpop.permute.xlu0 %1818
        %1820 = vrot.lane.b32.xlu0 %v493, 18
        %v1821 = vpop.permute.xlu0 %1820
        %1822 = vrot.lane.b32.xlu0 %v494, 18
        %v1823 = vpop.permute.xlu0 %1822
        %1824 = vrot.lane.b32.xlu0 %v495, 18
        %v1825 = vpop.permute.xlu0 %1824
        %1826 = vrot.lane.b32.xlu0 %v496, 18
        %v1827 = vpop.permute.xlu0 %1826
        %1828 = vrot.lane.b32.xlu0 %v497, 18
        %v1829 = vpop.permute.xlu0 %1828
        %1830 = vrot.lane.b32.xlu0 %v498, 18
        %v1831 = vpop.permute.xlu0 %1830
        %1832 = vrot.lane.b32.xlu0 %v499, 18
        %v1833 = vpop.permute.xlu0 %1832
        %1834 = vrot.lane.b32.xlu0 %v500, 18
        %v1835 = vpop.permute.xlu0 %1834
        %1836 = vrot.lane.b32.xlu0 %v501, 18
        %v1837 = vpop.permute.xlu0 %1836
        %1838 = vrot.lane.b32.xlu0 %v502, 18
        %v1839 = vpop.permute.xlu0 %1838
        %1840 = vrot.lane.b32.xlu0 %v503, 18
        %v1841 = vpop.permute.xlu0 %1840
        %1842 = vrot.lane.b32.xlu0 %v504, 18
        %v1843 = vpop.permute.xlu0 %1842
        %1844 = vrot.lane.b32.xlu0 %v505, 18
        %v1845 = vpop.permute.xlu0 %1844
        %1846 = vrot.lane.b32.xlu0 %v506, 18
        %v1847 = vpop.permute.xlu0 %1846
        %1848 = vrot.lane.b32.xlu0 %v507, 18
        %v1849 = vpop.permute.xlu0 %1848
        %1850 = vrot.lane.b32.xlu0 %v508, 18
        %v1851 = vpop.permute.xlu0 %1850
        %1852 = vrot.lane.b32.xlu0 %v509, 18
        %v1853 = vpop.permute.xlu0 %1852
        %1854 = vrot.lane.b32.xlu0 %v510, 18
        %v1855 = vpop.permute.xlu0 %1854
        %1856 = vrot.lane.b32.xlu0 %v511, 18
        %v1857 = vpop.permute.xlu0 %1856
        %1858 = vrot.lane.b32.xlu0 %v512, 18
        %v1859 = vpop.permute.xlu0 %1858
        %1860 = vrot.lane.b32.xlu0 %v513, 18
        %v1861 = vpop.permute.xlu0 %1860
        %1862 = vrot.lane.b32.xlu0 %v514, 18
        %v1863 = vpop.permute.xlu0 %1862
        %1864 = vrot.lane.b32.xlu0 %v515, 18
        %v1865 = vpop.permute.xlu0 %1864
        %1866 = vrot.lane.b32.xlu0 %v516, 18
        %v1867 = vpop.permute.xlu0 %1866
        %1868 = vrot.lane.b32.xlu0 %v517, 18
        %v1869 = vpop.permute.xlu0 %1868
        %1870 = vrot.lane.b32.xlu0 %v518, 18
        %v1871 = vpop.permute.xlu0 %1870
        %v1920 = vrot.slane %v514, 1
        %v1921 = vsel %vm567, %v661, %v1920
        %v1922 = vrot.slane %v515, 1
        %v1923 = vsel %vm567, %v1920, %v1922
        %v1924 = vrot.slane %v516, 1
        %v1925 = vsel %vm567, %v1922, %v1924
        %v1926 = vrot.slane %v517, 1
        %v1927 = vsel %vm567, %v1924, %v1926
        %v1928 = vrot.slane %v518, 1
        %v1929 = vsel %vm567, %v1926, %v1928
        %1930 = vrot.lane.b32.xlu0 %v580, 21
        %v1931 = vpop.permute.xlu0 %1930
        %1932 = vrot.lane.b32.xlu0 %v582, 21
        %v1933 = vpop.permute.xlu0 %1932
        %1934 = vrot.lane.b32.xlu0 %v584, 21
        %v1935 = vpop.permute.xlu0 %1934
        %1936 = vrot.lane.b32.xlu0 %v586, 21
        %v1937 = vpop.permute.xlu0 %1936
        %1938 = vrot.lane.b32.xlu0 %v588, 21
        %v1939 = vpop.permute.xlu0 %1938
        %1940 = vrot.lane.b32.xlu0 %v590, 21
        %v1941 = vpop.permute.xlu0 %1940
        %1942 = vrot.lane.b32.xlu0 %v592, 21
        %v1943 = vpop.permute.xlu0 %1942
        %1944 = vrot.lane.b32.xlu0 %v594, 21
        %v1945 = vpop.permute.xlu0 %1944
        %1946 = vrot.lane.b32.xlu0 %v596, 21
        %v1947 = vpop.permute.xlu0 %1946
        %1948 = vrot.lane.b32.xlu0 %v598, 21
        %v1949 = vpop.permute.xlu0 %1948
        %1950 = vrot.lane.b32.xlu0 %v600, 21
        %v1951 = vpop.permute.xlu0 %1950
        %1952 = vrot.lane.b32.xlu0 %v602, 21
        %v1953 = vpop.permute.xlu0 %1952
        %1954 = vrot.lane.b32.xlu0 %v604, 21
        %v1955 = vpop.permute.xlu0 %1954
        %1956 = vrot.lane.b32.xlu0 %v606, 21
        %v1957 = vpop.permute.xlu0 %1956
        %1958 = vrot.lane.b32.xlu0 %v608, 21
        %v1959 = vpop.permute.xlu0 %1958
        %1960 = vrot.lane.b32.xlu0 %v610, 21
        %v1961 = vpop.permute.xlu0 %1960
        %1962 = vrot.lane.b32.xlu0 %v612, 21
        %v1963 = vpop.permute.xlu0 %1962
        %1964 = vrot.lane.b32.xlu0 %v614, 21
        %v1965 = vpop.permute.xlu0 %1964
        %1966 = vrot.lane.b32.xlu0 %v616, 21
        %v1967 = vpop.permute.xlu0 %1966
        %1968 = vrot.lane.b32.xlu0 %v618, 21
        %v1969 = vpop.permute.xlu0 %1968
        %1970 = vrot.lane.b32.xlu0 %v620, 21
        %v1971 = vpop.permute.xlu0 %1970
        %1972 = vrot.lane.b32.xlu0 %v622, 21
        %v1973 = vpop.permute.xlu0 %1972
        %1974 = vrot.lane.b32.xlu0 %v624, 21
        %v1975 = vpop.permute.xlu0 %1974
        %1976 = vrot.lane.b32.xlu0 %v626, 21
        %v1977 = vpop.permute.xlu0 %1976
        %1978 = vrot.lane.b32.xlu0 %v628, 21
        %v1979 = vpop.permute.xlu0 %1978
        %1980 = vrot.lane.b32.xlu0 %v630, 21
        %v1981 = vpop.permute.xlu0 %1980
        %1982 = vrot.lane.b32.xlu0 %v632, 21
        %v1983 = vpop.permute.xlu0 %1982
        %1984 = vrot.lane.b32.xlu0 %v634, 21
        %v1985 = vpop.permute.xlu0 %1984
        %1986 = vrot.lane.b32.xlu0 %v636, 21
        %v1987 = vpop.permute.xlu0 %1986
        %1988 = vrot.lane.b32.xlu0 %v638, 21
        %v1989 = vpop.permute.xlu0 %1988
        %1990 = vrot.lane.b32.xlu0 %v640, 21
        %v1991 = vpop.permute.xlu0 %1990
        %1992 = vrot.lane.b32.xlu0 %v642, 21
        %v1993 = vpop.permute.xlu0 %1992
        %1994 = vrot.lane.b32.xlu0 %v644, 21
        %v1995 = vpop.permute.xlu0 %1994
        %1996 = vrot.lane.b32.xlu0 %v646, 21
        %v1997 = vpop.permute.xlu0 %1996
        %1998 = vrot.lane.b32.xlu0 %v648, 21
        %v1999 = vpop.permute.xlu0 %1998
        %2000 = vrot.lane.b32.xlu0 %v650, 21
        %v2001 = vpop.permute.xlu0 %2000
        %2002 = vrot.lane.b32.xlu0 %v652, 21
        %v2003 = vpop.permute.xlu0 %2002
        %2004 = vrot.lane.b32.xlu0 %v654, 21
        %v2005 = vpop.permute.xlu0 %2004
        %2006 = vrot.lane.b32.xlu0 %v656, 21
        %v2007 = vpop.permute.xlu0 %2006
        %2008 = vrot.lane.b32.xlu0 %v658, 21
        %v2009 = vpop.permute.xlu0 %2008
        %2010 = vrot.lane.b32.xlu0 %v660, 21
        %v2011 = vpop.permute.xlu0 %2010
        %2012 = vrot.lane.b32.xlu0 %v662, 21
        %v2013 = vpop.permute.xlu0 %2012
        %2014 = vrot.lane.b32.xlu0 %v1921, 21
        %v2015 = vpop.permute.xlu0 %2014
        %2016 = vrot.lane.b32.xlu0 %v1923, 21
        %v2017 = vpop.permute.xlu0 %2016
        %2018 = vrot.lane.b32.xlu0 %v1925, 21
        %v2019 = vpop.permute.xlu0 %2018
        %2020 = vrot.lane.b32.xlu0 %v1927, 21
        %v2021 = vpop.permute.xlu0 %2020
        %2022 = vrot.lane.b32.xlu0 %v1929, 21
        %v2023 = vpop.permute.xlu0 %2022
        %2024 = vrot.lane.b32.xlu0 %v1928, 21
        %v2025 = vpop.permute.xlu0 %2024
        %v2074 = vrot.slane %v514, 2
        %v2075 = vsel %vm807, %v901, %v2074
        %v2076 = vrot.slane %v515, 2
        %v2077 = vsel %vm807, %v2074, %v2076
        %v2078 = vrot.slane %v516, 2
        %v2079 = vsel %vm807, %v2076, %v2078
        %v2080 = vrot.slane %v517, 2
        %v2081 = vsel %vm807, %v2078, %v2080
        %v2082 = vrot.slane %v518, 2
        %v2083 = vsel %vm807, %v2080, %v2082
        %2084 = vrot.lane.b32.xlu0 %v820, 24
        %v2085 = vpop.permute.xlu0 %2084
        %2086 = vrot.lane.b32.xlu0 %v822, 24
        %v2087 = vpop.permute.xlu0 %2086
        %2088 = vrot.lane.b32.xlu0 %v824, 24
        %v2089 = vpop.permute.xlu0 %2088
        %2090 = vrot.lane.b32.xlu0 %v826, 24
        %v2091 = vpop.permute.xlu0 %2090
        %2092 = vrot.lane.b32.xlu0 %v828, 24
        %v2093 = vpop.permute.xlu0 %2092
        %2094 = vrot.lane.b32.xlu0 %v830, 24
        %v2095 = vpop.permute.xlu0 %2094
        %2096 = vrot.lane.b32.xlu0 %v832, 24
        %v2097 = vpop.permute.xlu0 %2096
        %2098 = vrot.lane.b32.xlu0 %v834, 24
        %v2099 = vpop.permute.xlu0 %2098
        %2100 = vrot.lane.b32.xlu0 %v836, 24
        %v2101 = vpop.permute.xlu0 %2100
        %2102 = vrot.lane.b32.xlu0 %v838, 24
        %v2103 = vpop.permute.xlu0 %2102
        %2104 = vrot.lane.b32.xlu0 %v840, 24
        %v2105 = vpop.permute.xlu0 %2104
        %2106 = vrot.lane.b32.xlu0 %v842, 24
        %v2107 = vpop.permute.xlu0 %2106
        %2108 = vrot.lane.b32.xlu0 %v844, 24
        %v2109 = vpop.permute.xlu0 %2108
        %2110 = vrot.lane.b32.xlu0 %v846, 24
        %v2111 = vpop.permute.xlu0 %2110
        %2112 = vrot.lane.b32.xlu0 %v848, 24
        %v2113 = vpop.permute.xlu0 %2112
        %2114 = vrot.lane.b32.xlu0 %v850, 24
        %v2115 = vpop.permute.xlu0 %2114
        %2116 = vrot.lane.b32.xlu0 %v852, 24
        %v2117 = vpop.permute.xlu0 %2116
        %2118 = vrot.lane.b32.xlu0 %v854, 24
        %v2119 = vpop.permute.xlu0 %2118
        %2120 = vrot.lane.b32.xlu0 %v856, 24
        %v2121 = vpop.permute.xlu0 %2120
        %2122 = vrot.lane.b32.xlu0 %v858, 24
        %v2123 = vpop.permute.xlu0 %2122
        %2124 = vrot.lane.b32.xlu0 %v860, 24
        %v2125 = vpop.permute.xlu0 %2124
        %2126 = vrot.lane.b32.xlu0 %v862, 24
        %v2127 = vpop.permute.xlu0 %2126
        %2128 = vrot.lane.b32.xlu0 %v864, 24
        %v2129 = vpop.permute.xlu0 %2128
        %2130 = vrot.lane.b32.xlu0 %v866, 24
        %v2131 = vpop.permute.xlu0 %2130
        %2132 = vrot.lane.b32.xlu0 %v868, 24
        %v2133 = vpop.permute.xlu0 %2132
        %2134 = vrot.lane.b32.xlu0 %v870, 24
        %v2135 = vpop.permute.xlu0 %2134
        %2136 = vrot.lane.b32.xlu0 %v872, 24
        %v2137 = vpop.permute.xlu0 %2136
        %2138 = vrot.lane.b32.xlu0 %v874, 24
        %v2139 = vpop.permute.xlu0 %2138
        %2140 = vrot.lane.b32.xlu0 %v876, 24
        %v2141 = vpop.permute.xlu0 %2140
        %2142 = vrot.lane.b32.xlu0 %v878, 24
        %v2143 = vpop.permute.xlu0 %2142
        %2144 = vrot.lane.b32.xlu0 %v880, 24
        %v2145 = vpop.permute.xlu0 %2144
        %2146 = vrot.lane.b32.xlu0 %v882, 24
        %v2147 = vpop.permute.xlu0 %2146
        %2148 = vrot.lane.b32.xlu0 %v884, 24
        %v2149 = vpop.permute.xlu0 %2148
        %2150 = vrot.lane.b32.xlu0 %v886, 24
        %v2151 = vpop.permute.xlu0 %2150
        %2152 = vrot.lane.b32.xlu0 %v888, 24
        %v2153 = vpop.permute.xlu0 %2152
        %2154 = vrot.lane.b32.xlu0 %v890, 24
        %v2155 = vpop.permute.xlu0 %2154
        %2156 = vrot.lane.b32.xlu0 %v892, 24
        %v2157 = vpop.permute.xlu0 %2156
        %2158 = vrot.lane.b32.xlu0 %v894, 24
        %v2159 = vpop.permute.xlu0 %2158
        %2160 = vrot.lane.b32.xlu0 %v896, 24
        %v2161 = vpop.permute.xlu0 %2160
        %2162 = vrot.lane.b32.xlu0 %v898, 24
        %v2163 = vpop.permute.xlu0 %2162
        %2164 = vrot.lane.b32.xlu0 %v900, 24
        %v2165 = vpop.permute.xlu0 %2164
        %2166 = vrot.lane.b32.xlu0 %v902, 24
        %v2167 = vpop.permute.xlu0 %2166
        %2168 = vrot.lane.b32.xlu0 %v2075, 24
        %v2169 = vpop.permute.xlu0 %2168
        %2170 = vrot.lane.b32.xlu0 %v2077, 24
        %v2171 = vpop.permute.xlu0 %2170
        %2172 = vrot.lane.b32.xlu0 %v2079, 24
        %v2173 = vpop.permute.xlu0 %2172
        %2174 = vrot.lane.b32.xlu0 %v2081, 24
        %v2175 = vpop.permute.xlu0 %2174
        %2176 = vrot.lane.b32.xlu0 %v2083, 24
        %v2177 = vpop.permute.xlu0 %2176
        %2178 = vrot.lane.b32.xlu0 %v2082, 24
        %v2179 = vpop.permute.xlu0 %2178
        %vm2228 = vcmask 23552
        %v2229 = vsel %vm2228, %v466, %v664
        %v2230 = vsel %vm2228, %v467, %v666
        %v2231 = vsel %vm2228, %v468, %v668
        %v2232 = vsel %vm2228, %v469, %v670
        %v2233 = vsel %vm2228, %v470, %v672
        %v2234 = vsel %vm2228, %v471, %v674
        %v2235 = vsel %vm2228, %v472, %v676
        %v2236 = vsel %vm2228, %v473, %v678
        %v2237 = vsel %vm2228, %v474, %v680
        %v2238 = vsel %vm2228, %v475, %v682
        %v2239 = vsel %vm2228, %v476, %v684
        %v2240 = vsel %vm2228, %v477, %v686
        %v2241 = vsel %vm2228, %v478, %v688
        %v2242 = vsel %vm2228, %v479, %v690
        %v2243 = vsel %vm2228, %v480, %v692
        %v2244 = vsel %vm2228, %v481, %v694
        %v2245 = vsel %vm2228, %v482, %v696
        %v2246 = vsel %vm2228, %v483, %v698
        %v2247 = vsel %vm2228, %v484, %v700
        %v2248 = vsel %vm2228, %v485, %v702
        %v2249 = vsel %vm2228, %v486, %v704
        %v2250 = vsel %vm2228, %v487, %v706
        %v2251 = vsel %vm2228, %v488, %v708
        %v2252 = vsel %vm2228, %v489, %v710
        %v2253 = vsel %vm2228, %v490, %v712
        %v2254 = vsel %vm2228, %v491, %v714
        %v2255 = vsel %vm2228, %v492, %v716
        %v2256 = vsel %vm2228, %v493, %v718
        %v2257 = vsel %vm2228, %v494, %v720
        %v2258 = vsel %vm2228, %v495, %v722
        %v2259 = vsel %vm2228, %v496, %v724
        %v2260 = vsel %vm2228, %v497, %v726
        %v2261 = vsel %vm2228, %v498, %v728
        %v2262 = vsel %vm2228, %v499, %v730
        %v2263 = vsel %vm2228, %v500, %v732
        %v2264 = vsel %vm2228, %v501, %v734
        %v2265 = vsel %vm2228, %v502, %v736
        %v2266 = vsel %vm2228, %v503, %v738
        %v2267 = vsel %vm2228, %v504, %v740
        %v2268 = vsel %vm2228, %v505, %v742
        %v2269 = vsel %vm2228, %v506, %v744
        %v2270 = vsel %vm2228, %v507, %v746
        %v2271 = vsel %vm2228, %v508, %v748
        %v2272 = vsel %vm2228, %v509, %v750
        %v2273 = vsel %vm2228, %v510, %v752
        %v2274 = vsel %vm2228, %v511, %v754
        %v2275 = vsel %vm2228, %v512, %v756
        %v2276 = vsel %vm2228, %v513, %v758
        %vm2277 = vcmask 48128
        %v2278 = vsel %vm2277, %v2229, %v904
        %v2279 = vsel %vm2277, %v2230, %v906
        %v2280 = vsel %vm2277, %v2231, %v908
        %v2281 = vsel %vm2277, %v2232, %v910
        %v2282 = vsel %vm2277, %v2233, %v912
        %v2283 = vsel %vm2277, %v2234, %v914
        %v2284 = vsel %vm2277, %v2235, %v916
        %v2285 = vsel %vm2277, %v2236, %v918
        %v2286 = vsel %vm2277, %v2237, %v920
        %v2287 = vsel %vm2277, %v2238, %v922
        %v2288 = vsel %vm2277, %v2239, %v924
        %v2289 = vsel %vm2277, %v2240, %v926
        %v2290 = vsel %vm2277, %v2241, %v928
        %v2291 = vsel %vm2277, %v2242, %v930
        %v2292 = vsel %vm2277, %v2243, %v932
        %v2293 = vsel %vm2277, %v2244, %v934
        %v2294 = vsel %vm2277, %v2245, %v936
        %v2295 = vsel %vm2277, %v2246, %v938
        %v2296 = vsel %vm2277, %v2247, %v940
        %v2297 = vsel %vm2277, %v2248, %v942
        %v2298 = vsel %vm2277, %v2249, %v944
        %v2299 = vsel %vm2277, %v2250, %v946
        %v2300 = vsel %vm2277, %v2251, %v948
        %v2301 = vsel %vm2277, %v2252, %v950
        %v2302 = vsel %vm2277, %v2253, %v952
        %v2303 = vsel %vm2277, %v2254, %v954
        %v2304 = vsel %vm2277, %v2255, %v956
        %v2305 = vsel %vm2277, %v2256, %v958
        %v2306 = vsel %vm2277, %v2257, %v960
        %v2307 = vsel %vm2277, %v2258, %v962
        %v2308 = vsel %vm2277, %v2259, %v964
        %v2309 = vsel %vm2277, %v2260, %v966
        %v2310 = vsel %vm2277, %v2261, %v968
        %v2311 = vsel %vm2277, %v2262, %v970
        %v2312 = vsel %vm2277, %v2263, %v972
        %v2313 = vsel %vm2277, %v2264, %v974
        %v2314 = vsel %vm2277, %v2265, %v976
        %v2315 = vsel %vm2277, %v2266, %v978
        %v2316 = vsel %vm2277, %v2267, %v980
        %v2317 = vsel %vm2277, %v2268, %v982
        %v2318 = vsel %vm2277, %v2269, %v984
        %v2319 = vsel %vm2277, %v2270, %v986
        %v2320 = vsel %vm2277, %v2271, %v988
        %v2321 = vsel %vm2277, %v2272, %v990
        %v2322 = vsel %vm2277, %v2273, %v992
        %v2323 = vsel %vm2277, %v2274, %v994
        %v2324 = vsel %vm2277, %v2275, %v996
        %v2325 = vsel %vm2277, %v2276, %v998
        %vm2326 = vcmask 72704
        %v2327 = vsel %vm2326, %v2278, %v1146
        %v2328 = vsel %vm2326, %v2279, %v1148
        %v2329 = vsel %vm2326, %v2280, %v1150
        %v2330 = vsel %vm2326, %v2281, %v1152
        %v2331 = vsel %vm2326, %v2282, %v1154
        %v2332 = vsel %vm2326, %v2283, %v1156
        %v2333 = vsel %vm2326, %v2284, %v1158
        %v2334 = vsel %vm2326, %v2285, %v1160
        %v2335 = vsel %vm2326, %v2286, %v1162
        %v2336 = vsel %vm2326, %v2287, %v1164
        %v2337 = vsel %vm2326, %v2288, %v1166
        %v2338 = vsel %vm2326, %v2289, %v1168
        %v2339 = vsel %vm2326, %v2290, %v1170
        %v2340 = vsel %vm2326, %v2291, %v1172
        %v2341 = vsel %vm2326, %v2292, %v1174
        %v2342 = vsel %vm2326, %v2293, %v1176
        %v2343 = vsel %vm2326, %v2294, %v1178
        %v2344 = vsel %vm2326, %v2295, %v1180
        %v2345 = vsel %vm2326, %v2296, %v1182
        %v2346 = vsel %vm2326, %v2297, %v1184
        %v2347 = vsel %vm2326, %v2298, %v1186
        %v2348 = vsel %vm2326, %v2299, %v1188
        %v2349 = vsel %vm2326, %v2300, %v1190
        %v2350 = vsel %vm2326, %v2301, %v1192
        %v2351 = vsel %vm2326, %v2302, %v1194
        %v2352 = vsel %vm2326, %v2303, %v1196
        %v2353 = vsel %vm2326, %v2304, %v1198
        %v2354 = vsel %vm2326, %v2305, %v1200
        %v2355 = vsel %vm2326, %v2306, %v1202
        %v2356 = vsel %vm2326, %v2307, %v1204
        %v2357 = vsel %vm2326, %v2308, %v1206
        %v2358 = vsel %vm2326, %v2309, %v1208
        %v2359 = vsel %vm2326, %v2310, %v1210
        %v2360 = vsel %vm2326, %v2311, %v1212
        %v2361 = vsel %vm2326, %v2312, %v1214
        %v2362 = vsel %vm2326, %v2313, %v1216
        %v2363 = vsel %vm2326, %v2314, %v1218
        %v2364 = vsel %vm2326, %v2315, %v1220
        %v2365 = vsel %vm2326, %v2316, %v1222
        %v2366 = vsel %vm2326, %v2317, %v1224
        %v2367 = vsel %vm2326, %v2318, %v1226
        %v2368 = vsel %vm2326, %v2319, %v1228
        %v2369 = vsel %vm2326, %v2320, %v1230
        %v2370 = vsel %vm2326, %v2321, %v1232
        %v2371 = vsel %vm2326, %v2322, %v1234
        %v2372 = vsel %vm2326, %v2323, %v1236
        %v2373 = vsel %vm2326, %v2324, %v1238
        %v2374 = vsel %vm2326, %v2325, %v1240
        %vm2375 = vcmask 97280
        %v2376 = vsel %vm2375, %v2327, %v1389
        %v2377 = vsel %vm2375, %v2328, %v1391
        %v2378 = vsel %vm2375, %v2329, %v1393
        %v2379 = vsel %vm2375, %v2330, %v1395
        %v2380 = vsel %vm2375, %v2331, %v1397
        %v2381 = vsel %vm2375, %v2332, %v1399
        %v2382 = vsel %vm2375, %v2333, %v1401
        %v2383 = vsel %vm2375, %v2334, %v1403
        %v2384 = vsel %vm2375, %v2335, %v1405
        %v2385 = vsel %vm2375, %v2336, %v1407
        %v2386 = vsel %vm2375, %v2337, %v1409
        %v2387 = vsel %vm2375, %v2338, %v1411
        %v2388 = vsel %vm2375, %v2339, %v1413
        %v2389 = vsel %vm2375, %v2340, %v1415
        %v2390 = vsel %vm2375, %v2341, %v1417
        %v2391 = vsel %vm2375, %v2342, %v1419
        %v2392 = vsel %vm2375, %v2343, %v1421
        %v2393 = vsel %vm2375, %v2344, %v1423
        %v2394 = vsel %vm2375, %v2345, %v1425
        %v2395 = vsel %vm2375, %v2346, %v1427
        %v2396 = vsel %vm2375, %v2347, %v1429
        %v2397 = vsel %vm2375, %v2348, %v1431
        %v2398 = vsel %vm2375, %v2349, %v1433
        %v2399 = vsel %vm2375, %v2350, %v1435
        %v2400 = vsel %vm2375, %v2351, %v1437
        %v2401 = vsel %vm2375, %v2352, %v1439
        %v2402 = vsel %vm2375, %v2353, %v1441
        %v2403 = vsel %vm2375, %v2354, %v1443
        %v2404 = vsel %vm2375, %v2355, %v1445
        %v2405 = vsel %vm2375, %v2356, %v1447
        %v2406 = vsel %vm2375, %v2357, %v1449
        %v2407 = vsel %vm2375, %v2358, %v1451
        %v2408 = vsel %vm2375, %v2359, %v1453
        %v2409 = vsel %vm2375, %v2360, %v1455
        %v2410 = vsel %vm2375, %v2361, %v1457
        %v2411 = vsel %vm2375, %v2362, %v1459
        %v2412 = vsel %vm2375, %v2363, %v1461
        %v2413 = vsel %vm2375, %v2364, %v1463
        %v2414 = vsel %vm2375, %v2365, %v1465
        %v2415 = vsel %vm2375, %v2366, %v1467
        %v2416 = vsel %vm2375, %v2367, %v1469
        %v2417 = vsel %vm2375, %v2368, %v1471
        %v2418 = vsel %vm2375, %v2369, %v1473
        %v2419 = vsel %vm2375, %v2370, %v1475
        %v2420 = vsel %vm2375, %v2371, %v1477
        %v2421 = vsel %vm2375, %v2372, %v1479
        %v2422 = vsel %vm2375, %v2373, %v1481
        %v2423 = vsel %vm2375, %v2374, %v1483
        %vm2424 = vcmask 121856
        %v2425 = vsel %vm2424, %v2376, %v1631
        %v2426 = vsel %vm2424, %v2377, %v1633
        %v2427 = vsel %vm2424, %v2378, %v1635
        %v2428 = vsel %vm2424, %v2379, %v1637
        %v2429 = vsel %vm2424, %v2380, %v1639
        %v2430 = vsel %vm2424, %v2381, %v1641
        %v2431 = vsel %vm2424, %v2382, %v1643
        %v2432 = vsel %vm2424, %v2383, %v1645
        %v2433 = vsel %vm2424, %v2384, %v1647
        %v2434 = vsel %vm2424, %v2385, %v1649
        %v2435 = vsel %vm2424, %v2386, %v1651
        %v2436 = vsel %vm2424, %v2387, %v1653
        %v2437 = vsel %vm2424, %v2388, %v1655
        %v2438 = vsel %vm2424, %v2389, %v1657
        %v2439 = vsel %vm2424, %v2390, %v1659
        %v2440 = vsel %vm2424, %v2391, %v1661
        %v2441 = vsel %vm2424, %v2392, %v1663
        %v2442 = vsel %vm2424, %v2393, %v1665
        %v2443 = vsel %vm2424, %v2394, %v1667
        %v2444 = vsel %vm2424, %v2395, %v1669
        %v2445 = vsel %vm2424, %v2396, %v1671
        %v2446 = vsel %vm2424, %v2397, %v1673
        %v2447 = vsel %vm2424, %v2398, %v1675
        %v2448 = vsel %vm2424, %v2399, %v1677
        %v2449 = vsel %vm2424, %v2400, %v1679
        %v2450 = vsel %vm2424, %v2401, %v1681
        %v2451 = vsel %vm2424, %v2402, %v1683
        %v2452 = vsel %vm2424, %v2403, %v1685
        %v2453 = vsel %vm2424, %v2404, %v1687
        %v2454 = vsel %vm2424, %v2405, %v1689
        %v2455 = vsel %vm2424, %v2406, %v1691
        %v2456 = vsel %vm2424, %v2407, %v1693
        %v2457 = vsel %vm2424, %v2408, %v1695
        %v2458 = vsel %vm2424, %v2409, %v1697
        %v2459 = vsel %vm2424, %v2410, %v1699
        %v2460 = vsel %vm2424, %v2411, %v1701
        %v2461 = vsel %vm2424, %v2412, %v1703
        %v2462 = vsel %vm2424, %v2413, %v1705
        %v2463 = vsel %vm2424, %v2414, %v1707
        %v2464 = vsel %vm2424, %v2415, %v1709
        %v2465 = vsel %vm2424, %v2416, %v1711
        %v2466 = vsel %vm2424, %v2417, %v1713
        %v2467 = vsel %vm2424, %v2418, %v1715
        %v2468 = vsel %vm2424, %v2419, %v1717
        %v2469 = vsel %vm2424, %v2420, %v1719
        %v2470 = vsel %vm2424, %v2421, %v1721
        %v2471 = vsel %vm2424, %v2422, %v1723
        %v2472 = vsel %vm2424, %v2423, %v1725
        %vm2473 = vcmask 146432
        %v2474 = vsel %vm2473, %v2425, %v1777
        %v2475 = vsel %vm2473, %v2426, %v1779
        %v2476 = vsel %vm2473, %v2427, %v1781
        %v2477 = vsel %vm2473, %v2428, %v1783
        %v2478 = vsel %vm2473, %v2429, %v1785
        %v2479 = vsel %vm2473, %v2430, %v1787
        %v2480 = vsel %vm2473, %v2431, %v1789
        %v2481 = vsel %vm2473, %v2432, %v1791
        %v2482 = vsel %vm2473, %v2433, %v1793
        %v2483 = vsel %vm2473, %v2434, %v1795
        %v2484 = vsel %vm2473, %v2435, %v1797
        %v2485 = vsel %vm2473, %v2436, %v1799
        %v2486 = vsel %vm2473, %v2437, %v1801
        %v2487 = vsel %vm2473, %v2438, %v1803
        %v2488 = vsel %vm2473, %v2439, %v1805
        %v2489 = vsel %vm2473, %v2440, %v1807
        %v2490 = vsel %vm2473, %v2441, %v1809
        %v2491 = vsel %vm2473, %v2442, %v1811
        %v2492 = vsel %vm2473, %v2443, %v1813
        %v2493 = vsel %vm2473, %v2444, %v1815
        %v2494 = vsel %vm2473, %v2445, %v1817
        %v2495 = vsel %vm2473, %v2446, %v1819
        %v2496 = vsel %vm2473, %v2447, %v1821
        %v2497 = vsel %vm2473, %v2448, %v1823
        %v2498 = vsel %vm2473, %v2449, %v1825
        %v2499 = vsel %vm2473, %v2450, %v1827
        %v2500 = vsel %vm2473, %v2451, %v1829
        %v2501 = vsel %vm2473, %v2452, %v1831
        %v2502 = vsel %vm2473, %v2453, %v1833
        %v2503 = vsel %vm2473, %v2454, %v1835
        %v2504 = vsel %vm2473, %v2455, %v1837
        %v2505 = vsel %vm2473, %v2456, %v1839
        %v2506 = vsel %vm2473, %v2457, %v1841
        %v2507 = vsel %vm2473, %v2458, %v1843
        %v2508 = vsel %vm2473, %v2459, %v1845
        %v2509 = vsel %vm2473, %v2460, %v1847
        %v2510 = vsel %vm2473, %v2461, %v1849
        %v2511 = vsel %vm2473, %v2462, %v1851
        %v2512 = vsel %vm2473, %v2463, %v1853
        %v2513 = vsel %vm2473, %v2464, %v1855
        %v2514 = vsel %vm2473, %v2465, %v1857
        %v2515 = vsel %vm2473, %v2466, %v1859
        %v2516 = vsel %vm2473, %v2467, %v1861
        %v2517 = vsel %vm2473, %v2468, %v1863
        %v2518 = vsel %vm2473, %v2469, %v1865
        %v2519 = vsel %vm2473, %v2470, %v1867
        %v2520 = vsel %vm2473, %v2471, %v1869
        %v2521 = vsel %vm2473, %v2472, %v1871
        %vm2522 = vcmask 171008
        %v2523 = vsel %vm2522, %v2474, %v1931
        %v2524 = vsel %vm2522, %v2475, %v1933
        %v2525 = vsel %vm2522, %v2476, %v1935
        %v2526 = vsel %vm2522, %v2477, %v1937
        %v2527 = vsel %vm2522, %v2478, %v1939
        %v2528 = vsel %vm2522, %v2479, %v1941
        %v2529 = vsel %vm2522, %v2480, %v1943
        %v2530 = vsel %vm2522, %v2481, %v1945
        %v2531 = vsel %vm2522, %v2482, %v1947
        %v2532 = vsel %vm2522, %v2483, %v1949
        %v2533 = vsel %vm2522, %v2484, %v1951
        %v2534 = vsel %vm2522, %v2485, %v1953
        %v2535 = vsel %vm2522, %v2486, %v1955
        %v2536 = vsel %vm2522, %v2487, %v1957
        %v2537 = vsel %vm2522, %v2488, %v1959
        %v2538 = vsel %vm2522, %v2489, %v1961
        %v2539 = vsel %vm2522, %v2490, %v1963
        %v2540 = vsel %vm2522, %v2491, %v1965
        %v2541 = vsel %vm2522, %v2492, %v1967
        %v2542 = vsel %vm2522, %v2493, %v1969
        %v2543 = vsel %vm2522, %v2494, %v1971
        %v2544 = vsel %vm2522, %v2495, %v1973
        %v2545 = vsel %vm2522, %v2496, %v1975
        %v2546 = vsel %vm2522, %v2497, %v1977
        %v2547 = vsel %vm2522, %v2498, %v1979
        %v2548 = vsel %vm2522, %v2499, %v1981
        %v2549 = vsel %vm2522, %v2500, %v1983
        %v2550 = vsel %vm2522, %v2501, %v1985
        %v2551 = vsel %vm2522, %v2502, %v1987
        %v2552 = vsel %vm2522, %v2503, %v1989
        %v2553 = vsel %vm2522, %v2504, %v1991
        %v2554 = vsel %vm2522, %v2505, %v1993
        %v2555 = vsel %vm2522, %v2506, %v1995
        %v2556 = vsel %vm2522, %v2507, %v1997
        %v2557 = vsel %vm2522, %v2508, %v1999
        %v2558 = vsel %vm2522, %v2509, %v2001
        %v2559 = vsel %vm2522, %v2510, %v2003
        %v2560 = vsel %vm2522, %v2511, %v2005
        %v2561 = vsel %vm2522, %v2512, %v2007
        %v2562 = vsel %vm2522, %v2513, %v2009
        %v2563 = vsel %vm2522, %v2514, %v2011
        %v2564 = vsel %vm2522, %v2515, %v2013
        %v2565 = vsel %vm2522, %v2516, %v2015
        %v2566 = vsel %vm2522, %v2517, %v2017
        %v2567 = vsel %vm2522, %v2518, %v2019
        %v2568 = vsel %vm2522, %v2519, %v2021
        %v2569 = vsel %vm2522, %v2520, %v2023
        %v2570 = vsel %vm2522, %v2521, %v2025
        %vm2571 = vcmask 195584
        %v2572 = vsel %vm2571, %v2523, %v2085
        %v2573 = vsel %vm2571, %v2524, %v2087
        %v2574 = vsel %vm2571, %v2525, %v2089
        %v2575 = vsel %vm2571, %v2526, %v2091
        %v2576 = vsel %vm2571, %v2527, %v2093
        %v2577 = vsel %vm2571, %v2528, %v2095
        %v2578 = vsel %vm2571, %v2529, %v2097
        %v2579 = vsel %vm2571, %v2530, %v2099
        %v2580 = vsel %vm2571, %v2531, %v2101
        %v2581 = vsel %vm2571, %v2532, %v2103
        %v2582 = vsel %vm2571, %v2533, %v2105
        %v2583 = vsel %vm2571, %v2534, %v2107
        %v2584 = vsel %vm2571, %v2535, %v2109
        %v2585 = vsel %vm2571, %v2536, %v2111
        %v2586 = vsel %vm2571, %v2537, %v2113
        %v2587 = vsel %vm2571, %v2538, %v2115
        %v2588 = vsel %vm2571, %v2539, %v2117
        %v2589 = vsel %vm2571, %v2540, %v2119
        %v2590 = vsel %vm2571, %v2541, %v2121
        %v2591 = vsel %vm2571, %v2542, %v2123
        %v2592 = vsel %vm2571, %v2543, %v2125
        %v2593 = vsel %vm2571, %v2544, %v2127
        %v2594 = vsel %vm2571, %v2545, %v2129
        %v2595 = vsel %vm2571, %v2546, %v2131
        %v2596 = vsel %vm2571, %v2547, %v2133
        %v2597 = vsel %vm2571, %v2548, %v2135
        %v2598 = vsel %vm2571, %v2549, %v2137
        %v2599 = vsel %vm2571, %v2550, %v2139
        %v2600 = vsel %vm2571, %v2551, %v2141
        %v2601 = vsel %vm2571, %v2552, %v2143
        %v2602 = vsel %vm2571, %v2553, %v2145
        %v2603 = vsel %vm2571, %v2554, %v2147
        %v2604 = vsel %vm2571, %v2555, %v2149
        %v2605 = vsel %vm2571, %v2556, %v2151
        %v2606 = vsel %vm2571, %v2557, %v2153
        %v2607 = vsel %vm2571, %v2558, %v2155
        %v2608 = vsel %vm2571, %v2559, %v2157
        %v2609 = vsel %vm2571, %v2560, %v2159
        %v2610 = vsel %vm2571, %v2561, %v2161
        %v2611 = vsel %vm2571, %v2562, %v2163
        %v2612 = vsel %vm2571, %v2563, %v2165
        %v2613 = vsel %vm2571, %v2564, %v2167
        %v2614 = vsel %vm2571, %v2565, %v2169
        %v2615 = vsel %vm2571, %v2566, %v2171
        %v2616 = vsel %vm2571, %v2567, %v2173
        %v2617 = vsel %vm2571, %v2568, %v2175
        %v2618 = vsel %vm2571, %v2569, %v2177
        %v2619 = vsel %vm2571, %v2570, %v2179
        %v2620 = vpack.c.bf16 %v2573, %v2572
        %v2621 = vpack.c.bf16 %v2575, %v2574
        %v2622 = vpack.c.bf16 %v2577, %v2576
        %v2623 = vpack.c.bf16 %v2579, %v2578
        %v2624 = vpack.c.bf16 %v2581, %v2580
        %v2625 = vpack.c.bf16 %v2583, %v2582
        %v2626 = vpack.c.bf16 %v2585, %v2584
        %v2627 = vpack.c.bf16 %v2587, %v2586
        %v2628 = vpack.c.bf16 %v2589, %v2588
        %v2629 = vpack.c.bf16 %v2591, %v2590
        %v2630 = vpack.c.bf16 %v2593, %v2592
        %v2631 = vpack.c.bf16 %v2595, %v2594
        %v2632 = vpack.c.bf16 %v2597, %v2596
        %v2633 = vpack.c.bf16 %v2599, %v2598
        %v2634 = vpack.c.bf16 %v2601, %v2600
        %v2635 = vpack.c.bf16 %v2603, %v2602
        %v2636 = vpack.c.bf16 %v2605, %v2604
        %v2637 = vpack.c.bf16 %v2607, %v2606
        %v2638 = vpack.c.bf16 %v2609, %v2608
        %v2639 = vpack.c.bf16 %v2611, %v2610
        %v2640 = vpack.c.bf16 %v2613, %v2612
        %v2641 = vpack.c.bf16 %v2615, %v2614
        %v2642 = vpack.c.bf16 %v2617, %v2616
        %v2643 = vpack.c.bf16 %v2619, %v2618
        %v2644 = vld [vmem:[%s1] sm:$0xf]
        %v2645 = vld [vmem:[%s1 + $0x4] sm:$0xf]
        %v2646 = vld [vmem:[%s1 + $0x8] sm:$0xf]
        %v2647 = vld [vmem:[%s1 + $0xc] sm:$0x3]
        %v2648 = vld [vmem:[%s2] sm:$0x1]
        %v2650 = vlaneseq
        %v2651 = vshrl.u32 %v2650, 7
        %v2652 = vsub.s32 0, %v2651
        %v2653 = vrot.slane %v2648, %v2652
        %v2659 = vunpack.c.l.b16 %v2644
        %v2660 = vunpack.c.l.b16 %v2645
        %v2661 = vunpack.c.l.b16 %v2646
        %v2662 = vunpack.c.l.b16 %v2647
        %v2663 = vpack.c.b16 %v2660, %v2659
        %v2664 = vpack.c.b16 %v2662, %v2661
        %vm2666 = vcmask 220160
        %v2668 = vsel %vm2666, %v2620, 0
        %v2671 = vsel %vm2666, %v2621, 0
        %v2674 = vsel %vm2666, %v2622, 0
        %v2677 = vsel %vm2666, %v2623, 0
        %v2680 = vsel %vm2666, %v2624, 0
        %v2683 = vsel %vm2666, %v2625, 0
        %v2686 = vsel %vm2666, %v2626, 0
        %v2689 = vsel %vm2666, %v2627, 0
        %v2692 = vsel %vm2666, %v2628, 0
        %v2695 = vsel %vm2666, %v2629, 0
        %v2698 = vsel %vm2666, %v2630, 0
        %v2701 = vsel %vm2666, %v2631, 0
        %v2704 = vsel %vm2666, %v2632, 0
        %v2707 = vsel %vm2666, %v2633, 0
        %v2710 = vsel %vm2666, %v2634, 0
        %v2713 = vsel %vm2666, %v2635, 0
        %v2716 = vsel %vm2666, %v2636, 0
        %v2719 = vsel %vm2666, %v2637, 0
        %v2722 = vsel %vm2666, %v2638, 0
        %v2725 = vsel %vm2666, %v2639, 0
        %v2728 = vsel %vm2666, %v2640, 0
        %v2731 = vsel %vm2666, %v2641, 0
        %v2734 = vsel %vm2666, %v2642, 0
        %v2737 = vsel %vm2666, %v2643, 0
        %vm2739 = vcmask 1044480
        %v2740 = vsel %vm2739, 4294967295, 65535
        %v2741 = vsel %vm807, %v2740, 0
        %v2743 = vand.u32 %v2664, %v2741
        %2745 = vmatprep.subr.bf16.mxu0 0
        %2746 = vmatpush1.bf16.msra.mxu0 %v2663
        %2747 = vmatprep.subr.bf16.mxu0 0
        %2748 = vmatpush1.bf16.msra.mxu0 %v2743
        %2749 = vmatprep.subr.bf16.mxu0 0
        %2750 = vmatpush1.bf16.msra.mxu0 0
        %2751 = vmatprep.subr.bf16.mxu0 0
        %2752 = vmatpush1.bf16.msra.mxu0 0
        %2753 = vmatprep.subr.bf16.mxu0 0
        %2754 = vmatpush1.bf16.msra.mxu0 0
        %2755 = vmatprep.subr.bf16.mxu0 0
        %2756 = vmatpush1.bf16.msra.mxu0 0
        %2757 = vmatprep.subr.bf16.mxu0 0
        %2758 = vmatpush1.bf16.msra.mxu0 0
        %2759 = vmatprep.subr.bf16.mxu0 0
        %2760 = vmatpush1.bf16.msra.mxu0 0
        %2761 = vmatprep.subr.bf16.mxu0 0
        %2762 = vmatpush1.bf16.msra.mxu0 0
        %2763 = vmatprep.subr.bf16.mxu0 0
        %2764 = vmatpush1.bf16.msra.mxu0 0
        %2765 = vmatprep.subr.bf16.mxu0 0
        %2766 = vmatpush1.bf16.msra.mxu0 0
        %2767 = vmatprep.subr.bf16.mxu0 0
        %2768 = vmatpush1.bf16.msra.mxu0 0
        %2769 = vmatprep.subr.bf16.mxu0 0
        %2770 = vmatpush1.bf16.msra.mxu0 0
        %2771 = vmatprep.subr.bf16.mxu0 0
        %2772 = vmatpush1.bf16.msra.mxu0 0
        %2773 = vmatprep.subr.bf16.mxu0 0
        %2774 = vmatpush1.bf16.msra.mxu0 0
        %2775 = vmatprep.subr.bf16.mxu0 0
        %2776 = vmatpush1.bf16.msra.mxu0 0
        %2777 = vmatprep.mubr.bf16.mxu0 0
        %2778 = vmatmul.mubr.bf16.gmra.mrb[0].mxu0 %v2668
        %v2779 = vpop.f32.mrb[0].mxu0
        %v2780 = vadd.f32 %v2653, %v2779
        %v2781 = vpop.f32.mrb[0].mxu0
        %v2782 = vpop.f32.mrb[0].mxu0
        %v2783 = vadd.f32 %v2653, %v2782
        %v2784 = vpop.f32.mrb[0].mxu0
        %2785 = vmatprep.mubr.bf16.mxu0 0
        %2786 = vmatmul.mubr.bf16.gmra.mrb[0].mxu0 %v2671
        %v2787 = vpop.f32.mrb[0].mxu0
        %v2788 = vadd.f32 %v2653, %v2787
        %v2789 = vpop.f32.mrb[0].mxu0
        %v2790 = vpop.f32.mrb[0].mxu0
        %v2791 = vadd.f32 %v2653, %v2790
        %v2792 = vpop.f32.mrb[0].mxu0
        %2793 = vmatprep.mubr.bf16.mxu0 0
        %2794 = vmatmul.mubr.bf16.gmra.mrb[0].mxu0 %v2674
        %v2795 = vpop.f32.mrb[0].mxu0
        %v2796 = vadd.f32 %v2653, %v2795
        %v2797 = vpop.f32.mrb[0].mxu0
        %v2798 = vpop.f32.mrb[0].mxu0
        %v2799 = vadd.f32 %v2653, %v2798
        %v2800 = vpop.f32.mrb[0].mxu0
        %2801 = vmatprep.mubr.bf16.mxu0 0
        %2802 = vmatmul.mubr.bf16.gmra.mrb[0].mxu0 %v2677
        %v2803 = vpop.f32.mrb[0].mxu0
        %v2804 = vadd.f32 %v2653, %v2803
        %v2805 = vpop.f32.mrb[0].mxu0
        %v2806 = vpop.f32.mrb[0].mxu0
        %v2807 = vadd.f32 %v2653, %v2806
        %v2808 = vpop.f32.mrb[0].mxu0
        %2809 = vmatprep.mubr.bf16.mxu0 0
        %2810 = vmatmul.mubr.bf16.gmra.mrb[0].mxu0 %v2680
        %v2811 = vpop.f32.mrb[0].mxu0
        %v2812 = vadd.f32 %v2653, %v2811
        %v2813 = vpop.f32.mrb[0].mxu0
        %v2814 = vpop.f32.mrb[0].mxu0
        %v2815 = vadd.f32 %v2653, %v2814
        %v2816 = vpop.f32.mrb[0].mxu0
        %2817 = vmatprep.mubr.bf16.mxu0 0
        %2818 = vmatmul.mubr.bf16.gmra.mrb[0].mxu0 %v2683
        %v2819 = vpop.f32.mrb[0].mxu0
        %v2820 = vadd.f32 %v2653, %v2819
        %v2821 = vpop.f32.mrb[0].mxu0
        %v2822 = vpop.f32.mrb[0].mxu0
        %v2823 = vadd.f32 %v2653, %v2822
        %v2824 = vpop.f32.mrb[0].mxu0
        %2825 = vmatprep.mubr.bf16.mxu0 0
        %2826 = vmatmul.mubr.bf16.gmra.mrb[0].mxu0 %v2686
        %v2827 = vpop.f32.mrb[0].mxu0
        %v2828 = vadd.f32 %v2653, %v2827
        %v2829 = vpop.f32.mrb[0].mxu0
        %v2830 = vpop.f32.mrb[0].mxu0
        %v2831 = vadd.f32 %v2653, %v2830
        %v2832 = vpop.f32.mrb[0].mxu0
        %2833 = vmatprep.mubr.bf16.mxu0 0
        %2834 = vmatmul.mubr.bf16.gmra.mrb[0].mxu0 %v2689
        %v2835 = vpop.f32.mrb[0].mxu0
        %v2836 = vadd.f32 %v2653, %v2835
        %v2837 = vpop.f32.mrb[0].mxu0
        %v2838 = vpop.f32.mrb[0].mxu0
        %v2839 = vadd.f32 %v2653, %v2838
        %v2840 = vpop.f32.mrb[0].mxu0
        %2841 = vmatprep.mubr.bf16.mxu0 0
        %2842 = vmatmul.mubr.bf16.gmra.mrb[0].mxu0 %v2692
        %v2843 = vpop.f32.mrb[0].mxu0
        %v2844 = vadd.f32 %v2653, %v2843
        %v2845 = vpop.f32.mrb[0].mxu0
        %v2846 = vpop.f32.mrb[0].mxu0
        %v2847 = vadd.f32 %v2653, %v2846
        %v2848 = vpop.f32.mrb[0].mxu0
        %2849 = vmatprep.mubr.bf16.mxu0 0
        %2850 = vmatmul.mubr.bf16.gmra.mrb[0].mxu0 %v2695
        %v2851 = vpop.f32.mrb[0].mxu0
        %v2852 = vadd.f32 %v2653, %v2851
        %v2853 = vpop.f32.mrb[0].mxu0
        %v2854 = vpop.f32.mrb[0].mxu0
        %v2855 = vadd.f32 %v2653, %v2854
        %v2856 = vpop.f32.mrb[0].mxu0
        %2857 = vmatprep.mubr.bf16.mxu0 0
        %2858 = vmatmul.mubr.bf16.gmra.mrb[0].mxu0 %v2698
        %v2859 = vpop.f32.mrb[0].mxu0
        %v2860 = vadd.f32 %v2653, %v2859
        %v2861 = vpop.f32.mrb[0].mxu0
        %v2862 = vpop.f32.mrb[0].mxu0
        %v2863 = vadd.f32 %v2653, %v2862
        %v2864 = vpop.f32.mrb[0].mxu0
        %2865 = vmatprep.mubr.bf16.mxu0 0
        %2866 = vmatmul.mubr.bf16.gmra.mrb[0].mxu0 %v2701
        %v2867 = vpop.f32.mrb[0].mxu0
        %v2868 = vadd.f32 %v2653, %v2867
        %v2869 = vpop.f32.mrb[0].mxu0
        %v2870 = vpop.f32.mrb[0].mxu0
        %v2871 = vadd.f32 %v2653, %v2870
        %v2872 = vpop.f32.mrb[0].mxu0
        %2873 = vmatprep.mubr.bf16.mxu0 0
        %2874 = vmatmul.mubr.bf16.gmra.mrb[0].mxu0 %v2704
        %v2875 = vpop.f32.mrb[0].mxu0
        %v2876 = vadd.f32 %v2653, %v2875
        %v2877 = vpop.f32.mrb[0].mxu0
        %v2878 = vpop.f32.mrb[0].mxu0
        %v2879 = vadd.f32 %v2653, %v2878
        %v2880 = vpop.f32.mrb[0].mxu0
        %2881 = vmatprep.mubr.bf16.mxu0 0
        %2882 = vmatmul.mubr.bf16.gmra.mrb[0].mxu0 %v2707
        %v2883 = vpop.f32.mrb[0].mxu0
        %v2884 = vadd.f32 %v2653, %v2883
        %v2885 = vpop.f32.mrb[0].mxu0
        %v2886 = vpop.f32.mrb[0].mxu0
        %v2887 = vadd.f32 %v2653, %v2886
        %v2888 = vpop.f32.mrb[0].mxu0
        %2889 = vmatprep.mubr.bf16.mxu0 0
        %2890 = vmatmul.mubr.bf16.gmra.mrb[0].mxu0 %v2710
        %v2891 = vpop.f32.mrb[0].mxu0
        %v2892 = vadd.f32 %v2653, %v2891
        %v2893 = vpop.f32.mrb[0].mxu0
        %v2894 = vpop.f32.mrb[0].mxu0
        %v2895 = vadd.f32 %v2653, %v2894
        %v2896 = vpop.f32.mrb[0].mxu0
        %2897 = vmatprep.mubr.bf16.mxu0 0
        %2898 = vmatmul.mubr.bf16.gmra.mrb[0].mxu0 %v2713
        %v2899 = vpop.f32.mrb[0].mxu0
        %v2900 = vadd.f32 %v2653, %v2899
        %v2901 = vpop.f32.mrb[0].mxu0
        %v2902 = vpop.f32.mrb[0].mxu0
        %v2903 = vadd.f32 %v2653, %v2902
        %v2904 = vpop.f32.mrb[0].mxu0
        %2905 = vmatprep.mubr.bf16.mxu0 0
        %2906 = vmatmul.mubr.bf16.gmra.mrb[0].mxu0 %v2716
        %v2907 = vpop.f32.mrb[0].mxu0
        %v2908 = vadd.f32 %v2653, %v2907
        %v2909 = vpop.f32.mrb[0].mxu0
        %v2910 = vpop.f32.mrb[0].mxu0
        %v2911 = vadd.f32 %v2653, %v2910
        %v2912 = vpop.f32.mrb[0].mxu0
        %2913 = vmatprep.mubr.bf16.mxu0 0
        %2914 = vmatmul.mubr.bf16.gmra.mrb[0].mxu0 %v2719
        %v2915 = vpop.f32.mrb[0].mxu0
        %v2916 = vadd.f32 %v2653, %v2915
        %v2917 = vpop.f32.mrb[0].mxu0
        %v2918 = vpop.f32.mrb[0].mxu0
        %v2919 = vadd.f32 %v2653, %v2918
        %v2920 = vpop.f32.mrb[0].mxu0
        %2921 = vmatprep.mubr.bf16.mxu0 0
        %2922 = vmatmul.mubr.bf16.gmra.mrb[0].mxu0 %v2722
        %v2923 = vpop.f32.mrb[0].mxu0
        %v2924 = vadd.f32 %v2653, %v2923
        %v2925 = vpop.f32.mrb[0].mxu0
        %v2926 = vpop.f32.mrb[0].mxu0
        %v2927 = vadd.f32 %v2653, %v2926
        %v2928 = vpop.f32.mrb[0].mxu0
        %2929 = vmatprep.mubr.bf16.mxu0 0
        %2930 = vmatmul.mubr.bf16.gmra.mrb[0].mxu0 %v2725
        %v2931 = vpop.f32.mrb[0].mxu0
        %v2932 = vadd.f32 %v2653, %v2931
        %v2933 = vpop.f32.mrb[0].mxu0
        %v2934 = vpop.f32.mrb[0].mxu0
        %v2935 = vadd.f32 %v2653, %v2934
        %v2936 = vpop.f32.mrb[0].mxu0
        %2937 = vmatprep.mubr.bf16.mxu0 0
        %2938 = vmatmul.mubr.bf16.gmra.mrb[0].mxu0 %v2728
        %v2939 = vpop.f32.mrb[0].mxu0
        %v2940 = vadd.f32 %v2653, %v2939
        %v2941 = vpop.f32.mrb[0].mxu0
        %v2942 = vpop.f32.mrb[0].mxu0
        %v2943 = vadd.f32 %v2653, %v2942
        %v2944 = vpop.f32.mrb[0].mxu0
        %2945 = vmatprep.mubr.bf16.mxu0 0
        %2946 = vmatmul.mubr.bf16.gmra.mrb[0].mxu0 %v2731
        %v2947 = vpop.f32.mrb[0].mxu0
        %v2948 = vadd.f32 %v2653, %v2947
        %v2949 = vpop.f32.mrb[0].mxu0
        %v2950 = vpop.f32.mrb[0].mxu0
        %v2951 = vadd.f32 %v2653, %v2950
        %v2952 = vpop.f32.mrb[0].mxu0
        %2953 = vmatprep.mubr.bf16.mxu0 0
        %2954 = vmatmul.mubr.bf16.gmra.mrb[0].mxu0 %v2734
        %v2955 = vpop.f32.mrb[0].mxu0
        %v2956 = vadd.f32 %v2653, %v2955
        %v2957 = vpop.f32.mrb[0].mxu0
        %v2958 = vpop.f32.mrb[0].mxu0
        %v2959 = vadd.f32 %v2653, %v2958
        %v2960 = vpop.f32.mrb[0].mxu0
        %2961 = vmatprep.mubr.bf16.mxu0 0
        %2962 = vmatmul.mubr.bf16.gmra.mrb[0].mxu0 %v2737
        %v2963 = vpop.f32.mrb[0].mxu0
        %v2964 = vpop.f32.mrb[0].mxu0
        %v2965 = vpop.f32.mrb[0].mxu0
        %v2966 = vpop.f32.mrb[0].mxu0
        %2967 = vdwg.mxu0
        %v2968 = vld [vmem:[%s3] sm:$0xff]
        %v2969 = vld [vmem:[%s3 + $0x8] sm:$0xff]
        %v2970 = vld [vmem:[%s3 + $0x10] sm:$0xff]
        %v2971 = vld [vmem:[%s3 + $0x18] sm:$0xff]
        %v2972 = vld [vmem:[%s3 + $0x20] sm:$0xff]
        %v2973 = vld [vmem:[%s3 + $0x28] sm:$0xff]
        %v2974 = vld [vmem:[%s3 + $0x30] sm:$0xff]
        %v2975 = vld [vmem:[%s3 + $0x38] sm:$0xff]
        %v2976 = vld [vmem:[%s3 + $0x40] sm:$0xff]
        %v2977 = vld [vmem:[%s3 + $0x48] sm:$0xff]
        %v2978 = vld [vmem:[%s3 + $0x50] sm:$0xff]
        %v2979 = vld [vmem:[%s3 + $0x58] sm:$0xff]
        %v2980 = vld [vmem:[%s3 + $0x60] sm:$0xff]
        %v2981 = vld [vmem:[%s3 + $0x68] sm:$0xff]
        %v2982 = vld [vmem:[%s3 + $0x70] sm:$0xff]
        %v2983 = vld [vmem:[%s3 + $0x78] sm:$0xff]
        %v2984 = vld [vmem:[%s3 + $0x80] sm:$0xff]
        %v2985 = vld [vmem:[%s3 + $0x88] sm:$0xff]
        %v2986 = vld [vmem:[%s3 + $0x90] sm:$0xff]
        %v2987 = vld [vmem:[%s3 + $0x98] sm:$0xff]
        %v2988 = vld [vmem:[%s3 + $0xa0] sm:$0xff]
        %v2989 = vld [vmem:[%s3 + $0xa8] sm:$0xff]
        %v2990 = vld [vmem:[%s3 + $0xb0] sm:$0xff]
        %v2991 = vld [vmem:[%s3 + $0xb8] sm:$0xff]
        %v2992 = vld [vmem:[%s3 + $0xc0] sm:$0xff]
        %v2993 = vld [vmem:[%s3 + $0xc8] sm:$0xff]
        %v2994 = vld [vmem:[%s3 + $0xd0] sm:$0xff]
        %v2995 = vld [vmem:[%s3 + $0xd8] sm:$0xff]
        %v2996 = vld [vmem:[%s3 + $0xe0] sm:$0xff]
        %v2997 = vld [vmem:[%s3 + $0xe8] sm:$0xff]
        %v2998 = vld [vmem:[%s3 + $0xf0] sm:$0xff]
        %v2999 = vld [vmem:[%s3 + $0xf8] sm:$0xff]
        %v3000 = vld [vmem:[%s3 + $0x100] sm:$0xff]
        %v3001 = vld [vmem:[%s3 + $0x108] sm:$0xff]
        %v3002 = vld [vmem:[%s3 + $0x110] sm:$0xff]
        %v3003 = vld [vmem:[%s3 + $0x118] sm:$0xff]
        %v3004 = vld [vmem:[%s3 + $0x120] sm:$0xff]
        %v3005 = vld [vmem:[%s3 + $0x128] sm:$0xff]
        %v3006 = vld [vmem:[%s3 + $0x130] sm:$0xff]
        %v3007 = vld [vmem:[%s3 + $0x138] sm:$0xff]
        %v3008 = vld [vmem:[%s3 + $0x140] sm:$0xff]
        %v3009 = vld [vmem:[%s3 + $0x148] sm:$0xff]
        %v3010 = vld [vmem:[%s3 + $0x150] sm:$0xff]
        %v3011 = vld [vmem:[%s3 + $0x158] sm:$0xff]
        %v3012 = vld [vmem:[%s3 + $0x160] sm:$0xff]
        %v3013 = vld [vmem:[%s3 + $0x168] sm:$0xff]
        %3015 = vset.pattern.permute.xlu0 0
        %3016 = vperm.xlu0 %3015, %v2968
        %v3017 = vpop.permute.xlu0 %3016
        %3020 = vset.pattern.permute.xlu0 0
        %3021 = vperm.xlu0 %3020, %v2969
        %v3022 = vpop.permute.xlu0 %3021
        %3025 = vset.pattern.permute.xlu0 0
        %3026 = vperm.xlu0 %3025, %v2970
        %v3027 = vpop.permute.xlu0 %3026
        %3030 = vset.pattern.permute.xlu0 0
        %3031 = vperm.xlu0 %3030, %v2971
        %v3032 = vpop.permute.xlu0 %3031
        %3035 = vset.pattern.permute.xlu0 0
        %3036 = vperm.xlu0 %3035, %v2972
        %v3037 = vpop.permute.xlu0 %3036
        %3040 = vset.pattern.permute.xlu0 0
        %3041 = vperm.xlu0 %3040, %v2973
        %v3042 = vpop.permute.xlu0 %3041
        %3045 = vset.pattern.permute.xlu0 0
        %3046 = vperm.xlu0 %3045, %v2974
        %v3047 = vpop.permute.xlu0 %3046
        %3050 = vset.pattern.permute.xlu0 0
        %3051 = vperm.xlu0 %3050, %v2975
        %v3052 = vpop.permute.xlu0 %3051
        %3055 = vset.pattern.permute.xlu0 0
        %3056 = vperm.xlu0 %3055, %v2976
        %v3057 = vpop.permute.xlu0 %3056
        %3060 = vset.pattern.permute.xlu0 0
        %3061 = vperm.xlu0 %3060, %v2977
        %v3062 = vpop.permute.xlu0 %3061
        %3065 = vset.pattern.permute.xlu0 0
        %3066 = vperm.xlu0 %3065, %v2978
        %v3067 = vpop.permute.xlu0 %3066
        %3070 = vset.pattern.permute.xlu0 0
        %3071 = vperm.xlu0 %3070, %v2979
        %v3072 = vpop.permute.xlu0 %3071
        %3075 = vset.pattern.permute.xlu0 0
        %3076 = vperm.xlu0 %3075, %v2980
        %v3077 = vpop.permute.xlu0 %3076
        %3080 = vset.pattern.permute.xlu0 0
        %3081 = vperm.xlu0 %3080, %v2981
        %v3082 = vpop.permute.xlu0 %3081
        %3085 = vset.pattern.permute.xlu0 0
        %3086 = vperm.xlu0 %3085, %v2982
        %v3087 = vpop.permute.xlu0 %3086
        %3090 = vset.pattern.permute.xlu0 0
        %3091 = vperm.xlu0 %3090, %v2983
        %v3092 = vpop.permute.xlu0 %3091
        %3095 = vset.pattern.permute.xlu0 0
        %3096 = vperm.xlu0 %3095, %v2984
        %v3097 = vpop.permute.xlu0 %3096
        %3100 = vset.pattern.permute.xlu0 0
        %3101 = vperm.xlu0 %3100, %v2985
        %v3102 = vpop.permute.xlu0 %3101
        %3105 = vset.pattern.permute.xlu0 0
        %3106 = vperm.xlu0 %3105, %v2986
        %v3107 = vpop.permute.xlu0 %3106
        %3110 = vset.pattern.permute.xlu0 0
        %3111 = vperm.xlu0 %3110, %v2987
        %v3112 = vpop.permute.xlu0 %3111
        %3115 = vset.pattern.permute.xlu0 0
        %3116 = vperm.xlu0 %3115, %v2988
        %v3117 = vpop.permute.xlu0 %3116
        %3120 = vset.pattern.permute.xlu0 0
        %3121 = vperm.xlu0 %3120, %v2989
        %v3122 = vpop.permute.xlu0 %3121
        %3125 = vset.pattern.permute.xlu0 0
        %3126 = vperm.xlu0 %3125, %v2990
        %v3127 = vpop.permute.xlu0 %3126
        %3130 = vset.pattern.permute.xlu0 0
        %3131 = vperm.xlu0 %3130, %v2991
        %v3132 = vpop.permute.xlu0 %3131
        %3135 = vset.pattern.permute.xlu0 0
        %3136 = vperm.xlu0 %3135, %v2992
        %v3137 = vpop.permute.xlu0 %3136
        %3140 = vset.pattern.permute.xlu0 0
        %3141 = vperm.xlu0 %3140, %v2993
        %v3142 = vpop.permute.xlu0 %3141
        %3145 = vset.pattern.permute.xlu0 0
        %3146 = vperm.xlu0 %3145, %v2994
        %v3147 = vpop.permute.xlu0 %3146
        %3150 = vset.pattern.permute.xlu0 0
        %3151 = vperm.xlu0 %3150, %v2995
        %v3152 = vpop.permute.xlu0 %3151
        %3155 = vset.pattern.permute.xlu0 0
        %3156 = vperm.xlu0 %3155, %v2996
        %v3157 = vpop.permute.xlu0 %3156
        %3160 = vset.pattern.permute.xlu0 0
        %3161 = vperm.xlu0 %3160, %v2997
        %v3162 = vpop.permute.xlu0 %3161
        %3165 = vset.pattern.permute.xlu0 0
        %3166 = vperm.xlu0 %3165, %v2998
        %v3167 = vpop.permute.xlu0 %3166
        %3170 = vset.pattern.permute.xlu0 0
        %3171 = vperm.xlu0 %3170, %v2999
        %v3172 = vpop.permute.xlu0 %3171
        %3175 = vset.pattern.permute.xlu0 0
        %3176 = vperm.xlu0 %3175, %v3000
        %v3177 = vpop.permute.xlu0 %3176
        %3180 = vset.pattern.permute.xlu0 0
        %3181 = vperm.xlu0 %3180, %v3001
        %v3182 = vpop.permute.xlu0 %3181
        %3185 = vset.pattern.permute.xlu0 0
        %3186 = vperm.xlu0 %3185, %v3002
        %v3187 = vpop.permute.xlu0 %3186
        %3190 = vset.pattern.permute.xlu0 0
        %3191 = vperm.xlu0 %3190, %v3003
        %v3192 = vpop.permute.xlu0 %3191
        %3195 = vset.pattern.permute.xlu0 0
        %3196 = vperm.xlu0 %3195, %v3004
        %v3197 = vpop.permute.xlu0 %3196
        %3200 = vset.pattern.permute.xlu0 0
        %3201 = vperm.xlu0 %3200, %v3005
        %v3202 = vpop.permute.xlu0 %3201
        %3205 = vset.pattern.permute.xlu0 0
        %3206 = vperm.xlu0 %3205, %v3006
        %v3207 = vpop.permute.xlu0 %3206
        %3210 = vset.pattern.permute.xlu0 0
        %3211 = vperm.xlu0 %3210, %v3007
        %v3212 = vpop.permute.xlu0 %3211
        %3215 = vset.pattern.permute.xlu0 0
        %3216 = vperm.xlu0 %3215, %v3008
        %v3217 = vpop.permute.xlu0 %3216
        %3220 = vset.pattern.permute.xlu0 0
        %3221 = vperm.xlu0 %3220, %v3009
        %v3222 = vpop.permute.xlu0 %3221
        %3225 = vset.pattern.permute.xlu0 0
        %3226 = vperm.xlu0 %3225, %v3010
        %v3227 = vpop.permute.xlu0 %3226
        %3230 = vset.pattern.permute.xlu0 0
        %3231 = vperm.xlu0 %3230, %v3011
        %v3232 = vpop.permute.xlu0 %3231
        %3235 = vset.pattern.permute.xlu0 0
        %3236 = vperm.xlu0 %3235, %v3012
        %v3237 = vpop.permute.xlu0 %3236
        %3240 = vset.pattern.permute.xlu0 0
        %3241 = vperm.xlu0 %3240, %v3013
        %v3242 = vpop.permute.xlu0 %3241
        %v3244 = vmul.f32 %v2780, %v3017
        %v3245 = vmul.f32 %v2783, %v3022
        %v3246 = vmul.f32 %v2788, %v3027
        %v3247 = vmul.f32 %v2791, %v3032
        %v3248 = vmul.f32 %v2796, %v3037
        %v3249 = vmul.f32 %v2799, %v3042
        %v3250 = vmul.f32 %v2804, %v3047
        %v3251 = vmul.f32 %v2807, %v3052
        %v3252 = vmul.f32 %v2812, %v3057
        %v3253 = vmul.f32 %v2815, %v3062
        %v3254 = vmul.f32 %v2820, %v3067
        %v3255 = vmul.f32 %v2823, %v3072
        %v3256 = vmul.f32 %v2828, %v3077
        %v3257 = vmul.f32 %v2831, %v3082
        %v3258 = vmul.f32 %v2836, %v3087
        %v3259 = vmul.f32 %v2839, %v3092
        %v3260 = vmul.f32 %v2844, %v3097
        %v3261 = vmul.f32 %v2847, %v3102
        %v3262 = vmul.f32 %v2852, %v3107
        %v3263 = vmul.f32 %v2855, %v3112
        %v3264 = vmul.f32 %v2860, %v3117
        %v3265 = vmul.f32 %v2863, %v3122
        %v3266 = vmul.f32 %v2868, %v3127
        %v3267 = vmul.f32 %v2871, %v3132
        %v3268 = vmul.f32 %v2876, %v3137
        %v3269 = vmul.f32 %v2879, %v3142
        %v3270 = vmul.f32 %v2884, %v3147
        %v3271 = vmul.f32 %v2887, %v3152
        %v3272 = vmul.f32 %v2892, %v3157
        %v3273 = vmul.f32 %v2895, %v3162
        %v3274 = vmul.f32 %v2900, %v3167
        %v3275 = vmul.f32 %v2903, %v3172
        %v3276 = vmul.f32 %v2908, %v3177
        %v3277 = vmul.f32 %v2911, %v3182
        %v3278 = vmul.f32 %v2916, %v3187
        %v3279 = vmul.f32 %v2919, %v3192
        %v3280 = vmul.f32 %v2924, %v3197
        %v3281 = vmul.f32 %v2927, %v3202
        %v3282 = vmul.f32 %v2932, %v3207
        %v3283 = vmul.f32 %v2935, %v3212
        %v3284 = vmul.f32 %v2940, %v3217
        %v3285 = vmul.f32 %v2943, %v3222
        %v3286 = vmul.f32 %v2948, %v3227
        %v3287 = vmul.f32 %v2951, %v3232
        %v3288 = vmul.f32 %v2956, %v3237
        %v3289 = vmul.f32 %v2959, %v3242
        %v3331 = vrot.slane %v3244, 1
        %v3332 = vrot.slane %v3245, 1
        %v3333 = vsel %vm567, %v3331, %v3332
        %v3334 = vrot.slane %v3246, 1
        %v3335 = vsel %vm567, %v3332, %v3334
        %v3336 = vrot.slane %v3247, 1
        %v3337 = vsel %vm567, %v3334, %v3336
        %v3338 = vrot.slane %v3248, 1
        %v3339 = vsel %vm567, %v3336, %v3338
        %v3340 = vrot.slane %v3249, 1
        %v3341 = vsel %vm567, %v3338, %v3340
        %v3342 = vrot.slane %v3250, 1
        %v3343 = vsel %vm567, %v3340, %v3342
        %v3344 = vrot.slane %v3251, 1
        %v3345 = vsel %vm567, %v3342, %v3344
        %v3346 = vrot.slane %v3252, 1
        %v3347 = vsel %vm567, %v3344, %v3346
        %v3348 = vrot.slane %v3253, 1
        %v3349 = vsel %vm567, %v3346, %v3348
        %v3350 = vrot.slane %v3254, 1
        %v3351 = vsel %vm567, %v3348, %v3350
        %v3352 = vrot.slane %v3255, 1
        %v3353 = vsel %vm567, %v3350, %v3352
        %v3354 = vrot.slane %v3256, 1
        %v3355 = vsel %vm567, %v3352, %v3354
        %v3356 = vrot.slane %v3257, 1
        %v3357 = vsel %vm567, %v3354, %v3356
        %v3358 = vrot.slane %v3258, 1
        %v3359 = vsel %vm567, %v3356, %v3358
        %v3360 = vrot.slane %v3259, 1
        %v3361 = vsel %vm567, %v3358, %v3360
        %v3362 = vrot.slane %v3260, 1
        %v3363 = vsel %vm567, %v3360, %v3362
        %v3364 = vrot.slane %v3261, 1
        %v3365 = vsel %vm567, %v3362, %v3364
        %v3366 = vrot.slane %v3262, 1
        %v3367 = vsel %vm567, %v3364, %v3366
        %v3368 = vrot.slane %v3263, 1
        %v3369 = vsel %vm567, %v3366, %v3368
        %v3370 = vrot.slane %v3264, 1
        %v3371 = vsel %vm567, %v3368, %v3370
        %v3372 = vrot.slane %v3265, 1
        %v3373 = vsel %vm567, %v3370, %v3372
        %v3374 = vrot.slane %v3266, 1
        %v3375 = vsel %vm567, %v3372, %v3374
        %v3376 = vrot.slane %v3267, 1
        %v3377 = vsel %vm567, %v3374, %v3376
        %v3378 = vrot.slane %v3268, 1
        %v3379 = vsel %vm567, %v3376, %v3378
        %v3380 = vrot.slane %v3269, 1
        %v3381 = vsel %vm567, %v3378, %v3380
        %v3382 = vrot.slane %v3270, 1
        %v3383 = vsel %vm567, %v3380, %v3382
        %v3384 = vrot.slane %v3271, 1
        %v3385 = vsel %vm567, %v3382, %v3384
        %v3386 = vrot.slane %v3272, 1
        %v3387 = vsel %vm567, %v3384, %v3386
        %v3388 = vrot.slane %v3273, 1
        %v3389 = vsel %vm567, %v3386, %v3388
        %v3390 = vrot.slane %v3274, 1
        %v3391 = vsel %vm567, %v3388, %v3390
        %v3392 = vrot.slane %v3275, 1
        %v3393 = vsel %vm567, %v3390, %v3392
        %v3394 = vrot.slane %v3276, 1
        %v3395 = vsel %vm567, %v3392, %v3394
        %v3396 = vrot.slane %v3277, 1
        %v3397 = vsel %vm567, %v3394, %v3396
        %v3398 = vrot.slane %v3278, 1
        %v3399 = vsel %vm567, %v3396, %v3398
        %v3400 = vrot.slane %v3279, 1
        %v3401 = vsel %vm567, %v3398, %v3400
        %v3402 = vrot.slane %v3280, 1
        %v3403 = vsel %vm567, %v3400, %v3402
        %v3404 = vrot.slane %v3281, 1
        %v3405 = vsel %vm567, %v3402, %v3404
        %v3406 = vrot.slane %v3282, 1
        %v3407 = vsel %vm567, %v3404, %v3406
        %v3408 = vrot.slane %v3283, 1
        %v3409 = vsel %vm567, %v3406, %v3408
        %v3410 = vrot.slane %v3284, 1
        %v3411 = vsel %vm567, %v3408, %v3410
        %3412 = vrot.lane.b32.xlu0 %v3333, 4
        %v3413 = vpop.permute.xlu0 %3412
        %3414 = vrot.lane.b32.xlu0 %v3335, 4
        %v3415 = vpop.permute.xlu0 %3414
        %3416 = vrot.lane.b32.xlu0 %v3337, 4
        %v3417 = vpop.permute.xlu0 %3416
        %3418 = vrot.lane.b32.xlu0 %v3339, 4
        %v3419 = vpop.permute.xlu0 %3418
        %3420 = vrot.lane.b32.xlu0 %v3341, 4
        %v3421 = vpop.permute.xlu0 %3420
        %3422 = vrot.lane.b32.xlu0 %v3343, 4
        %v3423 = vpop.permute.xlu0 %3422
        %3424 = vrot.lane.b32.xlu0 %v3345, 4
        %v3425 = vpop.permute.xlu0 %3424
        %3426 = vrot.lane.b32.xlu0 %v3347, 4
        %v3427 = vpop.permute.xlu0 %3426
        %3428 = vrot.lane.b32.xlu0 %v3349, 4
        %v3429 = vpop.permute.xlu0 %3428
        %3430 = vrot.lane.b32.xlu0 %v3351, 4
        %v3431 = vpop.permute.xlu0 %3430
        %3432 = vrot.lane.b32.xlu0 %v3353, 4
        %v3433 = vpop.permute.xlu0 %3432
        %3434 = vrot.lane.b32.xlu0 %v3355, 4
        %v3435 = vpop.permute.xlu0 %3434
        %3436 = vrot.lane.b32.xlu0 %v3357, 4
        %v3437 = vpop.permute.xlu0 %3436
        %3438 = vrot.lane.b32.xlu0 %v3359, 4
        %v3439 = vpop.permute.xlu0 %3438
        %3440 = vrot.lane.b32.xlu0 %v3361, 4
        %v3441 = vpop.permute.xlu0 %3440
        %3442 = vrot.lane.b32.xlu0 %v3363, 4
        %v3443 = vpop.permute.xlu0 %3442
        %3444 = vrot.lane.b32.xlu0 %v3365, 4
        %v3445 = vpop.permute.xlu0 %3444
        %3446 = vrot.lane.b32.xlu0 %v3367, 4
        %v3447 = vpop.permute.xlu0 %3446
        %3448 = vrot.lane.b32.xlu0 %v3369, 4
        %v3449 = vpop.permute.xlu0 %3448
        %3450 = vrot.lane.b32.xlu0 %v3371, 4
        %v3451 = vpop.permute.xlu0 %3450
        %3452 = vrot.lane.b32.xlu0 %v3373, 4
        %v3453 = vpop.permute.xlu0 %3452
        %3454 = vrot.lane.b32.xlu0 %v3375, 4
        %v3455 = vpop.permute.xlu0 %3454
        %3456 = vrot.lane.b32.xlu0 %v3377, 4
        %v3457 = vpop.permute.xlu0 %3456
        %3458 = vrot.lane.b32.xlu0 %v3379, 4
        %v3459 = vpop.permute.xlu0 %3458
        %3460 = vrot.lane.b32.xlu0 %v3381, 4
        %v3461 = vpop.permute.xlu0 %3460
        %3462 = vrot.lane.b32.xlu0 %v3383, 4
        %v3463 = vpop.permute.xlu0 %3462
        %3464 = vrot.lane.b32.xlu0 %v3385, 4
        %v3465 = vpop.permute.xlu0 %3464
        %3466 = vrot.lane.b32.xlu0 %v3387, 4
        %v3467 = vpop.permute.xlu0 %3466
        %3468 = vrot.lane.b32.xlu0 %v3389, 4
        %v3469 = vpop.permute.xlu0 %3468
        %3470 = vrot.lane.b32.xlu0 %v3391, 4
        %v3471 = vpop.permute.xlu0 %3470
        %3472 = vrot.lane.b32.xlu0 %v3393, 4
        %v3473 = vpop.permute.xlu0 %3472
        %3474 = vrot.lane.b32.xlu0 %v3395, 4
        %v3475 = vpop.permute.xlu0 %3474
        %3476 = vrot.lane.b32.xlu0 %v3397, 4
        %v3477 = vpop.permute.xlu0 %3476
        %3478 = vrot.lane.b32.xlu0 %v3399, 4
        %v3479 = vpop.permute.xlu0 %3478
        %3480 = vrot.lane.b32.xlu0 %v3401, 4
        %v3481 = vpop.permute.xlu0 %3480
        %3482 = vrot.lane.b32.xlu0 %v3403, 4
        %v3483 = vpop.permute.xlu0 %3482
        %3484 = vrot.lane.b32.xlu0 %v3405, 4
        %v3485 = vpop.permute.xlu0 %3484
        %3486 = vrot.lane.b32.xlu0 %v3407, 4
        %v3487 = vpop.permute.xlu0 %3486
        %3488 = vrot.lane.b32.xlu0 %v3409, 4
        %v3489 = vpop.permute.xlu0 %3488
        %3490 = vrot.lane.b32.xlu0 %v3411, 4
        %v3491 = vpop.permute.xlu0 %3490
        %v3532 = vrot.slane %v3244, 2
        %v3533 = vrot.slane %v3245, 2
        %v3534 = vsel %vm807, %v3532, %v3533
        %v3535 = vrot.slane %v3246, 2
        %v3536 = vsel %vm807, %v3533, %v3535
        %v3537 = vrot.slane %v3247, 2
        %v3538 = vsel %vm807, %v3535, %v3537
        %v3539 = vrot.slane %v3248, 2
        %v3540 = vsel %vm807, %v3537, %v3539
        %v3541 = vrot.slane %v3249, 2
        %v3542 = vsel %vm807, %v3539, %v3541
        %v3543 = vrot.slane %v3250, 2
        %v3544 = vsel %vm807, %v3541, %v3543
        %v3545 = vrot.slane %v3251, 2
        %v3546 = vsel %vm807, %v3543, %v3545
        %v3547 = vrot.slane %v3252, 2
        %v3548 = vsel %vm807, %v3545, %v3547
        %v3549 = vrot.slane %v3253, 2
        %v3550 = vsel %vm807, %v3547, %v3549
        %v3551 = vrot.slane %v3254, 2
        %v3552 = vsel %vm807, %v3549, %v3551
        %v3553 = vrot.slane %v3255, 2
        %v3554 = vsel %vm807, %v3551, %v3553
        %v3555 = vrot.slane %v3256, 2
        %v3556 = vsel %vm807, %v3553, %v3555
        %v3557 = vrot.slane %v3257, 2
        %v3558 = vsel %vm807, %v3555, %v3557
        %v3559 = vrot.slane %v3258, 2
        %v3560 = vsel %vm807, %v3557, %v3559
        %v3561 = vrot.slane %v3259, 2
        %v3562 = vsel %vm807, %v3559, %v3561
        %v3563 = vrot.slane %v3260, 2
        %v3564 = vsel %vm807, %v3561, %v3563
        %v3565 = vrot.slane %v3261, 2
        %v3566 = vsel %vm807, %v3563, %v3565
        %v3567 = vrot.slane %v3262, 2
        %v3568 = vsel %vm807, %v3565, %v3567
        %v3569 = vrot.slane %v3263, 2
        %v3570 = vsel %vm807, %v3567, %v3569
        %v3571 = vrot.slane %v3264, 2
        %v3572 = vsel %vm807, %v3569, %v3571
        %v3573 = vrot.slane %v3265, 2
        %v3574 = vsel %vm807, %v3571, %v3573
        %v3575 = vrot.slane %v3266, 2
        %v3576 = vsel %vm807, %v3573, %v3575
        %v3577 = vrot.slane %v3267, 2
        %v3578 = vsel %vm807, %v3575, %v3577
        %v3579 = vrot.slane %v3268, 2
        %v3580 = vsel %vm807, %v3577, %v3579
        %v3581 = vrot.slane %v3269, 2
        %v3582 = vsel %vm807, %v3579, %v3581
        %v3583 = vrot.slane %v3270, 2
        %v3584 = vsel %vm807, %v3581, %v3583
        %v3585 = vrot.slane %v3271, 2
        %v3586 = vsel %vm807, %v3583, %v3585
        %v3587 = vrot.slane %v3272, 2
        %v3588 = vsel %vm807, %v3585, %v3587
        %v3589 = vrot.slane %v3273, 2
        %v3590 = vsel %vm807, %v3587, %v3589
        %v3591 = vrot.slane %v3274, 2
        %v3592 = vsel %vm807, %v3589, %v3591
        %v3593 = vrot.slane %v3275, 2
        %v3594 = vsel %vm807, %v3591, %v3593
        %v3595 = vrot.slane %v3276, 2
        %v3596 = vsel %vm807, %v3593, %v3595
        %v3597 = vrot.slane %v3277, 2
        %v3598 = vsel %vm807, %v3595, %v3597
        %v3599 = vrot.slane %v3278, 2
        %v3600 = vsel %vm807, %v3597, %v3599
        %v3601 = vrot.slane %v3279, 2
        %v3602 = vsel %vm807, %v3599, %v3601
        %v3603 = vrot.slane %v3280, 2
        %v3604 = vsel %vm807, %v3601, %v3603
        %v3605 = vrot.slane %v3281, 2
        %v3606 = vsel %vm807, %v3603, %v3605
        %v3607 = vrot.slane %v3282, 2
        %v3608 = vsel %vm807, %v3605, %v3607
        %v3609 = vrot.slane %v3283, 2
        %v3610 = vsel %vm807, %v3607, %v3609
        %v3611 = vrot.slane %v3284, 2
        %v3612 = vsel %vm807, %v3609, %v3611
        %3613 = vrot.lane.b32.xlu0 %v3534, 8
        %v3614 = vpop.permute.xlu0 %3613
        %3615 = vrot.lane.b32.xlu0 %v3536, 8
        %v3616 = vpop.permute.xlu0 %3615
        %3617 = vrot.lane.b32.xlu0 %v3538, 8
        %v3618 = vpop.permute.xlu0 %3617
        %3619 = vrot.lane.b32.xlu0 %v3540, 8
        %v3620 = vpop.permute.xlu0 %3619
        %3621 = vrot.lane.b32.xlu0 %v3542, 8
        %v3622 = vpop.permute.xlu0 %3621
        %3623 = vrot.lane.b32.xlu0 %v3544, 8
        %v3624 = vpop.permute.xlu0 %3623
        %3625 = vrot.lane.b32.xlu0 %v3546, 8
        %v3626 = vpop.permute.xlu0 %3625
        %3627 = vrot.lane.b32.xlu0 %v3548, 8
        %v3628 = vpop.permute.xlu0 %3627
        %3629 = vrot.lane.b32.xlu0 %v3550, 8
        %v3630 = vpop.permute.xlu0 %3629
        %3631 = vrot.lane.b32.xlu0 %v3552, 8
        %v3632 = vpop.permute.xlu0 %3631
        %3633 = vrot.lane.b32.xlu0 %v3554, 8
        %v3634 = vpop.permute.xlu0 %3633
        %3635 = vrot.lane.b32.xlu0 %v3556, 8
        %v3636 = vpop.permute.xlu0 %3635
        %3637 = vrot.lane.b32.xlu0 %v3558, 8
        %v3638 = vpop.permute.xlu0 %3637
        %3639 = vrot.lane.b32.xlu0 %v3560, 8
        %v3640 = vpop.permute.xlu0 %3639
        %3641 = vrot.lane.b32.xlu0 %v3562, 8
        %v3642 = vpop.permute.xlu0 %3641
        %3643 = vrot.lane.b32.xlu0 %v3564, 8
        %v3644 = vpop.permute.xlu0 %3643
        %3645 = vrot.lane.b32.xlu0 %v3566, 8
        %v3646 = vpop.permute.xlu0 %3645
        %3647 = vrot.lane.b32.xlu0 %v3568, 8
        %v3648 = vpop.permute.xlu0 %3647
        %3649 = vrot.lane.b32.xlu0 %v3570, 8
        %v3650 = vpop.permute.xlu0 %3649
        %3651 = vrot.lane.b32.xlu0 %v3572, 8
        %v3652 = vpop.permute.xlu0 %3651
        %3653 = vrot.lane.b32.xlu0 %v3574, 8
        %v3654 = vpop.permute.xlu0 %3653
        %3655 = vrot.lane.b32.xlu0 %v3576, 8
        %v3656 = vpop.permute.xlu0 %3655
        %3657 = vrot.lane.b32.xlu0 %v3578, 8
        %v3658 = vpop.permute.xlu0 %3657
        %3659 = vrot.lane.b32.xlu0 %v3580, 8
        %v3660 = vpop.permute.xlu0 %3659
        %3661 = vrot.lane.b32.xlu0 %v3582, 8
        %v3662 = vpop.permute.xlu0 %3661
        %3663 = vrot.lane.b32.xlu0 %v3584, 8
        %v3664 = vpop.permute.xlu0 %3663
        %3665 = vrot.lane.b32.xlu0 %v3586, 8
        %v3666 = vpop.permute.xlu0 %3665
        %3667 = vrot.lane.b32.xlu0 %v3588, 8
        %v3668 = vpop.permute.xlu0 %3667
        %3669 = vrot.lane.b32.xlu0 %v3590, 8
        %v3670 = vpop.permute.xlu0 %3669
        %3671 = vrot.lane.b32.xlu0 %v3592, 8
        %v3672 = vpop.permute.xlu0 %3671
        %3673 = vrot.lane.b32.xlu0 %v3594, 8
        %v3674 = vpop.permute.xlu0 %3673
        %3675 = vrot.lane.b32.xlu0 %v3596, 8
        %v3676 = vpop.permute.xlu0 %3675
        %3677 = vrot.lane.b32.xlu0 %v3598, 8
        %v3678 = vpop.permute.xlu0 %3677
        %3679 = vrot.lane.b32.xlu0 %v3600, 8
        %v3680 = vpop.permute.xlu0 %3679
        %3681 = vrot.lane.b32.xlu0 %v3602, 8
        %v3682 = vpop.permute.xlu0 %3681
        %3683 = vrot.lane.b32.xlu0 %v3604, 8
        %v3684 = vpop.permute.xlu0 %3683
        %3685 = vrot.lane.b32.xlu0 %v3606, 8
        %v3686 = vpop.permute.xlu0 %3685
        %3687 = vrot.lane.b32.xlu0 %v3608, 8
        %v3688 = vpop.permute.xlu0 %3687
        %3689 = vrot.lane.b32.xlu0 %v3610, 8
        %v3690 = vpop.permute.xlu0 %3689
        %3691 = vrot.lane.b32.xlu0 %v3612, 8
        %v3692 = vpop.permute.xlu0 %3691
        %v3735 = vrot.slane %v3246, 4
        %v3736 = vrot.slane %v3247, 4
        %v3737 = vsel %vm1049, %v3735, %v3736
        %v3738 = vrot.slane %v3248, 4
        %v3739 = vsel %vm1049, %v3736, %v3738
        %v3740 = vrot.slane %v3249, 4
        %v3741 = vsel %vm1049, %v3738, %v3740
        %v3742 = vrot.slane %v3250, 4
        %v3743 = vsel %vm1049, %v3740, %v3742
        %v3744 = vrot.slane %v3251, 4
        %v3745 = vsel %vm1049, %v3742, %v3744
        %v3746 = vrot.slane %v3252, 4
        %v3747 = vsel %vm1049, %v3744, %v3746
        %v3748 = vrot.slane %v3253, 4
        %v3749 = vsel %vm1049, %v3746, %v3748
        %v3750 = vrot.slane %v3254, 4
        %v3751 = vsel %vm1049, %v3748, %v3750
        %v3752 = vrot.slane %v3255, 4
        %v3753 = vsel %vm1049, %v3750, %v3752
        %v3754 = vrot.slane %v3256, 4
        %v3755 = vsel %vm1049, %v3752, %v3754
        %v3756 = vrot.slane %v3257, 4
        %v3757 = vsel %vm1049, %v3754, %v3756
        %v3758 = vrot.slane %v3258, 4
        %v3759 = vsel %vm1049, %v3756, %v3758
        %v3760 = vrot.slane %v3259, 4
        %v3761 = vsel %vm1049, %v3758, %v3760
        %v3762 = vrot.slane %v3260, 4
        %v3763 = vsel %vm1049, %v3760, %v3762
        %v3764 = vrot.slane %v3261, 4
        %v3765 = vsel %vm1049, %v3762, %v3764
        %v3766 = vrot.slane %v3262, 4
        %v3767 = vsel %vm1049, %v3764, %v3766
        %v3768 = vrot.slane %v3263, 4
        %v3769 = vsel %vm1049, %v3766, %v3768
        %v3770 = vrot.slane %v3264, 4
        %v3771 = vsel %vm1049, %v3768, %v3770
        %v3772 = vrot.slane %v3265, 4
        %v3773 = vsel %vm1049, %v3770, %v3772
        %v3774 = vrot.slane %v3266, 4
        %v3775 = vsel %vm1049, %v3772, %v3774
        %v3776 = vrot.slane %v3267, 4
        %v3777 = vsel %vm1049, %v3774, %v3776
        %v3778 = vrot.slane %v3268, 4
        %v3779 = vsel %vm1049, %v3776, %v3778
        %v3780 = vrot.slane %v3269, 4
        %v3781 = vsel %vm1049, %v3778, %v3780
        %v3782 = vrot.slane %v3270, 4
        %v3783 = vsel %vm1049, %v3780, %v3782
        %v3784 = vrot.slane %v3271, 4
        %v3785 = vsel %vm1049, %v3782, %v3784
        %v3786 = vrot.slane %v3272, 4
        %v3787 = vsel %vm1049, %v3784, %v3786
        %v3788 = vrot.slane %v3273, 4
        %v3789 = vsel %vm1049, %v3786, %v3788
        %v3790 = vrot.slane %v3274, 4
        %v3791 = vsel %vm1049, %v3788, %v3790
        %v3792 = vrot.slane %v3275, 4
        %v3793 = vsel %vm1049, %v3790, %v3792
        %v3794 = vrot.slane %v3276, 4
        %v3795 = vsel %vm1049, %v3792, %v3794
        %v3796 = vrot.slane %v3277, 4
        %v3797 = vsel %vm1049, %v3794, %v3796
        %v3798 = vrot.slane %v3278, 4
        %v3799 = vsel %vm1049, %v3796, %v3798
        %v3800 = vrot.slane %v3279, 4
        %v3801 = vsel %vm1049, %v3798, %v3800
        %v3802 = vrot.slane %v3280, 4
        %v3803 = vsel %vm1049, %v3800, %v3802
        %v3804 = vrot.slane %v3281, 4
        %v3805 = vsel %vm1049, %v3802, %v3804
        %v3806 = vrot.slane %v3282, 4
        %v3807 = vsel %vm1049, %v3804, %v3806
        %v3808 = vrot.slane %v3283, 4
        %v3809 = vsel %vm1049, %v3806, %v3808
        %v3810 = vrot.slane %v3284, 4
        %v3811 = vsel %vm1049, %v3808, %v3810
        %v3812 = vrot.slane %v3285, 4
        %v3813 = vsel %vm1049, %v3810, %v3812
        %v3814 = vrot.slane %v3286, 4
        %v3815 = vsel %vm1049, %v3812, %v3814
        %3816 = vrot.lane.b32.xlu0 %v3737, 12
        %v3817 = vpop.permute.xlu0 %3816
        %3818 = vrot.lane.b32.xlu0 %v3739, 12
        %v3819 = vpop.permute.xlu0 %3818
        %3820 = vrot.lane.b32.xlu0 %v3741, 12
        %v3821 = vpop.permute.xlu0 %3820
        %3822 = vrot.lane.b32.xlu0 %v3743, 12
        %v3823 = vpop.permute.xlu0 %3822
        %3824 = vrot.lane.b32.xlu0 %v3745, 12
        %v3825 = vpop.permute.xlu0 %3824
        %3826 = vrot.lane.b32.xlu0 %v3747, 12
        %v3827 = vpop.permute.xlu0 %3826
        %3828 = vrot.lane.b32.xlu0 %v3749, 12
        %v3829 = vpop.permute.xlu0 %3828
        %3830 = vrot.lane.b32.xlu0 %v3751, 12
        %v3831 = vpop.permute.xlu0 %3830
        %3832 = vrot.lane.b32.xlu0 %v3753, 12
        %v3833 = vpop.permute.xlu0 %3832
        %3834 = vrot.lane.b32.xlu0 %v3755, 12
        %v3835 = vpop.permute.xlu0 %3834
        %3836 = vrot.lane.b32.xlu0 %v3757, 12
        %v3837 = vpop.permute.xlu0 %3836
        %3838 = vrot.lane.b32.xlu0 %v3759, 12
        %v3839 = vpop.permute.xlu0 %3838
        %3840 = vrot.lane.b32.xlu0 %v3761, 12
        %v3841 = vpop.permute.xlu0 %3840
        %3842 = vrot.lane.b32.xlu0 %v3763, 12
        %v3843 = vpop.permute.xlu0 %3842
        %3844 = vrot.lane.b32.xlu0 %v3765, 12
        %v3845 = vpop.permute.xlu0 %3844
        %3846 = vrot.lane.b32.xlu0 %v3767, 12
        %v3847 = vpop.permute.xlu0 %3846
        %3848 = vrot.lane.b32.xlu0 %v3769, 12
        %v3849 = vpop.permute.xlu0 %3848
        %3850 = vrot.lane.b32.xlu0 %v3771, 12
        %v3851 = vpop.permute.xlu0 %3850
        %3852 = vrot.lane.b32.xlu0 %v3773, 12
        %v3853 = vpop.permute.xlu0 %3852
        %3854 = vrot.lane.b32.xlu0 %v3775, 12
        %v3855 = vpop.permute.xlu0 %3854
        %3856 = vrot.lane.b32.xlu0 %v3777, 12
        %v3857 = vpop.permute.xlu0 %3856
        %3858 = vrot.lane.b32.xlu0 %v3779, 12
        %v3859 = vpop.permute.xlu0 %3858
        %3860 = vrot.lane.b32.xlu0 %v3781, 12
        %v3861 = vpop.permute.xlu0 %3860
        %3862 = vrot.lane.b32.xlu0 %v3783, 12
        %v3863 = vpop.permute.xlu0 %3862
        %3864 = vrot.lane.b32.xlu0 %v3785, 12
        %v3865 = vpop.permute.xlu0 %3864
        %3866 = vrot.lane.b32.xlu0 %v3787, 12
        %v3867 = vpop.permute.xlu0 %3866
        %3868 = vrot.lane.b32.xlu0 %v3789, 12
        %v3869 = vpop.permute.xlu0 %3868
        %3870 = vrot.lane.b32.xlu0 %v3791, 12
        %v3871 = vpop.permute.xlu0 %3870
        %3872 = vrot.lane.b32.xlu0 %v3793, 12
        %v3873 = vpop.permute.xlu0 %3872
        %3874 = vrot.lane.b32.xlu0 %v3795, 12
        %v3875 = vpop.permute.xlu0 %3874
        %3876 = vrot.lane.b32.xlu0 %v3797, 12
        %v3877 = vpop.permute.xlu0 %3876
        %3878 = vrot.lane.b32.xlu0 %v3799, 12
        %v3879 = vpop.permute.xlu0 %3878
        %3880 = vrot.lane.b32.xlu0 %v3801, 12
        %v3881 = vpop.permute.xlu0 %3880
        %3882 = vrot.lane.b32.xlu0 %v3803, 12
        %v3883 = vpop.permute.xlu0 %3882
        %3884 = vrot.lane.b32.xlu0 %v3805, 12
        %v3885 = vpop.permute.xlu0 %3884
        %3886 = vrot.lane.b32.xlu0 %v3807, 12
        %v3887 = vpop.permute.xlu0 %3886
        %3888 = vrot.lane.b32.xlu0 %v3809, 12
        %v3889 = vpop.permute.xlu0 %3888
        %3890 = vrot.lane.b32.xlu0 %v3811, 12
        %v3891 = vpop.permute.xlu0 %3890
        %3892 = vrot.lane.b32.xlu0 %v3813, 12
        %v3893 = vpop.permute.xlu0 %3892
        %3894 = vrot.lane.b32.xlu0 %v3815, 12
        %v3895 = vpop.permute.xlu0 %3894
        %v3936 = vrot.slane %v3246, 5
        %v3937 = vrot.slane %v3247, 5
        %v3938 = vsel %vm1290, %v3936, %v3937
        %v3939 = vrot.slane %v3248, 5
        %v3940 = vsel %vm1290, %v3937, %v3939
        %v3941 = vrot.slane %v3249, 5
        %v3942 = vsel %vm1290, %v3939, %v3941
        %v3943 = vrot.slane %v3250, 5
        %v3944 = vsel %vm1290, %v3941, %v3943
        %v3945 = vrot.slane %v3251, 5
        %v3946 = vsel %vm1290, %v3943, %v3945
        %v3947 = vrot.slane %v3252, 5
        %v3948 = vsel %vm1290, %v3945, %v3947
        %v3949 = vrot.slane %v3253, 5
        %v3950 = vsel %vm1290, %v3947, %v3949
        %v3951 = vrot.slane %v3254, 5
        %v3952 = vsel %vm1290, %v3949, %v3951
        %v3953 = vrot.slane %v3255, 5
        %v3954 = vsel %vm1290, %v3951, %v3953
        %v3955 = vrot.slane %v3256, 5
        %v3956 = vsel %vm1290, %v3953, %v3955
        %v3957 = vrot.slane %v3257, 5
        %v3958 = vsel %vm1290, %v3955, %v3957
        %v3959 = vrot.slane %v3258, 5
        %v3960 = vsel %vm1290, %v3957, %v3959
        %v3961 = vrot.slane %v3259, 5
        %v3962 = vsel %vm1290, %v3959, %v3961
        %v3963 = vrot.slane %v3260, 5
        %v3964 = vsel %vm1290, %v3961, %v3963
        %v3965 = vrot.slane %v3261, 5
        %v3966 = vsel %vm1290, %v3963, %v3965
        %v3967 = vrot.slane %v3262, 5
        %v3968 = vsel %vm1290, %v3965, %v3967
        %v3969 = vrot.slane %v3263, 5
        %v3970 = vsel %vm1290, %v3967, %v3969
        %v3971 = vrot.slane %v3264, 5
        %v3972 = vsel %vm1290, %v3969, %v3971
        %v3973 = vrot.slane %v3265, 5
        %v3974 = vsel %vm1290, %v3971, %v3973
        %v3975 = vrot.slane %v3266, 5
        %v3976 = vsel %vm1290, %v3973, %v3975
        %v3977 = vrot.slane %v3267, 5
        %v3978 = vsel %vm1290, %v3975, %v3977
        %v3979 = vrot.slane %v3268, 5
        %v3980 = vsel %vm1290, %v3977, %v3979
        %v3981 = vrot.slane %v3269, 5
        %v3982 = vsel %vm1290, %v3979, %v3981
        %v3983 = vrot.slane %v3270, 5
        %v3984 = vsel %vm1290, %v3981, %v3983
        %v3985 = vrot.slane %v3271, 5
        %v3986 = vsel %vm1290, %v3983, %v3985
        %v3987 = vrot.slane %v3272, 5
        %v3988 = vsel %vm1290, %v3985, %v3987
        %v3989 = vrot.slane %v3273, 5
        %v3990 = vsel %vm1290, %v3987, %v3989
        %v3991 = vrot.slane %v3274, 5
        %v3992 = vsel %vm1290, %v3989, %v3991
        %v3993 = vrot.slane %v3275, 5
        %v3994 = vsel %vm1290, %v3991, %v3993
        %v3995 = vrot.slane %v3276, 5
        %v3996 = vsel %vm1290, %v3993, %v3995
        %v3997 = vrot.slane %v3277, 5
        %v3998 = vsel %vm1290, %v3995, %v3997
        %v3999 = vrot.slane %v3278, 5
        %v4000 = vsel %vm1290, %v3997, %v3999
        %v4001 = vrot.slane %v3279, 5
        %v4002 = vsel %vm1290, %v3999, %v4001
        %v4003 = vrot.slane %v3280, 5
        %v4004 = vsel %vm1290, %v4001, %v4003
        %v4005 = vrot.slane %v3281, 5
        %v4006 = vsel %vm1290, %v4003, %v4005
        %v4007 = vrot.slane %v3282, 5
        %v4008 = vsel %vm1290, %v4005, %v4007
        %v4009 = vrot.slane %v3283, 5
        %v4010 = vsel %vm1290, %v4007, %v4009
        %v4011 = vrot.slane %v3284, 5
        %v4012 = vsel %vm1290, %v4009, %v4011
        %v4013 = vrot.slane %v3285, 5
        %v4014 = vsel %vm1290, %v4011, %v4013
        %v4015 = vrot.slane %v3286, 5
        %v4016 = vsel %vm1290, %v4013, %v4015
        %4017 = vrot.lane.b32.xlu0 %v3938, 16
        %v4018 = vpop.permute.xlu0 %4017
        %4019 = vrot.lane.b32.xlu0 %v3940, 16
        %v4020 = vpop.permute.xlu0 %4019
        %4021 = vrot.lane.b32.xlu0 %v3942, 16
        %v4022 = vpop.permute.xlu0 %4021
        %4023 = vrot.lane.b32.xlu0 %v3944, 16
        %v4024 = vpop.permute.xlu0 %4023
        %4025 = vrot.lane.b32.xlu0 %v3946, 16
        %v4026 = vpop.permute.xlu0 %4025
        %4027 = vrot.lane.b32.xlu0 %v3948, 16
        %v4028 = vpop.permute.xlu0 %4027
        %4029 = vrot.lane.b32.xlu0 %v3950, 16
        %v4030 = vpop.permute.xlu0 %4029
        %4031 = vrot.lane.b32.xlu0 %v3952, 16
        %v4032 = vpop.permute.xlu0 %4031
        %4033 = vrot.lane.b32.xlu0 %v3954, 16
        %v4034 = vpop.permute.xlu0 %4033
        %4035 = vrot.lane.b32.xlu0 %v3956, 16
        %v4036 = vpop.permute.xlu0 %4035
        %4037 = vrot.lane.b32.xlu0 %v3958, 16
        %v4038 = vpop.permute.xlu0 %4037
        %4039 = vrot.lane.b32.xlu0 %v3960, 16
        %v4040 = vpop.permute.xlu0 %4039
        %4041 = vrot.lane.b32.xlu0 %v3962, 16
        %v4042 = vpop.permute.xlu0 %4041
        %4043 = vrot.lane.b32.xlu0 %v3964, 16
        %v4044 = vpop.permute.xlu0 %4043
        %4045 = vrot.lane.b32.xlu0 %v3966, 16
        %v4046 = vpop.permute.xlu0 %4045
        %4047 = vrot.lane.b32.xlu0 %v3968, 16
        %v4048 = vpop.permute.xlu0 %4047
        %4049 = vrot.lane.b32.xlu0 %v3970, 16
        %v4050 = vpop.permute.xlu0 %4049
        %4051 = vrot.lane.b32.xlu0 %v3972, 16
        %v4052 = vpop.permute.xlu0 %4051
        %4053 = vrot.lane.b32.xlu0 %v3974, 16
        %v4054 = vpop.permute.xlu0 %4053
        %4055 = vrot.lane.b32.xlu0 %v3976, 16
        %v4056 = vpop.permute.xlu0 %4055
        %4057 = vrot.lane.b32.xlu0 %v3978, 16
        %v4058 = vpop.permute.xlu0 %4057
        %4059 = vrot.lane.b32.xlu0 %v3980, 16
        %v4060 = vpop.permute.xlu0 %4059
        %4061 = vrot.lane.b32.xlu0 %v3982, 16
        %v4062 = vpop.permute.xlu0 %4061
        %4063 = vrot.lane.b32.xlu0 %v3984, 16
        %v4064 = vpop.permute.xlu0 %4063
        %4065 = vrot.lane.b32.xlu0 %v3986, 16
        %v4066 = vpop.permute.xlu0 %4065
        %4067 = vrot.lane.b32.xlu0 %v3988, 16
        %v4068 = vpop.permute.xlu0 %4067
        %4069 = vrot.lane.b32.xlu0 %v3990, 16
        %v4070 = vpop.permute.xlu0 %4069
        %4071 = vrot.lane.b32.xlu0 %v3992, 16
        %v4072 = vpop.permute.xlu0 %4071
        %4073 = vrot.lane.b32.xlu0 %v3994, 16
        %v4074 = vpop.permute.xlu0 %4073
        %4075 = vrot.lane.b32.xlu0 %v3996, 16
        %v4076 = vpop.permute.xlu0 %4075
        %4077 = vrot.lane.b32.xlu0 %v3998, 16
        %v4078 = vpop.permute.xlu0 %4077
        %4079 = vrot.lane.b32.xlu0 %v4000, 16
        %v4080 = vpop.permute.xlu0 %4079
        %4081 = vrot.lane.b32.xlu0 %v4002, 16
        %v4082 = vpop.permute.xlu0 %4081
        %4083 = vrot.lane.b32.xlu0 %v4004, 16
        %v4084 = vpop.permute.xlu0 %4083
        %4085 = vrot.lane.b32.xlu0 %v4006, 16
        %v4086 = vpop.permute.xlu0 %4085
        %4087 = vrot.lane.b32.xlu0 %v4008, 16
        %v4088 = vpop.permute.xlu0 %4087
        %4089 = vrot.lane.b32.xlu0 %v4010, 16
        %v4090 = vpop.permute.xlu0 %4089
        %4091 = vrot.lane.b32.xlu0 %v4012, 16
        %v4092 = vpop.permute.xlu0 %4091
        %4093 = vrot.lane.b32.xlu0 %v4014, 16
        %v4094 = vpop.permute.xlu0 %4093
        %4095 = vrot.lane.b32.xlu0 %v4016, 16
        %v4096 = vpop.permute.xlu0 %4095
        %v4137 = vrot.slane %v3246, 6
        %v4138 = vrot.slane %v3247, 6
        %v4139 = vsel %vm1532, %v4137, %v4138
        %v4140 = vrot.slane %v3248, 6
        %v4141 = vsel %vm1532, %v4138, %v4140
        %v4142 = vrot.slane %v3249, 6
        %v4143 = vsel %vm1532, %v4140, %v4142
        %v4144 = vrot.slane %v3250, 6
        %v4145 = vsel %vm1532, %v4142, %v4144
        %v4146 = vrot.slane %v3251, 6
        %v4147 = vsel %vm1532, %v4144, %v4146
        %v4148 = vrot.slane %v3252, 6
        %v4149 = vsel %vm1532, %v4146, %v4148
        %v4150 = vrot.slane %v3253, 6
        %v4151 = vsel %vm1532, %v4148, %v4150
        %v4152 = vrot.slane %v3254, 6
        %v4153 = vsel %vm1532, %v4150, %v4152
        %v4154 = vrot.slane %v3255, 6
        %v4155 = vsel %vm1532, %v4152, %v4154
        %v4156 = vrot.slane %v3256, 6
        %v4157 = vsel %vm1532, %v4154, %v4156
        %v4158 = vrot.slane %v3257, 6
        %v4159 = vsel %vm1532, %v4156, %v4158
        %v4160 = vrot.slane %v3258, 6
        %v4161 = vsel %vm1532, %v4158, %v4160
        %v4162 = vrot.slane %v3259, 6
        %v4163 = vsel %vm1532, %v4160, %v4162
        %v4164 = vrot.slane %v3260, 6
        %v4165 = vsel %vm1532, %v4162, %v4164
        %v4166 = vrot.slane %v3261, 6
        %v4167 = vsel %vm1532, %v4164, %v4166
        %v4168 = vrot.slane %v3262, 6
        %v4169 = vsel %vm1532, %v4166, %v4168
        %v4170 = vrot.slane %v3263, 6
        %v4171 = vsel %vm1532, %v4168, %v4170
        %v4172 = vrot.slane %v3264, 6
        %v4173 = vsel %vm1532, %v4170, %v4172
        %v4174 = vrot.slane %v3265, 6
        %v4175 = vsel %vm1532, %v4172, %v4174
        %v4176 = vrot.slane %v3266, 6
        %v4177 = vsel %vm1532, %v4174, %v4176
        %v4178 = vrot.slane %v3267, 6
        %v4179 = vsel %vm1532, %v4176, %v4178
        %v4180 = vrot.slane %v3268, 6
        %v4181 = vsel %vm1532, %v4178, %v4180
        %v4182 = vrot.slane %v3269, 6
        %v4183 = vsel %vm1532, %v4180, %v4182
        %v4184 = vrot.slane %v3270, 6
        %v4185 = vsel %vm1532, %v4182, %v4184
        %v4186 = vrot.slane %v3271, 6
        %v4187 = vsel %vm1532, %v4184, %v4186
        %v4188 = vrot.slane %v3272, 6
        %v4189 = vsel %vm1532, %v4186, %v4188
        %v4190 = vrot.slane %v3273, 6
        %v4191 = vsel %vm1532, %v4188, %v4190
        %v4192 = vrot.slane %v3274, 6
        %v4193 = vsel %vm1532, %v4190, %v4192
        %v4194 = vrot.slane %v3275, 6
        %v4195 = vsel %vm1532, %v4192, %v4194
        %v4196 = vrot.slane %v3276, 6
        %v4197 = vsel %vm1532, %v4194, %v4196
        %v4198 = vrot.slane %v3277, 6
        %v4199 = vsel %vm1532, %v4196, %v4198
        %v4200 = vrot.slane %v3278, 6
        %v4201 = vsel %vm1532, %v4198, %v4200
        %v4202 = vrot.slane %v3279, 6
        %v4203 = vsel %vm1532, %v4200, %v4202
        %v4204 = vrot.slane %v3280, 6
        %v4205 = vsel %vm1532, %v4202, %v4204
        %v4206 = vrot.slane %v3281, 6
        %v4207 = vsel %vm1532, %v4204, %v4206
        %v4208 = vrot.slane %v3282, 6
        %v4209 = vsel %vm1532, %v4206, %v4208
        %v4210 = vrot.slane %v3283, 6
        %v4211 = vsel %vm1532, %v4208, %v4210
        %v4212 = vrot.slane %v3284, 6
        %v4213 = vsel %vm1532, %v4210, %v4212
        %v4214 = vrot.slane %v3285, 6
        %v4215 = vsel %vm1532, %v4212, %v4214
        %v4216 = vrot.slane %v3286, 6
        %v4217 = vsel %vm1532, %v4214, %v4216
        %4218 = vrot.lane.b32.xlu0 %v4139, 20
        %v4219 = vpop.permute.xlu0 %4218
        %4220 = vrot.lane.b32.xlu0 %v4141, 20
        %v4221 = vpop.permute.xlu0 %4220
        %4222 = vrot.lane.b32.xlu0 %v4143, 20
        %v4223 = vpop.permute.xlu0 %4222
        %4224 = vrot.lane.b32.xlu0 %v4145, 20
        %v4225 = vpop.permute.xlu0 %4224
        %4226 = vrot.lane.b32.xlu0 %v4147, 20
        %v4227 = vpop.permute.xlu0 %4226
        %4228 = vrot.lane.b32.xlu0 %v4149, 20
        %v4229 = vpop.permute.xlu0 %4228
        %4230 = vrot.lane.b32.xlu0 %v4151, 20
        %v4231 = vpop.permute.xlu0 %4230
        %4232 = vrot.lane.b32.xlu0 %v4153, 20
        %v4233 = vpop.permute.xlu0 %4232
        %4234 = vrot.lane.b32.xlu0 %v4155, 20
        %v4235 = vpop.permute.xlu0 %4234
        %4236 = vrot.lane.b32.xlu0 %v4157, 20
        %v4237 = vpop.permute.xlu0 %4236
        %4238 = vrot.lane.b32.xlu0 %v4159, 20
        %v4239 = vpop.permute.xlu0 %4238
        %4240 = vrot.lane.b32.xlu0 %v4161, 20
        %v4241 = vpop.permute.xlu0 %4240
        %4242 = vrot.lane.b32.xlu0 %v4163, 20
        %v4243 = vpop.permute.xlu0 %4242
        %4244 = vrot.lane.b32.xlu0 %v4165, 20
        %v4245 = vpop.permute.xlu0 %4244
        %4246 = vrot.lane.b32.xlu0 %v4167, 20
        %v4247 = vpop.permute.xlu0 %4246
        %4248 = vrot.lane.b32.xlu0 %v4169, 20
        %v4249 = vpop.permute.xlu0 %4248
        %4250 = vrot.lane.b32.xlu0 %v4171, 20
        %v4251 = vpop.permute.xlu0 %4250
        %4252 = vrot.lane.b32.xlu0 %v4173, 20
        %v4253 = vpop.permute.xlu0 %4252
        %4254 = vrot.lane.b32.xlu0 %v4175, 20
        %v4255 = vpop.permute.xlu0 %4254
        %4256 = vrot.lane.b32.xlu0 %v4177, 20
        %v4257 = vpop.permute.xlu0 %4256
        %4258 = vrot.lane.b32.xlu0 %v4179, 20
        %v4259 = vpop.permute.xlu0 %4258
        %4260 = vrot.lane.b32.xlu0 %v4181, 20
        %v4261 = vpop.permute.xlu0 %4260
        %4262 = vrot.lane.b32.xlu0 %v4183, 20
        %v4263 = vpop.permute.xlu0 %4262
        %4264 = vrot.lane.b32.xlu0 %v4185, 20
        %v4265 = vpop.permute.xlu0 %4264
        %4266 = vrot.lane.b32.xlu0 %v4187, 20
        %v4267 = vpop.permute.xlu0 %4266
        %4268 = vrot.lane.b32.xlu0 %v4189, 20
        %v4269 = vpop.permute.xlu0 %4268
        %4270 = vrot.lane.b32.xlu0 %v4191, 20
        %v4271 = vpop.permute.xlu0 %4270
        %4272 = vrot.lane.b32.xlu0 %v4193, 20
        %v4273 = vpop.permute.xlu0 %4272
        %4274 = vrot.lane.b32.xlu0 %v4195, 20
        %v4275 = vpop.permute.xlu0 %4274
        %4276 = vrot.lane.b32.xlu0 %v4197, 20
        %v4277 = vpop.permute.xlu0 %4276
        %4278 = vrot.lane.b32.xlu0 %v4199, 20
        %v4279 = vpop.permute.xlu0 %4278
        %4280 = vrot.lane.b32.xlu0 %v4201, 20
        %v4281 = vpop.permute.xlu0 %4280
        %4282 = vrot.lane.b32.xlu0 %v4203, 20
        %v4283 = vpop.permute.xlu0 %4282
        %4284 = vrot.lane.b32.xlu0 %v4205, 20
        %v4285 = vpop.permute.xlu0 %4284
        %4286 = vrot.lane.b32.xlu0 %v4207, 20
        %v4287 = vpop.permute.xlu0 %4286
        %4288 = vrot.lane.b32.xlu0 %v4209, 20
        %v4289 = vpop.permute.xlu0 %4288
        %4290 = vrot.lane.b32.xlu0 %v4211, 20
        %v4291 = vpop.permute.xlu0 %4290
        %4292 = vrot.lane.b32.xlu0 %v4213, 20
        %v4293 = vpop.permute.xlu0 %4292
        %4294 = vrot.lane.b32.xlu0 %v4215, 20
        %v4295 = vpop.permute.xlu0 %4294
        %4296 = vrot.lane.b32.xlu0 %v4217, 20
        %v4297 = vpop.permute.xlu0 %4296
        %4340 = vrot.lane.b32.xlu0 %v3249, 24
        %v4341 = vpop.permute.xlu0 %4340
        %4342 = vrot.lane.b32.xlu0 %v3250, 24
        %v4343 = vpop.permute.xlu0 %4342
        %4344 = vrot.lane.b32.xlu0 %v3251, 24
        %v4345 = vpop.permute.xlu0 %4344
        %4346 = vrot.lane.b32.xlu0 %v3252, 24
        %v4347 = vpop.permute.xlu0 %4346
        %4348 = vrot.lane.b32.xlu0 %v3253, 24
        %v4349 = vpop.permute.xlu0 %4348
        %4350 = vrot.lane.b32.xlu0 %v3254, 24
        %v4351 = vpop.permute.xlu0 %4350
        %4352 = vrot.lane.b32.xlu0 %v3255, 24
        %v4353 = vpop.permute.xlu0 %4352
        %4354 = vrot.lane.b32.xlu0 %v3256, 24
        %v4355 = vpop.permute.xlu0 %4354
        %4356 = vrot.lane.b32.xlu0 %v3257, 24
        %v4357 = vpop.permute.xlu0 %4356
        %4358 = vrot.lane.b32.xlu0 %v3258, 24
        %v4359 = vpop.permute.xlu0 %4358
        %4360 = vrot.lane.b32.xlu0 %v3259, 24
        %v4361 = vpop.permute.xlu0 %4360
        %4362 = vrot.lane.b32.xlu0 %v3260, 24
        %v4363 = vpop.permute.xlu0 %4362
        %4364 = vrot.lane.b32.xlu0 %v3261, 24
        %v4365 = vpop.permute.xlu0 %4364
        %4366 = vrot.lane.b32.xlu0 %v3262, 24
        %v4367 = vpop.permute.xlu0 %4366
        %4368 = vrot.lane.b32.xlu0 %v3263, 24
        %v4369 = vpop.permute.xlu0 %4368
        %4370 = vrot.lane.b32.xlu0 %v3264, 24
        %v4371 = vpop.permute.xlu0 %4370
        %4372 = vrot.lane.b32.xlu0 %v3265, 24
        %v4373 = vpop.permute.xlu0 %4372
        %4374 = vrot.lane.b32.xlu0 %v3266, 24
        %v4375 = vpop.permute.xlu0 %4374
        %4376 = vrot.lane.b32.xlu0 %v3267, 24
        %v4377 = vpop.permute.xlu0 %4376
        %4378 = vrot.lane.b32.xlu0 %v3268, 24
        %v4379 = vpop.permute.xlu0 %4378
        %4380 = vrot.lane.b32.xlu0 %v3269, 24
        %v4381 = vpop.permute.xlu0 %4380
        %4382 = vrot.lane.b32.xlu0 %v3270, 24
        %v4383 = vpop.permute.xlu0 %4382
        %4384 = vrot.lane.b32.xlu0 %v3271, 24
        %v4385 = vpop.permute.xlu0 %4384
        %4386 = vrot.lane.b32.xlu0 %v3272, 24
        %v4387 = vpop.permute.xlu0 %4386
        %4388 = vrot.lane.b32.xlu0 %v3273, 24
        %v4389 = vpop.permute.xlu0 %4388
        %4390 = vrot.lane.b32.xlu0 %v3274, 24
        %v4391 = vpop.permute.xlu0 %4390
        %4392 = vrot.lane.b32.xlu0 %v3275, 24
        %v4393 = vpop.permute.xlu0 %4392
        %4394 = vrot.lane.b32.xlu0 %v3276, 24
        %v4395 = vpop.permute.xlu0 %4394
        %4396 = vrot.lane.b32.xlu0 %v3277, 24
        %v4397 = vpop.permute.xlu0 %4396
        %4398 = vrot.lane.b32.xlu0 %v3278, 24
        %v4399 = vpop.permute.xlu0 %4398
        %4400 = vrot.lane.b32.xlu0 %v3279, 24
        %v4401 = vpop.permute.xlu0 %4400
        %4402 = vrot.lane.b32.xlu0 %v3280, 24
        %v4403 = vpop.permute.xlu0 %4402
        %4404 = vrot.lane.b32.xlu0 %v3281, 24
        %v4405 = vpop.permute.xlu0 %4404
        %4406 = vrot.lane.b32.xlu0 %v3282, 24
        %v4407 = vpop.permute.xlu0 %4406
        %4408 = vrot.lane.b32.xlu0 %v3283, 24
        %v4409 = vpop.permute.xlu0 %4408
        %4410 = vrot.lane.b32.xlu0 %v3284, 24
        %v4411 = vpop.permute.xlu0 %4410
        %4412 = vrot.lane.b32.xlu0 %v3285, 24
        %v4413 = vpop.permute.xlu0 %4412
        %4414 = vrot.lane.b32.xlu0 %v3286, 24
        %v4415 = vpop.permute.xlu0 %4414
        %4416 = vrot.lane.b32.xlu0 %v3287, 24
        %v4417 = vpop.permute.xlu0 %4416
        %4418 = vrot.lane.b32.xlu0 %v3288, 24
        %v4419 = vpop.permute.xlu0 %4418
        %v4461 = vrot.slane %v3285, 1
        %v4462 = vsel %vm567, %v3410, %v4461
        %v4463 = vrot.slane %v3286, 1
        %v4464 = vsel %vm567, %v4461, %v4463
        %v4465 = vrot.slane %v3287, 1
        %v4466 = vsel %vm567, %v4463, %v4465
        %v4467 = vrot.slane %v3288, 1
        %v4468 = vsel %vm567, %v4465, %v4467
        %v4469 = vrot.slane %v3289, 1
        %v4470 = vsel %vm567, %v4467, %v4469
        %4471 = vrot.lane.b32.xlu0 %v3343, 28
        %v4472 = vpop.permute.xlu0 %4471
        %4473 = vrot.lane.b32.xlu0 %v3345, 28
        %v4474 = vpop.permute.xlu0 %4473
        %4475 = vrot.lane.b32.xlu0 %v3347, 28
        %v4476 = vpop.permute.xlu0 %4475
        %4477 = vrot.lane.b32.xlu0 %v3349, 28
        %v4478 = vpop.permute.xlu0 %4477
        %4479 = vrot.lane.b32.xlu0 %v3351, 28
        %v4480 = vpop.permute.xlu0 %4479
        %4481 = vrot.lane.b32.xlu0 %v3353, 28
        %v4482 = vpop.permute.xlu0 %4481
        %4483 = vrot.lane.b32.xlu0 %v3355, 28
        %v4484 = vpop.permute.xlu0 %4483
        %4485 = vrot.lane.b32.xlu0 %v3357, 28
        %v4486 = vpop.permute.xlu0 %4485
        %4487 = vrot.lane.b32.xlu0 %v3359, 28
        %v4488 = vpop.permute.xlu0 %4487
        %4489 = vrot.lane.b32.xlu0 %v3361, 28
        %v4490 = vpop.permute.xlu0 %4489
        %4491 = vrot.lane.b32.xlu0 %v3363, 28
        %v4492 = vpop.permute.xlu0 %4491
        %4493 = vrot.lane.b32.xlu0 %v3365, 28
        %v4494 = vpop.permute.xlu0 %4493
        %4495 = vrot.lane.b32.xlu0 %v3367, 28
        %v4496 = vpop.permute.xlu0 %4495
        %4497 = vrot.lane.b32.xlu0 %v3369, 28
        %v4498 = vpop.permute.xlu0 %4497
        %4499 = vrot.lane.b32.xlu0 %v3371, 28
        %v4500 = vpop.permute.xlu0 %4499
        %4501 = vrot.lane.b32.xlu0 %v3373, 28
        %v4502 = vpop.permute.xlu0 %4501
        %4503 = vrot.lane.b32.xlu0 %v3375, 28
        %v4504 = vpop.permute.xlu0 %4503
        %4505 = vrot.lane.b32.xlu0 %v3377, 28
        %v4506 = vpop.permute.xlu0 %4505
        %4507 = vrot.lane.b32.xlu0 %v3379, 28
        %v4508 = vpop.permute.xlu0 %4507
        %4509 = vrot.lane.b32.xlu0 %v3381, 28
        %v4510 = vpop.permute.xlu0 %4509
        %4511 = vrot.lane.b32.xlu0 %v3383, 28
        %v4512 = vpop.permute.xlu0 %4511
        %4513 = vrot.lane.b32.xlu0 %v3385, 28
        %v4514 = vpop.permute.xlu0 %4513
        %4515 = vrot.lane.b32.xlu0 %v3387, 28
        %v4516 = vpop.permute.xlu0 %4515
        %4517 = vrot.lane.b32.xlu0 %v3389, 28
        %v4518 = vpop.permute.xlu0 %4517
        %4519 = vrot.lane.b32.xlu0 %v3391, 28
        %v4520 = vpop.permute.xlu0 %4519
        %4521 = vrot.lane.b32.xlu0 %v3393, 28
        %v4522 = vpop.permute.xlu0 %4521
        %4523 = vrot.lane.b32.xlu0 %v3395, 28
        %v4524 = vpop.permute.xlu0 %4523
        %4525 = vrot.lane.b32.xlu0 %v3397, 28
        %v4526 = vpop.permute.xlu0 %4525
        %4527 = vrot.lane.b32.xlu0 %v3399, 28
        %v4528 = vpop.permute.xlu0 %4527
        %4529 = vrot.lane.b32.xlu0 %v3401, 28
        %v4530 = vpop.permute.xlu0 %4529
        %4531 = vrot.lane.b32.xlu0 %v3403, 28
        %v4532 = vpop.permute.xlu0 %4531
        %4533 = vrot.lane.b32.xlu0 %v3405, 28
        %v4534 = vpop.permute.xlu0 %4533
        %4535 = vrot.lane.b32.xlu0 %v3407, 28
        %v4536 = vpop.permute.xlu0 %4535
        %4537 = vrot.lane.b32.xlu0 %v3409, 28
        %v4538 = vpop.permute.xlu0 %4537
        %4539 = vrot.lane.b32.xlu0 %v3411, 28
        %v4540 = vpop.permute.xlu0 %4539
        %4541 = vrot.lane.b32.xlu0 %v4462, 28
        %v4542 = vpop.permute.xlu0 %4541
        %4543 = vrot.lane.b32.xlu0 %v4464, 28
        %v4544 = vpop.permute.xlu0 %4543
        %4545 = vrot.lane.b32.xlu0 %v4466, 28
        %v4546 = vpop.permute.xlu0 %4545
        %4547 = vrot.lane.b32.xlu0 %v4468, 28
        %v4548 = vpop.permute.xlu0 %4547
        %4549 = vrot.lane.b32.xlu0 %v4470, 28
        %v4550 = vpop.permute.xlu0 %4549
        %v4591 = vrot.slane %v3285, 2
        %v4592 = vsel %vm807, %v3611, %v4591
        %v4593 = vrot.slane %v3286, 2
        %v4594 = vsel %vm807, %v4591, %v4593
        %v4595 = vrot.slane %v3287, 2
        %v4596 = vsel %vm807, %v4593, %v4595
        %v4597 = vrot.slane %v3288, 2
        %v4598 = vsel %vm807, %v4595, %v4597
        %v4599 = vrot.slane %v3289, 2
        %v4600 = vsel %vm807, %v4597, %v4599
        %4601 = vrot.lane.b32.xlu0 %v3544, 32
        %v4602 = vpop.permute.xlu0 %4601
        %4603 = vrot.lane.b32.xlu0 %v3546, 32
        %v4604 = vpop.permute.xlu0 %4603
        %4605 = vrot.lane.b32.xlu0 %v3548, 32
        %v4606 = vpop.permute.xlu0 %4605
        %4607 = vrot.lane.b32.xlu0 %v3550, 32
        %v4608 = vpop.permute.xlu0 %4607
        %4609 = vrot.lane.b32.xlu0 %v3552, 32
        %v4610 = vpop.permute.xlu0 %4609
        %4611 = vrot.lane.b32.xlu0 %v3554, 32
        %v4612 = vpop.permute.xlu0 %4611
        %4613 = vrot.lane.b32.xlu0 %v3556, 32
        %v4614 = vpop.permute.xlu0 %4613
        %4615 = vrot.lane.b32.xlu0 %v3558, 32
        %v4616 = vpop.permute.xlu0 %4615
        %4617 = vrot.lane.b32.xlu0 %v3560, 32
        %v4618 = vpop.permute.xlu0 %4617
        %4619 = vrot.lane.b32.xlu0 %v3562, 32
        %v4620 = vpop.permute.xlu0 %4619
        %4621 = vrot.lane.b32.xlu0 %v3564, 32
        %v4622 = vpop.permute.xlu0 %4621
        %4623 = vrot.lane.b32.xlu0 %v3566, 32
        %v4624 = vpop.permute.xlu0 %4623
        %4625 = vrot.lane.b32.xlu0 %v3568, 32
        %v4626 = vpop.permute.xlu0 %4625
        %4627 = vrot.lane.b32.xlu0 %v3570, 32
        %v4628 = vpop.permute.xlu0 %4627
        %4629 = vrot.lane.b32.xlu0 %v3572, 32
        %v4630 = vpop.permute.xlu0 %4629
        %4631 = vrot.lane.b32.xlu0 %v3574, 32
        %v4632 = vpop.permute.xlu0 %4631
        %4633 = vrot.lane.b32.xlu0 %v3576, 32
        %v4634 = vpop.permute.xlu0 %4633
        %4635 = vrot.lane.b32.xlu0 %v3578, 32
        %v4636 = vpop.permute.xlu0 %4635
        %4637 = vrot.lane.b32.xlu0 %v3580, 32
        %v4638 = vpop.permute.xlu0 %4637
        %4639 = vrot.lane.b32.xlu0 %v3582, 32
        %v4640 = vpop.permute.xlu0 %4639
        %4641 = vrot.lane.b32.xlu0 %v3584, 32
        %v4642 = vpop.permute.xlu0 %4641
        %4643 = vrot.lane.b32.xlu0 %v3586, 32
        %v4644 = vpop.permute.xlu0 %4643
        %4645 = vrot.lane.b32.xlu0 %v3588, 32
        %v4646 = vpop.permute.xlu0 %4645
        %4647 = vrot.lane.b32.xlu0 %v3590, 32
        %v4648 = vpop.permute.xlu0 %4647
        %4649 = vrot.lane.b32.xlu0 %v3592, 32
        %v4650 = vpop.permute.xlu0 %4649
        %4651 = vrot.lane.b32.xlu0 %v3594, 32
        %v4652 = vpop.permute.xlu0 %4651
        %4653 = vrot.lane.b32.xlu0 %v3596, 32
        %v4654 = vpop.permute.xlu0 %4653
        %4655 = vrot.lane.b32.xlu0 %v3598, 32
        %v4656 = vpop.permute.xlu0 %4655
        %4657 = vrot.lane.b32.xlu0 %v3600, 32
        %v4658 = vpop.permute.xlu0 %4657
        %4659 = vrot.lane.b32.xlu0 %v3602, 32
        %v4660 = vpop.permute.xlu0 %4659
        %4661 = vrot.lane.b32.xlu0 %v3604, 32
        %v4662 = vpop.permute.xlu0 %4661
        %4663 = vrot.lane.b32.xlu0 %v3606, 32
        %v4664 = vpop.permute.xlu0 %4663
        %4665 = vrot.lane.b32.xlu0 %v3608, 32
        %v4666 = vpop.permute.xlu0 %4665
        %4667 = vrot.lane.b32.xlu0 %v3610, 32
        %v4668 = vpop.permute.xlu0 %4667
        %4669 = vrot.lane.b32.xlu0 %v3612, 32
        %v4670 = vpop.permute.xlu0 %4669
        %4671 = vrot.lane.b32.xlu0 %v4592, 32
        %v4672 = vpop.permute.xlu0 %4671
        %4673 = vrot.lane.b32.xlu0 %v4594, 32
        %v4674 = vpop.permute.xlu0 %4673
        %4675 = vrot.lane.b32.xlu0 %v4596, 32
        %v4676 = vpop.permute.xlu0 %4675
        %4677 = vrot.lane.b32.xlu0 %v4598, 32
        %v4678 = vpop.permute.xlu0 %4677
        %4679 = vrot.lane.b32.xlu0 %v4600, 32
        %v4680 = vpop.permute.xlu0 %4679
        %vm4721 = vcmask 31744
        %v4722 = vsel %vm4721, %v3244, %v3413
        %v4723 = vsel %vm4721, %v3245, %v3415
        %v4724 = vsel %vm4721, %v3246, %v3417
        %v4725 = vsel %vm4721, %v3247, %v3419
        %v4726 = vsel %vm4721, %v3248, %v3421
        %v4727 = vsel %vm4721, %v3249, %v3423
        %v4728 = vsel %vm4721, %v3250, %v3425
        %v4729 = vsel %vm4721, %v3251, %v3427
        %v4730 = vsel %vm4721, %v3252, %v3429
        %v4731 = vsel %vm4721, %v3253, %v3431
        %v4732 = vsel %vm4721, %v3254, %v3433
        %v4733 = vsel %vm4721, %v3255, %v3435
        %v4734 = vsel %vm4721, %v3256, %v3437
        %v4735 = vsel %vm4721, %v3257, %v3439
        %v4736 = vsel %vm4721, %v3258, %v3441
        %v4737 = vsel %vm4721, %v3259, %v3443
        %v4738 = vsel %vm4721, %v3260, %v3445
        %v4739 = vsel %vm4721, %v3261, %v3447
        %v4740 = vsel %vm4721, %v3262, %v3449
        %v4741 = vsel %vm4721, %v3263, %v3451
        %v4742 = vsel %vm4721, %v3264, %v3453
        %v4743 = vsel %vm4721, %v3265, %v3455
        %v4744 = vsel %vm4721, %v3266, %v3457
        %v4745 = vsel %vm4721, %v3267, %v3459
        %v4746 = vsel %vm4721, %v3268, %v3461
        %v4747 = vsel %vm4721, %v3269, %v3463
        %v4748 = vsel %vm4721, %v3270, %v3465
        %v4749 = vsel %vm4721, %v3271, %v3467
        %v4750 = vsel %vm4721, %v3272, %v3469
        %v4751 = vsel %vm4721, %v3273, %v3471
        %v4752 = vsel %vm4721, %v3274, %v3473
        %v4753 = vsel %vm4721, %v3275, %v3475
        %v4754 = vsel %vm4721, %v3276, %v3477
        %v4755 = vsel %vm4721, %v3277, %v3479
        %v4756 = vsel %vm4721, %v3278, %v3481
        %v4757 = vsel %vm4721, %v3279, %v3483
        %v4758 = vsel %vm4721, %v3280, %v3485
        %v4759 = vsel %vm4721, %v3281, %v3487
        %v4760 = vsel %vm4721, %v3282, %v3489
        %v4761 = vsel %vm4721, %v3283, %v3491
        %vm4762 = vcmask 64512
        %v4763 = vsel %vm4762, %v4722, %v3614
        %v4764 = vsel %vm4762, %v4723, %v3616
        %v4765 = vsel %vm4762, %v4724, %v3618
        %v4766 = vsel %vm4762, %v4725, %v3620
        %v4767 = vsel %vm4762, %v4726, %v3622
        %v4768 = vsel %vm4762, %v4727, %v3624
        %v4769 = vsel %vm4762, %v4728, %v3626
        %v4770 = vsel %vm4762, %v4729, %v3628
        %v4771 = vsel %vm4762, %v4730, %v3630
        %v4772 = vsel %vm4762, %v4731, %v3632
        %v4773 = vsel %vm4762, %v4732, %v3634
        %v4774 = vsel %vm4762, %v4733, %v3636
        %v4775 = vsel %vm4762, %v4734, %v3638
        %v4776 = vsel %vm4762, %v4735, %v3640
        %v4777 = vsel %vm4762, %v4736, %v3642
        %v4778 = vsel %vm4762, %v4737, %v3644
        %v4779 = vsel %vm4762, %v4738, %v3646
        %v4780 = vsel %vm4762, %v4739, %v3648
        %v4781 = vsel %vm4762, %v4740, %v3650
        %v4782 = vsel %vm4762, %v4741, %v3652
        %v4783 = vsel %vm4762, %v4742, %v3654
        %v4784 = vsel %vm4762, %v4743, %v3656
        %v4785 = vsel %vm4762, %v4744, %v3658
        %v4786 = vsel %vm4762, %v4745, %v3660
        %v4787 = vsel %vm4762, %v4746, %v3662
        %v4788 = vsel %vm4762, %v4747, %v3664
        %v4789 = vsel %vm4762, %v4748, %v3666
        %v4790 = vsel %vm4762, %v4749, %v3668
        %v4791 = vsel %vm4762, %v4750, %v3670
        %v4792 = vsel %vm4762, %v4751, %v3672
        %v4793 = vsel %vm4762, %v4752, %v3674
        %v4794 = vsel %vm4762, %v4753, %v3676
        %v4795 = vsel %vm4762, %v4754, %v3678
        %v4796 = vsel %vm4762, %v4755, %v3680
        %v4797 = vsel %vm4762, %v4756, %v3682
        %v4798 = vsel %vm4762, %v4757, %v3684
        %v4799 = vsel %vm4762, %v4758, %v3686
        %v4800 = vsel %vm4762, %v4759, %v3688
        %v4801 = vsel %vm4762, %v4760, %v3690
        %v4802 = vsel %vm4762, %v4761, %v3692
        %v4803 = vsel %vm2375, %v4763, %v3817
        %v4804 = vsel %vm2375, %v4764, %v3819
        %v4805 = vsel %vm2375, %v4765, %v3821
        %v4806 = vsel %vm2375, %v4766, %v3823
        %v4807 = vsel %vm2375, %v4767, %v3825
        %v4808 = vsel %vm2375, %v4768, %v3827
        %v4809 = vsel %vm2375, %v4769, %v3829
        %v4810 = vsel %vm2375, %v4770, %v3831
        %v4811 = vsel %vm2375, %v4771, %v3833
        %v4812 = vsel %vm2375, %v4772, %v3835
        %v4813 = vsel %vm2375, %v4773, %v3837
        %v4814 = vsel %vm2375, %v4774, %v3839
        %v4815 = vsel %vm2375, %v4775, %v3841
        %v4816 = vsel %vm2375, %v4776, %v3843
        %v4817 = vsel %vm2375, %v4777, %v3845
        %v4818 = vsel %vm2375, %v4778, %v3847
        %v4819 = vsel %vm2375, %v4779, %v3849
        %v4820 = vsel %vm2375, %v4780, %v3851
        %v4821 = vsel %vm2375, %v4781, %v3853
        %v4822 = vsel %vm2375, %v4782, %v3855
        %v4823 = vsel %vm2375, %v4783, %v3857
        %v4824 = vsel %vm2375, %v4784, %v3859
        %v4825 = vsel %vm2375, %v4785, %v3861
        %v4826 = vsel %vm2375, %v4786, %v3863
        %v4827 = vsel %vm2375, %v4787, %v3865
        %v4828 = vsel %vm2375, %v4788, %v3867
        %v4829 = vsel %vm2375, %v4789, %v3869
        %v4830 = vsel %vm2375, %v4790, %v3871
        %v4831 = vsel %vm2375, %v4791, %v3873
        %v4832 = vsel %vm2375, %v4792, %v3875
        %v4833 = vsel %vm2375, %v4793, %v3877
        %v4834 = vsel %vm2375, %v4794, %v3879
        %v4835 = vsel %vm2375, %v4795, %v3881
        %v4836 = vsel %vm2375, %v4796, %v3883
        %v4837 = vsel %vm2375, %v4797, %v3885
        %v4838 = vsel %vm2375, %v4798, %v3887
        %v4839 = vsel %vm2375, %v4799, %v3889
        %v4840 = vsel %vm2375, %v4800, %v3891
        %v4841 = vsel %vm2375, %v4801, %v3893
        %v4842 = vsel %vm2375, %v4802, %v3895
        %vm4843 = vcmask 130048
        %v4844 = vsel %vm4843, %v4803, %v4018
        %v4845 = vsel %vm4843, %v4804, %v4020
        %v4846 = vsel %vm4843, %v4805, %v4022
        %v4847 = vsel %vm4843, %v4806, %v4024
        %v4848 = vsel %vm4843, %v4807, %v4026
        %v4849 = vsel %vm4843, %v4808, %v4028
        %v4850 = vsel %vm4843, %v4809, %v4030
        %v4851 = vsel %vm4843, %v4810, %v4032
        %v4852 = vsel %vm4843, %v4811, %v4034
        %v4853 = vsel %vm4843, %v4812, %v4036
        %v4854 = vsel %vm4843, %v4813, %v4038
        %v4855 = vsel %vm4843, %v4814, %v4040
        %v4856 = vsel %vm4843, %v4815, %v4042
        %v4857 = vsel %vm4843, %v4816, %v4044
        %v4858 = vsel %vm4843, %v4817, %v4046
        %v4859 = vsel %vm4843, %v4818, %v4048
        %v4860 = vsel %vm4843, %v4819, %v4050
        %v4861 = vsel %vm4843, %v4820, %v4052
        %v4862 = vsel %vm4843, %v4821, %v4054
        %v4863 = vsel %vm4843, %v4822, %v4056
        %v4864 = vsel %vm4843, %v4823, %v4058
        %v4865 = vsel %vm4843, %v4824, %v4060
        %v4866 = vsel %vm4843, %v4825, %v4062
        %v4867 = vsel %vm4843, %v4826, %v4064
        %v4868 = vsel %vm4843, %v4827, %v4066
        %v4869 = vsel %vm4843, %v4828, %v4068
        %v4870 = vsel %vm4843, %v4829, %v4070
        %v4871 = vsel %vm4843, %v4830, %v4072
        %v4872 = vsel %vm4843, %v4831, %v4074
        %v4873 = vsel %vm4843, %v4832, %v4076
        %v4874 = vsel %vm4843, %v4833, %v4078
        %v4875 = vsel %vm4843, %v4834, %v4080
        %v4876 = vsel %vm4843, %v4835, %v4082
        %v4877 = vsel %vm4843, %v4836, %v4084
        %v4878 = vsel %vm4843, %v4837, %v4086
        %v4879 = vsel %vm4843, %v4838, %v4088
        %v4880 = vsel %vm4843, %v4839, %v4090
        %v4881 = vsel %vm4843, %v4840, %v4092
        %v4882 = vsel %vm4843, %v4841, %v4094
        %v4883 = vsel %vm4843, %v4842, %v4096
        %vm4884 = vcmask 162816
        %v4885 = vsel %vm4884, %v4844, %v4219
        %v4886 = vsel %vm4884, %v4845, %v4221
        %v4887 = vsel %vm4884, %v4846, %v4223
        %v4888 = vsel %vm4884, %v4847, %v4225
        %v4889 = vsel %vm4884, %v4848, %v4227
        %v4890 = vsel %vm4884, %v4849, %v4229
        %v4891 = vsel %vm4884, %v4850, %v4231
        %v4892 = vsel %vm4884, %v4851, %v4233
        %v4893 = vsel %vm4884, %v4852, %v4235
        %v4894 = vsel %vm4884, %v4853, %v4237
        %v4895 = vsel %vm4884, %v4854, %v4239
        %v4896 = vsel %vm4884, %v4855, %v4241
        %v4897 = vsel %vm4884, %v4856, %v4243
        %v4898 = vsel %vm4884, %v4857, %v4245
        %v4899 = vsel %vm4884, %v4858, %v4247
        %v4900 = vsel %vm4884, %v4859, %v4249
        %v4901 = vsel %vm4884, %v4860, %v4251
        %v4902 = vsel %vm4884, %v4861, %v4253
        %v4903 = vsel %vm4884, %v4862, %v4255
        %v4904 = vsel %vm4884, %v4863, %v4257
        %v4905 = vsel %vm4884, %v4864, %v4259
        %v4906 = vsel %vm4884, %v4865, %v4261
        %v4907 = vsel %vm4884, %v4866, %v4263
        %v4908 = vsel %vm4884, %v4867, %v4265
        %v4909 = vsel %vm4884, %v4868, %v4267
        %v4910 = vsel %vm4884, %v4869, %v4269
        %v4911 = vsel %vm4884, %v4870, %v4271
        %v4912 = vsel %vm4884, %v4871, %v4273
        %v4913 = vsel %vm4884, %v4872, %v4275
        %v4914 = vsel %vm4884, %v4873, %v4277
        %v4915 = vsel %vm4884, %v4874, %v4279
        %v4916 = vsel %vm4884, %v4875, %v4281
        %v4917 = vsel %vm4884, %v4876, %v4283
        %v4918 = vsel %vm4884, %v4877, %v4285
        %v4919 = vsel %vm4884, %v4878, %v4287
        %v4920 = vsel %vm4884, %v4879, %v4289
        %v4921 = vsel %vm4884, %v4880, %v4291
        %v4922 = vsel %vm4884, %v4881, %v4293
        %v4923 = vsel %vm4884, %v4882, %v4295
        %v4924 = vsel %vm4884, %v4883, %v4297
        %v4925 = vsel %vm2571, %v4885, %v4341
        %v4926 = vsel %vm2571, %v4886, %v4343
        %v4927 = vsel %vm2571, %v4887, %v4345
        %v4928 = vsel %vm2571, %v4888, %v4347
        %v4929 = vsel %vm2571, %v4889, %v4349
        %v4930 = vsel %vm2571, %v4890, %v4351
        %v4931 = vsel %vm2571, %v4891, %v4353
        %v4932 = vsel %vm2571, %v4892, %v4355
        %v4933 = vsel %vm2571, %v4893, %v4357
        %v4934 = vsel %vm2571, %v4894, %v4359
        %v4935 = vsel %vm2571, %v4895, %v4361
        %v4936 = vsel %vm2571, %v4896, %v4363
        %v4937 = vsel %vm2571, %v4897, %v4365
        %v4938 = vsel %vm2571, %v4898, %v4367
        %v4939 = vsel %vm2571, %v4899, %v4369
        %v4940 = vsel %vm2571, %v4900, %v4371
        %v4941 = vsel %vm2571, %v4901, %v4373
        %v4942 = vsel %vm2571, %v4902, %v4375
        %v4943 = vsel %vm2571, %v4903, %v4377
        %v4944 = vsel %vm2571, %v4904, %v4379
        %v4945 = vsel %vm2571, %v4905, %v4381
        %v4946 = vsel %vm2571, %v4906, %v4383
        %v4947 = vsel %vm2571, %v4907, %v4385
        %v4948 = vsel %vm2571, %v4908, %v4387
        %v4949 = vsel %vm2571, %v4909, %v4389
        %v4950 = vsel %vm2571, %v4910, %v4391
        %v4951 = vsel %vm2571, %v4911, %v4393
        %v4952 = vsel %vm2571, %v4912, %v4395
        %v4953 = vsel %vm2571, %v4913, %v4397
        %v4954 = vsel %vm2571, %v4914, %v4399
        %v4955 = vsel %vm2571, %v4915, %v4401
        %v4956 = vsel %vm2571, %v4916, %v4403
        %v4957 = vsel %vm2571, %v4917, %v4405
        %v4958 = vsel %vm2571, %v4918, %v4407
        %v4959 = vsel %vm2571, %v4919, %v4409
        %v4960 = vsel %vm2571, %v4920, %v4411
        %v4961 = vsel %vm2571, %v4921, %v4413
        %v4962 = vsel %vm2571, %v4922, %v4415
        %v4963 = vsel %vm2571, %v4923, %v4417
        %v4964 = vsel %vm2571, %v4924, %v4419
        %vm4965 = vcmask 228352
        %v4966 = vsel %vm4965, %v4925, %v4472
        %v4967 = vsel %vm4965, %v4926, %v4474
        %v4968 = vsel %vm4965, %v4927, %v4476
        %v4969 = vsel %vm4965, %v4928, %v4478
        %v4970 = vsel %vm4965, %v4929, %v4480
        %v4971 = vsel %vm4965, %v4930, %v4482
        %v4972 = vsel %vm4965, %v4931, %v4484
        %v4973 = vsel %vm4965, %v4932, %v4486
        %v4974 = vsel %vm4965, %v4933, %v4488
        %v4975 = vsel %vm4965, %v4934, %v4490
        %v4976 = vsel %vm4965, %v4935, %v4492
        %v4977 = vsel %vm4965, %v4936, %v4494
        %v4978 = vsel %vm4965, %v4937, %v4496
        %v4979 = vsel %vm4965, %v4938, %v4498
        %v4980 = vsel %vm4965, %v4939, %v4500
        %v4981 = vsel %vm4965, %v4940, %v4502
        %v4982 = vsel %vm4965, %v4941, %v4504
        %v4983 = vsel %vm4965, %v4942, %v4506
        %v4984 = vsel %vm4965, %v4943, %v4508
        %v4985 = vsel %vm4965, %v4944, %v4510
        %v4986 = vsel %vm4965, %v4945, %v4512
        %v4987 = vsel %vm4965, %v4946, %v4514
        %v4988 = vsel %vm4965, %v4947, %v4516
        %v4989 = vsel %vm4965, %v4948, %v4518
        %v4990 = vsel %vm4965, %v4949, %v4520
        %v4991 = vsel %vm4965, %v4950, %v4522
        %v4992 = vsel %vm4965, %v4951, %v4524
        %v4993 = vsel %vm4965, %v4952, %v4526
        %v4994 = vsel %vm4965, %v4953, %v4528
        %v4995 = vsel %vm4965, %v4954, %v4530
        %v4996 = vsel %vm4965, %v4955, %v4532
        %v4997 = vsel %vm4965, %v4956, %v4534
        %v4998 = vsel %vm4965, %v4957, %v4536
        %v4999 = vsel %vm4965, %v4958, %v4538
        %v5000 = vsel %vm4965, %v4959, %v4540
        %v5001 = vsel %vm4965, %v4960, %v4542
        %v5002 = vsel %vm4965, %v4961, %v4544
        %v5003 = vsel %vm4965, %v4962, %v4546
        %v5004 = vsel %vm4965, %v4963, %v4548
        %v5005 = vsel %vm4965, %v4964, %v4550
        %vm5006 = vcmask 261120
        %v5007 = vsel %vm5006, %v4966, %v4602
        %v5008 = vsel %vm5006, %v4967, %v4604
        %v5009 = vsel %vm5006, %v4968, %v4606
        %v5010 = vsel %vm5006, %v4969, %v4608
        %v5011 = vsel %vm5006, %v4970, %v4610
        %v5012 = vsel %vm5006, %v4971, %v4612
        %v5013 = vsel %vm5006, %v4972, %v4614
        %v5014 = vsel %vm5006, %v4973, %v4616
        %v5015 = vsel %vm5006, %v4974, %v4618
        %v5016 = vsel %vm5006, %v4975, %v4620
        %v5017 = vsel %vm5006, %v4976, %v4622
        %v5018 = vsel %vm5006, %v4977, %v4624
        %v5019 = vsel %vm5006, %v4978, %v4626
        %v5020 = vsel %vm5006, %v4979, %v4628
        %v5021 = vsel %vm5006, %v4980, %v4630
        %v5022 = vsel %vm5006, %v4981, %v4632
        %v5023 = vsel %vm5006, %v4982, %v4634
        %v5024 = vsel %vm5006, %v4983, %v4636
        %v5025 = vsel %vm5006, %v4984, %v4638
        %v5026 = vsel %vm5006, %v4985, %v4640
        %v5027 = vsel %vm5006, %v4986, %v4642
        %v5028 = vsel %vm5006, %v4987, %v4644
        %v5029 = vsel %vm5006, %v4988, %v4646
        %v5030 = vsel %vm5006, %v4989, %v4648
        %v5031 = vsel %vm5006, %v4990, %v4650
        %v5032 = vsel %vm5006, %v4991, %v4652
        %v5033 = vsel %vm5006, %v4992, %v4654
        %v5034 = vsel %vm5006, %v4993, %v4656
        %v5035 = vsel %vm5006, %v4994, %v4658
        %v5036 = vsel %vm5006, %v4995, %v4660
        %v5037 = vsel %vm5006, %v4996, %v4662
        %v5038 = vsel %vm5006, %v4997, %v4664
        %v5039 = vsel %vm5006, %v4998, %v4666
        %v5040 = vsel %vm5006, %v4999, %v4668
        %v5041 = vsel %vm5006, %v5000, %v4670
        %v5042 = vsel %vm5006, %v5001, %v4672
        %v5043 = vsel %vm5006, %v5002, %v4674
        %v5044 = vsel %vm5006, %v5003, %v4676
        %v5045 = vsel %vm5006, %v5004, %v4678
        %v5046 = vsel %vm5006, %v5005, %v4680
        %v5047 = vpack.c.bf16 %v5008, %v5007
        %v5048 = vpack.c.bf16 %v5010, %v5009
        %v5049 = vpack.c.bf16 %v5012, %v5011
        %v5050 = vpack.c.bf16 %v5014, %v5013
        %v5051 = vpack.c.bf16 %v5016, %v5015
        %v5052 = vpack.c.bf16 %v5018, %v5017
        %v5053 = vpack.c.bf16 %v5020, %v5019
        %v5054 = vpack.c.bf16 %v5022, %v5021
        %v5055 = vpack.c.bf16 %v5024, %v5023
        %v5056 = vpack.c.bf16 %v5026, %v5025
        %v5057 = vpack.c.bf16 %v5028, %v5027
        %v5058 = vpack.c.bf16 %v5030, %v5029
        %v5059 = vpack.c.bf16 %v5032, %v5031
        %v5060 = vpack.c.bf16 %v5034, %v5033
        %v5061 = vpack.c.bf16 %v5036, %v5035
        %v5062 = vpack.c.bf16 %v5038, %v5037
        %v5063 = vpack.c.bf16 %v5040, %v5039
        %v5064 = vpack.c.bf16 %v5042, %v5041
        %v5065 = vpack.c.bf16 %v5044, %v5043
        %v5066 = vpack.c.bf16 %v5046, %v5045
        %v5067 = vld [vmem:[%s4] sm:$0xf]
        %v5068 = vld [vmem:[%s4 + $0x4] sm:$0xf]
        %v5069 = vld [vmem:[%s4 + $0x8] sm:$0xf]
        %v5070 = vld [vmem:[%s4 + $0xc] sm:$0xf]
        %v5071 = vld [vmem:[%s4 + $0x10] sm:$0x3]
        %v5072 = vld [vmem:[%s5] sm:$0x1]
        %v5074 = vlaneseq
        %v5075 = vshrl.u32 %v5074, 7
        %v5076 = vsub.s32 0, %v5075
        %v5077 = vrot.slane %v5072, %v5076
        %v5084 = vunpack.c.l.b16 %v5067
        %v5085 = vunpack.c.l.b16 %v5068
        %v5086 = vunpack.c.l.b16 %v5069
        %v5087 = vunpack.c.l.b16 %v5070
        %v5088 = vunpack.c.l.b16 %v5071
        %v5089 = vpack.c.b16 %v5085, %v5084
        %v5090 = vpack.c.b16 %v5087, %v5086
        %v5091 = vpack.c.b16 %v5088, %v5088
        %vm5094 = vcmask 293888
        %v5096 = vsel %vm5094, %v5047, 0
        %v5099 = vsel %vm5094, %v5048, 0
        %v5102 = vsel %vm5094, %v5049, 0
        %v5105 = vsel %vm5094, %v5050, 0
        %v5108 = vsel %vm5094, %v5051, 0
        %v5111 = vsel %vm5094, %v5052, 0
        %v5114 = vsel %vm5094, %v5053, 0
        %v5117 = vsel %vm5094, %v5054, 0
        %v5120 = vsel %vm5094, %v5055, 0
        %v5123 = vsel %vm5094, %v5056, 0
        %v5126 = vsel %vm5094, %v5057, 0
        %v5129 = vsel %vm5094, %v5058, 0
        %v5132 = vsel %vm5094, %v5059, 0
        %v5135 = vsel %vm5094, %v5060, 0
        %v5138 = vsel %vm5094, %v5061, 0
        %v5141 = vsel %vm5094, %v5062, 0
        %v5144 = vsel %vm5094, %v5063, 0
        %v5147 = vsel %vm5094, %v5064, 0
        %v5150 = vsel %vm5094, %v5065, 0
        %v5153 = vsel %vm5094, %v5066, 0
        %v5156 = vsel %vm1532, %v5091, 0
        %5158 = vmatprep.subr.bf16.mxu0 0
        %5159 = vmatpush1.bf16.msra.mxu0 %v5089
        %5160 = vmatprep.subr.bf16.mxu0 0
        %5161 = vmatpush1.bf16.msra.mxu0 %v5090
        %5162 = vmatprep.subr.bf16.mxu0 0
        %5163 = vmatpush1.bf16.msra.mxu0 %v5156
        %5164 = vmatprep.subr.bf16.mxu0 0
        %5165 = vmatpush1.bf16.msra.mxu0 0
        %5166 = vmatprep.subr.bf16.mxu0 0
        %5167 = vmatpush1.bf16.msra.mxu0 0
        %5168 = vmatprep.subr.bf16.mxu0 0
        %5169 = vmatpush1.bf16.msra.mxu0 0
        %5170 = vmatprep.subr.bf16.mxu0 0
        %5171 = vmatpush1.bf16.msra.mxu0 0
        %5172 = vmatprep.subr.bf16.mxu0 0
        %5173 = vmatpush1.bf16.msra.mxu0 0
        %5174 = vmatprep.subr.bf16.mxu0 0
        %5175 = vmatpush1.bf16.msra.mxu0 0
        %5176 = vmatprep.subr.bf16.mxu0 0
        %5177 = vmatpush1.bf16.msra.mxu0 0
        %5178 = vmatprep.subr.bf16.mxu0 0
        %5179 = vmatpush1.bf16.msra.mxu0 0
        %5180 = vmatprep.subr.bf16.mxu0 0
        %5181 = vmatpush1.bf16.msra.mxu0 0
        %5182 = vmatprep.subr.bf16.mxu0 0
        %5183 = vmatpush1.bf16.msra.mxu0 0
        %5184 = vmatprep.subr.bf16.mxu0 0
        %5185 = vmatpush1.bf16.msra.mxu0 0
        %5186 = vmatprep.subr.bf16.mxu0 0
        %5187 = vmatpush1.bf16.msra.mxu0 0
        %5188 = vmatprep.subr.bf16.mxu0 0
        %5189 = vmatpush1.bf16.msra.mxu0 0
        %5190 = vmatprep.mubr.bf16.mxu0 0
        %5191 = vmatmul.mubr.bf16.gmra.mrb[0].mxu0 %v5096
        %v5192 = vpop.f32.mrb[0].mxu0
        %v5193 = vadd.f32 %v5077, %v5192
        %v5194 = vpop.f32.mrb[0].mxu0
        %v5195 = vpop.f32.mrb[0].mxu0
        %v5196 = vadd.f32 %v5077, %v5195
        %v5197 = vpop.f32.mrb[0].mxu0
        %5198 = vmatprep.mubr.bf16.mxu0 0
        %5199 = vmatmul.mubr.bf16.gmra.mrb[0].mxu0 %v5099
        %v5200 = vpop.f32.mrb[0].mxu0
        %v5201 = vadd.f32 %v5077, %v5200
        %v5202 = vpop.f32.mrb[0].mxu0
        %v5203 = vpop.f32.mrb[0].mxu0
        %v5204 = vadd.f32 %v5077, %v5203
        %v5205 = vpop.f32.mrb[0].mxu0
        %5206 = vmatprep.mubr.bf16.mxu0 0
        %5207 = vmatmul.mubr.bf16.gmra.mrb[0].mxu0 %v5102
        %v5208 = vpop.f32.mrb[0].mxu0
        %v5209 = vadd.f32 %v5077, %v5208
        %v5210 = vpop.f32.mrb[0].mxu0
        %v5211 = vpop.f32.mrb[0].mxu0
        %v5212 = vadd.f32 %v5077, %v5211
        %v5213 = vpop.f32.mrb[0].mxu0
        %5214 = vmatprep.mubr.bf16.mxu0 0
        %5215 = vmatmul.mubr.bf16.gmra.mrb[0].mxu0 %v5105
        %v5216 = vpop.f32.mrb[0].mxu0
        %v5217 = vadd.f32 %v5077, %v5216
        %v5218 = vpop.f32.mrb[0].mxu0
        %v5219 = vpop.f32.mrb[0].mxu0
        %v5220 = vadd.f32 %v5077, %v5219
        %v5221 = vpop.f32.mrb[0].mxu0
        %5222 = vmatprep.mubr.bf16.mxu0 0
        %5223 = vmatmul.mubr.bf16.gmra.mrb[0].mxu0 %v5108
        %v5224 = vpop.f32.mrb[0].mxu0
        %v5225 = vadd.f32 %v5077, %v5224
        %v5226 = vpop.f32.mrb[0].mxu0
        %v5227 = vpop.f32.mrb[0].mxu0
        %v5228 = vadd.f32 %v5077, %v5227
        %v5229 = vpop.f32.mrb[0].mxu0
        %5230 = vmatprep.mubr.bf16.mxu0 0
        %5231 = vmatmul.mubr.bf16.gmra.mrb[0].mxu0 %v5111
        %v5232 = vpop.f32.mrb[0].mxu0
        %v5233 = vadd.f32 %v5077, %v5232
        %v5234 = vpop.f32.mrb[0].mxu0
        %v5235 = vpop.f32.mrb[0].mxu0
        %v5236 = vadd.f32 %v5077, %v5235
        %v5237 = vpop.f32.mrb[0].mxu0
        %5238 = vmatprep.mubr.bf16.mxu0 0
        %5239 = vmatmul.mubr.bf16.gmra.mrb[0].mxu0 %v5114
        %v5240 = vpop.f32.mrb[0].mxu0
        %v5241 = vadd.f32 %v5077, %v5240
        %v5242 = vpop.f32.mrb[0].mxu0
        %v5243 = vpop.f32.mrb[0].mxu0
        %v5244 = vadd.f32 %v5077, %v5243
        %v5245 = vpop.f32.mrb[0].mxu0
        %5246 = vmatprep.mubr.bf16.mxu0 0
        %5247 = vmatmul.mubr.bf16.gmra.mrb[0].mxu0 %v5117
        %v5248 = vpop.f32.mrb[0].mxu0
        %v5249 = vadd.f32 %v5077, %v5248
        %v5250 = vpop.f32.mrb[0].mxu0
        %v5251 = vpop.f32.mrb[0].mxu0
        %v5252 = vadd.f32 %v5077, %v5251
        %v5253 = vpop.f32.mrb[0].mxu0
        %5254 = vmatprep.mubr.bf16.mxu0 0
        %5255 = vmatmul.mubr.bf16.gmra.mrb[0].mxu0 %v5120
        %v5256 = vpop.f32.mrb[0].mxu0
        %v5257 = vadd.f32 %v5077, %v5256
        %v5258 = vpop.f32.mrb[0].mxu0
        %v5259 = vpop.f32.mrb[0].mxu0
        %v5260 = vadd.f32 %v5077, %v5259
        %v5261 = vpop.f32.mrb[0].mxu0
        %5262 = vmatprep.mubr.bf16.mxu0 0
        %5263 = vmatmul.mubr.bf16.gmra.mrb[0].mxu0 %v5123
        %v5264 = vpop.f32.mrb[0].mxu0
        %v5265 = vadd.f32 %v5077, %v5264
        %v5266 = vpop.f32.mrb[0].mxu0
        %v5267 = vpop.f32.mrb[0].mxu0
        %v5268 = vadd.f32 %v5077, %v5267
        %v5269 = vpop.f32.mrb[0].mxu0
        %5270 = vmatprep.mubr.bf16.mxu0 0
        %5271 = vmatmul.mubr.bf16.gmra.mrb[0].mxu0 %v5126
        %v5272 = vpop.f32.mrb[0].mxu0
        %v5273 = vadd.f32 %v5077, %v5272
        %v5274 = vpop.f32.mrb[0].mxu0
        %v5275 = vpop.f32.mrb[0].mxu0
        %v5276 = vadd.f32 %v5077, %v5275
        %v5277 = vpop.f32.mrb[0].mxu0
        %5278 = vmatprep.mubr.bf16.mxu0 0
        %5279 = vmatmul.mubr.bf16.gmra.mrb[0].mxu0 %v5129
        %v5280 = vpop.f32.mrb[0].mxu0
        %v5281 = vadd.f32 %v5077, %v5280
        %v5282 = vpop.f32.mrb[0].mxu0
        %v5283 = vpop.f32.mrb[0].mxu0
        %v5284 = vadd.f32 %v5077, %v5283
        %v5285 = vpop.f32.mrb[0].mxu0
        %5286 = vmatprep.mubr.bf16.mxu0 0
        %5287 = vmatmul.mubr.bf16.gmra.mrb[0].mxu0 %v5132
        %v5288 = vpop.f32.mrb[0].mxu0
        %v5289 = vadd.f32 %v5077, %v5288
        %v5290 = vpop.f32.mrb[0].mxu0
        %v5291 = vpop.f32.mrb[0].mxu0
        %v5292 = vadd.f32 %v5077, %v5291
        %v5293 = vpop.f32.mrb[0].mxu0
        %5294 = vmatprep.mubr.bf16.mxu0 0
        %5295 = vmatmul.mubr.bf16.gmra.mrb[0].mxu0 %v5135
        %v5296 = vpop.f32.mrb[0].mxu0
        %v5297 = vadd.f32 %v5077, %v5296
        %v5298 = vpop.f32.mrb[0].mxu0
        %v5299 = vpop.f32.mrb[0].mxu0
        %v5300 = vadd.f32 %v5077, %v5299
        %v5301 = vpop.f32.mrb[0].mxu0
        %5302 = vmatprep.mubr.bf16.mxu0 0
        %5303 = vmatmul.mubr.bf16.gmra.mrb[0].mxu0 %v5138
        %v5304 = vpop.f32.mrb[0].mxu0
        %v5305 = vadd.f32 %v5077, %v5304
        %v5306 = vpop.f32.mrb[0].mxu0
        %v5307 = vpop.f32.mrb[0].mxu0
        %v5308 = vadd.f32 %v5077, %v5307
        %v5309 = vpop.f32.mrb[0].mxu0
        %5310 = vmatprep.mubr.bf16.mxu0 0
        %5311 = vmatmul.mubr.bf16.gmra.mrb[0].mxu0 %v5141
        %v5312 = vpop.f32.mrb[0].mxu0
        %v5313 = vadd.f32 %v5077, %v5312
        %v5314 = vpop.f32.mrb[0].mxu0
        %v5315 = vpop.f32.mrb[0].mxu0
        %v5316 = vadd.f32 %v5077, %v5315
        %v5317 = vpop.f32.mrb[0].mxu0
        %5318 = vmatprep.mubr.bf16.mxu0 0
        %5319 = vmatmul.mubr.bf16.gmra.mrb[0].mxu0 %v5144
        %v5320 = vpop.f32.mrb[0].mxu0
        %v5321 = vadd.f32 %v5077, %v5320
        %v5322 = vpop.f32.mrb[0].mxu0
        %v5323 = vpop.f32.mrb[0].mxu0
        %v5324 = vadd.f32 %v5077, %v5323
        %v5325 = vpop.f32.mrb[0].mxu0
        %5326 = vmatprep.mubr.bf16.mxu0 0
        %5327 = vmatmul.mubr.bf16.gmra.mrb[0].mxu0 %v5147
        %v5328 = vpop.f32.mrb[0].mxu0
        %v5329 = vadd.f32 %v5077, %v5328
        %v5330 = vpop.f32.mrb[0].mxu0
        %v5331 = vpop.f32.mrb[0].mxu0
        %v5332 = vadd.f32 %v5077, %v5331
        %v5333 = vpop.f32.mrb[0].mxu0
        %5334 = vmatprep.mubr.bf16.mxu0 0
        %5335 = vmatmul.mubr.bf16.gmra.mrb[0].mxu0 %v5150
        %v5336 = vpop.f32.mrb[0].mxu0
        %v5337 = vadd.f32 %v5077, %v5336
        %v5338 = vpop.f32.mrb[0].mxu0
        %v5339 = vpop.f32.mrb[0].mxu0
        %v5340 = vadd.f32 %v5077, %v5339
        %v5341 = vpop.f32.mrb[0].mxu0
        %5342 = vmatprep.mubr.bf16.mxu0 0
        %5343 = vmatmul.mubr.bf16.gmra.mrb[0].mxu0 %v5153
        %v5344 = vpop.f32.mrb[0].mxu0
        %v5345 = vadd.f32 %v5077, %v5344
        %v5346 = vpop.f32.mrb[0].mxu0
        %v5347 = vpop.f32.mrb[0].mxu0
        %v5348 = vadd.f32 %v5077, %v5347
        %v5349 = vpop.f32.mrb[0].mxu0
        %5350 = vdwg.mxu0
        %5391 = vrot.lane.b32.xlu0 %v5193, 8
        %v5392 = vpop.permute.xlu0 %5391
        %5393 = vrot.lane.b32.xlu0 %v5196, 8
        %v5394 = vpop.permute.xlu0 %5393
        %5395 = vrot.lane.b32.xlu0 %v5201, 8
        %v5396 = vpop.permute.xlu0 %5395
        %5397 = vrot.lane.b32.xlu0 %v5204, 8
        %v5398 = vpop.permute.xlu0 %5397
        %5399 = vrot.lane.b32.xlu0 %v5209, 8
        %v5400 = vpop.permute.xlu0 %5399
        %5401 = vrot.lane.b32.xlu0 %v5212, 8
        %v5402 = vpop.permute.xlu0 %5401
        %5403 = vrot.lane.b32.xlu0 %v5217, 8
        %v5404 = vpop.permute.xlu0 %5403
        %5405 = vrot.lane.b32.xlu0 %v5220, 8
        %v5406 = vpop.permute.xlu0 %5405
        %5407 = vrot.lane.b32.xlu0 %v5225, 8
        %v5408 = vpop.permute.xlu0 %5407
        %5409 = vrot.lane.b32.xlu0 %v5228, 8
        %v5410 = vpop.permute.xlu0 %5409
        %5411 = vrot.lane.b32.xlu0 %v5233, 8
        %v5412 = vpop.permute.xlu0 %5411
        %5413 = vrot.lane.b32.xlu0 %v5236, 8
        %v5414 = vpop.permute.xlu0 %5413
        %5415 = vrot.lane.b32.xlu0 %v5241, 8
        %v5416 = vpop.permute.xlu0 %5415
        %5417 = vrot.lane.b32.xlu0 %v5244, 8
        %v5418 = vpop.permute.xlu0 %5417
        %5419 = vrot.lane.b32.xlu0 %v5249, 8
        %v5420 = vpop.permute.xlu0 %5419
        %5421 = vrot.lane.b32.xlu0 %v5252, 8
        %v5422 = vpop.permute.xlu0 %5421
        %5423 = vrot.lane.b32.xlu0 %v5257, 8
        %v5424 = vpop.permute.xlu0 %5423
        %5425 = vrot.lane.b32.xlu0 %v5260, 8
        %v5426 = vpop.permute.xlu0 %5425
        %5427 = vrot.lane.b32.xlu0 %v5265, 8
        %v5428 = vpop.permute.xlu0 %5427
        %5429 = vrot.lane.b32.xlu0 %v5268, 8
        %v5430 = vpop.permute.xlu0 %5429
        %5431 = vrot.lane.b32.xlu0 %v5273, 8
        %v5432 = vpop.permute.xlu0 %5431
        %5433 = vrot.lane.b32.xlu0 %v5276, 8
        %v5434 = vpop.permute.xlu0 %5433
        %5435 = vrot.lane.b32.xlu0 %v5281, 8
        %v5436 = vpop.permute.xlu0 %5435
        %5437 = vrot.lane.b32.xlu0 %v5284, 8
        %v5438 = vpop.permute.xlu0 %5437
        %5439 = vrot.lane.b32.xlu0 %v5289, 8
        %v5440 = vpop.permute.xlu0 %5439
        %5441 = vrot.lane.b32.xlu0 %v5292, 8
        %v5442 = vpop.permute.xlu0 %5441
        %5443 = vrot.lane.b32.xlu0 %v5297, 8
        %v5444 = vpop.permute.xlu0 %5443
        %5445 = vrot.lane.b32.xlu0 %v5300, 8
        %v5446 = vpop.permute.xlu0 %5445
        %5447 = vrot.lane.b32.xlu0 %v5305, 8
        %v5448 = vpop.permute.xlu0 %5447
        %5449 = vrot.lane.b32.xlu0 %v5308, 8
        %v5450 = vpop.permute.xlu0 %5449
        %5451 = vrot.lane.b32.xlu0 %v5313, 8
        %v5452 = vpop.permute.xlu0 %5451
        %5453 = vrot.lane.b32.xlu0 %v5316, 8
        %v5454 = vpop.permute.xlu0 %5453
        %5455 = vrot.lane.b32.xlu0 %v5321, 8
        %v5456 = vpop.permute.xlu0 %5455
        %5457 = vrot.lane.b32.xlu0 %v5324, 8
        %v5458 = vpop.permute.xlu0 %5457
        %5459 = vrot.lane.b32.xlu0 %v5329, 8
        %v5460 = vpop.permute.xlu0 %5459
        %5461 = vrot.lane.b32.xlu0 %v5332, 8
        %v5462 = vpop.permute.xlu0 %5461
        %5463 = vrot.lane.b32.xlu0 %v5337, 8
        %v5464 = vpop.permute.xlu0 %5463
        %5465 = vrot.lane.b32.xlu0 %v5340, 8
        %v5466 = vpop.permute.xlu0 %5465
        %5467 = vrot.lane.b32.xlu0 %v5345, 8
        %v5468 = vpop.permute.xlu0 %5467
        %5469 = vrot.lane.b32.xlu0 %v5348, 8
        %v5470 = vpop.permute.xlu0 %5469
        %5511 = vrot.lane.b32.xlu0 %v5193, 16
        %v5512 = vpop.permute.xlu0 %5511
        %5513 = vrot.lane.b32.xlu0 %v5196, 16
        %v5514 = vpop.permute.xlu0 %5513
        %5515 = vrot.lane.b32.xlu0 %v5201, 16
        %v5516 = vpop.permute.xlu0 %5515
        %5517 = vrot.lane.b32.xlu0 %v5204, 16
        %v5518 = vpop.permute.xlu0 %5517
        %5519 = vrot.lane.b32.xlu0 %v5209, 16
        %v5520 = vpop.permute.xlu0 %5519
        %5521 = vrot.lane.b32.xlu0 %v5212, 16
        %v5522 = vpop.permute.xlu0 %5521
        %5523 = vrot.lane.b32.xlu0 %v5217, 16
        %v5524 = vpop.permute.xlu0 %5523
        %5525 = vrot.lane.b32.xlu0 %v5220, 16
        %v5526 = vpop.permute.xlu0 %5525
        %5527 = vrot.lane.b32.xlu0 %v5225, 16
        %v5528 = vpop.permute.xlu0 %5527
        %5529 = vrot.lane.b32.xlu0 %v5228, 16
        %v5530 = vpop.permute.xlu0 %5529
        %5531 = vrot.lane.b32.xlu0 %v5233, 16
        %v5532 = vpop.permute.xlu0 %5531
        %5533 = vrot.lane.b32.xlu0 %v5236, 16
        %v5534 = vpop.permute.xlu0 %5533
        %5535 = vrot.lane.b32.xlu0 %v5241, 16
        %v5536 = vpop.permute.xlu0 %5535
        %5537 = vrot.lane.b32.xlu0 %v5244, 16
        %v5538 = vpop.permute.xlu0 %5537
        %5539 = vrot.lane.b32.xlu0 %v5249, 16
        %v5540 = vpop.permute.xlu0 %5539
        %5541 = vrot.lane.b32.xlu0 %v5252, 16
        %v5542 = vpop.permute.xlu0 %5541
        %5543 = vrot.lane.b32.xlu0 %v5257, 16
        %v5544 = vpop.permute.xlu0 %5543
        %5545 = vrot.lane.b32.xlu0 %v5260, 16
        %v5546 = vpop.permute.xlu0 %5545
        %5547 = vrot.lane.b32.xlu0 %v5265, 16
        %v5548 = vpop.permute.xlu0 %5547
        %5549 = vrot.lane.b32.xlu0 %v5268, 16
        %v5550 = vpop.permute.xlu0 %5549
        %5551 = vrot.lane.b32.xlu0 %v5273, 16
        %v5552 = vpop.permute.xlu0 %5551
        %5553 = vrot.lane.b32.xlu0 %v5276, 16
        %v5554 = vpop.permute.xlu0 %5553
        %5555 = vrot.lane.b32.xlu0 %v5281, 16
        %v5556 = vpop.permute.xlu0 %5555
        %5557 = vrot.lane.b32.xlu0 %v5284, 16
        %v5558 = vpop.permute.xlu0 %5557
        %5559 = vrot.lane.b32.xlu0 %v5289, 16
        %v5560 = vpop.permute.xlu0 %5559
        %5561 = vrot.lane.b32.xlu0 %v5292, 16
        %v5562 = vpop.permute.xlu0 %5561
        %5563 = vrot.lane.b32.xlu0 %v5297, 16
        %v5564 = vpop.permute.xlu0 %5563
        %5565 = vrot.lane.b32.xlu0 %v5300, 16
        %v5566 = vpop.permute.xlu0 %5565
        %5567 = vrot.lane.b32.xlu0 %v5305, 16
        %v5568 = vpop.permute.xlu0 %5567
        %5569 = vrot.lane.b32.xlu0 %v5308, 16
        %v5570 = vpop.permute.xlu0 %5569
        %5571 = vrot.lane.b32.xlu0 %v5313, 16
        %v5572 = vpop.permute.xlu0 %5571
        %5573 = vrot.lane.b32.xlu0 %v5316, 16
        %v5574 = vpop.permute.xlu0 %5573
        %5575 = vrot.lane.b32.xlu0 %v5321, 16
        %v5576 = vpop.permute.xlu0 %5575
        %5577 = vrot.lane.b32.xlu0 %v5324, 16
        %v5578 = vpop.permute.xlu0 %5577
        %5579 = vrot.lane.b32.xlu0 %v5329, 16
        %v5580 = vpop.permute.xlu0 %5579
        %5581 = vrot.lane.b32.xlu0 %v5332, 16
        %v5582 = vpop.permute.xlu0 %5581
        %5583 = vrot.lane.b32.xlu0 %v5337, 16
        %v5584 = vpop.permute.xlu0 %5583
        %5585 = vrot.lane.b32.xlu0 %v5340, 16
        %v5586 = vpop.permute.xlu0 %5585
        %5587 = vrot.lane.b32.xlu0 %v5345, 16
        %v5588 = vpop.permute.xlu0 %5587
        %5589 = vrot.lane.b32.xlu0 %v5348, 16
        %v5590 = vpop.permute.xlu0 %5589
        %5631 = vrot.lane.b32.xlu0 %v5193, 24
        %v5632 = vpop.permute.xlu0 %5631
        %5633 = vrot.lane.b32.xlu0 %v5196, 24
        %v5634 = vpop.permute.xlu0 %5633
        %5635 = vrot.lane.b32.xlu0 %v5201, 24
        %v5636 = vpop.permute.xlu0 %5635
        %5637 = vrot.lane.b32.xlu0 %v5204, 24
        %v5638 = vpop.permute.xlu0 %5637
        %5639 = vrot.lane.b32.xlu0 %v5209, 24
        %v5640 = vpop.permute.xlu0 %5639
        %5641 = vrot.lane.b32.xlu0 %v5212, 24
        %v5642 = vpop.permute.xlu0 %5641
        %5643 = vrot.lane.b32.xlu0 %v5217, 24
        %v5644 = vpop.permute.xlu0 %5643
        %5645 = vrot.lane.b32.xlu0 %v5220, 24
        %v5646 = vpop.permute.xlu0 %5645
        %5647 = vrot.lane.b32.xlu0 %v5225, 24
        %v5648 = vpop.permute.xlu0 %5647
        %5649 = vrot.lane.b32.xlu0 %v5228, 24
        %v5650 = vpop.permute.xlu0 %5649
        %5651 = vrot.lane.b32.xlu0 %v5233, 24
        %v5652 = vpop.permute.xlu0 %5651
        %5653 = vrot.lane.b32.xlu0 %v5236, 24
        %v5654 = vpop.permute.xlu0 %5653
        %5655 = vrot.lane.b32.xlu0 %v5241, 24
        %v5656 = vpop.permute.xlu0 %5655
        %5657 = vrot.lane.b32.xlu0 %v5244, 24
        %v5658 = vpop.permute.xlu0 %5657
        %5659 = vrot.lane.b32.xlu0 %v5249, 24
        %v5660 = vpop.permute.xlu0 %5659
        %5661 = vrot.lane.b32.xlu0 %v5252, 24
        %v5662 = vpop.permute.xlu0 %5661
        %5663 = vrot.lane.b32.xlu0 %v5257, 24
        %v5664 = vpop.permute.xlu0 %5663
        %5665 = vrot.lane.b32.xlu0 %v5260, 24
        %v5666 = vpop.permute.xlu0 %5665
        %5667 = vrot.lane.b32.xlu0 %v5265, 24
        %v5668 = vpop.permute.xlu0 %5667
        %5669 = vrot.lane.b32.xlu0 %v5268, 24
        %v5670 = vpop.permute.xlu0 %5669
        %5671 = vrot.lane.b32.xlu0 %v5273, 24
        %v5672 = vpop.permute.xlu0 %5671
        %5673 = vrot.lane.b32.xlu0 %v5276, 24
        %v5674 = vpop.permute.xlu0 %5673
        %5675 = vrot.lane.b32.xlu0 %v5281, 24
        %v5676 = vpop.permute.xlu0 %5675
        %5677 = vrot.lane.b32.xlu0 %v5284, 24
        %v5678 = vpop.permute.xlu0 %5677
        %5679 = vrot.lane.b32.xlu0 %v5289, 24
        %v5680 = vpop.permute.xlu0 %5679
        %5681 = vrot.lane.b32.xlu0 %v5292, 24
        %v5682 = vpop.permute.xlu0 %5681
        %5683 = vrot.lane.b32.xlu0 %v5297, 24
        %v5684 = vpop.permute.xlu0 %5683
        %5685 = vrot.lane.b32.xlu0 %v5300, 24
        %v5686 = vpop.permute.xlu0 %5685
        %5687 = vrot.lane.b32.xlu0 %v5305, 24
        %v5688 = vpop.permute.xlu0 %5687
        %5689 = vrot.lane.b32.xlu0 %v5308, 24
        %v5690 = vpop.permute.xlu0 %5689
        %5691 = vrot.lane.b32.xlu0 %v5313, 24
        %v5692 = vpop.permute.xlu0 %5691
        %5693 = vrot.lane.b32.xlu0 %v5316, 24
        %v5694 = vpop.permute.xlu0 %5693
        %5695 = vrot.lane.b32.xlu0 %v5321, 24
        %v5696 = vpop.permute.xlu0 %5695
        %5697 = vrot.lane.b32.xlu0 %v5324, 24
        %v5698 = vpop.permute.xlu0 %5697
        %5699 = vrot.lane.b32.xlu0 %v5329, 24
        %v5700 = vpop.permute.xlu0 %5699
        %5701 = vrot.lane.b32.xlu0 %v5332, 24
        %v5702 = vpop.permute.xlu0 %5701
        %5703 = vrot.lane.b32.xlu0 %v5337, 24
        %v5704 = vpop.permute.xlu0 %5703
        %5705 = vrot.lane.b32.xlu0 %v5340, 24
        %v5706 = vpop.permute.xlu0 %5705
        %5707 = vrot.lane.b32.xlu0 %v5345, 24
        %v5708 = vpop.permute.xlu0 %5707
        %5709 = vrot.lane.b32.xlu0 %v5348, 24
        %v5710 = vpop.permute.xlu0 %5709
        %5751 = vrot.lane.b32.xlu0 %v5193, 32
        %v5752 = vpop.permute.xlu0 %5751
        %5753 = vrot.lane.b32.xlu0 %v5196, 32
        %v5754 = vpop.permute.xlu0 %5753
        %5755 = vrot.lane.b32.xlu0 %v5201, 32
        %v5756 = vpop.permute.xlu0 %5755
        %5757 = vrot.lane.b32.xlu0 %v5204, 32
        %v5758 = vpop.permute.xlu0 %5757
        %5759 = vrot.lane.b32.xlu0 %v5209, 32
        %v5760 = vpop.permute.xlu0 %5759
        %5761 = vrot.lane.b32.xlu0 %v5212, 32
        %v5762 = vpop.permute.xlu0 %5761
        %5763 = vrot.lane.b32.xlu0 %v5217, 32
        %v5764 = vpop.permute.xlu0 %5763
        %5765 = vrot.lane.b32.xlu0 %v5220, 32
        %v5766 = vpop.permute.xlu0 %5765
        %5767 = vrot.lane.b32.xlu0 %v5225, 32
        %v5768 = vpop.permute.xlu0 %5767
        %5769 = vrot.lane.b32.xlu0 %v5228, 32
        %v5770 = vpop.permute.xlu0 %5769
        %5771 = vrot.lane.b32.xlu0 %v5233, 32
        %v5772 = vpop.permute.xlu0 %5771
        %5773 = vrot.lane.b32.xlu0 %v5236, 32
        %v5774 = vpop.permute.xlu0 %5773
        %5775 = vrot.lane.b32.xlu0 %v5241, 32
        %v5776 = vpop.permute.xlu0 %5775
        %5777 = vrot.lane.b32.xlu0 %v5244, 32
        %v5778 = vpop.permute.xlu0 %5777
        %5779 = vrot.lane.b32.xlu0 %v5249, 32
        %v5780 = vpop.permute.xlu0 %5779
        %5781 = vrot.lane.b32.xlu0 %v5252, 32
        %v5782 = vpop.permute.xlu0 %5781
        %5783 = vrot.lane.b32.xlu0 %v5257, 32
        %v5784 = vpop.permute.xlu0 %5783
        %5785 = vrot.lane.b32.xlu0 %v5260, 32
        %v5786 = vpop.permute.xlu0 %5785
        %5787 = vrot.lane.b32.xlu0 %v5265, 32
        %v5788 = vpop.permute.xlu0 %5787
        %5789 = vrot.lane.b32.xlu0 %v5268, 32
        %v5790 = vpop.permute.xlu0 %5789
        %5791 = vrot.lane.b32.xlu0 %v5273, 32
        %v5792 = vpop.permute.xlu0 %5791
        %5793 = vrot.lane.b32.xlu0 %v5276, 32
        %v5794 = vpop.permute.xlu0 %5793
        %5795 = vrot.lane.b32.xlu0 %v5281, 32
        %v5796 = vpop.permute.xlu0 %5795
        %5797 = vrot.lane.b32.xlu0 %v5284, 32
        %v5798 = vpop.permute.xlu0 %5797
        %5799 = vrot.lane.b32.xlu0 %v5289, 32
        %v5800 = vpop.permute.xlu0 %5799
        %5801 = vrot.lane.b32.xlu0 %v5292, 32
        %v5802 = vpop.permute.xlu0 %5801
        %5803 = vrot.lane.b32.xlu0 %v5297, 32
        %v5804 = vpop.permute.xlu0 %5803
        %5805 = vrot.lane.b32.xlu0 %v5300, 32
        %v5806 = vpop.permute.xlu0 %5805
        %5807 = vrot.lane.b32.xlu0 %v5305, 32
        %v5808 = vpop.permute.xlu0 %5807
        %5809 = vrot.lane.b32.xlu0 %v5308, 32
        %v5810 = vpop.permute.xlu0 %5809
        %5811 = vrot.lane.b32.xlu0 %v5313, 32
        %v5812 = vpop.permute.xlu0 %5811
        %5813 = vrot.lane.b32.xlu0 %v5316, 32
        %v5814 = vpop.permute.xlu0 %5813
        %5815 = vrot.lane.b32.xlu0 %v5321, 32
        %v5816 = vpop.permute.xlu0 %5815
        %5817 = vrot.lane.b32.xlu0 %v5324, 32
        %v5818 = vpop.permute.xlu0 %5817
        %5819 = vrot.lane.b32.xlu0 %v5329, 32
        %v5820 = vpop.permute.xlu0 %5819
        %5821 = vrot.lane.b32.xlu0 %v5332, 32
        %v5822 = vpop.permute.xlu0 %5821
        %5823 = vrot.lane.b32.xlu0 %v5337, 32
        %v5824 = vpop.permute.xlu0 %5823
        %5825 = vrot.lane.b32.xlu0 %v5340, 32
        %v5826 = vpop.permute.xlu0 %5825
        %5827 = vrot.lane.b32.xlu0 %v5345, 32
        %v5828 = vpop.permute.xlu0 %5827
        %5829 = vrot.lane.b32.xlu0 %v5348, 32
        %v5830 = vpop.permute.xlu0 %5829
        %5871 = vrot.lane.b32.xlu0 %v5193, 40
        %v5872 = vpop.permute.xlu0 %5871
        %5873 = vrot.lane.b32.xlu0 %v5196, 40
        %v5874 = vpop.permute.xlu0 %5873
        %5875 = vrot.lane.b32.xlu0 %v5201, 40
        %v5876 = vpop.permute.xlu0 %5875
        %5877 = vrot.lane.b32.xlu0 %v5204, 40
        %v5878 = vpop.permute.xlu0 %5877
        %5879 = vrot.lane.b32.xlu0 %v5209, 40
        %v5880 = vpop.permute.xlu0 %5879
        %5881 = vrot.lane.b32.xlu0 %v5212, 40
        %v5882 = vpop.permute.xlu0 %5881
        %5883 = vrot.lane.b32.xlu0 %v5217, 40
        %v5884 = vpop.permute.xlu0 %5883
        %5885 = vrot.lane.b32.xlu0 %v5220, 40
        %v5886 = vpop.permute.xlu0 %5885
        %5887 = vrot.lane.b32.xlu0 %v5225, 40
        %v5888 = vpop.permute.xlu0 %5887
        %5889 = vrot.lane.b32.xlu0 %v5228, 40
        %v5890 = vpop.permute.xlu0 %5889
        %5891 = vrot.lane.b32.xlu0 %v5233, 40
        %v5892 = vpop.permute.xlu0 %5891
        %5893 = vrot.lane.b32.xlu0 %v5236, 40
        %v5894 = vpop.permute.xlu0 %5893
        %5895 = vrot.lane.b32.xlu0 %v5241, 40
        %v5896 = vpop.permute.xlu0 %5895
        %5897 = vrot.lane.b32.xlu0 %v5244, 40
        %v5898 = vpop.permute.xlu0 %5897
        %5899 = vrot.lane.b32.xlu0 %v5249, 40
        %v5900 = vpop.permute.xlu0 %5899
        %5901 = vrot.lane.b32.xlu0 %v5252, 40
        %v5902 = vpop.permute.xlu0 %5901
        %5903 = vrot.lane.b32.xlu0 %v5257, 40
        %v5904 = vpop.permute.xlu0 %5903
        %5905 = vrot.lane.b32.xlu0 %v5260, 40
        %v5906 = vpop.permute.xlu0 %5905
        %5907 = vrot.lane.b32.xlu0 %v5265, 40
        %v5908 = vpop.permute.xlu0 %5907
        %5909 = vrot.lane.b32.xlu0 %v5268, 40
        %v5910 = vpop.permute.xlu0 %5909
        %5911 = vrot.lane.b32.xlu0 %v5273, 40
        %v5912 = vpop.permute.xlu0 %5911
        %5913 = vrot.lane.b32.xlu0 %v5276, 40
        %v5914 = vpop.permute.xlu0 %5913
        %5915 = vrot.lane.b32.xlu0 %v5281, 40
        %v5916 = vpop.permute.xlu0 %5915
        %5917 = vrot.lane.b32.xlu0 %v5284, 40
        %v5918 = vpop.permute.xlu0 %5917
        %5919 = vrot.lane.b32.xlu0 %v5289, 40
        %v5920 = vpop.permute.xlu0 %5919
        %5921 = vrot.lane.b32.xlu0 %v5292, 40
        %v5922 = vpop.permute.xlu0 %5921
        %5923 = vrot.lane.b32.xlu0 %v5297, 40
        %v5924 = vpop.permute.xlu0 %5923
        %5925 = vrot.lane.b32.xlu0 %v5300, 40
        %v5926 = vpop.permute.xlu0 %5925
        %5927 = vrot.lane.b32.xlu0 %v5305, 40
        %v5928 = vpop.permute.xlu0 %5927
        %5929 = vrot.lane.b32.xlu0 %v5308, 40
        %v5930 = vpop.permute.xlu0 %5929
        %5931 = vrot.lane.b32.xlu0 %v5313, 40
        %v5932 = vpop.permute.xlu0 %5931
        %5933 = vrot.lane.b32.xlu0 %v5316, 40
        %v5934 = vpop.permute.xlu0 %5933
        %5935 = vrot.lane.b32.xlu0 %v5321, 40
        %v5936 = vpop.permute.xlu0 %5935
        %5937 = vrot.lane.b32.xlu0 %v5324, 40
        %v5938 = vpop.permute.xlu0 %5937
        %5939 = vrot.lane.b32.xlu0 %v5329, 40
        %v5940 = vpop.permute.xlu0 %5939
        %5941 = vrot.lane.b32.xlu0 %v5332, 40
        %v5942 = vpop.permute.xlu0 %5941
        %5943 = vrot.lane.b32.xlu0 %v5337, 40
        %v5944 = vpop.permute.xlu0 %5943
        %5945 = vrot.lane.b32.xlu0 %v5340, 40
        %v5946 = vpop.permute.xlu0 %5945
        %5947 = vrot.lane.b32.xlu0 %v5345, 40
        %v5948 = vpop.permute.xlu0 %5947
        %5949 = vrot.lane.b32.xlu0 %v5348, 40
        %v5950 = vpop.permute.xlu0 %5949
        %5991 = vrot.lane.b32.xlu0 %v5193, 48
        %v5992 = vpop.permute.xlu0 %5991
        %5993 = vrot.lane.b32.xlu0 %v5196, 48
        %v5994 = vpop.permute.xlu0 %5993
        %5995 = vrot.lane.b32.xlu0 %v5201, 48
        %v5996 = vpop.permute.xlu0 %5995
        %5997 = vrot.lane.b32.xlu0 %v5204, 48
        %v5998 = vpop.permute.xlu0 %5997
        %5999 = vrot.lane.b32.xlu0 %v5209, 48
        %v6000 = vpop.permute.xlu0 %5999
        %6001 = vrot.lane.b32.xlu0 %v5212, 48
        %v6002 = vpop.permute.xlu0 %6001
        %6003 = vrot.lane.b32.xlu0 %v5217, 48
        %v6004 = vpop.permute.xlu0 %6003
        %6005 = vrot.lane.b32.xlu0 %v5220, 48
        %v6006 = vpop.permute.xlu0 %6005
        %6007 = vrot.lane.b32.xlu0 %v5225, 48
        %v6008 = vpop.permute.xlu0 %6007
        %6009 = vrot.lane.b32.xlu0 %v5228, 48
        %v6010 = vpop.permute.xlu0 %6009
        %6011 = vrot.lane.b32.xlu0 %v5233, 48
        %v6012 = vpop.permute.xlu0 %6011
        %6013 = vrot.lane.b32.xlu0 %v5236, 48
        %v6014 = vpop.permute.xlu0 %6013
        %6015 = vrot.lane.b32.xlu0 %v5241, 48
        %v6016 = vpop.permute.xlu0 %6015
        %6017 = vrot.lane.b32.xlu0 %v5244, 48
        %v6018 = vpop.permute.xlu0 %6017
        %6019 = vrot.lane.b32.xlu0 %v5249, 48
        %v6020 = vpop.permute.xlu0 %6019
        %6021 = vrot.lane.b32.xlu0 %v5252, 48
        %v6022 = vpop.permute.xlu0 %6021
        %6023 = vrot.lane.b32.xlu0 %v5257, 48
        %v6024 = vpop.permute.xlu0 %6023
        %6025 = vrot.lane.b32.xlu0 %v5260, 48
        %v6026 = vpop.permute.xlu0 %6025
        %6027 = vrot.lane.b32.xlu0 %v5265, 48
        %v6028 = vpop.permute.xlu0 %6027
        %6029 = vrot.lane.b32.xlu0 %v5268, 48
        %v6030 = vpop.permute.xlu0 %6029
        %6031 = vrot.lane.b32.xlu0 %v5273, 48
        %v6032 = vpop.permute.xlu0 %6031
        %6033 = vrot.lane.b32.xlu0 %v5276, 48
        %v6034 = vpop.permute.xlu0 %6033
        %6035 = vrot.lane.b32.xlu0 %v5281, 48
        %v6036 = vpop.permute.xlu0 %6035
        %6037 = vrot.lane.b32.xlu0 %v5284, 48
        %v6038 = vpop.permute.xlu0 %6037
        %6039 = vrot.lane.b32.xlu0 %v5289, 48
        %v6040 = vpop.permute.xlu0 %6039
        %6041 = vrot.lane.b32.xlu0 %v5292, 48
        %v6042 = vpop.permute.xlu0 %6041
        %6043 = vrot.lane.b32.xlu0 %v5297, 48
        %v6044 = vpop.permute.xlu0 %6043
        %6045 = vrot.lane.b32.xlu0 %v5300, 48
        %v6046 = vpop.permute.xlu0 %6045
        %6047 = vrot.lane.b32.xlu0 %v5305, 48
        %v6048 = vpop.permute.xlu0 %6047
        %6049 = vrot.lane.b32.xlu0 %v5308, 48
        %v6050 = vpop.permute.xlu0 %6049
        %6051 = vrot.lane.b32.xlu0 %v5313, 48
        %v6052 = vpop.permute.xlu0 %6051
        %6053 = vrot.lane.b32.xlu0 %v5316, 48
        %v6054 = vpop.permute.xlu0 %6053
        %6055 = vrot.lane.b32.xlu0 %v5321, 48
        %v6056 = vpop.permute.xlu0 %6055
        %6057 = vrot.lane.b32.xlu0 %v5324, 48
        %v6058 = vpop.permute.xlu0 %6057
        %6059 = vrot.lane.b32.xlu0 %v5329, 48
        %v6060 = vpop.permute.xlu0 %6059
        %6061 = vrot.lane.b32.xlu0 %v5332, 48
        %v6062 = vpop.permute.xlu0 %6061
        %6063 = vrot.lane.b32.xlu0 %v5337, 48
        %v6064 = vpop.permute.xlu0 %6063
        %6065 = vrot.lane.b32.xlu0 %v5340, 48
        %v6066 = vpop.permute.xlu0 %6065
        %6067 = vrot.lane.b32.xlu0 %v5345, 48
        %v6068 = vpop.permute.xlu0 %6067
        %6069 = vrot.lane.b32.xlu0 %v5348, 48
        %v6070 = vpop.permute.xlu0 %6069
        %6111 = vrot.lane.b32.xlu0 %v5193, 56
        %v6112 = vpop.permute.xlu0 %6111
        %6113 = vrot.lane.b32.xlu0 %v5196, 56
        %v6114 = vpop.permute.xlu0 %6113
        %6115 = vrot.lane.b32.xlu0 %v5201, 56
        %v6116 = vpop.permute.xlu0 %6115
        %6117 = vrot.lane.b32.xlu0 %v5204, 56
        %v6118 = vpop.permute.xlu0 %6117
        %6119 = vrot.lane.b32.xlu0 %v5209, 56
        %v6120 = vpop.permute.xlu0 %6119
        %6121 = vrot.lane.b32.xlu0 %v5212, 56
        %v6122 = vpop.permute.xlu0 %6121
        %6123 = vrot.lane.b32.xlu0 %v5217, 56
        %v6124 = vpop.permute.xlu0 %6123
        %6125 = vrot.lane.b32.xlu0 %v5220, 56
        %v6126 = vpop.permute.xlu0 %6125
        %6127 = vrot.lane.b32.xlu0 %v5225, 56
        %v6128 = vpop.permute.xlu0 %6127
        %6129 = vrot.lane.b32.xlu0 %v5228, 56
        %v6130 = vpop.permute.xlu0 %6129
        %6131 = vrot.lane.b32.xlu0 %v5233, 56
        %v6132 = vpop.permute.xlu0 %6131
        %6133 = vrot.lane.b32.xlu0 %v5236, 56
        %v6134 = vpop.permute.xlu0 %6133
        %6135 = vrot.lane.b32.xlu0 %v5241, 56
        %v6136 = vpop.permute.xlu0 %6135
        %6137 = vrot.lane.b32.xlu0 %v5244, 56
        %v6138 = vpop.permute.xlu0 %6137
        %6139 = vrot.lane.b32.xlu0 %v5249, 56
        %v6140 = vpop.permute.xlu0 %6139
        %6141 = vrot.lane.b32.xlu0 %v5252, 56
        %v6142 = vpop.permute.xlu0 %6141
        %6143 = vrot.lane.b32.xlu0 %v5257, 56
        %v6144 = vpop.permute.xlu0 %6143
        %6145 = vrot.lane.b32.xlu0 %v5260, 56
        %v6146 = vpop.permute.xlu0 %6145
        %6147 = vrot.lane.b32.xlu0 %v5265, 56
        %v6148 = vpop.permute.xlu0 %6147
        %6149 = vrot.lane.b32.xlu0 %v5268, 56
        %v6150 = vpop.permute.xlu0 %6149
        %6151 = vrot.lane.b32.xlu0 %v5273, 56
        %v6152 = vpop.permute.xlu0 %6151
        %6153 = vrot.lane.b32.xlu0 %v5276, 56
        %v6154 = vpop.permute.xlu0 %6153
        %6155 = vrot.lane.b32.xlu0 %v5281, 56
        %v6156 = vpop.permute.xlu0 %6155
        %6157 = vrot.lane.b32.xlu0 %v5284, 56
        %v6158 = vpop.permute.xlu0 %6157
        %6159 = vrot.lane.b32.xlu0 %v5289, 56
        %v6160 = vpop.permute.xlu0 %6159
        %6161 = vrot.lane.b32.xlu0 %v5292, 56
        %v6162 = vpop.permute.xlu0 %6161
        %6163 = vrot.lane.b32.xlu0 %v5297, 56
        %v6164 = vpop.permute.xlu0 %6163
        %6165 = vrot.lane.b32.xlu0 %v5300, 56
        %v6166 = vpop.permute.xlu0 %6165
        %6167 = vrot.lane.b32.xlu0 %v5305, 56
        %v6168 = vpop.permute.xlu0 %6167
        %6169 = vrot.lane.b32.xlu0 %v5308, 56
        %v6170 = vpop.permute.xlu0 %6169
        %6171 = vrot.lane.b32.xlu0 %v5313, 56
        %v6172 = vpop.permute.xlu0 %6171
        %6173 = vrot.lane.b32.xlu0 %v5316, 56
        %v6174 = vpop.permute.xlu0 %6173
        %6175 = vrot.lane.b32.xlu0 %v5321, 56
        %v6176 = vpop.permute.xlu0 %6175
        %6177 = vrot.lane.b32.xlu0 %v5324, 56
        %v6178 = vpop.permute.xlu0 %6177
        %6179 = vrot.lane.b32.xlu0 %v5329, 56
        %v6180 = vpop.permute.xlu0 %6179
        %6181 = vrot.lane.b32.xlu0 %v5332, 56
        %v6182 = vpop.permute.xlu0 %6181
        %6183 = vrot.lane.b32.xlu0 %v5337, 56
        %v6184 = vpop.permute.xlu0 %6183
        %6185 = vrot.lane.b32.xlu0 %v5340, 56
        %v6186 = vpop.permute.xlu0 %6185
        %6187 = vrot.lane.b32.xlu0 %v5345, 56
        %v6188 = vpop.permute.xlu0 %6187
        %6189 = vrot.lane.b32.xlu0 %v5348, 56
        %v6190 = vpop.permute.xlu0 %6189
        %6231 = vrot.lane.b32.xlu0 %v5193, 64
        %v6232 = vpop.permute.xlu0 %6231
        %6233 = vrot.lane.b32.xlu0 %v5196, 64
        %v6234 = vpop.permute.xlu0 %6233
        %6235 = vrot.lane.b32.xlu0 %v5201, 64
        %v6236 = vpop.permute.xlu0 %6235
        %6237 = vrot.lane.b32.xlu0 %v5204, 64
        %v6238 = vpop.permute.xlu0 %6237
        %6239 = vrot.lane.b32.xlu0 %v5209, 64
        %v6240 = vpop.permute.xlu0 %6239
        %6241 = vrot.lane.b32.xlu0 %v5212, 64
        %v6242 = vpop.permute.xlu0 %6241
        %6243 = vrot.lane.b32.xlu0 %v5217, 64
        %v6244 = vpop.permute.xlu0 %6243
        %6245 = vrot.lane.b32.xlu0 %v5220, 64
        %v6246 = vpop.permute.xlu0 %6245
        %6247 = vrot.lane.b32.xlu0 %v5225, 64
        %v6248 = vpop.permute.xlu0 %6247
        %6249 = vrot.lane.b32.xlu0 %v5228, 64
        %v6250 = vpop.permute.xlu0 %6249
        %6251 = vrot.lane.b32.xlu0 %v5233, 64
        %v6252 = vpop.permute.xlu0 %6251
        %6253 = vrot.lane.b32.xlu0 %v5236, 64
        %v6254 = vpop.permute.xlu0 %6253
        %6255 = vrot.lane.b32.xlu0 %v5241, 64
        %v6256 = vpop.permute.xlu0 %6255
        %6257 = vrot.lane.b32.xlu0 %v5244, 64
        %v6258 = vpop.permute.xlu0 %6257
        %6259 = vrot.lane.b32.xlu0 %v5249, 64
        %v6260 = vpop.permute.xlu0 %6259
        %6261 = vrot.lane.b32.xlu0 %v5252, 64
        %v6262 = vpop.permute.xlu0 %6261
        %6263 = vrot.lane.b32.xlu0 %v5257, 64
        %v6264 = vpop.permute.xlu0 %6263
        %6265 = vrot.lane.b32.xlu0 %v5260, 64
        %v6266 = vpop.permute.xlu0 %6265
        %6267 = vrot.lane.b32.xlu0 %v5265, 64
        %v6268 = vpop.permute.xlu0 %6267
        %6269 = vrot.lane.b32.xlu0 %v5268, 64
        %v6270 = vpop.permute.xlu0 %6269
        %6271 = vrot.lane.b32.xlu0 %v5273, 64
        %v6272 = vpop.permute.xlu0 %6271
        %6273 = vrot.lane.b32.xlu0 %v5276, 64
        %v6274 = vpop.permute.xlu0 %6273
        %6275 = vrot.lane.b32.xlu0 %v5281, 64
        %v6276 = vpop.permute.xlu0 %6275
        %6277 = vrot.lane.b32.xlu0 %v5284, 64
        %v6278 = vpop.permute.xlu0 %6277
        %6279 = vrot.lane.b32.xlu0 %v5289, 64
        %v6280 = vpop.permute.xlu0 %6279
        %6281 = vrot.lane.b32.xlu0 %v5292, 64
        %v6282 = vpop.permute.xlu0 %6281
        %6283 = vrot.lane.b32.xlu0 %v5297, 64
        %v6284 = vpop.permute.xlu0 %6283
        %6285 = vrot.lane.b32.xlu0 %v5300, 64
        %v6286 = vpop.permute.xlu0 %6285
        %6287 = vrot.lane.b32.xlu0 %v5305, 64
        %v6288 = vpop.permute.xlu0 %6287
        %6289 = vrot.lane.b32.xlu0 %v5308, 64
        %v6290 = vpop.permute.xlu0 %6289
        %6291 = vrot.lane.b32.xlu0 %v5313, 64
        %v6292 = vpop.permute.xlu0 %6291
        %6293 = vrot.lane.b32.xlu0 %v5316, 64
        %v6294 = vpop.permute.xlu0 %6293
        %6295 = vrot.lane.b32.xlu0 %v5321, 64
        %v6296 = vpop.permute.xlu0 %6295
        %6297 = vrot.lane.b32.xlu0 %v5324, 64
        %v6298 = vpop.permute.xlu0 %6297
        %6299 = vrot.lane.b32.xlu0 %v5329, 64
        %v6300 = vpop.permute.xlu0 %6299
        %6301 = vrot.lane.b32.xlu0 %v5332, 64
        %v6302 = vpop.permute.xlu0 %6301
        %6303 = vrot.lane.b32.xlu0 %v5337, 64
        %v6304 = vpop.permute.xlu0 %6303
        %6305 = vrot.lane.b32.xlu0 %v5340, 64
        %v6306 = vpop.permute.xlu0 %6305
        %6307 = vrot.lane.b32.xlu0 %v5345, 64
        %v6308 = vpop.permute.xlu0 %6307
        %6309 = vrot.lane.b32.xlu0 %v5348, 64
        %v6310 = vpop.permute.xlu0 %6309
        %6351 = vrot.lane.b32.xlu0 %v5193, 72
        %v6352 = vpop.permute.xlu0 %6351
        %6353 = vrot.lane.b32.xlu0 %v5196, 72
        %v6354 = vpop.permute.xlu0 %6353
        %6355 = vrot.lane.b32.xlu0 %v5201, 72
        %v6356 = vpop.permute.xlu0 %6355
        %6357 = vrot.lane.b32.xlu0 %v5204, 72
        %v6358 = vpop.permute.xlu0 %6357
        %6359 = vrot.lane.b32.xlu0 %v5209, 72
        %v6360 = vpop.permute.xlu0 %6359
        %6361 = vrot.lane.b32.xlu0 %v5212, 72
        %v6362 = vpop.permute.xlu0 %6361
        %6363 = vrot.lane.b32.xlu0 %v5217, 72
        %v6364 = vpop.permute.xlu0 %6363
        %6365 = vrot.lane.b32.xlu0 %v5220, 72
        %v6366 = vpop.permute.xlu0 %6365
        %6367 = vrot.lane.b32.xlu0 %v5225, 72
        %v6368 = vpop.permute.xlu0 %6367
        %6369 = vrot.lane.b32.xlu0 %v5228, 72
        %v6370 = vpop.permute.xlu0 %6369
        %6371 = vrot.lane.b32.xlu0 %v5233, 72
        %v6372 = vpop.permute.xlu0 %6371
        %6373 = vrot.lane.b32.xlu0 %v5236, 72
        %v6374 = vpop.permute.xlu0 %6373
        %6375 = vrot.lane.b32.xlu0 %v5241, 72
        %v6376 = vpop.permute.xlu0 %6375
        %6377 = vrot.lane.b32.xlu0 %v5244, 72
        %v6378 = vpop.permute.xlu0 %6377
        %6379 = vrot.lane.b32.xlu0 %v5249, 72
        %v6380 = vpop.permute.xlu0 %6379
        %6381 = vrot.lane.b32.xlu0 %v5252, 72
        %v6382 = vpop.permute.xlu0 %6381
        %6383 = vrot.lane.b32.xlu0 %v5257, 72
        %v6384 = vpop.permute.xlu0 %6383
        %6385 = vrot.lane.b32.xlu0 %v5260, 72
        %v6386 = vpop.permute.xlu0 %6385
        %6387 = vrot.lane.b32.xlu0 %v5265, 72
        %v6388 = vpop.permute.xlu0 %6387
        %6389 = vrot.lane.b32.xlu0 %v5268, 72
        %v6390 = vpop.permute.xlu0 %6389
        %6391 = vrot.lane.b32.xlu0 %v5273, 72
        %v6392 = vpop.permute.xlu0 %6391
        %6393 = vrot.lane.b32.xlu0 %v5276, 72
        %v6394 = vpop.permute.xlu0 %6393
        %6395 = vrot.lane.b32.xlu0 %v5281, 72
        %v6396 = vpop.permute.xlu0 %6395
        %6397 = vrot.lane.b32.xlu0 %v5284, 72
        %v6398 = vpop.permute.xlu0 %6397
        %6399 = vrot.lane.b32.xlu0 %v5289, 72
        %v6400 = vpop.permute.xlu0 %6399
        %6401 = vrot.lane.b32.xlu0 %v5292, 72
        %v6402 = vpop.permute.xlu0 %6401
        %6403 = vrot.lane.b32.xlu0 %v5297, 72
        %v6404 = vpop.permute.xlu0 %6403
        %6405 = vrot.lane.b32.xlu0 %v5300, 72
        %v6406 = vpop.permute.xlu0 %6405
        %6407 = vrot.lane.b32.xlu0 %v5305, 72
        %v6408 = vpop.permute.xlu0 %6407
        %6409 = vrot.lane.b32.xlu0 %v5308, 72
        %v6410 = vpop.permute.xlu0 %6409
        %6411 = vrot.lane.b32.xlu0 %v5313, 72
        %v6412 = vpop.permute.xlu0 %6411
        %6413 = vrot.lane.b32.xlu0 %v5316, 72
        %v6414 = vpop.permute.xlu0 %6413
        %6415 = vrot.lane.b32.xlu0 %v5321, 72
        %v6416 = vpop.permute.xlu0 %6415
        %6417 = vrot.lane.b32.xlu0 %v5324, 72
        %v6418 = vpop.permute.xlu0 %6417
        %6419 = vrot.lane.b32.xlu0 %v5329, 72
        %v6420 = vpop.permute.xlu0 %6419
        %6421 = vrot.lane.b32.xlu0 %v5332, 72
        %v6422 = vpop.permute.xlu0 %6421
        %6423 = vrot.lane.b32.xlu0 %v5337, 72
        %v6424 = vpop.permute.xlu0 %6423
        %6425 = vrot.lane.b32.xlu0 %v5340, 72
        %v6426 = vpop.permute.xlu0 %6425
        %6427 = vrot.lane.b32.xlu0 %v5345, 72
        %v6428 = vpop.permute.xlu0 %6427
        %6429 = vrot.lane.b32.xlu0 %v5348, 72
        %v6430 = vpop.permute.xlu0 %6429
        %6471 = vrot.lane.b32.xlu0 %v5193, 80
        %v6472 = vpop.permute.xlu0 %6471
        %6473 = vrot.lane.b32.xlu0 %v5196, 80
        %v6474 = vpop.permute.xlu0 %6473
        %6475 = vrot.lane.b32.xlu0 %v5201, 80
        %v6476 = vpop.permute.xlu0 %6475
        %6477 = vrot.lane.b32.xlu0 %v5204, 80
        %v6478 = vpop.permute.xlu0 %6477
        %6479 = vrot.lane.b32.xlu0 %v5209, 80
        %v6480 = vpop.permute.xlu0 %6479
        %6481 = vrot.lane.b32.xlu0 %v5212, 80
        %v6482 = vpop.permute.xlu0 %6481
        %6483 = vrot.lane.b32.xlu0 %v5217, 80
        %v6484 = vpop.permute.xlu0 %6483
        %6485 = vrot.lane.b32.xlu0 %v5220, 80
        %v6486 = vpop.permute.xlu0 %6485
        %6487 = vrot.lane.b32.xlu0 %v5225, 80
        %v6488 = vpop.permute.xlu0 %6487
        %6489 = vrot.lane.b32.xlu0 %v5228, 80
        %v6490 = vpop.permute.xlu0 %6489
        %6491 = vrot.lane.b32.xlu0 %v5233, 80
        %v6492 = vpop.permute.xlu0 %6491
        %6493 = vrot.lane.b32.xlu0 %v5236, 80
        %v6494 = vpop.permute.xlu0 %6493
        %6495 = vrot.lane.b32.xlu0 %v5241, 80
        %v6496 = vpop.permute.xlu0 %6495
        %6497 = vrot.lane.b32.xlu0 %v5244, 80
        %v6498 = vpop.permute.xlu0 %6497
        %6499 = vrot.lane.b32.xlu0 %v5249, 80
        %v6500 = vpop.permute.xlu0 %6499
        %6501 = vrot.lane.b32.xlu0 %v5252, 80
        %v6502 = vpop.permute.xlu0 %6501
        %6503 = vrot.lane.b32.xlu0 %v5257, 80
        %v6504 = vpop.permute.xlu0 %6503
        %6505 = vrot.lane.b32.xlu0 %v5260, 80
        %v6506 = vpop.permute.xlu0 %6505
        %6507 = vrot.lane.b32.xlu0 %v5265, 80
        %v6508 = vpop.permute.xlu0 %6507
        %6509 = vrot.lane.b32.xlu0 %v5268, 80
        %v6510 = vpop.permute.xlu0 %6509
        %6511 = vrot.lane.b32.xlu0 %v5273, 80
        %v6512 = vpop.permute.xlu0 %6511
        %6513 = vrot.lane.b32.xlu0 %v5276, 80
        %v6514 = vpop.permute.xlu0 %6513
        %6515 = vrot.lane.b32.xlu0 %v5281, 80
        %v6516 = vpop.permute.xlu0 %6515
        %6517 = vrot.lane.b32.xlu0 %v5284, 80
        %v6518 = vpop.permute.xlu0 %6517
        %6519 = vrot.lane.b32.xlu0 %v5289, 80
        %v6520 = vpop.permute.xlu0 %6519
        %6521 = vrot.lane.b32.xlu0 %v5292, 80
        %v6522 = vpop.permute.xlu0 %6521
        %6523 = vrot.lane.b32.xlu0 %v5297, 80
        %v6524 = vpop.permute.xlu0 %6523
        %6525 = vrot.lane.b32.xlu0 %v5300, 80
        %v6526 = vpop.permute.xlu0 %6525
        %6527 = vrot.lane.b32.xlu0 %v5305, 80
        %v6528 = vpop.permute.xlu0 %6527
        %6529 = vrot.lane.b32.xlu0 %v5308, 80
        %v6530 = vpop.permute.xlu0 %6529
        %6531 = vrot.lane.b32.xlu0 %v5313, 80
        %v6532 = vpop.permute.xlu0 %6531
        %6533 = vrot.lane.b32.xlu0 %v5316, 80
        %v6534 = vpop.permute.xlu0 %6533
        %6535 = vrot.lane.b32.xlu0 %v5321, 80
        %v6536 = vpop.permute.xlu0 %6535
        %6537 = vrot.lane.b32.xlu0 %v5324, 80
        %v6538 = vpop.permute.xlu0 %6537
        %6539 = vrot.lane.b32.xlu0 %v5329, 80
        %v6540 = vpop.permute.xlu0 %6539
        %6541 = vrot.lane.b32.xlu0 %v5332, 80
        %v6542 = vpop.permute.xlu0 %6541
        %6543 = vrot.lane.b32.xlu0 %v5337, 80
        %v6544 = vpop.permute.xlu0 %6543
        %6545 = vrot.lane.b32.xlu0 %v5340, 80
        %v6546 = vpop.permute.xlu0 %6545
        %6547 = vrot.lane.b32.xlu0 %v5345, 80
        %v6548 = vpop.permute.xlu0 %6547
        %6549 = vrot.lane.b32.xlu0 %v5348, 80
        %v6550 = vpop.permute.xlu0 %6549
        %6591 = vrot.lane.b32.xlu0 %v5193, 88
        %v6592 = vpop.permute.xlu0 %6591
        %6593 = vrot.lane.b32.xlu0 %v5196, 88
        %v6594 = vpop.permute.xlu0 %6593
        %6595 = vrot.lane.b32.xlu0 %v5201, 88
        %v6596 = vpop.permute.xlu0 %6595
        %6597 = vrot.lane.b32.xlu0 %v5204, 88
        %v6598 = vpop.permute.xlu0 %6597
        %6599 = vrot.lane.b32.xlu0 %v5209, 88
        %v6600 = vpop.permute.xlu0 %6599
        %6601 = vrot.lane.b32.xlu0 %v5212, 88
        %v6602 = vpop.permute.xlu0 %6601
        %6603 = vrot.lane.b32.xlu0 %v5217, 88
        %v6604 = vpop.permute.xlu0 %6603
        %6605 = vrot.lane.b32.xlu0 %v5220, 88
        %v6606 = vpop.permute.xlu0 %6605
        %6607 = vrot.lane.b32.xlu0 %v5225, 88
        %v6608 = vpop.permute.xlu0 %6607
        %6609 = vrot.lane.b32.xlu0 %v5228, 88
        %v6610 = vpop.permute.xlu0 %6609
        %6611 = vrot.lane.b32.xlu0 %v5233, 88
        %v6612 = vpop.permute.xlu0 %6611
        %6613 = vrot.lane.b32.xlu0 %v5236, 88
        %v6614 = vpop.permute.xlu0 %6613
        %6615 = vrot.lane.b32.xlu0 %v5241, 88
        %v6616 = vpop.permute.xlu0 %6615
        %6617 = vrot.lane.b32.xlu0 %v5244, 88
        %v6618 = vpop.permute.xlu0 %6617
        %6619 = vrot.lane.b32.xlu0 %v5249, 88
        %v6620 = vpop.permute.xlu0 %6619
        %6621 = vrot.lane.b32.xlu0 %v5252, 88
        %v6622 = vpop.permute.xlu0 %6621
        %6623 = vrot.lane.b32.xlu0 %v5257, 88
        %v6624 = vpop.permute.xlu0 %6623
        %6625 = vrot.lane.b32.xlu0 %v5260, 88
        %v6626 = vpop.permute.xlu0 %6625
        %6627 = vrot.lane.b32.xlu0 %v5265, 88
        %v6628 = vpop.permute.xlu0 %6627
        %6629 = vrot.lane.b32.xlu0 %v5268, 88
        %v6630 = vpop.permute.xlu0 %6629
        %6631 = vrot.lane.b32.xlu0 %v5273, 88
        %v6632 = vpop.permute.xlu0 %6631
        %6633 = vrot.lane.b32.xlu0 %v5276, 88
        %v6634 = vpop.permute.xlu0 %6633
        %6635 = vrot.lane.b32.xlu0 %v5281, 88
        %v6636 = vpop.permute.xlu0 %6635
        %6637 = vrot.lane.b32.xlu0 %v5284, 88
        %v6638 = vpop.permute.xlu0 %6637
        %6639 = vrot.lane.b32.xlu0 %v5289, 88
        %v6640 = vpop.permute.xlu0 %6639
        %6641 = vrot.lane.b32.xlu0 %v5292, 88
        %v6642 = vpop.permute.xlu0 %6641
        %6643 = vrot.lane.b32.xlu0 %v5297, 88
        %v6644 = vpop.permute.xlu0 %6643
        %6645 = vrot.lane.b32.xlu0 %v5300, 88
        %v6646 = vpop.permute.xlu0 %6645
        %6647 = vrot.lane.b32.xlu0 %v5305, 88
        %v6648 = vpop.permute.xlu0 %6647
        %6649 = vrot.lane.b32.xlu0 %v5308, 88
        %v6650 = vpop.permute.xlu0 %6649
        %6651 = vrot.lane.b32.xlu0 %v5313, 88
        %v6652 = vpop.permute.xlu0 %6651
        %6653 = vrot.lane.b32.xlu0 %v5316, 88
        %v6654 = vpop.permute.xlu0 %6653
        %6655 = vrot.lane.b32.xlu0 %v5321, 88
        %v6656 = vpop.permute.xlu0 %6655
        %6657 = vrot.lane.b32.xlu0 %v5324, 88
        %v6658 = vpop.permute.xlu0 %6657
        %6659 = vrot.lane.b32.xlu0 %v5329, 88
        %v6660 = vpop.permute.xlu0 %6659
        %6661 = vrot.lane.b32.xlu0 %v5332, 88
        %v6662 = vpop.permute.xlu0 %6661
        %6663 = vrot.lane.b32.xlu0 %v5337, 88
        %v6664 = vpop.permute.xlu0 %6663
        %6665 = vrot.lane.b32.xlu0 %v5340, 88
        %v6666 = vpop.permute.xlu0 %6665
        %6667 = vrot.lane.b32.xlu0 %v5345, 88
        %v6668 = vpop.permute.xlu0 %6667
        %6669 = vrot.lane.b32.xlu0 %v5348, 88
        %v6670 = vpop.permute.xlu0 %6669
        %6711 = vrot.lane.b32.xlu0 %v5193, 96
        %v6712 = vpop.permute.xlu0 %6711
        %6713 = vrot.lane.b32.xlu0 %v5196, 96
        %v6714 = vpop.permute.xlu0 %6713
        %6715 = vrot.lane.b32.xlu0 %v5201, 96
        %v6716 = vpop.permute.xlu0 %6715
        %6717 = vrot.lane.b32.xlu0 %v5204, 96
        %v6718 = vpop.permute.xlu0 %6717
        %6719 = vrot.lane.b32.xlu0 %v5209, 96
        %v6720 = vpop.permute.xlu0 %6719
        %6721 = vrot.lane.b32.xlu0 %v5212, 96
        %v6722 = vpop.permute.xlu0 %6721
        %6723 = vrot.lane.b32.xlu0 %v5217, 96
        %v6724 = vpop.permute.xlu0 %6723
        %6725 = vrot.lane.b32.xlu0 %v5220, 96
        %v6726 = vpop.permute.xlu0 %6725
        %6727 = vrot.lane.b32.xlu0 %v5225, 96
        %v6728 = vpop.permute.xlu0 %6727
        %6729 = vrot.lane.b32.xlu0 %v5228, 96
        %v6730 = vpop.permute.xlu0 %6729
        %6731 = vrot.lane.b32.xlu0 %v5233, 96
        %v6732 = vpop.permute.xlu0 %6731
        %6733 = vrot.lane.b32.xlu0 %v5236, 96
        %v6734 = vpop.permute.xlu0 %6733
        %6735 = vrot.lane.b32.xlu0 %v5241, 96
        %v6736 = vpop.permute.xlu0 %6735
        %6737 = vrot.lane.b32.xlu0 %v5244, 96
        %v6738 = vpop.permute.xlu0 %6737
        %6739 = vrot.lane.b32.xlu0 %v5249, 96
        %v6740 = vpop.permute.xlu0 %6739
        %6741 = vrot.lane.b32.xlu0 %v5252, 96
        %v6742 = vpop.permute.xlu0 %6741
        %6743 = vrot.lane.b32.xlu0 %v5257, 96
        %v6744 = vpop.permute.xlu0 %6743
        %6745 = vrot.lane.b32.xlu0 %v5260, 96
        %v6746 = vpop.permute.xlu0 %6745
        %6747 = vrot.lane.b32.xlu0 %v5265, 96
        %v6748 = vpop.permute.xlu0 %6747
        %6749 = vrot.lane.b32.xlu0 %v5268, 96
        %v6750 = vpop.permute.xlu0 %6749
        %6751 = vrot.lane.b32.xlu0 %v5273, 96
        %v6752 = vpop.permute.xlu0 %6751
        %6753 = vrot.lane.b32.xlu0 %v5276, 96
        %v6754 = vpop.permute.xlu0 %6753
        %6755 = vrot.lane.b32.xlu0 %v5281, 96
        %v6756 = vpop.permute.xlu0 %6755
        %6757 = vrot.lane.b32.xlu0 %v5284, 96
        %v6758 = vpop.permute.xlu0 %6757
        %6759 = vrot.lane.b32.xlu0 %v5289, 96
        %v6760 = vpop.permute.xlu0 %6759
        %6761 = vrot.lane.b32.xlu0 %v5292, 96
        %v6762 = vpop.permute.xlu0 %6761
        %6763 = vrot.lane.b32.xlu0 %v5297, 96
        %v6764 = vpop.permute.xlu0 %6763
        %6765 = vrot.lane.b32.xlu0 %v5300, 96
        %v6766 = vpop.permute.xlu0 %6765
        %6767 = vrot.lane.b32.xlu0 %v5305, 96
        %v6768 = vpop.permute.xlu0 %6767
        %6769 = vrot.lane.b32.xlu0 %v5308, 96
        %v6770 = vpop.permute.xlu0 %6769
        %6771 = vrot.lane.b32.xlu0 %v5313, 96
        %v6772 = vpop.permute.xlu0 %6771
        %6773 = vrot.lane.b32.xlu0 %v5316, 96
        %v6774 = vpop.permute.xlu0 %6773
        %6775 = vrot.lane.b32.xlu0 %v5321, 96
        %v6776 = vpop.permute.xlu0 %6775
        %6777 = vrot.lane.b32.xlu0 %v5324, 96
        %v6778 = vpop.permute.xlu0 %6777
        %6779 = vrot.lane.b32.xlu0 %v5329, 96
        %v6780 = vpop.permute.xlu0 %6779
        %6781 = vrot.lane.b32.xlu0 %v5332, 96
        %v6782 = vpop.permute.xlu0 %6781
        %6783 = vrot.lane.b32.xlu0 %v5337, 96
        %v6784 = vpop.permute.xlu0 %6783
        %6785 = vrot.lane.b32.xlu0 %v5340, 96
        %v6786 = vpop.permute.xlu0 %6785
        %6787 = vrot.lane.b32.xlu0 %v5345, 96
        %v6788 = vpop.permute.xlu0 %6787
        %6789 = vrot.lane.b32.xlu0 %v5348, 96
        %v6790 = vpop.permute.xlu0 %6789
        %6831 = vrot.lane.b32.xlu0 %v5193, 104
        %v6832 = vpop.permute.xlu0 %6831
        %6833 = vrot.lane.b32.xlu0 %v5196, 104
        %v6834 = vpop.permute.xlu0 %6833
        %6835 = vrot.lane.b32.xlu0 %v5201, 104
        %v6836 = vpop.permute.xlu0 %6835
        %6837 = vrot.lane.b32.xlu0 %v5204, 104
        %v6838 = vpop.permute.xlu0 %6837
        %6839 = vrot.lane.b32.xlu0 %v5209, 104
        %v6840 = vpop.permute.xlu0 %6839
        %6841 = vrot.lane.b32.xlu0 %v5212, 104
        %v6842 = vpop.permute.xlu0 %6841
        %6843 = vrot.lane.b32.xlu0 %v5217, 104
        %v6844 = vpop.permute.xlu0 %6843
        %6845 = vrot.lane.b32.xlu0 %v5220, 104
        %v6846 = vpop.permute.xlu0 %6845
        %6847 = vrot.lane.b32.xlu0 %v5225, 104
        %v6848 = vpop.permute.xlu0 %6847
        %6849 = vrot.lane.b32.xlu0 %v5228, 104
        %v6850 = vpop.permute.xlu0 %6849
        %6851 = vrot.lane.b32.xlu0 %v5233, 104
        %v6852 = vpop.permute.xlu0 %6851
        %6853 = vrot.lane.b32.xlu0 %v5236, 104
        %v6854 = vpop.permute.xlu0 %6853
        %6855 = vrot.lane.b32.xlu0 %v5241, 104
        %v6856 = vpop.permute.xlu0 %6855
        %6857 = vrot.lane.b32.xlu0 %v5244, 104
        %v6858 = vpop.permute.xlu0 %6857
        %6859 = vrot.lane.b32.xlu0 %v5249, 104
        %v6860 = vpop.permute.xlu0 %6859
        %6861 = vrot.lane.b32.xlu0 %v5252, 104
        %v6862 = vpop.permute.xlu0 %6861
        %6863 = vrot.lane.b32.xlu0 %v5257, 104
        %v6864 = vpop.permute.xlu0 %6863
        %6865 = vrot.lane.b32.xlu0 %v5260, 104
        %v6866 = vpop.permute.xlu0 %6865
        %6867 = vrot.lane.b32.xlu0 %v5265, 104
        %v6868 = vpop.permute.xlu0 %6867
        %6869 = vrot.lane.b32.xlu0 %v5268, 104
        %v6870 = vpop.permute.xlu0 %6869
        %6871 = vrot.lane.b32.xlu0 %v5273, 104
        %v6872 = vpop.permute.xlu0 %6871
        %6873 = vrot.lane.b32.xlu0 %v5276, 104
        %v6874 = vpop.permute.xlu0 %6873
        %6875 = vrot.lane.b32.xlu0 %v5281, 104
        %v6876 = vpop.permute.xlu0 %6875
        %6877 = vrot.lane.b32.xlu0 %v5284, 104
        %v6878 = vpop.permute.xlu0 %6877
        %6879 = vrot.lane.b32.xlu0 %v5289, 104
        %v6880 = vpop.permute.xlu0 %6879
        %6881 = vrot.lane.b32.xlu0 %v5292, 104
        %v6882 = vpop.permute.xlu0 %6881
        %6883 = vrot.lane.b32.xlu0 %v5297, 104
        %v6884 = vpop.permute.xlu0 %6883
        %6885 = vrot.lane.b32.xlu0 %v5300, 104
        %v6886 = vpop.permute.xlu0 %6885
        %6887 = vrot.lane.b32.xlu0 %v5305, 104
        %v6888 = vpop.permute.xlu0 %6887
        %6889 = vrot.lane.b32.xlu0 %v5308, 104
        %v6890 = vpop.permute.xlu0 %6889
        %6891 = vrot.lane.b32.xlu0 %v5313, 104
        %v6892 = vpop.permute.xlu0 %6891
        %6893 = vrot.lane.b32.xlu0 %v5316, 104
        %v6894 = vpop.permute.xlu0 %6893
        %6895 = vrot.lane.b32.xlu0 %v5321, 104
        %v6896 = vpop.permute.xlu0 %6895
        %6897 = vrot.lane.b32.xlu0 %v5324, 104
        %v6898 = vpop.permute.xlu0 %6897
        %6899 = vrot.lane.b32.xlu0 %v5329, 104
        %v6900 = vpop.permute.xlu0 %6899
        %6901 = vrot.lane.b32.xlu0 %v5332, 104
        %v6902 = vpop.permute.xlu0 %6901
        %6903 = vrot.lane.b32.xlu0 %v5337, 104
        %v6904 = vpop.permute.xlu0 %6903
        %6905 = vrot.lane.b32.xlu0 %v5340, 104
        %v6906 = vpop.permute.xlu0 %6905
        %6907 = vrot.lane.b32.xlu0 %v5345, 104
        %v6908 = vpop.permute.xlu0 %6907
        %6909 = vrot.lane.b32.xlu0 %v5348, 104
        %v6910 = vpop.permute.xlu0 %6909
        %6951 = vrot.lane.b32.xlu0 %v5193, 112
        %v6952 = vpop.permute.xlu0 %6951
        %6953 = vrot.lane.b32.xlu0 %v5196, 112
        %v6954 = vpop.permute.xlu0 %6953
        %6955 = vrot.lane.b32.xlu0 %v5201, 112
        %v6956 = vpop.permute.xlu0 %6955
        %6957 = vrot.lane.b32.xlu0 %v5204, 112
        %v6958 = vpop.permute.xlu0 %6957
        %6959 = vrot.lane.b32.xlu0 %v5209, 112
        %v6960 = vpop.permute.xlu0 %6959
        %6961 = vrot.lane.b32.xlu0 %v5212, 112
        %v6962 = vpop.permute.xlu0 %6961
        %6963 = vrot.lane.b32.xlu0 %v5217, 112
        %v6964 = vpop.permute.xlu0 %6963
        %6965 = vrot.lane.b32.xlu0 %v5220, 112
        %v6966 = vpop.permute.xlu0 %6965
        %6967 = vrot.lane.b32.xlu0 %v5225, 112
        %v6968 = vpop.permute.xlu0 %6967
        %6969 = vrot.lane.b32.xlu0 %v5228, 112
        %v6970 = vpop.permute.xlu0 %6969
        %6971 = vrot.lane.b32.xlu0 %v5233, 112
        %v6972 = vpop.permute.xlu0 %6971
        %6973 = vrot.lane.b32.xlu0 %v5236, 112
        %v6974 = vpop.permute.xlu0 %6973
        %6975 = vrot.lane.b32.xlu0 %v5241, 112
        %v6976 = vpop.permute.xlu0 %6975
        %6977 = vrot.lane.b32.xlu0 %v5244, 112
        %v6978 = vpop.permute.xlu0 %6977
        %6979 = vrot.lane.b32.xlu0 %v5249, 112
        %v6980 = vpop.permute.xlu0 %6979
        %6981 = vrot.lane.b32.xlu0 %v5252, 112
        %v6982 = vpop.permute.xlu0 %6981
        %6983 = vrot.lane.b32.xlu0 %v5257, 112
        %v6984 = vpop.permute.xlu0 %6983
        %6985 = vrot.lane.b32.xlu0 %v5260, 112
        %v6986 = vpop.permute.xlu0 %6985
        %6987 = vrot.lane.b32.xlu0 %v5265, 112
        %v6988 = vpop.permute.xlu0 %6987
        %6989 = vrot.lane.b32.xlu0 %v5268, 112
        %v6990 = vpop.permute.xlu0 %6989
        %6991 = vrot.lane.b32.xlu0 %v5273, 112
        %v6992 = vpop.permute.xlu0 %6991
        %6993 = vrot.lane.b32.xlu0 %v5276, 112
        %v6994 = vpop.permute.xlu0 %6993
        %6995 = vrot.lane.b32.xlu0 %v5281, 112
        %v6996 = vpop.permute.xlu0 %6995
        %6997 = vrot.lane.b32.xlu0 %v5284, 112
        %v6998 = vpop.permute.xlu0 %6997
        %6999 = vrot.lane.b32.xlu0 %v5289, 112
        %v7000 = vpop.permute.xlu0 %6999
        %7001 = vrot.lane.b32.xlu0 %v5292, 112
        %v7002 = vpop.permute.xlu0 %7001
        %7003 = vrot.lane.b32.xlu0 %v5297, 112
        %v7004 = vpop.permute.xlu0 %7003
        %7005 = vrot.lane.b32.xlu0 %v5300, 112
        %v7006 = vpop.permute.xlu0 %7005
        %7007 = vrot.lane.b32.xlu0 %v5305, 112
        %v7008 = vpop.permute.xlu0 %7007
        %7009 = vrot.lane.b32.xlu0 %v5308, 112
        %v7010 = vpop.permute.xlu0 %7009
        %7011 = vrot.lane.b32.xlu0 %v5313, 112
        %v7012 = vpop.permute.xlu0 %7011
        %7013 = vrot.lane.b32.xlu0 %v5316, 112
        %v7014 = vpop.permute.xlu0 %7013
        %7015 = vrot.lane.b32.xlu0 %v5321, 112
        %v7016 = vpop.permute.xlu0 %7015
        %7017 = vrot.lane.b32.xlu0 %v5324, 112
        %v7018 = vpop.permute.xlu0 %7017
        %7019 = vrot.lane.b32.xlu0 %v5329, 112
        %v7020 = vpop.permute.xlu0 %7019
        %7021 = vrot.lane.b32.xlu0 %v5332, 112
        %v7022 = vpop.permute.xlu0 %7021
        %7023 = vrot.lane.b32.xlu0 %v5337, 112
        %v7024 = vpop.permute.xlu0 %7023
        %7025 = vrot.lane.b32.xlu0 %v5340, 112
        %v7026 = vpop.permute.xlu0 %7025
        %7027 = vrot.lane.b32.xlu0 %v5345, 112
        %v7028 = vpop.permute.xlu0 %7027
        %7029 = vrot.lane.b32.xlu0 %v5348, 112
        %v7030 = vpop.permute.xlu0 %7029
        %7071 = vrot.lane.b32.xlu0 %v5193, 120
        %v7072 = vpop.permute.xlu0 %7071
        %7073 = vrot.lane.b32.xlu0 %v5196, 120
        %v7074 = vpop.permute.xlu0 %7073
        %7075 = vrot.lane.b32.xlu0 %v5201, 120
        %v7076 = vpop.permute.xlu0 %7075
        %7077 = vrot.lane.b32.xlu0 %v5204, 120
        %v7078 = vpop.permute.xlu0 %7077
        %7079 = vrot.lane.b32.xlu0 %v5209, 120
        %v7080 = vpop.permute.xlu0 %7079
        %7081 = vrot.lane.b32.xlu0 %v5212, 120
        %v7082 = vpop.permute.xlu0 %7081
        %7083 = vrot.lane.b32.xlu0 %v5217, 120
        %v7084 = vpop.permute.xlu0 %7083
        %7085 = vrot.lane.b32.xlu0 %v5220, 120
        %v7086 = vpop.permute.xlu0 %7085
        %7087 = vrot.lane.b32.xlu0 %v5225, 120
        %v7088 = vpop.permute.xlu0 %7087
        %7089 = vrot.lane.b32.xlu0 %v5228, 120
        %v7090 = vpop.permute.xlu0 %7089
        %7091 = vrot.lane.b32.xlu0 %v5233, 120
        %v7092 = vpop.permute.xlu0 %7091
        %7093 = vrot.lane.b32.xlu0 %v5236, 120
        %v7094 = vpop.permute.xlu0 %7093
        %7095 = vrot.lane.b32.xlu0 %v5241, 120
        %v7096 = vpop.permute.xlu0 %7095
        %7097 = vrot.lane.b32.xlu0 %v5244, 120
        %v7098 = vpop.permute.xlu0 %7097
        %7099 = vrot.lane.b32.xlu0 %v5249, 120
        %v7100 = vpop.permute.xlu0 %7099
        %7101 = vrot.lane.b32.xlu0 %v5252, 120
        %v7102 = vpop.permute.xlu0 %7101
        %7103 = vrot.lane.b32.xlu0 %v5257, 120
        %v7104 = vpop.permute.xlu0 %7103
        %7105 = vrot.lane.b32.xlu0 %v5260, 120
        %v7106 = vpop.permute.xlu0 %7105
        %7107 = vrot.lane.b32.xlu0 %v5265, 120
        %v7108 = vpop.permute.xlu0 %7107
        %7109 = vrot.lane.b32.xlu0 %v5268, 120
        %v7110 = vpop.permute.xlu0 %7109
        %7111 = vrot.lane.b32.xlu0 %v5273, 120
        %v7112 = vpop.permute.xlu0 %7111
        %7113 = vrot.lane.b32.xlu0 %v5276, 120
        %v7114 = vpop.permute.xlu0 %7113
        %7115 = vrot.lane.b32.xlu0 %v5281, 120
        %v7116 = vpop.permute.xlu0 %7115
        %7117 = vrot.lane.b32.xlu0 %v5284, 120
        %v7118 = vpop.permute.xlu0 %7117
        %7119 = vrot.lane.b32.xlu0 %v5289, 120
        %v7120 = vpop.permute.xlu0 %7119
        %7121 = vrot.lane.b32.xlu0 %v5292, 120
        %v7122 = vpop.permute.xlu0 %7121
        %7123 = vrot.lane.b32.xlu0 %v5297, 120
        %v7124 = vpop.permute.xlu0 %7123
        %7125 = vrot.lane.b32.xlu0 %v5300, 120
        %v7126 = vpop.permute.xlu0 %7125
        %7127 = vrot.lane.b32.xlu0 %v5305, 120
        %v7128 = vpop.permute.xlu0 %7127
        %7129 = vrot.lane.b32.xlu0 %v5308, 120
        %v7130 = vpop.permute.xlu0 %7129
        %7131 = vrot.lane.b32.xlu0 %v5313, 120
        %v7132 = vpop.permute.xlu0 %7131
        %7133 = vrot.lane.b32.xlu0 %v5316, 120
        %v7134 = vpop.permute.xlu0 %7133
        %7135 = vrot.lane.b32.xlu0 %v5321, 120
        %v7136 = vpop.permute.xlu0 %7135
        %7137 = vrot.lane.b32.xlu0 %v5324, 120
        %v7138 = vpop.permute.xlu0 %7137
        %7139 = vrot.lane.b32.xlu0 %v5329, 120
        %v7140 = vpop.permute.xlu0 %7139
        %7141 = vrot.lane.b32.xlu0 %v5332, 120
        %v7142 = vpop.permute.xlu0 %7141
        %7143 = vrot.lane.b32.xlu0 %v5337, 120
        %v7144 = vpop.permute.xlu0 %7143
        %7145 = vrot.lane.b32.xlu0 %v5340, 120
        %v7146 = vpop.permute.xlu0 %7145
        %7147 = vrot.lane.b32.xlu0 %v5345, 120
        %v7148 = vpop.permute.xlu0 %7147
        %7149 = vrot.lane.b32.xlu0 %v5348, 120
        %v7150 = vpop.permute.xlu0 %7149
        %v7191 = vsel %vm4762, %v5193, %v5392
        %v7192 = vsel %vm4762, %v5196, %v5394
        %v7193 = vsel %vm4762, %v5201, %v5396
        %v7194 = vsel %vm4762, %v5204, %v5398
        %v7195 = vsel %vm4762, %v5209, %v5400
        %v7196 = vsel %vm4762, %v5212, %v5402
        %v7197 = vsel %vm4762, %v5217, %v5404
        %v7198 = vsel %vm4762, %v5220, %v5406
        %v7199 = vsel %vm4762, %v5225, %v5408
        %v7200 = vsel %vm4762, %v5228, %v5410
        %v7201 = vsel %vm4762, %v5233, %v5412
        %v7202 = vsel %vm4762, %v5236, %v5414
        %v7203 = vsel %vm4762, %v5241, %v5416
        %v7204 = vsel %vm4762, %v5244, %v5418
        %v7205 = vsel %vm4762, %v5249, %v5420
        %v7206 = vsel %vm4762, %v5252, %v5422
        %v7207 = vsel %vm4762, %v5257, %v5424
        %v7208 = vsel %vm4762, %v5260, %v5426
        %v7209 = vsel %vm4762, %v5265, %v5428
        %v7210 = vsel %vm4762, %v5268, %v5430
        %v7211 = vsel %vm4762, %v5273, %v5432
        %v7212 = vsel %vm4762, %v5276, %v5434
        %v7213 = vsel %vm4762, %v5281, %v5436
        %v7214 = vsel %vm4762, %v5284, %v5438
        %v7215 = vsel %vm4762, %v5289, %v5440
        %v7216 = vsel %vm4762, %v5292, %v5442
        %v7217 = vsel %vm4762, %v5297, %v5444
        %v7218 = vsel %vm4762, %v5300, %v5446
        %v7219 = vsel %vm4762, %v5305, %v5448
        %v7220 = vsel %vm4762, %v5308, %v5450
        %v7221 = vsel %vm4762, %v5313, %v5452
        %v7222 = vsel %vm4762, %v5316, %v5454
        %v7223 = vsel %vm4762, %v5321, %v5456
        %v7224 = vsel %vm4762, %v5324, %v5458
        %v7225 = vsel %vm4762, %v5329, %v5460
        %v7226 = vsel %vm4762, %v5332, %v5462
        %v7227 = vsel %vm4762, %v5337, %v5464
        %v7228 = vsel %vm4762, %v5340, %v5466
        %v7229 = vsel %vm4762, %v5345, %v5468
        %v7230 = vsel %vm4762, %v5348, %v5470
        %v7231 = vsel %vm4843, %v7191, %v5512
        %v7232 = vsel %vm4843, %v7192, %v5514
        %v7233 = vsel %vm4843, %v7193, %v5516
        %v7234 = vsel %vm4843, %v7194, %v5518
        %v7235 = vsel %vm4843, %v7195, %v5520
        %v7236 = vsel %vm4843, %v7196, %v5522
        %v7237 = vsel %vm4843, %v7197, %v5524
        %v7238 = vsel %vm4843, %v7198, %v5526
        %v7239 = vsel %vm4843, %v7199, %v5528
        %v7240 = vsel %vm4843, %v7200, %v5530
        %v7241 = vsel %vm4843, %v7201, %v5532
        %v7242 = vsel %vm4843, %v7202, %v5534
        %v7243 = vsel %vm4843, %v7203, %v5536
        %v7244 = vsel %vm4843, %v7204, %v5538
        %v7245 = vsel %vm4843, %v7205, %v5540
        %v7246 = vsel %vm4843, %v7206, %v5542
        %v7247 = vsel %vm4843, %v7207, %v5544
        %v7248 = vsel %vm4843, %v7208, %v5546
        %v7249 = vsel %vm4843, %v7209, %v5548
        %v7250 = vsel %vm4843, %v7210, %v5550
        %v7251 = vsel %vm4843, %v7211, %v5552
        %v7252 = vsel %vm4843, %v7212, %v5554
        %v7253 = vsel %vm4843, %v7213, %v5556
        %v7254 = vsel %vm4843, %v7214, %v5558
        %v7255 = vsel %vm4843, %v7215, %v5560
        %v7256 = vsel %vm4843, %v7216, %v5562
        %v7257 = vsel %vm4843, %v7217, %v5564
        %v7258 = vsel %vm4843, %v7218, %v5566
        %v7259 = vsel %vm4843, %v7219, %v5568
        %v7260 = vsel %vm4843, %v7220, %v5570
        %v7261 = vsel %vm4843, %v7221, %v5572
        %v7262 = vsel %vm4843, %v7222, %v5574
        %v7263 = vsel %vm4843, %v7223, %v5576
        %v7264 = vsel %vm4843, %v7224, %v5578
        %v7265 = vsel %vm4843, %v7225, %v5580
        %v7266 = vsel %vm4843, %v7226, %v5582
        %v7267 = vsel %vm4843, %v7227, %v5584
        %v7268 = vsel %vm4843, %v7228, %v5586
        %v7269 = vsel %vm4843, %v7229, %v5588
        %v7270 = vsel %vm4843, %v7230, %v5590
        %v7271 = vsel %vm2571, %v7231, %v5632
        %v7272 = vsel %vm2571, %v7232, %v5634
        %v7273 = vsel %vm2571, %v7233, %v5636
        %v7274 = vsel %vm2571, %v7234, %v5638
        %v7275 = vsel %vm2571, %v7235, %v5640
        %v7276 = vsel %vm2571, %v7236, %v5642
        %v7277 = vsel %vm2571, %v7237, %v5644
        %v7278 = vsel %vm2571, %v7238, %v5646
        %v7279 = vsel %vm2571, %v7239, %v5648
        %v7280 = vsel %vm2571, %v7240, %v5650
        %v7281 = vsel %vm2571, %v7241, %v5652
        %v7282 = vsel %vm2571, %v7242, %v5654
        %v7283 = vsel %vm2571, %v7243, %v5656
        %v7284 = vsel %vm2571, %v7244, %v5658
        %v7285 = vsel %vm2571, %v7245, %v5660
        %v7286 = vsel %vm2571, %v7246, %v5662
        %v7287 = vsel %vm2571, %v7247, %v5664
        %v7288 = vsel %vm2571, %v7248, %v5666
        %v7289 = vsel %vm2571, %v7249, %v5668
        %v7290 = vsel %vm2571, %v7250, %v5670
        %v7291 = vsel %vm2571, %v7251, %v5672
        %v7292 = vsel %vm2571, %v7252, %v5674
        %v7293 = vsel %vm2571, %v7253, %v5676
        %v7294 = vsel %vm2571, %v7254, %v5678
        %v7295 = vsel %vm2571, %v7255, %v5680
        %v7296 = vsel %vm2571, %v7256, %v5682
        %v7297 = vsel %vm2571, %v7257, %v5684
        %v7298 = vsel %vm2571, %v7258, %v5686
        %v7299 = vsel %vm2571, %v7259, %v5688
        %v7300 = vsel %vm2571, %v7260, %v5690
        %v7301 = vsel %vm2571, %v7261, %v5692
        %v7302 = vsel %vm2571, %v7262, %v5694
        %v7303 = vsel %vm2571, %v7263, %v5696
        %v7304 = vsel %vm2571, %v7264, %v5698
        %v7305 = vsel %vm2571, %v7265, %v5700
        %v7306 = vsel %vm2571, %v7266, %v5702
        %v7307 = vsel %vm2571, %v7267, %v5704
        %v7308 = vsel %vm2571, %v7268, %v5706
        %v7309 = vsel %vm2571, %v7269, %v5708
        %v7310 = vsel %vm2571, %v7270, %v5710
        %v7311 = vsel %vm5006, %v7271, %v5752
        %v7312 = vsel %vm5006, %v7272, %v5754
        %v7313 = vsel %vm5006, %v7273, %v5756
        %v7314 = vsel %vm5006, %v7274, %v5758
        %v7315 = vsel %vm5006, %v7275, %v5760
        %v7316 = vsel %vm5006, %v7276, %v5762
        %v7317 = vsel %vm5006, %v7277, %v5764
        %v7318 = vsel %vm5006, %v7278, %v5766
        %v7319 = vsel %vm5006, %v7279, %v5768
        %v7320 = vsel %vm5006, %v7280, %v5770
        %v7321 = vsel %vm5006, %v7281, %v5772
        %v7322 = vsel %vm5006, %v7282, %v5774
        %v7323 = vsel %vm5006, %v7283, %v5776
        %v7324 = vsel %vm5006, %v7284, %v5778
        %v7325 = vsel %vm5006, %v7285, %v5780
        %v7326 = vsel %vm5006, %v7286, %v5782
        %v7327 = vsel %vm5006, %v7287, %v5784
        %v7328 = vsel %vm5006, %v7288, %v5786
        %v7329 = vsel %vm5006, %v7289, %v5788
        %v7330 = vsel %vm5006, %v7290, %v5790
        %v7331 = vsel %vm5006, %v7291, %v5792
        %v7332 = vsel %vm5006, %v7292, %v5794
        %v7333 = vsel %vm5006, %v7293, %v5796
        %v7334 = vsel %vm5006, %v7294, %v5798
        %v7335 = vsel %vm5006, %v7295, %v5800
        %v7336 = vsel %vm5006, %v7296, %v5802
        %v7337 = vsel %vm5006, %v7297, %v5804
        %v7338 = vsel %vm5006, %v7298, %v5806
        %v7339 = vsel %vm5006, %v7299, %v5808
        %v7340 = vsel %vm5006, %v7300, %v5810
        %v7341 = vsel %vm5006, %v7301, %v5812
        %v7342 = vsel %vm5006, %v7302, %v5814
        %v7343 = vsel %vm5006, %v7303, %v5816
        %v7344 = vsel %vm5006, %v7304, %v5818
        %v7345 = vsel %vm5006, %v7305, %v5820
        %v7346 = vsel %vm5006, %v7306, %v5822
        %v7347 = vsel %vm5006, %v7307, %v5824
        %v7348 = vsel %vm5006, %v7308, %v5826
        %v7349 = vsel %vm5006, %v7309, %v5828
        %v7350 = vsel %vm5006, %v7310, %v5830
        %vm7351 = vcmask 326656
        %v7352 = vsel %vm7351, %v7311, %v5872
        %v7353 = vsel %vm7351, %v7312, %v5874
        %v7354 = vsel %vm7351, %v7313, %v5876
        %v7355 = vsel %vm7351, %v7314, %v5878
        %v7356 = vsel %vm7351, %v7315, %v5880
        %v7357 = vsel %vm7351, %v7316, %v5882
        %v7358 = vsel %vm7351, %v7317, %v5884
        %v7359 = vsel %vm7351, %v7318, %v5886
        %v7360 = vsel %vm7351, %v7319, %v5888
        %v7361 = vsel %vm7351, %v7320, %v5890
        %v7362 = vsel %vm7351, %v7321, %v5892
        %v7363 = vsel %vm7351, %v7322, %v5894
        %v7364 = vsel %vm7351, %v7323, %v5896
        %v7365 = vsel %vm7351, %v7324, %v5898
        %v7366 = vsel %vm7351, %v7325, %v5900
        %v7367 = vsel %vm7351, %v7326, %v5902
        %v7368 = vsel %vm7351, %v7327, %v5904
        %v7369 = vsel %vm7351, %v7328, %v5906
        %v7370 = vsel %vm7351, %v7329, %v5908
        %v7371 = vsel %vm7351, %v7330, %v5910
        %v7372 = vsel %vm7351, %v7331, %v5912
        %v7373 = vsel %vm7351, %v7332, %v5914
        %v7374 = vsel %vm7351, %v7333, %v5916
        %v7375 = vsel %vm7351, %v7334, %v5918
        %v7376 = vsel %vm7351, %v7335, %v5920
        %v7377 = vsel %vm7351, %v7336, %v5922
        %v7378 = vsel %vm7351, %v7337, %v5924
        %v7379 = vsel %vm7351, %v7338, %v5926
        %v7380 = vsel %vm7351, %v7339, %v5928
        %v7381 = vsel %vm7351, %v7340, %v5930
        %v7382 = vsel %vm7351, %v7341, %v5932
        %v7383 = vsel %vm7351, %v7342, %v5934
        %v7384 = vsel %vm7351, %v7343, %v5936
        %v7385 = vsel %vm7351, %v7344, %v5938
        %v7386 = vsel %vm7351, %v7345, %v5940
        %v7387 = vsel %vm7351, %v7346, %v5942
        %v7388 = vsel %vm7351, %v7347, %v5944
        %v7389 = vsel %vm7351, %v7348, %v5946
        %v7390 = vsel %vm7351, %v7349, %v5948
        %v7391 = vsel %vm7351, %v7350, %v5950
        %vm7392 = vcmask 392192
        %v7393 = vsel %vm7392, %v7352, %v5992
        %v7394 = vsel %vm7392, %v7353, %v5994
        %v7395 = vsel %vm7392, %v7354, %v5996
        %v7396 = vsel %vm7392, %v7355, %v5998
        %v7397 = vsel %vm7392, %v7356, %v6000
        %v7398 = vsel %vm7392, %v7357, %v6002
        %v7399 = vsel %vm7392, %v7358, %v6004
        %v7400 = vsel %vm7392, %v7359, %v6006
        %v7401 = vsel %vm7392, %v7360, %v6008
        %v7402 = vsel %vm7392, %v7361, %v6010
        %v7403 = vsel %vm7392, %v7362, %v6012
        %v7404 = vsel %vm7392, %v7363, %v6014
        %v7405 = vsel %vm7392, %v7364, %v6016
        %v7406 = vsel %vm7392, %v7365, %v6018
        %v7407 = vsel %vm7392, %v7366, %v6020
        %v7408 = vsel %vm7392, %v7367, %v6022
        %v7409 = vsel %vm7392, %v7368, %v6024
        %v7410 = vsel %vm7392, %v7369, %v6026
        %v7411 = vsel %vm7392, %v7370, %v6028
        %v7412 = vsel %vm7392, %v7371, %v6030
        %v7413 = vsel %vm7392, %v7372, %v6032
        %v7414 = vsel %vm7392, %v7373, %v6034
        %v7415 = vsel %vm7392, %v7374, %v6036
        %v7416 = vsel %vm7392, %v7375, %v6038
        %v7417 = vsel %vm7392, %v7376, %v6040
        %v7418 = vsel %vm7392, %v7377, %v6042
        %v7419 = vsel %vm7392, %v7378, %v6044
        %v7420 = vsel %vm7392, %v7379, %v6046
        %v7421 = vsel %vm7392, %v7380, %v6048
        %v7422 = vsel %vm7392, %v7381, %v6050
        %v7423 = vsel %vm7392, %v7382, %v6052
        %v7424 = vsel %vm7392, %v7383, %v6054
        %v7425 = vsel %vm7392, %v7384, %v6056
        %v7426 = vsel %vm7392, %v7385, %v6058
        %v7427 = vsel %vm7392, %v7386, %v6060
        %v7428 = vsel %vm7392, %v7387, %v6062
        %v7429 = vsel %vm7392, %v7388, %v6064
        %v7430 = vsel %vm7392, %v7389, %v6066
        %v7431 = vsel %vm7392, %v7390, %v6068
        %v7432 = vsel %vm7392, %v7391, %v6070
        %vm7433 = vcmask 457728
        %v7434 = vsel %vm7433, %v7393, %v6112
        %v7435 = vsel %vm7433, %v7394, %v6114
        %v7436 = vsel %vm7433, %v7395, %v6116
        %v7437 = vsel %vm7433, %v7396, %v6118
        %v7438 = vsel %vm7433, %v7397, %v6120
        %v7439 = vsel %vm7433, %v7398, %v6122
        %v7440 = vsel %vm7433, %v7399, %v6124
        %v7441 = vsel %vm7433, %v7400, %v6126
        %v7442 = vsel %vm7433, %v7401, %v6128
        %v7443 = vsel %vm7433, %v7402, %v6130
        %v7444 = vsel %vm7433, %v7403, %v6132
        %v7445 = vsel %vm7433, %v7404, %v6134
        %v7446 = vsel %vm7433, %v7405, %v6136
        %v7447 = vsel %vm7433, %v7406, %v6138
        %v7448 = vsel %vm7433, %v7407, %v6140
        %v7449 = vsel %vm7433, %v7408, %v6142
        %v7450 = vsel %vm7433, %v7409, %v6144
        %v7451 = vsel %vm7433, %v7410, %v6146
        %v7452 = vsel %vm7433, %v7411, %v6148
        %v7453 = vsel %vm7433, %v7412, %v6150
        %v7454 = vsel %vm7433, %v7413, %v6152
        %v7455 = vsel %vm7433, %v7414, %v6154
        %v7456 = vsel %vm7433, %v7415, %v6156
        %v7457 = vsel %vm7433, %v7416, %v6158
        %v7458 = vsel %vm7433, %v7417, %v6160
        %v7459 = vsel %vm7433, %v7418, %v6162
        %v7460 = vsel %vm7433, %v7419, %v6164
        %v7461 = vsel %vm7433, %v7420, %v6166
        %v7462 = vsel %vm7433, %v7421, %v6168
        %v7463 = vsel %vm7433, %v7422, %v6170
        %v7464 = vsel %vm7433, %v7423, %v6172
        %v7465 = vsel %vm7433, %v7424, %v6174
        %v7466 = vsel %vm7433, %v7425, %v6176
        %v7467 = vsel %vm7433, %v7426, %v6178
        %v7468 = vsel %vm7433, %v7427, %v6180
        %v7469 = vsel %vm7433, %v7428, %v6182
        %v7470 = vsel %vm7433, %v7429, %v6184
        %v7471 = vsel %vm7433, %v7430, %v6186
        %v7472 = vsel %vm7433, %v7431, %v6188
        %v7473 = vsel %vm7433, %v7432, %v6190
        %vm7474 = vcmask 523264
        %v7475 = vsel %vm7474, %v7434, %v6232
        %v7476 = vsel %vm7474, %v7435, %v6234
        %v7477 = vsel %vm7474, %v7436, %v6236
        %v7478 = vsel %vm7474, %v7437, %v6238
        %v7479 = vsel %vm7474, %v7438, %v6240
        %v7480 = vsel %vm7474, %v7439, %v6242
        %v7481 = vsel %vm7474, %v7440, %v6244
        %v7482 = vsel %vm7474, %v7441, %v6246
        %v7483 = vsel %vm7474, %v7442, %v6248
        %v7484 = vsel %vm7474, %v7443, %v6250
        %v7485 = vsel %vm7474, %v7444, %v6252
        %v7486 = vsel %vm7474, %v7445, %v6254
        %v7487 = vsel %vm7474, %v7446, %v6256
        %v7488 = vsel %vm7474, %v7447, %v6258
        %v7489 = vsel %vm7474, %v7448, %v6260
        %v7490 = vsel %vm7474, %v7449, %v6262
        %v7491 = vsel %vm7474, %v7450, %v6264
        %v7492 = vsel %vm7474, %v7451, %v6266
        %v7493 = vsel %vm7474, %v7452, %v6268
        %v7494 = vsel %vm7474, %v7453, %v6270
        %v7495 = vsel %vm7474, %v7454, %v6272
        %v7496 = vsel %vm7474, %v7455, %v6274
        %v7497 = vsel %vm7474, %v7456, %v6276
        %v7498 = vsel %vm7474, %v7457, %v6278
        %v7499 = vsel %vm7474, %v7458, %v6280
        %v7500 = vsel %vm7474, %v7459, %v6282
        %v7501 = vsel %vm7474, %v7460, %v6284
        %v7502 = vsel %vm7474, %v7461, %v6286
        %v7503 = vsel %vm7474, %v7462, %v6288
        %v7504 = vsel %vm7474, %v7463, %v6290
        %v7505 = vsel %vm7474, %v7464, %v6292
        %v7506 = vsel %vm7474, %v7465, %v6294
        %v7507 = vsel %vm7474, %v7466, %v6296
        %v7508 = vsel %vm7474, %v7467, %v6298
        %v7509 = vsel %vm7474, %v7468, %v6300
        %v7510 = vsel %vm7474, %v7469, %v6302
        %v7511 = vsel %vm7474, %v7470, %v6304
        %v7512 = vsel %vm7474, %v7471, %v6306
        %v7513 = vsel %vm7474, %v7472, %v6308
        %v7514 = vsel %vm7474, %v7473, %v6310
        %vm7515 = vcmask 588800
        %v7516 = vsel %vm7515, %v7475, %v6352
        %v7517 = vsel %vm7515, %v7476, %v6354
        %v7518 = vsel %vm7515, %v7477, %v6356
        %v7519 = vsel %vm7515, %v7478, %v6358
        %v7520 = vsel %vm7515, %v7479, %v6360
        %v7521 = vsel %vm7515, %v7480, %v6362
        %v7522 = vsel %vm7515, %v7481, %v6364
        %v7523 = vsel %vm7515, %v7482, %v6366
        %v7524 = vsel %vm7515, %v7483, %v6368
        %v7525 = vsel %vm7515, %v7484, %v6370
        %v7526 = vsel %vm7515, %v7485, %v6372
        %v7527 = vsel %vm7515, %v7486, %v6374
        %v7528 = vsel %vm7515, %v7487, %v6376
        %v7529 = vsel %vm7515, %v7488, %v6378
        %v7530 = vsel %vm7515, %v7489, %v6380
        %v7531 = vsel %vm7515, %v7490, %v6382
        %v7532 = vsel %vm7515, %v7491, %v6384
        %v7533 = vsel %vm7515, %v7492, %v6386
        %v7534 = vsel %vm7515, %v7493, %v6388
        %v7535 = vsel %vm7515, %v7494, %v6390
        %v7536 = vsel %vm7515, %v7495, %v6392
        %v7537 = vsel %vm7515, %v7496, %v6394
        %v7538 = vsel %vm7515, %v7497, %v6396
        %v7539 = vsel %vm7515, %v7498, %v6398
        %v7540 = vsel %vm7515, %v7499, %v6400
        %v7541 = vsel %vm7515, %v7500, %v6402
        %v7542 = vsel %vm7515, %v7501, %v6404
        %v7543 = vsel %vm7515, %v7502, %v6406
        %v7544 = vsel %vm7515, %v7503, %v6408
        %v7545 = vsel %vm7515, %v7504, %v6410
        %v7546 = vsel %vm7515, %v7505, %v6412
        %v7547 = vsel %vm7515, %v7506, %v6414
        %v7548 = vsel %vm7515, %v7507, %v6416
        %v7549 = vsel %vm7515, %v7508, %v6418
        %v7550 = vsel %vm7515, %v7509, %v6420
        %v7551 = vsel %vm7515, %v7510, %v6422
        %v7552 = vsel %vm7515, %v7511, %v6424
        %v7553 = vsel %vm7515, %v7512, %v6426
        %v7554 = vsel %vm7515, %v7513, %v6428
        %v7555 = vsel %vm7515, %v7514, %v6430
        %vm7556 = vcmask 654336
        %v7557 = vsel %vm7556, %v7516, %v6472
        %v7558 = vsel %vm7556, %v7517, %v6474
        %v7559 = vsel %vm7556, %v7518, %v6476
        %v7560 = vsel %vm7556, %v7519, %v6478
        %v7561 = vsel %vm7556, %v7520, %v6480
        %v7562 = vsel %vm7556, %v7521, %v6482
        %v7563 = vsel %vm7556, %v7522, %v6484
        %v7564 = vsel %vm7556, %v7523, %v6486
        %v7565 = vsel %vm7556, %v7524, %v6488
        %v7566 = vsel %vm7556, %v7525, %v6490
        %v7567 = vsel %vm7556, %v7526, %v6492
        %v7568 = vsel %vm7556, %v7527, %v6494
        %v7569 = vsel %vm7556, %v7528, %v6496
        %v7570 = vsel %vm7556, %v7529, %v6498
        %v7571 = vsel %vm7556, %v7530, %v6500
        %v7572 = vsel %vm7556, %v7531, %v6502
        %v7573 = vsel %vm7556, %v7532, %v6504
        %v7574 = vsel %vm7556, %v7533, %v6506
        %v7575 = vsel %vm7556, %v7534, %v6508
        %v7576 = vsel %vm7556, %v7535, %v6510
        %v7577 = vsel %vm7556, %v7536, %v6512
        %v7578 = vsel %vm7556, %v7537, %v6514
        %v7579 = vsel %vm7556, %v7538, %v6516
        %v7580 = vsel %vm7556, %v7539, %v6518
        %v7581 = vsel %vm7556, %v7540, %v6520
        %v7582 = vsel %vm7556, %v7541, %v6522
        %v7583 = vsel %vm7556, %v7542, %v6524
        %v7584 = vsel %vm7556, %v7543, %v6526
        %v7585 = vsel %vm7556, %v7544, %v6528
        %v7586 = vsel %vm7556, %v7545, %v6530
        %v7587 = vsel %vm7556, %v7546, %v6532
        %v7588 = vsel %vm7556, %v7547, %v6534
        %v7589 = vsel %vm7556, %v7548, %v6536
        %v7590 = vsel %vm7556, %v7549, %v6538
        %v7591 = vsel %vm7556, %v7550, %v6540
        %v7592 = vsel %vm7556, %v7551, %v6542
        %v7593 = vsel %vm7556, %v7552, %v6544
        %v7594 = vsel %vm7556, %v7553, %v6546
        %v7595 = vsel %vm7556, %v7554, %v6548
        %v7596 = vsel %vm7556, %v7555, %v6550
        %vm7597 = vcmask 719872
        %v7598 = vsel %vm7597, %v7557, %v6592
        %v7599 = vsel %vm7597, %v7558, %v6594
        %v7600 = vsel %vm7597, %v7559, %v6596
        %v7601 = vsel %vm7597, %v7560, %v6598
        %v7602 = vsel %vm7597, %v7561, %v6600
        %v7603 = vsel %vm7597, %v7562, %v6602
        %v7604 = vsel %vm7597, %v7563, %v6604
        %v7605 = vsel %vm7597, %v7564, %v6606
        %v7606 = vsel %vm7597, %v7565, %v6608
        %v7607 = vsel %vm7597, %v7566, %v6610
        %v7608 = vsel %vm7597, %v7567, %v6612
        %v7609 = vsel %vm7597, %v7568, %v6614
        %v7610 = vsel %vm7597, %v7569, %v6616
        %v7611 = vsel %vm7597, %v7570, %v6618
        %v7612 = vsel %vm7597, %v7571, %v6620
        %v7613 = vsel %vm7597, %v7572, %v6622
        %v7614 = vsel %vm7597, %v7573, %v6624
        %v7615 = vsel %vm7597, %v7574, %v6626
        %v7616 = vsel %vm7597, %v7575, %v6628
        %v7617 = vsel %vm7597, %v7576, %v6630
        %v7618 = vsel %vm7597, %v7577, %v6632
        %v7619 = vsel %vm7597, %v7578, %v6634
        %v7620 = vsel %vm7597, %v7579, %v6636
        %v7621 = vsel %vm7597, %v7580, %v6638
        %v7622 = vsel %vm7597, %v7581, %v6640
        %v7623 = vsel %vm7597, %v7582, %v6642
        %v7624 = vsel %vm7597, %v7583, %v6644
        %v7625 = vsel %vm7597, %v7584, %v6646
        %v7626 = vsel %vm7597, %v7585, %v6648
        %v7627 = vsel %vm7597, %v7586, %v6650
        %v7628 = vsel %vm7597, %v7587, %v6652
        %v7629 = vsel %vm7597, %v7588, %v6654
        %v7630 = vsel %vm7597, %v7589, %v6656
        %v7631 = vsel %vm7597, %v7590, %v6658
        %v7632 = vsel %vm7597, %v7591, %v6660
        %v7633 = vsel %vm7597, %v7592, %v6662
        %v7634 = vsel %vm7597, %v7593, %v6664
        %v7635 = vsel %vm7597, %v7594, %v6666
        %v7636 = vsel %vm7597, %v7595, %v6668
        %v7637 = vsel %vm7597, %v7596, %v6670
        %vm7638 = vcmask 785408
        %v7639 = vsel %vm7638, %v7598, %v6712
        %v7640 = vsel %vm7638, %v7599, %v6714
        %v7641 = vsel %vm7638, %v7600, %v6716
        %v7642 = vsel %vm7638, %v7601, %v6718
        %v7643 = vsel %vm7638, %v7602, %v6720
        %v7644 = vsel %vm7638, %v7603, %v6722
        %v7645 = vsel %vm7638, %v7604, %v6724
        %v7646 = vsel %vm7638, %v7605, %v6726
        %v7647 = vsel %vm7638, %v7606, %v6728
        %v7648 = vsel %vm7638, %v7607, %v6730
        %v7649 = vsel %vm7638, %v7608, %v6732
        %v7650 = vsel %vm7638, %v7609, %v6734
        %v7651 = vsel %vm7638, %v7610, %v6736
        %v7652 = vsel %vm7638, %v7611, %v6738
        %v7653 = vsel %vm7638, %v7612, %v6740
        %v7654 = vsel %vm7638, %v7613, %v6742
        %v7655 = vsel %vm7638, %v7614, %v6744
        %v7656 = vsel %vm7638, %v7615, %v6746
        %v7657 = vsel %vm7638, %v7616, %v6748
        %v7658 = vsel %vm7638, %v7617, %v6750
        %v7659 = vsel %vm7638, %v7618, %v6752
        %v7660 = vsel %vm7638, %v7619, %v6754
        %v7661 = vsel %vm7638, %v7620, %v6756
        %v7662 = vsel %vm7638, %v7621, %v6758
        %v7663 = vsel %vm7638, %v7622, %v6760
        %v7664 = vsel %vm7638, %v7623, %v6762
        %v7665 = vsel %vm7638, %v7624, %v6764
        %v7666 = vsel %vm7638, %v7625, %v6766
        %v7667 = vsel %vm7638, %v7626, %v6768
        %v7668 = vsel %vm7638, %v7627, %v6770
        %v7669 = vsel %vm7638, %v7628, %v6772
        %v7670 = vsel %vm7638, %v7629, %v6774
        %v7671 = vsel %vm7638, %v7630, %v6776
        %v7672 = vsel %vm7638, %v7631, %v6778
        %v7673 = vsel %vm7638, %v7632, %v6780
        %v7674 = vsel %vm7638, %v7633, %v6782
        %v7675 = vsel %vm7638, %v7634, %v6784
        %v7676 = vsel %vm7638, %v7635, %v6786
        %v7677 = vsel %vm7638, %v7636, %v6788
        %v7678 = vsel %vm7638, %v7637, %v6790
        %vm7679 = vcmask 850944
        %v7680 = vsel %vm7679, %v7639, %v6832
        %v7681 = vsel %vm7679, %v7640, %v6834
        %v7682 = vsel %vm7679, %v7641, %v6836
        %v7683 = vsel %vm7679, %v7642, %v6838
        %v7684 = vsel %vm7679, %v7643, %v6840
        %v7685 = vsel %vm7679, %v7644, %v6842
        %v7686 = vsel %vm7679, %v7645, %v6844
        %v7687 = vsel %vm7679, %v7646, %v6846
        %v7688 = vsel %vm7679, %v7647, %v6848
        %v7689 = vsel %vm7679, %v7648, %v6850
        %v7690 = vsel %vm7679, %v7649, %v6852
        %v7691 = vsel %vm7679, %v7650, %v6854
        %v7692 = vsel %vm7679, %v7651, %v6856
        %v7693 = vsel %vm7679, %v7652, %v6858
        %v7694 = vsel %vm7679, %v7653, %v6860
        %v7695 = vsel %vm7679, %v7654, %v6862
        %v7696 = vsel %vm7679, %v7655, %v6864
        %v7697 = vsel %vm7679, %v7656, %v6866
        %v7698 = vsel %vm7679, %v7657, %v6868
        %v7699 = vsel %vm7679, %v7658, %v6870
        %v7700 = vsel %vm7679, %v7659, %v6872
        %v7701 = vsel %vm7679, %v7660, %v6874
        %v7702 = vsel %vm7679, %v7661, %v6876
        %v7703 = vsel %vm7679, %v7662, %v6878
        %v7704 = vsel %vm7679, %v7663, %v6880
        %v7705 = vsel %vm7679, %v7664, %v6882
        %v7706 = vsel %vm7679, %v7665, %v6884
        %v7707 = vsel %vm7679, %v7666, %v6886
        %v7708 = vsel %vm7679, %v7667, %v6888
        %v7709 = vsel %vm7679, %v7668, %v6890
        %v7710 = vsel %vm7679, %v7669, %v6892
        %v7711 = vsel %vm7679, %v7670, %v6894
        %v7712 = vsel %vm7679, %v7671, %v6896
        %v7713 = vsel %vm7679, %v7672, %v6898
        %v7714 = vsel %vm7679, %v7673, %v6900
        %v7715 = vsel %vm7679, %v7674, %v6902
        %v7716 = vsel %vm7679, %v7675, %v6904
        %v7717 = vsel %vm7679, %v7676, %v6906
        %v7718 = vsel %vm7679, %v7677, %v6908
        %v7719 = vsel %vm7679, %v7678, %v6910
        %vm7720 = vcmask 916480
        %v7721 = vsel %vm7720, %v7680, %v6952
        %v7722 = vsel %vm7720, %v7681, %v6954
        %v7723 = vsel %vm7720, %v7682, %v6956
        %v7724 = vsel %vm7720, %v7683, %v6958
        %v7725 = vsel %vm7720, %v7684, %v6960
        %v7726 = vsel %vm7720, %v7685, %v6962
        %v7727 = vsel %vm7720, %v7686, %v6964
        %v7728 = vsel %vm7720, %v7687, %v6966
        %v7729 = vsel %vm7720, %v7688, %v6968
        %v7730 = vsel %vm7720, %v7689, %v6970
        %v7731 = vsel %vm7720, %v7690, %v6972
        %v7732 = vsel %vm7720, %v7691, %v6974
        %v7733 = vsel %vm7720, %v7692, %v6976
        %v7734 = vsel %vm7720, %v7693, %v6978
        %v7735 = vsel %vm7720, %v7694, %v6980
        %v7736 = vsel %vm7720, %v7695, %v6982
        %v7737 = vsel %vm7720, %v7696, %v6984
        %v7738 = vsel %vm7720, %v7697, %v6986
        %v7739 = vsel %vm7720, %v7698, %v6988
        %v7740 = vsel %vm7720, %v7699, %v6990
        %v7741 = vsel %vm7720, %v7700, %v6992
        %v7742 = vsel %vm7720, %v7701, %v6994
        %v7743 = vsel %vm7720, %v7702, %v6996
        %v7744 = vsel %vm7720, %v7703, %v6998
        %v7745 = vsel %vm7720, %v7704, %v7000
        %v7746 = vsel %vm7720, %v7705, %v7002
        %v7747 = vsel %vm7720, %v7706, %v7004
        %v7748 = vsel %vm7720, %v7707, %v7006
        %v7749 = vsel %vm7720, %v7708, %v7008
        %v7750 = vsel %vm7720, %v7709, %v7010
        %v7751 = vsel %vm7720, %v7710, %v7012
        %v7752 = vsel %vm7720, %v7711, %v7014
        %v7753 = vsel %vm7720, %v7712, %v7016
        %v7754 = vsel %vm7720, %v7713, %v7018
        %v7755 = vsel %vm7720, %v7714, %v7020
        %v7756 = vsel %vm7720, %v7715, %v7022
        %v7757 = vsel %vm7720, %v7716, %v7024
        %v7758 = vsel %vm7720, %v7717, %v7026
        %v7759 = vsel %vm7720, %v7718, %v7028
        %v7760 = vsel %vm7720, %v7719, %v7030
        %vm7761 = vcmask 982016
        %v7762 = vsel %vm7761, %v7721, %v7072
        %v7763 = vsel %vm7761, %v7722, %v7074
        %v7764 = vsel %vm7761, %v7723, %v7076
        %v7765 = vsel %vm7761, %v7724, %v7078
        %v7766 = vsel %vm7761, %v7725, %v7080
        %v7767 = vsel %vm7761, %v7726, %v7082
        %v7768 = vsel %vm7761, %v7727, %v7084
        %v7769 = vsel %vm7761, %v7728, %v7086
        %v7770 = vsel %vm7761, %v7729, %v7088
        %v7771 = vsel %vm7761, %v7730, %v7090
        %v7772 = vsel %vm7761, %v7731, %v7092
        %v7773 = vsel %vm7761, %v7732, %v7094
        %v7774 = vsel %vm7761, %v7733, %v7096
        %v7775 = vsel %vm7761, %v7734, %v7098
        %v7776 = vsel %vm7761, %v7735, %v7100
        %v7777 = vsel %vm7761, %v7736, %v7102
        %v7778 = vsel %vm7761, %v7737, %v7104
        %v7779 = vsel %vm7761, %v7738, %v7106
        %v7780 = vsel %vm7761, %v7739, %v7108
        %v7781 = vsel %vm7761, %v7740, %v7110
        %v7782 = vsel %vm7761, %v7741, %v7112
        %v7783 = vsel %vm7761, %v7742, %v7114
        %v7784 = vsel %vm7761, %v7743, %v7116
        %v7785 = vsel %vm7761, %v7744, %v7118
        %v7786 = vsel %vm7761, %v7745, %v7120
        %v7787 = vsel %vm7761, %v7746, %v7122
        %v7788 = vsel %vm7761, %v7747, %v7124
        %v7789 = vsel %vm7761, %v7748, %v7126
        %v7790 = vsel %vm7761, %v7749, %v7128
        %v7791 = vsel %vm7761, %v7750, %v7130
        %v7792 = vsel %vm7761, %v7751, %v7132
        %v7793 = vsel %vm7761, %v7752, %v7134
        %v7794 = vsel %vm7761, %v7753, %v7136
        %v7795 = vsel %vm7761, %v7754, %v7138
        %v7796 = vsel %vm7761, %v7755, %v7140
        %v7797 = vsel %vm7761, %v7756, %v7142
        %v7798 = vsel %vm7761, %v7757, %v7144
        %v7799 = vsel %vm7761, %v7758, %v7146
        %v7800 = vsel %vm7761, %v7759, %v7148
        %v7801 = vsel %vm7761, %v7760, %v7150
        %v7802 = vld [vmem:[%s6] sm:$0xff]
        %v7803 = vld [vmem:[%s6 + $0x8] sm:$0xff]
        %v7804 = vld [vmem:[%s6 + $0x10] sm:$0xff]
        %v7805 = vld [vmem:[%s6 + $0x18] sm:$0xff]
        %v7806 = vld [vmem:[%s6 + $0x20] sm:$0xff]
        %v7807 = vld [vmem:[%s6 + $0x28] sm:$0xff]
        %v7808 = vld [vmem:[%s6 + $0x30] sm:$0xff]
        %v7809 = vld [vmem:[%s6 + $0x38] sm:$0xff]
        %v7810 = vld [vmem:[%s6 + $0x40] sm:$0xff]
        %v7811 = vld [vmem:[%s6 + $0x48] sm:$0xff]
        %v7812 = vld [vmem:[%s6 + $0x50] sm:$0xff]
        %v7813 = vld [vmem:[%s6 + $0x58] sm:$0xff]
        %v7814 = vld [vmem:[%s6 + $0x60] sm:$0xff]
        %v7815 = vld [vmem:[%s6 + $0x68] sm:$0xff]
        %v7816 = vld [vmem:[%s6 + $0x70] sm:$0xff]
        %v7817 = vld [vmem:[%s6 + $0x78] sm:$0xff]
        %v7818 = vld [vmem:[%s6 + $0x80] sm:$0xff]
        %v7819 = vld [vmem:[%s6 + $0x88] sm:$0xff]
        %v7820 = vld [vmem:[%s6 + $0x90] sm:$0xff]
        %v7821 = vld [vmem:[%s6 + $0x98] sm:$0xff]
        %v7822 = vld [vmem:[%s6 + $0xa0] sm:$0xff]
        %v7823 = vld [vmem:[%s6 + $0xa8] sm:$0xff]
        %v7824 = vld [vmem:[%s6 + $0xb0] sm:$0xff]
        %v7825 = vld [vmem:[%s6 + $0xb8] sm:$0xff]
        %v7826 = vld [vmem:[%s6 + $0xc0] sm:$0xff]
        %v7827 = vld [vmem:[%s6 + $0xc8] sm:$0xff]
        %v7828 = vld [vmem:[%s6 + $0xd0] sm:$0xff]
        %v7829 = vld [vmem:[%s6 + $0xd8] sm:$0xff]
        %v7830 = vld [vmem:[%s6 + $0xe0] sm:$0xff]
        %v7831 = vld [vmem:[%s6 + $0xe8] sm:$0xff]
        %v7832 = vld [vmem:[%s6 + $0xf0] sm:$0xff]
        %v7833 = vld [vmem:[%s6 + $0xf8] sm:$0xff]
        %v7834 = vld [vmem:[%s6 + $0x100] sm:$0xff]
        %v7835 = vld [vmem:[%s6 + $0x108] sm:$0xff]
        %v7836 = vld [vmem:[%s6 + $0x110] sm:$0xff]
        %v7837 = vld [vmem:[%s6 + $0x118] sm:$0xff]
        %v7838 = vld [vmem:[%s6 + $0x120] sm:$0xff]
        %v7839 = vld [vmem:[%s6 + $0x128] sm:$0xff]
        %v7840 = vld [vmem:[%s6 + $0x130] sm:$0xff]
        %v7841 = vld [vmem:[%s6 + $0x138] sm:$0xff]
        %v7842 = vmul.f32 %v7762, %v7802
        %v7843 = vmul.f32 %v7763, %v7803
        %v7844 = vmul.f32 %v7764, %v7804
        %v7845 = vmul.f32 %v7765, %v7805
        %v7846 = vmul.f32 %v7766, %v7806
        %v7847 = vmul.f32 %v7767, %v7807
        %v7848 = vmul.f32 %v7768, %v7808
        %v7849 = vmul.f32 %v7769, %v7809
        %v7850 = vmul.f32 %v7770, %v7810
        %v7851 = vmul.f32 %v7771, %v7811
        %v7852 = vmul.f32 %v7772, %v7812
        %v7853 = vmul.f32 %v7773, %v7813
        %v7854 = vmul.f32 %v7774, %v7814
        %v7855 = vmul.f32 %v7775, %v7815
        %v7856 = vmul.f32 %v7776, %v7816
        %v7857 = vmul.f32 %v7777, %v7817
        %v7858 = vmul.f32 %v7778, %v7818
        %v7859 = vmul.f32 %v7779, %v7819
        %v7860 = vmul.f32 %v7780, %v7820
        %v7861 = vmul.f32 %v7781, %v7821
        %v7862 = vmul.f32 %v7782, %v7822
        %v7863 = vmul.f32 %v7783, %v7823
        %v7864 = vmul.f32 %v7784, %v7824
        %v7865 = vmul.f32 %v7785, %v7825
        %v7866 = vmul.f32 %v7786, %v7826
        %v7867 = vmul.f32 %v7787, %v7827
        %v7868 = vmul.f32 %v7788, %v7828
        %v7869 = vmul.f32 %v7789, %v7829
        %v7870 = vmul.f32 %v7790, %v7830
        %v7871 = vmul.f32 %v7791, %v7831
        %v7872 = vmul.f32 %v7792, %v7832
        %v7873 = vmul.f32 %v7793, %v7833
        %v7874 = vmul.f32 %v7794, %v7834
        %v7875 = vmul.f32 %v7795, %v7835
        %v7876 = vmul.f32 %v7796, %v7836
        %v7877 = vmul.f32 %v7797, %v7837
        %v7878 = vmul.f32 %v7798, %v7838
        %v7879 = vmul.f32 %v7799, %v7839
        %v7880 = vmul.f32 %v7800, %v7840
        %v7881 = vmul.f32 %v7801, %v7841
        %v7882 = vpack.c.bf16 %v7843, %v7842
        %v7883 = vpack.c.bf16 %v7845, %v7844
        %v7884 = vpack.c.bf16 %v7847, %v7846
        %v7885 = vpack.c.bf16 %v7849, %v7848
        %v7886 = vpack.c.bf16 %v7851, %v7850
        %v7887 = vpack.c.bf16 %v7853, %v7852
        %v7888 = vpack.c.bf16 %v7855, %v7854
        %v7889 = vpack.c.bf16 %v7857, %v7856
        %v7890 = vpack.c.bf16 %v7859, %v7858
        %v7891 = vpack.c.bf16 %v7861, %v7860
        %v7892 = vpack.c.bf16 %v7863, %v7862
        %v7893 = vpack.c.bf16 %v7865, %v7864
        %v7894 = vpack.c.bf16 %v7867, %v7866
        %v7895 = vpack.c.bf16 %v7869, %v7868
        %v7896 = vpack.c.bf16 %v7871, %v7870
        %v7897 = vpack.c.bf16 %v7873, %v7872
        %v7898 = vpack.c.bf16 %v7875, %v7874
        %v7899 = vpack.c.bf16 %v7877, %v7876
        %v7900 = vpack.c.bf16 %v7879, %v7878
        %v7901 = vpack.c.bf16 %v7881, %v7880
        %v7902 = vld [vmem:[%s7] sm:$0xf]
        %v7903 = vld [vmem:[%s7 + $0x4] sm:$0xf]
        %v7904 = vld [vmem:[%s7 + $0x8] sm:$0xf]
        %v7905 = vld [vmem:[%s7 + $0xc] sm:$0xf]
        %v7906 = vld [vmem:[%s7 + $0x10] sm:$0xf]
        %v7907 = vld [vmem:[%s7 + $0x14] sm:$0xf]
        %v7908 = vld [vmem:[%s7 + $0x18] sm:$0xf]
        %v7909 = vld [vmem:[%s7 + $0x1c] sm:$0xf]
        %v7910 = vld [vmem:[%s7 + $0x20] sm:$0xf]
        %v7911 = vld [vmem:[%s7 + $0x24] sm:$0xf]
        %v7912 = vld [vmem:[%s7 + $0x28] sm:$0xf]
        %v7913 = vld [vmem:[%s7 + $0x2c] sm:$0xf]
        %v7914 = vld [vmem:[%s7 + $0x30] sm:$0xf]
        %v7915 = vld [vmem:[%s7 + $0x34] sm:$0xf]
        %v7916 = vld [vmem:[%s7 + $0x38] sm:$0xf]
        %v7917 = vld [vmem:[%s7 + $0x3c] sm:$0xf]
        %v7934 = vunpack.c.l.b16 %v7902
        %v7935 = vunpack.c.l.b16 %v7903
        %v7936 = vunpack.c.l.b16 %v7904
        %v7937 = vunpack.c.l.b16 %v7905
        %v7938 = vunpack.c.l.b16 %v7906
        %v7939 = vunpack.c.l.b16 %v7907
        %v7940 = vunpack.c.l.b16 %v7908
        %v7941 = vunpack.c.l.b16 %v7909
        %v7942 = vunpack.c.l.b16 %v7910
        %v7943 = vunpack.c.l.b16 %v7911
        %v7944 = vunpack.c.l.b16 %v7912
        %v7945 = vunpack.c.l.b16 %v7913
        %v7946 = vunpack.c.l.b16 %v7914
        %v7947 = vunpack.c.l.b16 %v7915
        %v7948 = vunpack.c.l.b16 %v7916
        %v7949 = vunpack.c.l.b16 %v7917
        %v7950 = vpack.c.b16 %v7935, %v7934
        %v7951 = vpack.c.b16 %v7937, %v7936
        %v7952 = vpack.c.b16 %v7939, %v7938
        %v7953 = vpack.c.b16 %v7941, %v7940
        %v7954 = vpack.c.b16 %v7943, %v7942
        %v7955 = vpack.c.b16 %v7945, %v7944
        %v7956 = vpack.c.b16 %v7947, %v7946
        %v7957 = vpack.c.b16 %v7949, %v7948
        %7966 = vmatprep.subr.bf16.mxu0 0
        %7967 = vmatpush1.bf16.msra.mxu0 %v7950
        %7968 = vmatprep.subr.bf16.mxu0 0
        %7969 = vmatpush1.bf16.msra.mxu0 %v7951
        %7970 = vmatprep.subr.bf16.mxu0 0
        %7971 = vmatpush1.bf16.msra.mxu0 %v7952
        %7972 = vmatprep.subr.bf16.mxu0 0
        %7973 = vmatpush1.bf16.msra.mxu0 %v7953
        %7974 = vmatprep.subr.bf16.mxu0 0
        %7975 = vmatpush1.bf16.msra.mxu0 %v7954
        %7976 = vmatprep.subr.bf16.mxu0 0
        %7977 = vmatpush1.bf16.msra.mxu0 %v7955
        %7978 = vmatprep.subr.bf16.mxu0 0
        %7979 = vmatpush1.bf16.msra.mxu0 %v7956
        %7980 = vmatprep.subr.bf16.mxu0 0
        %7981 = vmatpush1.bf16.msra.mxu0 %v7957
        %7982 = vmatprep.subr.bf16.mxu0 0
        %7983 = vmatpush1.bf16.msra.mxu0 0
        %7984 = vmatprep.subr.bf16.mxu0 0
        %7985 = vmatpush1.bf16.msra.mxu0 0
        %7986 = vmatprep.subr.bf16.mxu0 0
        %7987 = vmatpush1.bf16.msra.mxu0 0
        %7988 = vmatprep.subr.bf16.mxu0 0
        %7989 = vmatpush1.bf16.msra.mxu0 0
        %7990 = vmatprep.subr.bf16.mxu0 0
        %7991 = vmatpush1.bf16.msra.mxu0 0
        %7992 = vmatprep.subr.bf16.mxu0 0
        %7993 = vmatpush1.bf16.msra.mxu0 0
        %7994 = vmatprep.subr.bf16.mxu0 0
        %7995 = vmatpush1.bf16.msra.mxu0 0
        %7996 = vmatprep.subr.bf16.mxu0 0
        %7997 = vmatpush1.bf16.msra.mxu0 0
        %7998 = vmatprep.mubr.bf16.mxu0 0
        %7999 = vmatmul.mubr.bf16.gmra.mrb[0].mxu0 %v7882
        %v8000 = vpop.f32.mrb[0].mxu0
        %v8001 = vadd.f32 0.0, %v8000
        %v8002 = vpop.f32.mrb[0].mxu0
        %v8003 = vpop.f32.mrb[0].mxu0
        %v8004 = vadd.f32 0.0, %v8003
        %v8005 = vpop.f32.mrb[0].mxu0
        %8006 = vmatprep.mubr.bf16.mxu0 0
        %8007 = vmatmul.mubr.bf16.gmra.mrb[0].mxu0 %v7883
        %v8008 = vpop.f32.mrb[0].mxu0
        %v8009 = vadd.f32 0.0, %v8008
        %v8010 = vpop.f32.mrb[0].mxu0
        %v8011 = vpop.f32.mrb[0].mxu0
        %v8012 = vadd.f32 0.0, %v8011
        %v8013 = vpop.f32.mrb[0].mxu0
        %8014 = vmatprep.mubr.bf16.mxu0 0
        %8015 = vmatmul.mubr.bf16.gmra.mrb[0].mxu0 %v7884
        %v8016 = vpop.f32.mrb[0].mxu0
        %v8017 = vadd.f32 0.0, %v8016
        %v8018 = vpop.f32.mrb[0].mxu0
        %v8019 = vpop.f32.mrb[0].mxu0
        %v8020 = vadd.f32 0.0, %v8019
        %v8021 = vpop.f32.mrb[0].mxu0
        %8022 = vmatprep.mubr.bf16.mxu0 0
        %8023 = vmatmul.mubr.bf16.gmra.mrb[0].mxu0 %v7885
        %v8024 = vpop.f32.mrb[0].mxu0
        %v8025 = vadd.f32 0.0, %v8024
        %v8026 = vpop.f32.mrb[0].mxu0
        %v8027 = vpop.f32.mrb[0].mxu0
        %v8028 = vadd.f32 0.0, %v8027
        %v8029 = vpop.f32.mrb[0].mxu0
        %8030 = vmatprep.mubr.bf16.mxu0 0
        %8031 = vmatmul.mubr.bf16.gmra.mrb[0].mxu0 %v7886
        %v8032 = vpop.f32.mrb[0].mxu0
        %v8033 = vadd.f32 0.0, %v8032
        %v8034 = vpop.f32.mrb[0].mxu0
        %v8035 = vpop.f32.mrb[0].mxu0
        %v8036 = vadd.f32 0.0, %v8035
        %v8037 = vpop.f32.mrb[0].mxu0
        %8038 = vmatprep.mubr.bf16.mxu0 0
        %8039 = vmatmul.mubr.bf16.gmra.mrb[0].mxu0 %v7887
        %v8040 = vpop.f32.mrb[0].mxu0
        %v8041 = vadd.f32 0.0, %v8040
        %v8042 = vpop.f32.mrb[0].mxu0
        %v8043 = vpop.f32.mrb[0].mxu0
        %v8044 = vadd.f32 0.0, %v8043
        %v8045 = vpop.f32.mrb[0].mxu0
        %8046 = vmatprep.mubr.bf16.mxu0 0
        %8047 = vmatmul.mubr.bf16.gmra.mrb[0].mxu0 %v7888
        %v8048 = vpop.f32.mrb[0].mxu0
        %v8049 = vadd.f32 0.0, %v8048
        %v8050 = vpop.f32.mrb[0].mxu0
        %v8051 = vpop.f32.mrb[0].mxu0
        %v8052 = vadd.f32 0.0, %v8051
        %v8053 = vpop.f32.mrb[0].mxu0
        %8054 = vmatprep.mubr.bf16.mxu0 0
        %8055 = vmatmul.mubr.bf16.gmra.mrb[0].mxu0 %v7889
        %v8056 = vpop.f32.mrb[0].mxu0
        %v8057 = vadd.f32 0.0, %v8056
        %v8058 = vpop.f32.mrb[0].mxu0
        %v8059 = vpop.f32.mrb[0].mxu0
        %v8060 = vadd.f32 0.0, %v8059
        %v8061 = vpop.f32.mrb[0].mxu0
        %8062 = vmatprep.mubr.bf16.mxu0 0
        %8063 = vmatmul.mubr.bf16.gmra.mrb[0].mxu0 %v7890
        %v8064 = vpop.f32.mrb[0].mxu0
        %v8065 = vadd.f32 0.0, %v8064
        %v8066 = vpop.f32.mrb[0].mxu0
        %v8067 = vpop.f32.mrb[0].mxu0
        %v8068 = vadd.f32 0.0, %v8067
        %v8069 = vpop.f32.mrb[0].mxu0
        %8070 = vmatprep.mubr.bf16.mxu0 0
        %8071 = vmatmul.mubr.bf16.gmra.mrb[0].mxu0 %v7891
        %v8072 = vpop.f32.mrb[0].mxu0
        %v8073 = vadd.f32 0.0, %v8072
        %v8074 = vpop.f32.mrb[0].mxu0
        %v8075 = vpop.f32.mrb[0].mxu0
        %v8076 = vadd.f32 0.0, %v8075
        %v8077 = vpop.f32.mrb[0].mxu0
        %8078 = vmatprep.mubr.bf16.mxu0 0
        %8079 = vmatmul.mubr.bf16.gmra.mrb[0].mxu0 %v7892
        %v8080 = vpop.f32.mrb[0].mxu0
        %v8081 = vadd.f32 0.0, %v8080
        %v8082 = vpop.f32.mrb[0].mxu0
        %v8083 = vpop.f32.mrb[0].mxu0
        %v8084 = vadd.f32 0.0, %v8083
        %v8085 = vpop.f32.mrb[0].mxu0
        %8086 = vmatprep.mubr.bf16.mxu0 0
        %8087 = vmatmul.mubr.bf16.gmra.mrb[0].mxu0 %v7893
        %v8088 = vpop.f32.mrb[0].mxu0
        %v8089 = vadd.f32 0.0, %v8088
        %v8090 = vpop.f32.mrb[0].mxu0
        %v8091 = vpop.f32.mrb[0].mxu0
        %v8092 = vadd.f32 0.0, %v8091
        %v8093 = vpop.f32.mrb[0].mxu0
        %8094 = vmatprep.mubr.bf16.mxu0 0
        %8095 = vmatmul.mubr.bf16.gmra.mrb[0].mxu0 %v7894
        %v8096 = vpop.f32.mrb[0].mxu0
        %v8097 = vadd.f32 0.0, %v8096
        %v8098 = vpop.f32.mrb[0].mxu0
        %v8099 = vpop.f32.mrb[0].mxu0
        %v8100 = vadd.f32 0.0, %v8099
        %v8101 = vpop.f32.mrb[0].mxu0
        %8102 = vmatprep.mubr.bf16.mxu0 0
        %8103 = vmatmul.mubr.bf16.gmra.mrb[0].mxu0 %v7895
        %v8104 = vpop.f32.mrb[0].mxu0
        %v8105 = vadd.f32 0.0, %v8104
        %v8106 = vpop.f32.mrb[0].mxu0
        %v8107 = vpop.f32.mrb[0].mxu0
        %v8108 = vadd.f32 0.0, %v8107
        %v8109 = vpop.f32.mrb[0].mxu0
        %8110 = vmatprep.mubr.bf16.mxu0 0
        %8111 = vmatmul.mubr.bf16.gmra.mrb[0].mxu0 %v7896
        %v8112 = vpop.f32.mrb[0].mxu0
        %v8113 = vadd.f32 0.0, %v8112
        %v8114 = vpop.f32.mrb[0].mxu0
        %v8115 = vpop.f32.mrb[0].mxu0
        %v8116 = vadd.f32 0.0, %v8115
        %v8117 = vpop.f32.mrb[0].mxu0
        %8118 = vmatprep.mubr.bf16.mxu0 0
        %8119 = vmatmul.mubr.bf16.gmra.mrb[0].mxu0 %v7897
        %v8120 = vpop.f32.mrb[0].mxu0
        %v8121 = vadd.f32 0.0, %v8120
        %v8122 = vpop.f32.mrb[0].mxu0
        %v8123 = vpop.f32.mrb[0].mxu0
        %v8124 = vadd.f32 0.0, %v8123
        %v8125 = vpop.f32.mrb[0].mxu0
        %8126 = vmatprep.mubr.bf16.mxu0 0
        %8127 = vmatmul.mubr.bf16.gmra.mrb[0].mxu0 %v7898
        %v8128 = vpop.f32.mrb[0].mxu0
        %v8129 = vadd.f32 0.0, %v8128
        %v8130 = vpop.f32.mrb[0].mxu0
        %v8131 = vpop.f32.mrb[0].mxu0
        %v8132 = vadd.f32 0.0, %v8131
        %v8133 = vpop.f32.mrb[0].mxu0
        %8134 = vmatprep.mubr.bf16.mxu0 0
        %8135 = vmatmul.mubr.bf16.gmra.mrb[0].mxu0 %v7899
        %v8136 = vpop.f32.mrb[0].mxu0
        %v8137 = vadd.f32 0.0, %v8136
        %v8138 = vpop.f32.mrb[0].mxu0
        %v8139 = vpop.f32.mrb[0].mxu0
        %v8140 = vadd.f32 0.0, %v8139
        %v8141 = vpop.f32.mrb[0].mxu0
        %8142 = vmatprep.mubr.bf16.mxu0 0
        %8143 = vmatmul.mubr.bf16.gmra.mrb[0].mxu0 %v7900
        %v8144 = vpop.f32.mrb[0].mxu0
        %v8145 = vadd.f32 0.0, %v8144
        %v8146 = vpop.f32.mrb[0].mxu0
        %v8147 = vpop.f32.mrb[0].mxu0
        %v8148 = vadd.f32 0.0, %v8147
        %v8149 = vpop.f32.mrb[0].mxu0
        %8150 = vmatprep.mubr.bf16.mxu0 0
        %8151 = vmatmul.mubr.bf16.gmra.mrb[0].mxu0 %v7901
        %v8152 = vpop.f32.mrb[0].mxu0
        %v8153 = vadd.f32 0.0, %v8152
        %v8154 = vpop.f32.mrb[0].mxu0
        %v8155 = vpop.f32.mrb[0].mxu0
        %v8156 = vadd.f32 0.0, %v8155
        %v8157 = vpop.f32.mrb[0].mxu0
        %8158 = vdwg.mxu0
        %v8159 = vld [vmem:[%s9] sm:$0xff]
        %v8160 = vld [vmem:[%s9 + $0x8] sm:$0xff]
        %v8161 = vld [vmem:[%s9 + $0x10] sm:$0xff]
        %v8162 = vld [vmem:[%s9 + $0x18] sm:$0xff]
        %v8163 = vld [vmem:[%s9 + $0x20] sm:$0xff]
        %v8164 = vld [vmem:[%s9 + $0x28] sm:$0xff]
        %v8165 = vld [vmem:[%s8] sm:$0x1]
        %v8167 = vlaneseq
        %v8168 = vshrl.u32 %v8167, 7
        %v8169 = vsub.s32 0, %v8168
        %v8170 = vrot.slane %v8165, %v8169
        %v8173 = vsel %vm7474, %v8161, 0
        %v8176 = vsel %vm7474, %v8164, 0
        %8178 = vmatprep.subr.mxu0 0.0
        %8179 = vmatpush1.msra.mxu0 %v8001
        %8180 = vmatprep.subr.mxu0 0.0
        %8181 = vmatpush1.msra.mxu0 %v8004
        %8182 = vmatprep.subr.mxu0 0.0
        %8183 = vmatpush1.msra.mxu0 %v8009
        %8184 = vmatprep.subr.mxu0 0.0
        %8185 = vmatpush1.msra.mxu0 %v8012
        %8186 = vmatprep.subr.mxu0 0.0
        %8187 = vmatpush1.msra.mxu0 %v8017
        %8188 = vmatprep.subr.mxu0 0.0
        %8189 = vmatpush1.msra.mxu0 %v8020
        %8190 = vmatprep.subr.mxu0 0.0
        %8191 = vmatpush1.msra.mxu0 %v8025
        %8192 = vmatprep.subr.mxu0 0.0
        %8193 = vmatpush1.msra.mxu0 %v8028
        %8194 = vmatprep.subr.mxu0 0.0
        %8195 = vmatpush1.msra.mxu0 %v8033
        %8196 = vmatprep.subr.mxu0 0.0
        %8197 = vmatpush1.msra.mxu0 %v8036
        %8198 = vmatprep.subr.mxu0 0.0
        %8199 = vmatpush1.msra.mxu0 %v8041
        %8200 = vmatprep.subr.mxu0 0.0
        %8201 = vmatpush1.msra.mxu0 %v8044
        %8202 = vmatprep.subr.mxu0 0.0
        %8203 = vmatpush1.msra.mxu0 %v8049
        %8204 = vmatprep.subr.mxu0 0.0
        %8205 = vmatpush1.msra.mxu0 %v8052
        %8206 = vmatprep.subr.mxu0 0.0
        %8207 = vmatpush1.msra.mxu0 %v8057
        %8208 = vmatprep.subr.mxu0 0.0
        %8209 = vmatpush1.msra.mxu0 %v8060
        %8210 = vmatprep.subr.mxu0 0.0
        %8211 = vmatpush1.msra.mxu0 %v8065
        %8212 = vmatprep.subr.mxu0 0.0
        %8213 = vmatpush1.msra.mxu0 %v8068
        %8214 = vmatprep.subr.mxu0 0.0
        %8215 = vmatpush1.msra.mxu0 %v8073
        %8216 = vmatprep.subr.mxu0 0.0
        %8217 = vmatpush1.msra.mxu0 %v8076
        %8218 = vmatprep.subr.mxu0 0.0
        %8219 = vmatpush1.msra.mxu0 %v8081
        %8220 = vmatprep.subr.mxu0 0.0
        %8221 = vmatpush1.msra.mxu0 %v8084
        %8222 = vmatprep.subr.mxu0 0.0
        %8223 = vmatpush1.msra.mxu0 %v8089
        %8224 = vmatprep.subr.mxu0 0.0
        %8225 = vmatpush1.msra.mxu0 %v8092
        %8226 = vmatprep.subr.mxu0 0.0
        %8227 = vmatpush1.msra.mxu0 %v8097
        %8228 = vmatprep.subr.mxu0 0.0
        %8229 = vmatpush1.msra.mxu0 %v8100
        %8230 = vmatprep.subr.mxu0 0.0
        %8231 = vmatpush1.msra.mxu0 %v8105
        %8232 = vmatprep.subr.mxu0 0.0
        %8233 = vmatpush1.msra.mxu0 %v8108
        %8234 = vmatprep.subr.mxu0 0.0
        %8235 = vmatpush1.msra.mxu0 %v8113
        %8236 = vmatprep.subr.mxu0 0.0
        %8237 = vmatpush1.msra.mxu0 %v8116
        %8238 = vmatprep.subr.mxu0 0.0
        %8239 = vmatpush1.msra.mxu0 %v8121
        %8240 = vmatprep.subr.mxu0 0.0
        %8241 = vmatpush1.msra.mxu0 %v8124
        %8242 = vmatprep.mubr.f32.mxu0 %v8160
        %8243 = vmatmul.mubr.f32.gmra.mrb[0].mxu0 %v8159
        %v8244 = vpop.f32.mrb[0].mxu0
        %v8245 = vadd.f32 %v8170, %v8244
        %v8246 = vpop.f32.mrb[0].mxu0
        %8247 = vmatprep.mubr.f32.mxu0 %v8163
        %8248 = vmatmul.mubr.f32.gmra.mrb[0].mxu0 %v8162
        %v8249 = vpop.f32.mrb[0].mxu0
        %v8250 = vadd.f32 %v8170, %v8249
        %v8251 = vpop.f32.mrb[0].mxu0
        %8252 = vdwg.mxu0
        %8253 = vmatprep.subr.mxu0 0.0
        %8254 = vmatpush1.msra.mxu0 %v8129
        %8255 = vmatprep.subr.mxu0 0.0
        %8256 = vmatpush1.msra.mxu0 %v8132
        %8257 = vmatprep.subr.mxu0 0.0
        %8258 = vmatpush1.msra.mxu0 %v8137
        %8259 = vmatprep.subr.mxu0 0.0
        %8260 = vmatpush1.msra.mxu0 %v8140
        %8261 = vmatprep.subr.mxu0 0.0
        %8262 = vmatpush1.msra.mxu0 %v8145
        %8263 = vmatprep.subr.mxu0 0.0
        %8264 = vmatpush1.msra.mxu0 %v8148
        %8265 = vmatprep.subr.mxu0 0.0
        %8266 = vmatpush1.msra.mxu0 %v8153
        %8267 = vmatprep.subr.mxu0 0.0
        %8268 = vmatpush1.msra.mxu0 %v8156
        %8269 = vmatprep.subr.mxu0 0.0
        %8270 = vmatpush1.msra.mxu0 0.0
        %8271 = vmatprep.subr.mxu0 0.0
        %8272 = vmatpush1.msra.mxu0 0.0
        %8273 = vmatprep.subr.mxu0 0.0
        %8274 = vmatpush1.msra.mxu0 0.0
        %8275 = vmatprep.subr.mxu0 0.0
        %8276 = vmatpush1.msra.mxu0 0.0
        %8277 = vmatprep.subr.mxu0 0.0
        %8278 = vmatpush1.msra.mxu0 0.0
        %8279 = vmatprep.subr.mxu0 0.0
        %8280 = vmatpush1.msra.mxu0 0.0
        %8281 = vmatprep.subr.mxu0 0.0
        %8282 = vmatpush1.msra.mxu0 0.0
        %8283 = vmatprep.subr.mxu0 0.0
        %8284 = vmatpush1.msra.mxu0 0.0
        %8285 = vmatprep.subr.mxu0 0.0
        %8286 = vmatpush1.msra.mxu0 0.0
        %8287 = vmatprep.subr.mxu0 0.0
        %8288 = vmatpush1.msra.mxu0 0.0
        %8289 = vmatprep.subr.mxu0 0.0
        %8290 = vmatpush1.msra.mxu0 0.0
        %8291 = vmatprep.subr.mxu0 0.0
        %8292 = vmatpush1.msra.mxu0 0.0
        %8293 = vmatprep.subr.mxu0 0.0
        %8294 = vmatpush1.msra.mxu0 0.0
        %8295 = vmatprep.subr.mxu0 0.0
        %8296 = vmatpush1.msra.mxu0 0.0
        %8297 = vmatprep.subr.mxu0 0.0
        %8298 = vmatpush1.msra.mxu0 0.0
        %8299 = vmatprep.subr.mxu0 0.0
        %8300 = vmatpush1.msra.mxu0 0.0
        %8301 = vmatprep.subr.mxu0 0.0
        %8302 = vmatpush1.msra.mxu0 0.0
        %8303 = vmatprep.subr.mxu0 0.0
        %8304 = vmatpush1.msra.mxu0 0.0
        %8305 = vmatprep.subr.mxu0 0.0
        %8306 = vmatpush1.msra.mxu0 0.0
        %8307 = vmatprep.subr.mxu0 0.0
        %8308 = vmatpush1.msra.mxu0 0.0
        %8309 = vmatprep.subr.mxu0 0.0
        %8310 = vmatpush1.msra.mxu0 0.0
        %8311 = vmatprep.subr.mxu0 0.0
        %8312 = vmatpush1.msra.mxu0 0.0
        %8313 = vmatprep.subr.mxu0 0.0
        %8314 = vmatpush1.msra.mxu0 0.0
        %8315 = vmatprep.subr.mxu0 0.0
        %8316 = vmatpush1.msra.mxu0 0.0
        %8317 = vmatprep.mubr.f32.mxu0 0.0
        %8318 = vmatmul.mubr.f32.gmra.mrb[0].mxu0 %v8173
        %v8319 = vpop.f32.mrb[0].mxu0
        %v8320 = vadd.f32 %v8245, %v8319
        %v8321 = vpop.f32.mrb[0].mxu0
        %8322 = vmatprep.mubr.f32.mxu0 0.0
        %8323 = vmatmul.mubr.f32.gmra.mrb[0].mxu0 %v8176
        %v8324 = vpop.f32.mrb[0].mxu0
        %v8325 = vadd.f32 %v8250, %v8324
        %v8326 = vpop.f32.mrb[0].mxu0
        %8327 = vdwg.mxu0
        %v8328 = vmul.f32 %v8320, 0.5
        %v8329 = vmul.f32 %v8325, 0.5
        %v8330 = vrcp.pop 1.4142135
        %v8331 = vmul.f32 %v8320, %v8330
        %v8332 = vmul.f32 %v8325, %v8330
        %vm8333 = vcmp.ge.f32.partialorder %v8331, 0.0
        %vm8334 = vcmp.ge.f32.partialorder %v8332, 0.0
        %v8335 = vsel %vm8333, 1.0, -1.0
        %v8336 = vsel %vm8334, 1.0, -1.0
        %v8337 = vand.u32 2147483647, %v8331
        %v8338 = vand.u32 2147483647, %v8332
        %v8339 = vmul.f32 %v8337, 0.3275911
        %v8340 = vmul.f32 %v8338, 0.3275911
        %v8341 = vadd.f32 %v8339, 1.0
        %v8342 = vadd.f32 %v8340, 1.0
        %v8343 = vrcp.pop %v8341
        %v8344 = vmul.f32 1.0, %v8343
        %v8345 = vrcp.pop %v8342
        %v8346 = vmul.f32 1.0, %v8345
        %v8347 = vmul.f32 %v8344, 1.0614054
        %v8348 = vmul.f32 %v8346, 1.0614054
        %v8349 = vadd.f32 %v8347, -1.4531521
        %v8350 = vadd.f32 %v8348, -1.4531521
        %v8351 = vmul.f32 %v8349, %v8344
        %v8352 = vmul.f32 %v8350, %v8346
        %v8353 = vadd.f32 %v8351, 1.4214138
        %v8354 = vadd.f32 %v8352, 1.4214138
        %v8355 = vmul.f32 %v8353, %v8344
        %v8356 = vmul.f32 %v8354, %v8346
        %v8357 = vadd.f32 %v8355, -0.28449672
        %v8358 = vadd.f32 %v8356, -0.28449672
        %v8359 = vmul.f32 %v8357, %v8344
        %v8360 = vmul.f32 %v8358, %v8346
        %v8361 = vadd.f32 %v8359, 0.2548296
        %v8362 = vadd.f32 %v8360, 0.2548296
        %v8363 = vmul.f32 %v8361, %v8344
        %v8364 = vmul.f32 %v8362, %v8346
        %v8365 = vsub.f32 0.0, %v8337
        %v8366 = vsub.f32 0.0, %v8338
        %v8367 = vmul.f32 %v8365, %v8337
        %v8368 = vmul.f32 %v8366, %v8338
        %v8369 = vmul.f32 %v8367, 1.442695
        %v8370 = vpow.pop %v8369
        %v8371 = vmul.f32 %v8368, 1.442695
        %v8372 = vpow.pop %v8371
        %v8373 = vmul.f32 %v8363, %v8370
        %v8374 = vmul.f32 %v8364, %v8372
        %v8375 = vsub.f32 1.0, %v8373
        %v8376 = vsub.f32 1.0, %v8374
        %v8377 = vmul.f32 %v8335, %v8375
        %v8378 = vmul.f32 %v8336, %v8376
        %v8379 = vadd.f32 %v8377, 1.0
        %v8380 = vadd.f32 %v8378, 1.0
        %v8381 = vmul.f32 %v8328, %v8379
        %v8382 = vmul.f32 %v8329, %v8380
        %v8383 = vld [vmem:[%s10] sm:$0x1]
        %v8385 = vlaneseq
        %v8386 = vshrl.u32 %v8385, 7
        %v8387 = vsub.s32 0, %v8386
        %v8388 = vrot.slane %v8383, %v8387
        %v8390 = vmul.f32 %v8381, %v8388
        %v8391 = vmul.f32 %v8382, %v8388
        %v8392 = vld [vmem:[%s11] sm:$0x1]
        %v8394 = vlaneseq
        %v8395 = vshrl.u32 %v8394, 7
        %v8396 = vsub.s32 0, %v8395
        %v8397 = vrot.slane %v8392, %v8396
        %v8399 = vadd.f32 %v8390, %v8397
        %v8400 = vadd.f32 %v8391, %v8397
        %v8401 = vsel %vm4843, %v8399, 0.0
        %v8402 = vsel %vm4843, %v8400, 0.0
        %v8403 = vadd.f32 %v8401, %v8402
        %v8404 = vrot.slane %v8403, 4
        %v8405 = vadd.f32 %v8403, %v8404
        %v8406 = vrot.slane %v8405, 2
        %v8407 = vadd.f32 %v8405, %v8406
        %v8408 = vrot.slane %v8407, 1
        %v8409 = vadd.f32 %v8407, %v8408
        %v8410 = vrcp.pop 16.0
        %v8411 = vmul.f32 %v8409, %v8410
        %v8412 = vld [vmem:[%s12] sm:$0xff]
        %v8413 = vld [vmem:[%s12 + $0x8] sm:$0xff]
        %v8414 = vld [vmem:[%s13] sm:$0x1]
        %v8416 = vsel %vm4843, %v8411, 0
        %8418 = vmatprep.subr.mxu0 0.0
        %8419 = vmatpush1.msra.mxu0 %v8412
        %8420 = vmatprep.subr.mxu0 0.0
        %8421 = vmatpush1.msra.mxu0 %v8413
        %8422 = vmatprep.subr.mxu0 0.0
        %8423 = vmatpush1.msra.mxu0 0.0
        %8424 = vmatprep.subr.mxu0 0.0
        %8425 = vmatpush1.msra.mxu0 0.0
        %8426 = vmatprep.subr.mxu0 0.0
        %8427 = vmatpush1.msra.mxu0 0.0
        %8428 = vmatprep.subr.mxu0 0.0
        %8429 = vmatpush1.msra.mxu0 0.0
        %8430 = vmatprep.subr.mxu0 0.0
        %8431 = vmatpush1.msra.mxu0 0.0
        %8432 = vmatprep.subr.mxu0 0.0
        %8433 = vmatpush1.msra.mxu0 0.0
        %8434 = vmatprep.subr.mxu0 0.0
        %8435 = vmatpush1.msra.mxu0 0.0
        %8436 = vmatprep.subr.mxu0 0.0
        %8437 = vmatpush1.msra.mxu0 0.0
        %8438 = vmatprep.subr.mxu0 0.0
        %8439 = vmatpush1.msra.mxu0 0.0
        %8440 = vmatprep.subr.mxu0 0.0
        %8441 = vmatpush1.msra.mxu0 0.0
        %8442 = vmatprep.subr.mxu0 0.0
        %8443 = vmatpush1.msra.mxu0 0.0
        %8444 = vmatprep.subr.mxu0 0.0
        %8445 = vmatpush1.msra.mxu0 0.0
        %8446 = vmatprep.subr.mxu0 0.0
        %8447 = vmatpush1.msra.mxu0 0.0
        %8448 = vmatprep.subr.mxu0 0.0
        %8449 = vmatpush1.msra.mxu0 0.0
        %8450 = vmatprep.subr.mxu0 0.0
        %8451 = vmatpush1.msra.mxu0 0.0
        %8452 = vmatprep.subr.mxu0 0.0
        %8453 = vmatpush1.msra.mxu0 0.0
        %8454 = vmatprep.subr.mxu0 0.0
        %8455 = vmatpush1.msra.mxu0 0.0
        %8456 = vmatprep.subr.mxu0 0.0
        %8457 = vmatpush1.msra.mxu0 0.0
        %8458 = vmatprep.subr.mxu0 0.0
        %8459 = vmatpush1.msra.mxu0 0.0
        %8460 = vmatprep.subr.mxu0 0.0
        %8461 = vmatpush1.msra.mxu0 0.0
        %8462 = vmatprep.subr.mxu0 0.0
        %8463 = vmatpush1.msra.mxu0 0.0
        %8464 = vmatprep.subr.mxu0 0.0
        %8465 = vmatpush1.msra.mxu0 0.0
        %8466 = vmatprep.subr.mxu0 0.0
        %8467 = vmatpush1.msra.mxu0 0.0
        %8468 = vmatprep.subr.mxu0 0.0
        %8469 = vmatpush1.msra.mxu0 0.0
        %8470 = vmatprep.subr.mxu0 0.0
        %8471 = vmatpush1.msra.mxu0 0.0
        %8472 = vmatprep.subr.mxu0 0.0
        %8473 = vmatpush1.msra.mxu0 0.0
        %8474 = vmatprep.subr.mxu0 0.0
        %8475 = vmatpush1.msra.mxu0 0.0
        %8476 = vmatprep.subr.mxu0 0.0
        %8477 = vmatpush1.msra.mxu0 0.0
        %8478 = vmatprep.subr.mxu0 0.0
        %8479 = vmatpush1.msra.mxu0 0.0
        %8480 = vmatprep.subr.mxu0 0.0
        %8481 = vmatpush1.msra.mxu0 0.0
        %8482 = vmatprep.mubr.f32.mxu0 0.0
        %8483 = vmatmul.mubr.f32.gmra.mrb[0].mxu0 %v8416
        %v8484 = vpop.f32.mrb[0].mxu0
        %v8485 = vadd.f32 %v8414, %v8484
        %v8486 = vpop.f32.mrb[0].mxu0
        %8487 = vdwg.mxu0
        %vm8488 = vcmask 73728
        %8489 = vst.msk [vmem:[%s459] sm:$0x1] %vm8488, %v8485
        %s8490 = sand.u32 %s335, 1
        %s8491 = scalar_lea.sflag [#allocation3], %s8490
        %s8492 = sand.u32 %s335, 1
        %s8493 = scalar_lea.vmem [#allocation2], %s8492
        // Predicated region
        $region77: #{tpu_custom_call.1} parent=75 // pred_check
          %p8494 = pneg %p345
        $region78: #{tpu_custom_call.1} parent=75 // pred_check_branch
          %8496 = sbr.rel (%p8494) target = $region80
        $region79: #{tpu_custom_call.1} parent=75 // pred_region
          %s8498 = ssub.s32 16, 16
          %8499 = vsyncadd %s8491, %s8498
          %s8500 = smul.addr %s28, 16
          %s8501 = scalar_lea.hbm %s14, %s8500
          %s8503 = sshll.u32 %s8493, 4
          %s8504 = int_to_ptr.vmem [resolvable:$true] %s8503
          %8506 = dma.vmem_to_hbm [thread:$0]  %s8504, 16, %s8501, %s8491
        $region80: #{tpu_custom_call.1} parent=75 // pred_fallthru
          _
      $region76: #{tpu_custom_call.1} parent=5 // pred_fallthru
        _
      %p8507 = scmp.le.s32.totalorder 2, %s23
      // Predicated region
      $region81: #{tpu_custom_call.1} parent=5 // pred_check
        %p8508 = pneg %p8507
      $region82: #{tpu_custom_call.1} parent=5 // pred_check_branch
        %8510 = sbr.rel (%p8508) target = $region84
      $region83: #{tpu_custom_call.1} parent=5 // pred_region
        %s8511 = ssub.s32 %s23, 2
        // Predicated region
        $region85: #{tpu_custom_call.1} parent=83 // pred_check
          %p8512 = pneg %p351
        $region86: #{tpu_custom_call.1} parent=83 // pred_check_branch
          %8514 = sbr.rel (%p8512) target = $region88
        $region87: #{tpu_custom_call.1} parent=83 // pred_region
          %s8515 = sand.u32 %s336, 1
          %s8516 = scalar_lea.sflag [#allocation3], %s8515
          %s8517 = sand.u32 %s336, 1
          %s8518 = scalar_lea.vmem [#allocation2], %s8517
          %8519 = dma.done %s8516, 16
        $region88: #{tpu_custom_call.1} parent=83 // pred_fallthru
          _
      $region84: #{tpu_custom_call.1} parent=5 // pred_fallthru
        _
    $region6: #{tpu_custom_call.1} parent=1 // loop_footer
      %s27 = sadd.s32 1, %s23
    $region7: #{tpu_custom_call.1} parent=1 // loop_footer_branch
      %22 = sbr.rel target = $region3
    $region8: #{tpu_custom_call.1} parent=1 // loop_exit
      _
    %8520 = vsyncpa [#allocation3], 1
    %s8521 = scalar_lea.sflag [#allocation3], 1
    %8522 = vsyncpa %s8521, 1

</llo_original>
